<compile_context>
chip_gen: v7x
topology: tpu7x:2x2x1
jax: 0.10.0
libtpu: 0.0.40
codegen_flags: <defaults>
</compile_context>

<pallas_src>
import numpy as np
import jax
import jax.numpy as jnp
from jax.experimental import pallas as pl
from jax.experimental.pallas import tpu as pltpu

# ---- static sizes implied by the module (Linear(192,10) => 28x28 input) ----
IN_H = IN_W = 28
K = 5
C1 = 4
H1 = IN_H - K + 1              # 24  (conv1 output spatial)
P1 = H1 // 2                   # 12  (after pool1)
C2 = 12
H2 = P1 - K + 1                # 8   (conv2 output spatial)
P2 = H2 // 2                   # 4   (after pool2)
N_FEAT = C2 * P2 * P2          # 192
N_CLS = 10
OUT_PAD = 128                  # lane-dense padded output width
F1 = C1 * H1 * H1              # 2304 (conv1 features, channel-major)
F2 = C2 * H2 * H2              # 768  (conv2 features, channel-major)


def _round_up(x, m):
    return (x + m - 1) // m * m


# ---------------- one-time host-side (numpy) weight fusion ----------------
def _conv_select(in_h, out_h, k):
    """S[p_in, k_idx, p_out] = 1 iff p_in == (oi+di)*in_h + (oj+dj)."""
    S = np.zeros((in_h * in_h, k * k, out_h * out_h), np.float32)
    for di in range(k):
        for dj in range(k):
            kk = di * k + dj
            for oi in range(out_h):
                for oj in range(out_h):
                    S[(oi + di) * in_h + (oj + dj), kk, oi * out_h + oj] = 1.0
    return S


def _pool_mat(in_h):
    out_h = in_h // 2
    P = np.zeros((in_h * in_h, out_h * out_h), np.float32)
    for ri in range(out_h):
        for rj in range(out_h):
            for u in range(2):
                for v in range(2):
                    P[(2 * ri + u) * in_h + (2 * rj + v), ri * out_h + rj] = 0.25
    return P


def prepare_m2_params(W1, b1, W2, b2, Wfc, bfc):
    """Fuse conv/pool/FC into 3 dense bf16 matrices + f32 bias rows (runs once,
    on host, outside any jit)."""
    W1 = np.asarray(W1, np.float32); b1 = np.asarray(b1, np.float32)
    W2 = np.asarray(W2, np.float32); b2 = np.asarray(b2, np.float32)
    Wfc = np.asarray(Wfc, np.float32); bfc = np.asarray(bfc, np.float32)

    S1 = _conv_select(IN_H, H1, K)                                   # (784, 25, 576)
    S2 = _conv_select(P1, H2, K)                                     # (144, 25, 64)
    P1big = np.kron(np.eye(C1, dtype=np.float32), _pool_mat(H1))     # (2304, 576)
    P2big = np.kron(np.eye(C2, dtype=np.float32), _pool_mat(H2))     # (768, 192)

    # Conv1 fused (im2col selection @ weights), channel-major features c*576+q.
    c1big = np.einsum('pkq,ck->pcq', S1,
                      W1.reshape(C1, K * K)).reshape(IN_H * IN_W, F1)  # (784, 2304)
    b1big = np.repeat(b1, H1 * H1).reshape(1, F1)                      # (1, 2304)

    # Conv2 fused, then AvgPool1 folded in (linear compose): (2304, 768).
    w2r = np.transpose(W2, (1, 0, 2, 3)).reshape(C1, C2, K * K)        # [ci, co, k]
    c2big = np.einsum('pkq,cdk->cpdq', S2, w2r).reshape(C1 * P1 * P1, F2)  # (576, 768)
    w2fold = P1big @ c2big                                             # (2304, 768)
    b2big = np.repeat(b2, H2 * H2).reshape(1, F2)                      # (1, 768)

    # FC padded to 128 lanes, with AvgPool2 folded in: (768, 128).
    wfc_pad = np.zeros((N_FEAT, OUT_PAD), np.float32)
    wfc_pad[:, :N_CLS] = Wfc.T
    w3fold = P2big @ wfc_pad                                           # (768, 128)
    b3pad = np.zeros((1, OUT_PAD), np.float32)
    b3pad[0, :N_CLS] = bfc

    return (jnp.asarray(c1big, jnp.bfloat16), jnp.asarray(b1big, jnp.float32),
            jnp.asarray(w2fold, jnp.bfloat16), jnp.asarray(b2big, jnp.float32),
            jnp.asarray(w3fold, jnp.bfloat16), jnp.asarray(b3pad, jnp.float32))


# ---------------- Pallas kernel: 3 matmuls + 2 squares ----------------
def m2_kernel(x_ref, w1_ref, b1_ref, w2_ref, b2_ref, w3_ref, b3_ref, o_ref):
    x = x_ref[...]                                                     # (BB, 784) bf16
    # Conv1 (fused im2col + weights) + bias, square in f32 on the VPU.
    a1 = jnp.dot(x, w1_ref[...], preferred_element_type=jnp.float32) + b1_ref[...]
    a1 = a1 * a1                                                       # (BB, 2304) f32
    # [AvgPool1 folded into] Conv2 + bias, square.
    a2 = jnp.dot(a1.astype(jnp.bfloat16), w2_ref[...],
                 preferred_element_type=jnp.float32) + b2_ref[...]
    a2 = a2 * a2                                                       # (BB, 768) f32
    # [AvgPool2 + Flatten folded into] FC, lane-dense padded output.
    o_ref[...] = jnp.dot(a2.astype(jnp.bfloat16), w3_ref[...],
                         preferred_element_type=jnp.float32) + b3_ref[...]  # (BB, 128)


def _pick_bb(Bp):
    """Batch block per grid step: 256 on 256-wide-MXU chips (v6e/v7x) when the
    grid still has >=2 steps (keeps both v7x TCs busy), else 128."""
    bb_max = 128
    try:
        kind = jax.devices()[0].device_kind.lower()
        if ("v6" in kind) or ("v7" in kind) or ("7x" in kind):
            bb_max = 256
    except Exception:
        pass
    if bb_max == 256 and Bp < 512:
        bb_max = 128
    return min(Bp, bb_max)


# ---------------- forward wrapper (prep already hoisted out) ----------------
@jax.jit
def m2_forward(x, w1, b1, w2, b2, w3, b3):
    B = x.shape[0]
    x2d = x.reshape(B, IN_H * IN_W)

    Bp = _round_up(B, 8)
    BB = _pick_bb(Bp)
    Bp = _round_up(Bp, BB)
    if Bp != B:
        x2d = jnp.pad(x2d, ((0, Bp - B), (0, 0)))
    x_bf = x2d.astype(jnp.bfloat16)

    def const_spec(arr):
        return pl.BlockSpec(arr.shape, lambda b: (0, 0))

    grid_spec = pltpu.PrefetchScalarGridSpec(
        num_scalar_prefetch=0,
        grid=(Bp // BB,),
        in_specs=[
            pl.BlockSpec((BB, IN_H * IN_W), lambda b: (b, 0)),
            const_spec(w1), const_spec(b1),
            const_spec(w2), const_spec(b2),
            const_spec(w3), const_spec(b3),
        ],
        out_specs=pl.BlockSpec((BB, OUT_PAD), lambda b: (b, 0)),
    )
    out = pl.pallas_call(
        m2_kernel,
        out_shape=jax.ShapeDtypeStruct((Bp, OUT_PAD), jnp.float32),
        grid_spec=grid_spec,
        compiler_params=pltpu.CompilerParams(
            dimension_semantics=("parallel",),
            vmem_limit_bytes=40 * 1024 * 1024),
    )(x_bf, w1, b1, w2, b2, w3, b3)
    return out[:B, :N_CLS]


# ---------------- pure-JAX reference (same semantics as the PyTorch module) ----------------
def m2_reference(x, W1, b1, W2, b2, Wfc, bfc):
    y = jax.lax.conv_general_dilated(x, W1, (1, 1), "VALID",
                                     dimension_numbers=("NCHW", "OIHW", "NCHW"))
    y = y + b1[None, :, None, None]
    y = y * y
    B, C, H, W = y.shape
    y = y.reshape(B, C, H // 2, 2, W // 2, 2).mean(axis=(3, 5))
    y = jax.lax.conv_general_dilated(y, W2, (1, 1), "VALID",
                                     dimension_numbers=("NCHW", "OIHW", "NCHW"))
    y = y + b2[None, :, None, None]
    y = y * y
    B, C, H, W = y.shape
    y = y.reshape(B, C, H // 2, 2, W // 2, 2).mean(axis=(3, 5))
    y = y.reshape(B, -1)
    return y @ Wfc.T + bfc


if __name__ == "__main__":
    key = jax.random.PRNGKey(0)
    ks = jax.random.split(key, 7)
    B = 2
    x = jax.random.normal(ks[0], (B, 1, IN_H, IN_W), jnp.float32)
    W1 = jax.random.normal(ks[1], (C1, 1, K, K), jnp.float32) * 0.1
    b1 = jax.random.normal(ks[2], (C1,), jnp.float32) * 0.1
    W2 = jax.random.normal(ks[3], (C2, C1, K, K), jnp.float32) * 0.1
    b2 = jax.random.normal(ks[4], (C2,), jnp.float32) * 0.1
    Wfc = jax.random.normal(ks[5], (N_CLS, N_FEAT), jnp.float32) * 0.1
    bfc = jax.random.normal(ks[6], (N_CLS,), jnp.float32) * 0.1

    # One-time host-side weight fusion (outside the per-call path).
    params = prepare_m2_params(W1, b1, W2, b2, Wfc, bfc)

    out = m2_forward(x, *params)
    out = jax.block_until_ready(out)

    ref = m2_reference(x, W1, b1, W2, b2, Wfc, bfc)
    err = float(jnp.max(jnp.abs(out - ref)) / (jnp.max(jnp.abs(ref)) + 1e-6))
    assert err < 5e-2, f"mismatch vs reference: rel err {err}"
    print("KERNEL_OK")
</pallas_src>

<mosaic_0001>
module attributes {stable_mosaic.version = 11 : i64} {
  func.func @m2_kernel(%arg0: i32, %arg1: memref<8x784xbf16, #tpu.memory_space<vmem>>, %arg2: memref<784x2304xbf16, #tpu.memory_space<vmem>>, %arg3: memref<1x2304xf32, #tpu.memory_space<vmem>>, %arg4: memref<2304x768xbf16, #tpu.memory_space<vmem>>, %arg5: memref<1x768xf32, #tpu.memory_space<vmem>>, %arg6: memref<768x128xbf16, #tpu.memory_space<vmem>>, %arg7: memref<1x128xf32, #tpu.memory_space<vmem>>, %arg8: memref<8x128xf32, #tpu.memory_space<vmem>>) attributes {dimension_semantics = [#tpu.dimension_semantics<parallel>], iteration_bounds = array<i64: 1>, scalar_prefetch = 0 : i64, scratch_operands = 0 : i64, tpu.core_type = #tpu.core_type<tc>, window_params = [{transform_indices = @transform_0, window_bounds = array<i64: 8, 784>}, {pipeline_mode = #tpu.pipeline_mode<synchronous>, transform_indices = @transform_1, window_bounds = array<i64: 784, 2304>}, {pipeline_mode = #tpu.pipeline_mode<synchronous>, transform_indices = @transform_2, window_bounds = array<i64: 1, 2304>}, {pipeline_mode = #tpu.pipeline_mode<synchronous>, transform_indices = @transform_3, window_bounds = array<i64: 2304, 768>}, {pipeline_mode = #tpu.pipeline_mode<synchronous>, transform_indices = @transform_4, window_bounds = array<i64: 1, 768>}, {pipeline_mode = #tpu.pipeline_mode<synchronous>, transform_indices = @transform_5, window_bounds = array<i64: 768, 128>}, {pipeline_mode = #tpu.pipeline_mode<synchronous>, transform_indices = @transform_6, window_bounds = array<i64: 1, 128>}, {transform_indices = @transform_7, window_bounds = array<i64: 8, 128>}]} {
    %c0 = arith.constant 0 : index
    %c0_0 = arith.constant 0 : index
    %0 = vector.load %arg1[%c0, %c0_0] : memref<8x784xbf16, #tpu.memory_space<vmem>>, vector<8x784xbf16>
    %c0_1 = arith.constant 0 : index
    %c0_2 = arith.constant 0 : index
    %1 = vector.load %arg2[%c0_1, %c0_2] : memref<784x2304xbf16, #tpu.memory_space<vmem>>, vector<784x2304xbf16>
    %cst = arith.constant dense<0.000000e+00> : vector<8x2304xf32>
    %2 = tpu.matmul %0, %1, %cst {dimension_numbers = #tpu.dot_dimension_numbers<[1], [0], [0], [1], [0, 0, 1, 1], [], []>} : vector<8x784xbf16>, vector<784x2304xbf16>, vector<8x2304xf32> -> vector<8x2304xf32>
    %c0_3 = arith.constant 0 : index
    %c0_4 = arith.constant 0 : index
    %3 = vector.load %arg3[%c0_3, %c0_4] : memref<1x2304xf32, #tpu.memory_space<vmem>>, vector<1x2304xf32>
    %4 = vector.broadcast %3 : vector<1x2304xf32> to vector<8x2304xf32>
    %5 = arith.addf %2, %4 : vector<8x2304xf32>
    %6 = arith.mulf %5, %5 : vector<8x2304xf32>
    %7 = arith.truncf %6 : vector<8x2304xf32> to vector<8x2304xbf16>
    %c0_5 = arith.constant 0 : index
    %c0_6 = arith.constant 0 : index
    %8 = vector.load %arg4[%c0_5, %c0_6] : memref<2304x768xbf16, #tpu.memory_space<vmem>>, vector<2304x768xbf16>
    %cst_7 = arith.constant dense<0.000000e+00> : vector<8x768xf32>
    %9 = tpu.matmul %7, %8, %cst_7 {dimension_numbers = #tpu.dot_dimension_numbers<[1], [0], [0], [1], [0, 0, 1, 1], [], []>} : vector<8x2304xbf16>, vector<2304x768xbf16>, vector<8x768xf32> -> vector<8x768xf32>
    %c0_8 = arith.constant 0 : index
    %c0_9 = arith.constant 0 : index
    %10 = vector.load %arg5[%c0_8, %c0_9] : memref<1x768xf32, #tpu.memory_space<vmem>>, vector<1x768xf32>
    %11 = vector.broadcast %10 : vector<1x768xf32> to vector<8x768xf32>
    %12 = arith.addf %9, %11 : vector<8x768xf32>
    %13 = arith.mulf %12, %12 : vector<8x768xf32>
    %14 = arith.truncf %13 : vector<8x768xf32> to vector<8x768xbf16>
    %c0_10 = arith.constant 0 : index
    %c0_11 = arith.constant 0 : index
    %15 = vector.load %arg6[%c0_10, %c0_11] : memref<768x128xbf16, #tpu.memory_space<vmem>>, vector<768x128xbf16>
    %cst_12 = arith.constant dense<0.000000e+00> : vector<8x128xf32>
    %16 = tpu.matmul %14, %15, %cst_12 {dimension_numbers = #tpu.dot_dimension_numbers<[1], [0], [0], [1], [0, 0, 1, 1], [], []>} : vector<8x768xbf16>, vector<768x128xbf16>, vector<8x128xf32> -> vector<8x128xf32>
    %c0_13 = arith.constant 0 : index
    %c0_14 = arith.constant 0 : index
    %17 = vector.load %arg7[%c0_13, %c0_14] : memref<1x128xf32, #tpu.memory_space<vmem>>, vector<1x128xf32>
    %18 = vector.broadcast %17 : vector<1x128xf32> to vector<8x128xf32>
    %19 = arith.addf %16, %18 : vector<8x128xf32>
    %c0_15 = arith.constant 0 : index
    %c0_16 = arith.constant 0 : index
    %20 = vector.load %arg8[%c0_15, %c0_16] : memref<8x128xf32, #tpu.memory_space<vmem>>, vector<8x128xf32>
    tpu.vector_store %arg8[%c0_15, %c0_16], %19 {strides = array<i32>} : memref<8x128xf32, #tpu.memory_space<vmem>>, vector<8x128xf32>,
    return
  }
  func.func @transform_0(%arg0: i32) -> (i32, i32) {
    %c0_i32 = arith.constant 0 : i32
    %c0_i32_0 = arith.constant 0 : i32
    return %arg0, %c0_i32 : i32, i32
  }
  func.func @transform_1(%arg0: i32) -> (i32, i32) {
    %c0_i32 = arith.constant 0 : i32
    %c0_i32_0 = arith.constant 0 : i32
    %c0_i32_1 = arith.constant 0 : i32
    return %c0_i32, %c0_i32_0 : i32, i32
  }
  func.func @transform_2(%arg0: i32) -> (i32, i32) {
    %c0_i32 = arith.constant 0 : i32
    %c0_i32_0 = arith.constant 0 : i32
    %c0_i32_1 = arith.constant 0 : i32
    return %c0_i32, %c0_i32_0 : i32, i32
  }
  func.func @transform_3(%arg0: i32) -> (i32, i32) {
    %c0_i32 = arith.constant 0 : i32
    %c0_i32_0 = arith.constant 0 : i32
    %c0_i32_1 = arith.constant 0 : i32
    return %c0_i32, %c0_i32_0 : i32, i32
  }
  func.func @transform_4(%arg0: i32) -> (i32, i32) {
    %c0_i32 = arith.constant 0 : i32
    %c0_i32_0 = arith.constant 0 : i32
    %c0_i32_1 = arith.constant 0 : i32
    return %c0_i32, %c0_i32_0 : i32, i32
  }
  func.func @transform_5(%arg0: i32) -> (i32, i32) {
    %c0_i32 = arith.constant 0 : i32
    %c0_i32_0 = arith.constant 0 : i32
    %c0_i32_1 = arith.constant 0 : i32
    return %c0_i32, %c0_i32_0 : i32, i32
  }
  func.func @transform_6(%arg0: i32) -> (i32, i32) {
    %c0_i32 = arith.constant 0 : i32
    %c0_i32_0 = arith.constant 0 : i32
    %c0_i32_1 = arith.constant 0 : i32
    return %c0_i32, %c0_i32_0 : i32, i32
  }
  func.func @transform_7(%arg0: i32) -> (i32, i32) {
    %c0_i32 = arith.constant 0 : i32
    %c0_i32_0 = arith.constant 0 : i32
    return %arg0, %c0_i32 : i32, i32
  }
}

</mosaic_0001>

<llo_original>
// kernel: m2_forward.1
$region0: #{m2_forward.1}
  #allocation0 [shape = 'u32[]', space=smem, size = 0x4, offset = 0x4, fixed_abs, tag = 'smem constant byte address 0x4 - core index']
  #allocation1 [shape = 'u32[144,128]{1,0:T(1,128)}', space=vmem, size = 0x12000, scoped, tag = 'internal scratch']
  %s0 = inlined_call_operand.vmem [shape: bf16[8,784], index: 0, kind: input, shape index: {}]
  %s1 = inlined_call_operand.hbm [shape: bf16[784,2304], index: 1, kind: input, shape index: {}]
  %s2 = inlined_call_operand.hbm [shape: f32[1,2304], index: 2, kind: input, shape index: {}]
  %s3 = inlined_call_operand.hbm [shape: bf16[2304,768], index: 3, kind: input, shape index: {}]
  %s4 = inlined_call_operand.hbm [shape: f32[1,768], index: 4, kind: input, shape index: {}]
  %s5 = inlined_call_operand.hbm [shape: bf16[768,128], index: 5, kind: input, shape index: {}]
  %s6 = inlined_call_operand.hbm [shape: f32[1,128], index: 6, kind: input, shape index: {}]
  %s7 = inlined_call_operand.vmem [shape: f32[8,128], index: 7, kind: output, shape index: {}]
  %s8 = sld [smem:[#allocation0]]
  $region62: #{m2_forward.1} parent=0
    _
  %s10 = ssub.s32 1, %s8
  %s11 = scalar_select 0, %s10, %s8
  $region1: #{m2_forward.1} parent=0
    #allocation2 [shape = 'u8[3612672]{0}', space=vmem, size = 0x372000, scoped, tag = 'input window, operand 1, single buffered']
    #allocation3 [shape = 's32[1]{0}', space=sflag, size = 0x4, scoped, tag = 'scoped memory for m2_forward.1']
    #allocation4 [shape = 'u8[9216]{0}', space=vmem, size = 0x2400, scoped, tag = 'input window, operand 2, single buffered']
    #allocation5 [shape = 's32[1]{0}', space=sflag, size = 0x4, scoped, tag = 'scoped memory for m2_forward.1']
    #allocation6 [shape = 'u8[3538944]{0}', space=vmem, size = 0x360000, scoped, tag = 'input window, operand 3, single buffered']
    #allocation7 [shape = 'u8[3072]{0}', space=vmem, size = 0xc00, scoped, tag = 'input window, operand 4, single buffered']
    #allocation8 [shape = 's32[1]{0}', space=sflag, size = 0x4, scoped, tag = 'scoped memory for m2_forward.1']
    #allocation9 [shape = 'u8[196608]{0}', space=vmem, size = 0x30000, scoped, tag = 'input window, operand 5, single buffered']
    #allocation10 [shape = 'u8[512]{0}', space=vmem, size = 0x400, scoped, tag = 'input window, operand 6, single buffered']
    #allocation11 [shape = 's32[1]{0}', space=sflag, size = 0x4, scoped, tag = 'scoped memory for m2_forward.1']
    %12 = vsyncpa [#allocation3], 0
    %13 = vsyncpa [#allocation5], 0
    %14 = vsyncpa [#allocation8], 0
    %15 = vsyncpa [#allocation11], 0
    // Predicated region
    $region2: #{m2_forward.1} parent=1 // pred_check
      _
    $region3: #{m2_forward.1} parent=1 // pred_check_branch
      %17 = sbr.rel (0) target = $region5
    $region4: #{m2_forward.1} parent=1 // pred_region
      _
    $region5: #{m2_forward.1} parent=1 // pred_fallthru
      _
    // Predicated region
    $region6: #{m2_forward.1} parent=1 // pred_check
      _
    $region7: #{m2_forward.1} parent=1 // pred_check_branch
      %19 = sbr.rel (0) target = $region9
    $region8: #{m2_forward.1} parent=1 // pred_region
      %s21 = ssub.s32 112896, 112896
      %22 = vsyncadd [#allocation3], %s21
      %s23 = sshll.u32 [#allocation2], 4
      %s24 = int_to_ptr.vmem [resolvable:$true] %s23
      %29 = dma.hbm_to_vmem [thread:$0]  %s1, 112896, %s24, [#allocation3], 1152, 1152, 72
    $region9: #{m2_forward.1} parent=1 // pred_fallthru
      _
    // Predicated region
    $region10: #{m2_forward.1} parent=1 // pred_check
      _
    $region11: #{m2_forward.1} parent=1 // pred_check_branch
      %31 = sbr.rel (0) target = $region13
    $region12: #{m2_forward.1} parent=1 // pred_region
      %s33 = ssub.s32 288, 288
      %34 = vsyncadd [#allocation5], %s33
      %s36 = sshll.u32 [#allocation4], 4
      %s37 = int_to_ptr.vmem [resolvable:$true] %s36
      %39 = dma.hbm_to_vmem [thread:$0]  %s2, 288, %s37, [#allocation5]
    $region13: #{m2_forward.1} parent=1 // pred_fallthru
      _
    // Predicated region
    $region14: #{m2_forward.1} parent=1 // pred_check
      _
    $region15: #{m2_forward.1} parent=1 // pred_check_branch
      %41 = sbr.rel (0) target = $region17
    $region16: #{m2_forward.1} parent=1 // pred_region
      %s43 = ssub.s32 110592, 110592
      %44 = vsyncadd [#allocation5], %s43
      %s45 = sshll.u32 [#allocation6], 4
      %s46 = int_to_ptr.vmem [resolvable:$true] %s45
      %51 = dma.hbm_to_vmem [thread:$0]  %s3, 110592, %s46, [#allocation5], 384, 384, 24
    $region17: #{m2_forward.1} parent=1 // pred_fallthru
      _
    // Predicated region
    $region18: #{m2_forward.1} parent=1 // pred_check
      _
    $region19: #{m2_forward.1} parent=1 // pred_check_branch
      %53 = sbr.rel (0) target = $region21
    $region20: #{m2_forward.1} parent=1 // pred_region
      %s55 = ssub.s32 96, 96
      %56 = vsyncadd [#allocation8], %s55
      %s58 = sshll.u32 [#allocation7], 4
      %s59 = int_to_ptr.vmem [resolvable:$true] %s58
      %61 = dma.hbm_to_vmem [thread:$0]  %s4, 96, %s59, [#allocation8]
    $region21: #{m2_forward.1} parent=1 // pred_fallthru
      _
    // Predicated region
    $region22: #{m2_forward.1} parent=1 // pred_check
      _
    $region23: #{m2_forward.1} parent=1 // pred_check_branch
      %63 = sbr.rel (0) target = $region25
    $region24: #{m2_forward.1} parent=1 // pred_region
      %s65 = ssub.s32 6144, 6144
      %66 = vsyncadd [#allocation8], %s65
      %s67 = sshll.u32 [#allocation9], 4
      %s68 = int_to_ptr.vmem [resolvable:$true] %s67
      %73 = dma.hbm_to_vmem [thread:$0]  %s5, 6144, %s68, [#allocation8], 64, 64, 4
    $region25: #{m2_forward.1} parent=1 // pred_fallthru
      _
    // Predicated region
    $region26: #{m2_forward.1} parent=1 // pred_check
      _
    $region27: #{m2_forward.1} parent=1 // pred_check_branch
      %75 = sbr.rel (0) target = $region29
    $region28: #{m2_forward.1} parent=1 // pred_region
      %s77 = ssub.s32 16, 16
      %78 = vsyncadd [#allocation11], %s77
      %s80 = sshll.u32 [#allocation10], 4
      %s81 = int_to_ptr.vmem [resolvable:$true] %s80
      %83 = dma.hbm_to_vmem [thread:$0]  %s6, 16, %s81, [#allocation11]
    $region29: #{m2_forward.1} parent=1 // pred_fallthru
      _
    // Predicated region
    $region30: #{m2_forward.1} parent=1 // pred_check
      _
    $region31: #{m2_forward.1} parent=1 // pred_check_branch
      %85 = sbr.rel (0) target = $region33
    $region32: #{m2_forward.1} parent=1 // pred_region
      %86 = dma.done [#allocation3], 112896
    $region33: #{m2_forward.1} parent=1 // pred_fallthru
      _
    // Predicated region
    $region34: #{m2_forward.1} parent=1 // pred_check
      _
    $region35: #{m2_forward.1} parent=1 // pred_check_branch
      %88 = sbr.rel (0) target = $region37
    $region36: #{m2_forward.1} parent=1 // pred_region
      %89 = dma.done [#allocation5], 288
    $region37: #{m2_forward.1} parent=1 // pred_fallthru
      _
    // Predicated region
    $region38: #{m2_forward.1} parent=1 // pred_check
      _
    $region39: #{m2_forward.1} parent=1 // pred_check_branch
      %91 = sbr.rel (0) target = $region41
    $region40: #{m2_forward.1} parent=1 // pred_region
      %92 = dma.done [#allocation5], 110592
    $region41: #{m2_forward.1} parent=1 // pred_fallthru
      _
    // Predicated region
    $region42: #{m2_forward.1} parent=1 // pred_check
      _
    $region43: #{m2_forward.1} parent=1 // pred_check_branch
      %94 = sbr.rel (0) target = $region45
    $region44: #{m2_forward.1} parent=1 // pred_region
      %95 = dma.done [#allocation8], 96
    $region45: #{m2_forward.1} parent=1 // pred_fallthru
      _
    // Predicated region
    $region46: #{m2_forward.1} parent=1 // pred_check
      _
    $region47: #{m2_forward.1} parent=1 // pred_check_branch
      %97 = sbr.rel (0) target = $region49
    $region48: #{m2_forward.1} parent=1 // pred_region
      %98 = dma.done [#allocation8], 6144
    $region49: #{m2_forward.1} parent=1 // pred_fallthru
      _
    // Predicated region
    $region50: #{m2_forward.1} parent=1 // pred_check
      _
    $region51: #{m2_forward.1} parent=1 // pred_check_branch
      %100 = sbr.rel (0) target = $region53
    $region52: #{m2_forward.1} parent=1 // pred_region
      %101 = dma.done [#allocation11], 16
    $region53: #{m2_forward.1} parent=1 // pred_fallthru
      _
    %v103 = vld [vmem:[%s0] sm:$0xff]
    %v104 = vld [vmem:[%s0 + $0x8] sm:$0xff]
    %v105 = vld [vmem:[%s0 + $0x10] sm:$0xff]
    %v106 = vld [vmem:[%s0 + $0x18] sm:$0xf]
    %v107 = vld [vmem:[#allocation2] sm:$0xff]
    %v108 = vld [vmem:[#allocation2 + $0x8] sm:$0xff]
    %v109 = vld [vmem:[#allocation2 + $0x10] sm:$0xff]
    %v110 = vld [vmem:[#allocation2 + $0x18] sm:$0xff]
    %v111 = vld [vmem:[#allocation2 + $0x20] sm:$0xff]
    %v112 = vld [vmem:[#allocation2 + $0x28] sm:$0xff]
    %v113 = vld [vmem:[#allocation2 + $0x30] sm:$0xff]
    %v114 = vld [vmem:[#allocation2 + $0x38] sm:$0xff]
    %v115 = vld [vmem:[#allocation2 + $0x40] sm:$0xff]
    %v116 = vld [vmem:[#allocation2 + $0x48] sm:$0xff]
    %v117 = vld [vmem:[#allocation2 + $0x50] sm:$0xff]
    %v118 = vld [vmem:[#allocation2 + $0x58] sm:$0xff]
    %v119 = vld [vmem:[#allocation2 + $0x60] sm:$0xff]
    %v120 = vld [vmem:[#allocation2 + $0x68] sm:$0xff]
    %v121 = vld [vmem:[#allocation2 + $0x70] sm:$0xff]
    %v122 = vld [vmem:[#allocation2 + $0x78] sm:$0xff]
    %v123 = vld [vmem:[#allocation2 + $0x80] sm:$0xff]
    %v124 = vld [vmem:[#allocation2 + $0x88] sm:$0xff]
    %v125 = vld [vmem:[#allocation2 + $0x90] sm:$0xff]
    %v126 = vld [vmem:[#allocation2 + $0x98] sm:$0xff]
    %v127 = vld [vmem:[#allocation2 + $0xa0] sm:$0xff]
    %v128 = vld [vmem:[#allocation2 + $0xa8] sm:$0xff]
    %v129 = vld [vmem:[#allocation2 + $0xb0] sm:$0xff]
    %v130 = vld [vmem:[#allocation2 + $0xb8] sm:$0xff]
    %v131 = vld [vmem:[#allocation2 + $0xc0] sm:$0xff]
    %v132 = vld [vmem:[#allocation2 + $0xc8] sm:$0xff]
    %v133 = vld [vmem:[#allocation2 + $0xd0] sm:$0xff]
    %v134 = vld [vmem:[#allocation2 + $0xd8] sm:$0xff]
    %v135 = vld [vmem:[#allocation2 + $0xe0] sm:$0xff]
    %v136 = vld [vmem:[#allocation2 + $0xe8] sm:$0xff]
    %v137 = vld [vmem:[#allocation2 + $0xf0] sm:$0xff]
    %v138 = vld [vmem:[#allocation2 + $0xf8] sm:$0xff]
    %v139 = vld [vmem:[#allocation2 + $0x100] sm:$0xff]
    %v140 = vld [vmem:[#allocation2 + $0x108] sm:$0xff]
    %v141 = vld [vmem:[#allocation2 + $0x110] sm:$0xff]
    %v142 = vld [vmem:[#allocation2 + $0x118] sm:$0xff]
    %v143 = vld [vmem:[#allocation2 + $0x120] sm:$0xff]
    %v144 = vld [vmem:[#allocation2 + $0x128] sm:$0xff]
    %v145 = vld [vmem:[#allocation2 + $0x130] sm:$0xff]
    %v146 = vld [vmem:[#allocation2 + $0x138] sm:$0xff]
    %v147 = vld [vmem:[#allocation2 + $0x140] sm:$0xff]
    %v148 = vld [vmem:[#allocation2 + $0x148] sm:$0xff]
    %v149 = vld [vmem:[#allocation2 + $0x150] sm:$0xff]
    %v150 = vld [vmem:[#allocation2 + $0x158] sm:$0xff]
    %v151 = vld [vmem:[#allocation2 + $0x160] sm:$0xff]
    %v152 = vld [vmem:[#allocation2 + $0x168] sm:$0xff]
    %v153 = vld [vmem:[#allocation2 + $0x170] sm:$0xff]
    %v154 = vld [vmem:[#allocation2 + $0x178] sm:$0xff]
    %v155 = vld [vmem:[#allocation2 + $0x180] sm:$0xff]
    %v156 = vld [vmem:[#allocation2 + $0x188] sm:$0xff]
    %v157 = vld [vmem:[#allocation2 + $0x190] sm:$0xff]
    %v158 = vld [vmem:[#allocation2 + $0x198] sm:$0xff]
    %v159 = vld [vmem:[#allocation2 + $0x1a0] sm:$0xff]
    %v160 = vld [vmem:[#allocation2 + $0x1a8] sm:$0xff]
    %v161 = vld [vmem:[#allocation2 + $0x1b0] sm:$0xff]
    %v162 = vld [vmem:[#allocation2 + $0x1b8] sm:$0xff]
    %v163 = vld [vmem:[#allocation2 + $0x1c0] sm:$0xff]
    %v164 = vld [vmem:[#allocation2 + $0x1c8] sm:$0xff]
    %v165 = vld [vmem:[#allocation2 + $0x1d0] sm:$0xff]
    %v166 = vld [vmem:[#allocation2 + $0x1d8] sm:$0xff]
    %v167 = vld [vmem:[#allocation2 + $0x1e0] sm:$0xff]
    %v168 = vld [vmem:[#allocation2 + $0x1e8] sm:$0xff]
    %v169 = vld [vmem:[#allocation2 + $0x1f0] sm:$0xff]
    %v170 = vld [vmem:[#allocation2 + $0x1f8] sm:$0xff]
    %v171 = vld [vmem:[#allocation2 + $0x200] sm:$0xff]
    %v172 = vld [vmem:[#allocation2 + $0x208] sm:$0xff]
    %v173 = vld [vmem:[#allocation2 + $0x210] sm:$0xff]
    %v174 = vld [vmem:[#allocation2 + $0x218] sm:$0xff]
    %v175 = vld [vmem:[#allocation2 + $0x220] sm:$0xff]
    %v176 = vld [vmem:[#allocation2 + $0x228] sm:$0xff]
    %v177 = vld [vmem:[#allocation2 + $0x230] sm:$0xff]
    %v178 = vld [vmem:[#allocation2 + $0x238] sm:$0xff]
    %v179 = vld [vmem:[#allocation2 + $0x240] sm:$0xff]
    %v180 = vld [vmem:[#allocation2 + $0x248] sm:$0xff]
    %v181 = vld [vmem:[#allocation2 + $0x250] sm:$0xff]
    %v182 = vld [vmem:[#allocation2 + $0x258] sm:$0xff]
    %v183 = vld [vmem:[#allocation2 + $0x260] sm:$0xff]
    %v184 = vld [vmem:[#allocation2 + $0x268] sm:$0xff]
    %v185 = vld [vmem:[#allocation2 + $0x270] sm:$0xff]
    %v186 = vld [vmem:[#allocation2 + $0x278] sm:$0xff]
    %v187 = vld [vmem:[#allocation2 + $0x280] sm:$0xff]
    %v188 = vld [vmem:[#allocation2 + $0x288] sm:$0xff]
    %v189 = vld [vmem:[#allocation2 + $0x290] sm:$0xff]
    %v190 = vld [vmem:[#allocation2 + $0x298] sm:$0xff]
    %v191 = vld [vmem:[#allocation2 + $0x2a0] sm:$0xff]
    %v192 = vld [vmem:[#allocation2 + $0x2a8] sm:$0xff]
    %v193 = vld [vmem:[#allocation2 + $0x2b0] sm:$0xff]
    %v194 = vld [vmem:[#allocation2 + $0x2b8] sm:$0xff]
    %v195 = vld [vmem:[#allocation2 + $0x2c0] sm:$0xff]
    %v196 = vld [vmem:[#allocation2 + $0x2c8] sm:$0xff]
    %v197 = vld [vmem:[#allocation2 + $0x2d0] sm:$0xff]
    %v198 = vld [vmem:[#allocation2 + $0x2d8] sm:$0xff]
    %v199 = vld [vmem:[#allocation2 + $0x2e0] sm:$0xff]
    %v200 = vld [vmem:[#allocation2 + $0x2e8] sm:$0xff]
    %v201 = vld [vmem:[#allocation2 + $0x2f0] sm:$0xff]
    %v202 = vld [vmem:[#allocation2 + $0x2f8] sm:$0xff]
    %v203 = vld [vmem:[#allocation2 + $0x300] sm:$0xff]
    %v204 = vld [vmem:[#allocation2 + $0x308] sm:$0xff]
    %v205 = vld [vmem:[#allocation2 + $0x310] sm:$0xff]
    %v206 = vld [vmem:[#allocation2 + $0x318] sm:$0xff]
    %v207 = vld [vmem:[#allocation2 + $0x320] sm:$0xff]
    %v208 = vld [vmem:[#allocation2 + $0x328] sm:$0xff]
    %v209 = vld [vmem:[#allocation2 + $0x330] sm:$0xff]
    %v210 = vld [vmem:[#allocation2 + $0x338] sm:$0xff]
    %v211 = vld [vmem:[#allocation2 + $0x340] sm:$0xff]
    %v212 = vld [vmem:[#allocation2 + $0x348] sm:$0xff]
    %v213 = vld [vmem:[#allocation2 + $0x350] sm:$0xff]
    %v214 = vld [vmem:[#allocation2 + $0x358] sm:$0xff]
    %v215 = vld [vmem:[#allocation2 + $0x360] sm:$0xff]
    %v216 = vld [vmem:[#allocation2 + $0x368] sm:$0xff]
    %v217 = vld [vmem:[#allocation2 + $0x370] sm:$0xff]
    %v218 = vld [vmem:[#allocation2 + $0x378] sm:$0xff]
    %v219 = vld [vmem:[#allocation2 + $0x380] sm:$0xff]
    %v220 = vld [vmem:[#allocation2 + $0x388] sm:$0xff]
    %v221 = vld [vmem:[#allocation2 + $0x390] sm:$0xff]
    %v222 = vld [vmem:[#allocation2 + $0x398] sm:$0xff]
    %v223 = vld [vmem:[#allocation2 + $0x3a0] sm:$0xff]
    %v224 = vld [vmem:[#allocation2 + $0x3a8] sm:$0xff]
    %v225 = vld [vmem:[#allocation2 + $0x3b0] sm:$0xff]
    %v226 = vld [vmem:[#allocation2 + $0x3b8] sm:$0xff]
    %v227 = vld [vmem:[#allocation2 + $0x3c0] sm:$0xff]
    %v228 = vld [vmem:[#allocation2 + $0x3c8] sm:$0xff]
    %v229 = vld [vmem:[#allocation2 + $0x3d0] sm:$0xff]
    %v230 = vld [vmem:[#allocation2 + $0x3d8] sm:$0xff]
    %v231 = vld [vmem:[#allocation2 + $0x3e0] sm:$0xff]
    %v232 = vld [vmem:[#allocation2 + $0x3e8] sm:$0xff]
    %v233 = vld [vmem:[#allocation2 + $0x3f0] sm:$0xff]
    %v234 = vld [vmem:[#allocation2 + $0x3f8] sm:$0xff]
    %v235 = vld [vmem:[#allocation2 + $0x400] sm:$0xff]
    %v236 = vld [vmem:[#allocation2 + $0x408] sm:$0xff]
    %v237 = vld [vmem:[#allocation2 + $0x410] sm:$0xff]
    %v238 = vld [vmem:[#allocation2 + $0x418] sm:$0xff]
    %v239 = vld [vmem:[#allocation2 + $0x420] sm:$0xff]
    %v240 = vld [vmem:[#allocation2 + $0x428] sm:$0xff]
    %v241 = vld [vmem:[#allocation2 + $0x430] sm:$0xff]
    %v242 = vld [vmem:[#allocation2 + $0x438] sm:$0xff]
    %v243 = vld [vmem:[#allocation2 + $0x440] sm:$0xff]
    %v244 = vld [vmem:[#allocation2 + $0x448] sm:$0xff]
    %v245 = vld [vmem:[#allocation2 + $0x450] sm:$0xff]
    %v246 = vld [vmem:[#allocation2 + $0x458] sm:$0xff]
    %v247 = vld [vmem:[#allocation2 + $0x460] sm:$0xff]
    %v248 = vld [vmem:[#allocation2 + $0x468] sm:$0xff]
    %v249 = vld [vmem:[#allocation2 + $0x470] sm:$0xff]
    %v250 = vld [vmem:[#allocation2 + $0x478] sm:$0xff]
    %v251 = vld [vmem:[#allocation2 + $0x480] sm:$0xff]
    %v252 = vld [vmem:[#allocation2 + $0x488] sm:$0xff]
    %v253 = vld [vmem:[#allocation2 + $0x490] sm:$0xff]
    %v254 = vld [vmem:[#allocation2 + $0x498] sm:$0xff]
    %v255 = vld [vmem:[#allocation2 + $0x4a0] sm:$0xff]
    %v256 = vld [vmem:[#allocation2 + $0x4a8] sm:$0xff]
    %v257 = vld [vmem:[#allocation2 + $0x4b0] sm:$0xff]
    %v258 = vld [vmem:[#allocation2 + $0x4b8] sm:$0xff]
    %v259 = vld [vmem:[#allocation2 + $0x4c0] sm:$0xff]
    %v260 = vld [vmem:[#allocation2 + $0x4c8] sm:$0xff]
    %v261 = vld [vmem:[#allocation2 + $0x4d0] sm:$0xff]
    %v262 = vld [vmem:[#allocation2 + $0x4d8] sm:$0xff]
    %v263 = vld [vmem:[#allocation2 + $0x4e0] sm:$0xff]
    %v264 = vld [vmem:[#allocation2 + $0x4e8] sm:$0xff]
    %v265 = vld [vmem:[#allocation2 + $0x4f0] sm:$0xff]
    %v266 = vld [vmem:[#allocation2 + $0x4f8] sm:$0xff]
    %v267 = vld [vmem:[#allocation2 + $0x500] sm:$0xff]
    %v268 = vld [vmem:[#allocation2 + $0x508] sm:$0xff]
    %v269 = vld [vmem:[#allocation2 + $0x510] sm:$0xff]
    %v270 = vld [vmem:[#allocation2 + $0x518] sm:$0xff]
    %v271 = vld [vmem:[#allocation2 + $0x520] sm:$0xff]
    %v272 = vld [vmem:[#allocation2 + $0x528] sm:$0xff]
    %v273 = vld [vmem:[#allocation2 + $0x530] sm:$0xff]
    %v274 = vld [vmem:[#allocation2 + $0x538] sm:$0xff]
    %v275 = vld [vmem:[#allocation2 + $0x540] sm:$0xff]
    %v276 = vld [vmem:[#allocation2 + $0x548] sm:$0xff]
    %v277 = vld [vmem:[#allocation2 + $0x550] sm:$0xff]
    %v278 = vld [vmem:[#allocation2 + $0x558] sm:$0xff]
    %v279 = vld [vmem:[#allocation2 + $0x560] sm:$0xff]
    %v280 = vld [vmem:[#allocation2 + $0x568] sm:$0xff]
    %v281 = vld [vmem:[#allocation2 + $0x570] sm:$0xff]
    %v282 = vld [vmem:[#allocation2 + $0x578] sm:$0xff]
    %v283 = vld [vmem:[#allocation2 + $0x580] sm:$0xff]
    %v284 = vld [vmem:[#allocation2 + $0x588] sm:$0xff]
    %v285 = vld [vmem:[#allocation2 + $0x590] sm:$0xff]
    %v286 = vld [vmem:[#allocation2 + $0x598] sm:$0xff]
    %v287 = vld [vmem:[#allocation2 + $0x5a0] sm:$0xff]
    %v288 = vld [vmem:[#allocation2 + $0x5a8] sm:$0xff]
    %v289 = vld [vmem:[#allocation2 + $0x5b0] sm:$0xff]
    %v290 = vld [vmem:[#allocation2 + $0x5b8] sm:$0xff]
    %v291 = vld [vmem:[#allocation2 + $0x5c0] sm:$0xff]
    %v292 = vld [vmem:[#allocation2 + $0x5c8] sm:$0xff]
    %v293 = vld [vmem:[#allocation2 + $0x5d0] sm:$0xff]
    %v294 = vld [vmem:[#allocation2 + $0x5d8] sm:$0xff]
    %v295 = vld [vmem:[#allocation2 + $0x5e0] sm:$0xff]
    %v296 = vld [vmem:[#allocation2 + $0x5e8] sm:$0xff]
    %v297 = vld [vmem:[#allocation2 + $0x5f0] sm:$0xff]
    %v298 = vld [vmem:[#allocation2 + $0x5f8] sm:$0xff]
    %v299 = vld [vmem:[#allocation2 + $0x600] sm:$0xff]
    %v300 = vld [vmem:[#allocation2 + $0x608] sm:$0xff]
    %v301 = vld [vmem:[#allocation2 + $0x610] sm:$0xff]
    %v302 = vld [vmem:[#allocation2 + $0x618] sm:$0xff]
    %v303 = vld [vmem:[#allocation2 + $0x620] sm:$0xff]
    %v304 = vld [vmem:[#allocation2 + $0x628] sm:$0xff]
    %v305 = vld [vmem:[#allocation2 + $0x630] sm:$0xff]
    %v306 = vld [vmem:[#allocation2 + $0x638] sm:$0xff]
    %v307 = vld [vmem:[#allocation2 + $0x640] sm:$0xff]
    %v308 = vld [vmem:[#allocation2 + $0x648] sm:$0xff]
    %v309 = vld [vmem:[#allocation2 + $0x650] sm:$0xff]
    %v310 = vld [vmem:[#allocation2 + $0x658] sm:$0xff]
    %v311 = vld [vmem:[#allocation2 + $0x660] sm:$0xff]
    %v312 = vld [vmem:[#allocation2 + $0x668] sm:$0xff]
    %v313 = vld [vmem:[#allocation2 + $0x670] sm:$0xff]
    %v314 = vld [vmem:[#allocation2 + $0x678] sm:$0xff]
    %v315 = vld [vmem:[#allocation2 + $0x680] sm:$0xff]
    %v316 = vld [vmem:[#allocation2 + $0x688] sm:$0xff]
    %v317 = vld [vmem:[#allocation2 + $0x690] sm:$0xff]
    %v318 = vld [vmem:[#allocation2 + $0x698] sm:$0xff]
    %v319 = vld [vmem:[#allocation2 + $0x6a0] sm:$0xff]
    %v320 = vld [vmem:[#allocation2 + $0x6a8] sm:$0xff]
    %v321 = vld [vmem:[#allocation2 + $0x6b0] sm:$0xff]
    %v322 = vld [vmem:[#allocation2 + $0x6b8] sm:$0xff]
    %v323 = vld [vmem:[#allocation2 + $0x6c0] sm:$0xff]
    %v324 = vld [vmem:[#allocation2 + $0x6c8] sm:$0xff]
    %v325 = vld [vmem:[#allocation2 + $0x6d0] sm:$0xff]
    %v326 = vld [vmem:[#allocation2 + $0x6d8] sm:$0xff]
    %v327 = vld [vmem:[#allocation2 + $0x6e0] sm:$0xff]
    %v328 = vld [vmem:[#allocation2 + $0x6e8] sm:$0xff]
    %v329 = vld [vmem:[#allocation2 + $0x6f0] sm:$0xff]
    %v330 = vld [vmem:[#allocation2 + $0x6f8] sm:$0xff]
    %v331 = vld [vmem:[#allocation2 + $0x700] sm:$0xff]
    %v332 = vld [vmem:[#allocation2 + $0x708] sm:$0xff]
    %v333 = vld [vmem:[#allocation2 + $0x710] sm:$0xff]
    %v334 = vld [vmem:[#allocation2 + $0x718] sm:$0xff]
    %v335 = vld [vmem:[#allocation2 + $0x720] sm:$0xff]
    %v336 = vld [vmem:[#allocation2 + $0x728] sm:$0xff]
    %v337 = vld [vmem:[#allocation2 + $0x730] sm:$0xff]
    %v338 = vld [vmem:[#allocation2 + $0x738] sm:$0xff]
    %v339 = vld [vmem:[#allocation2 + $0x740] sm:$0xff]
    %v340 = vld [vmem:[#allocation2 + $0x748] sm:$0xff]
    %v341 = vld [vmem:[#allocation2 + $0x750] sm:$0xff]
    %v342 = vld [vmem:[#allocation2 + $0x758] sm:$0xff]
    %v343 = vld [vmem:[#allocation2 + $0x760] sm:$0xff]
    %v344 = vld [vmem:[#allocation2 + $0x768] sm:$0xff]
    %v345 = vld [vmem:[#allocation2 + $0x770] sm:$0xff]
    %v346 = vld [vmem:[#allocation2 + $0x778] sm:$0xff]
    %v347 = vld [vmem:[#allocation2 + $0x780] sm:$0xff]
    %v348 = vld [vmem:[#allocation2 + $0x788] sm:$0xff]
    %v349 = vld [vmem:[#allocation2 + $0x790] sm:$0xff]
    %v350 = vld [vmem:[#allocation2 + $0x798] sm:$0xff]
    %v351 = vld [vmem:[#allocation2 + $0x7a0] sm:$0xff]
    %v352 = vld [vmem:[#allocation2 + $0x7a8] sm:$0xff]
    %v353 = vld [vmem:[#allocation2 + $0x7b0] sm:$0xff]
    %v354 = vld [vmem:[#allocation2 + $0x7b8] sm:$0xff]
    %v355 = vld [vmem:[#allocation2 + $0x7c0] sm:$0xff]
    %v356 = vld [vmem:[#allocation2 + $0x7c8] sm:$0xff]
    %v357 = vld [vmem:[#allocation2 + $0x7d0] sm:$0xff]
    %v358 = vld [vmem:[#allocation2 + $0x7d8] sm:$0xff]
    %v359 = vld [vmem:[#allocation2 + $0x7e0] sm:$0xff]
    %v360 = vld [vmem:[#allocation2 + $0x7e8] sm:$0xff]
    %v361 = vld [vmem:[#allocation2 + $0x7f0] sm:$0xff]
    %v362 = vld [vmem:[#allocation2 + $0x7f8] sm:$0xff]
    %v363 = vld [vmem:[#allocation2 + $0x800] sm:$0xff]
    %v364 = vld [vmem:[#allocation2 + $0x808] sm:$0xff]
    %v365 = vld [vmem:[#allocation2 + $0x810] sm:$0xff]
    %v366 = vld [vmem:[#allocation2 + $0x818] sm:$0xff]
    %v367 = vld [vmem:[#allocation2 + $0x820] sm:$0xff]
    %v368 = vld [vmem:[#allocation2 + $0x828] sm:$0xff]
    %v369 = vld [vmem:[#allocation2 + $0x830] sm:$0xff]
    %v370 = vld [vmem:[#allocation2 + $0x838] sm:$0xff]
    %v371 = vld [vmem:[#allocation2 + $0x840] sm:$0xff]
    %v372 = vld [vmem:[#allocation2 + $0x848] sm:$0xff]
    %v373 = vld [vmem:[#allocation2 + $0x850] sm:$0xff]
    %v374 = vld [vmem:[#allocation2 + $0x858] sm:$0xff]
    %v375 = vld [vmem:[#allocation2 + $0x860] sm:$0xff]
    %v376 = vld [vmem:[#allocation2 + $0x868] sm:$0xff]
    %v377 = vld [vmem:[#allocation2 + $0x870] sm:$0xff]
    %v378 = vld [vmem:[#allocation2 + $0x878] sm:$0xff]
    %v379 = vld [vmem:[#allocation2 + $0x880] sm:$0xff]
    %v380 = vld [vmem:[#allocation2 + $0x888] sm:$0xff]
    %v381 = vld [vmem:[#allocation2 + $0x890] sm:$0xff]
    %v382 = vld [vmem:[#allocation2 + $0x898] sm:$0xff]
    %v383 = vld [vmem:[#allocation2 + $0x8a0] sm:$0xff]
    %v384 = vld [vmem:[#allocation2 + $0x8a8] sm:$0xff]
    %v385 = vld [vmem:[#allocation2 + $0x8b0] sm:$0xff]
    %v386 = vld [vmem:[#allocation2 + $0x8b8] sm:$0xff]
    %v387 = vld [vmem:[#allocation2 + $0x8c0] sm:$0xff]
    %v388 = vld [vmem:[#allocation2 + $0x8c8] sm:$0xff]
    %v389 = vld [vmem:[#allocation2 + $0x8d0] sm:$0xff]
    %v390 = vld [vmem:[#allocation2 + $0x8d8] sm:$0xff]
    %v391 = vld [vmem:[#allocation2 + $0x8e0] sm:$0xff]
    %v392 = vld [vmem:[#allocation2 + $0x8e8] sm:$0xff]
    %v393 = vld [vmem:[#allocation2 + $0x8f0] sm:$0xff]
    %v394 = vld [vmem:[#allocation2 + $0x8f8] sm:$0xff]
    %v395 = vld [vmem:[#allocation2 + $0x900] sm:$0xff]
    %v396 = vld [vmem:[#allocation2 + $0x908] sm:$0xff]
    %v397 = vld [vmem:[#allocation2 + $0x910] sm:$0xff]
    %v398 = vld [vmem:[#allocation2 + $0x918] sm:$0xff]
    %v399 = vld [vmem:[#allocation2 + $0x920] sm:$0xff]
    %v400 = vld [vmem:[#allocation2 + $0x928] sm:$0xff]
    %v401 = vld [vmem:[#allocation2 + $0x930] sm:$0xff]
    %v402 = vld [vmem:[#allocation2 + $0x938] sm:$0xff]
    %v403 = vld [vmem:[#allocation2 + $0x940] sm:$0xff]
    %v404 = vld [vmem:[#allocation2 + $0x948] sm:$0xff]
    %v405 = vld [vmem:[#allocation2 + $0x950] sm:$0xff]
    %v406 = vld [vmem:[#allocation2 + $0x958] sm:$0xff]
    %v407 = vld [vmem:[#allocation2 + $0x960] sm:$0xff]
    %v408 = vld [vmem:[#allocation2 + $0x968] sm:$0xff]
    %v409 = vld [vmem:[#allocation2 + $0x970] sm:$0xff]
    %v410 = vld [vmem:[#allocation2 + $0x978] sm:$0xff]
    %v411 = vld [vmem:[#allocation2 + $0x980] sm:$0xff]
    %v412 = vld [vmem:[#allocation2 + $0x988] sm:$0xff]
    %v413 = vld [vmem:[#allocation2 + $0x990] sm:$0xff]
    %v414 = vld [vmem:[#allocation2 + $0x998] sm:$0xff]
    %v415 = vld [vmem:[#allocation2 + $0x9a0] sm:$0xff]
    %v416 = vld [vmem:[#allocation2 + $0x9a8] sm:$0xff]
    %v417 = vld [vmem:[#allocation2 + $0x9b0] sm:$0xff]
    %v418 = vld [vmem:[#allocation2 + $0x9b8] sm:$0xff]
    %v419 = vld [vmem:[#allocation2 + $0x9c0] sm:$0xff]
    %v420 = vld [vmem:[#allocation2 + $0x9c8] sm:$0xff]
    %v421 = vld [vmem:[#allocation2 + $0x9d0] sm:$0xff]
    %v422 = vld [vmem:[#allocation2 + $0x9d8] sm:$0xff]
    %v423 = vld [vmem:[#allocation2 + $0x9e0] sm:$0xff]
    %v424 = vld [vmem:[#allocation2 + $0x9e8] sm:$0xff]
    %v425 = vld [vmem:[#allocation2 + $0x9f0] sm:$0xff]
    %v426 = vld [vmem:[#allocation2 + $0x9f8] sm:$0xff]
    %v427 = vld [vmem:[#allocation2 + $0xa00] sm:$0xff]
    %v428 = vld [vmem:[#allocation2 + $0xa08] sm:$0xff]
    %v429 = vld [vmem:[#allocation2 + $0xa10] sm:$0xff]
    %v430 = vld [vmem:[#allocation2 + $0xa18] sm:$0xff]
    %v431 = vld [vmem:[#allocation2 + $0xa20] sm:$0xff]
    %v432 = vld [vmem:[#allocation2 + $0xa28] sm:$0xff]
    %v433 = vld [vmem:[#allocation2 + $0xa30] sm:$0xff]
    %v434 = vld [vmem:[#allocation2 + $0xa38] sm:$0xff]
    %v435 = vld [vmem:[#allocation2 + $0xa40] sm:$0xff]
    %v436 = vld [vmem:[#allocation2 + $0xa48] sm:$0xff]
    %v437 = vld [vmem:[#allocation2 + $0xa50] sm:$0xff]
    %v438 = vld [vmem:[#allocation2 + $0xa58] sm:$0xff]
    %v439 = vld [vmem:[#allocation2 + $0xa60] sm:$0xff]
    %v440 = vld [vmem:[#allocation2 + $0xa68] sm:$0xff]
    %v441 = vld [vmem:[#allocation2 + $0xa70] sm:$0xff]
    %v442 = vld [vmem:[#allocation2 + $0xa78] sm:$0xff]
    %v443 = vld [vmem:[#allocation2 + $0xa80] sm:$0xff]
    %v444 = vld [vmem:[#allocation2 + $0xa88] sm:$0xff]
    %v445 = vld [vmem:[#allocation2 + $0xa90] sm:$0xff]
    %v446 = vld [vmem:[#allocation2 + $0xa98] sm:$0xff]
    %v447 = vld [vmem:[#allocation2 + $0xaa0] sm:$0xff]
    %v448 = vld [vmem:[#allocation2 + $0xaa8] sm:$0xff]
    %v449 = vld [vmem:[#allocation2 + $0xab0] sm:$0xff]
    %v450 = vld [vmem:[#allocation2 + $0xab8] sm:$0xff]
    %v451 = vld [vmem:[#allocation2 + $0xac0] sm:$0xff]
    %v452 = vld [vmem:[#allocation2 + $0xac8] sm:$0xff]
    %v453 = vld [vmem:[#allocation2 + $0xad0] sm:$0xff]
    %v454 = vld [vmem:[#allocation2 + $0xad8] sm:$0xff]
    %v455 = vld [vmem:[#allocation2 + $0xae0] sm:$0xff]
    %v456 = vld [vmem:[#allocation2 + $0xae8] sm:$0xff]
    %v457 = vld [vmem:[#allocation2 + $0xaf0] sm:$0xff]
    %v458 = vld [vmem:[#allocation2 + $0xaf8] sm:$0xff]
    %v459 = vld [vmem:[#allocation2 + $0xb00] sm:$0xff]
    %v460 = vld [vmem:[#allocation2 + $0xb08] sm:$0xff]
    %v461 = vld [vmem:[#allocation2 + $0xb10] sm:$0xff]
    %v462 = vld [vmem:[#allocation2 + $0xb18] sm:$0xff]
    %v463 = vld [vmem:[#allocation2 + $0xb20] sm:$0xff]
    %v464 = vld [vmem:[#allocation2 + $0xb28] sm:$0xff]
    %v465 = vld [vmem:[#allocation2 + $0xb30] sm:$0xff]
    %v466 = vld [vmem:[#allocation2 + $0xb38] sm:$0xff]
    %v467 = vld [vmem:[#allocation2 + $0xb40] sm:$0xff]
    %v468 = vld [vmem:[#allocation2 + $0xb48] sm:$0xff]
    %v469 = vld [vmem:[#allocation2 + $0xb50] sm:$0xff]
    %v470 = vld [vmem:[#allocation2 + $0xb58] sm:$0xff]
    %v471 = vld [vmem:[#allocation2 + $0xb60] sm:$0xff]
    %v472 = vld [vmem:[#allocation2 + $0xb68] sm:$0xff]
    %v473 = vld [vmem:[#allocation2 + $0xb70] sm:$0xff]
    %v474 = vld [vmem:[#allocation2 + $0xb78] sm:$0xff]
    %v475 = vld [vmem:[#allocation2 + $0xb80] sm:$0xff]
    %v476 = vld [vmem:[#allocation2 + $0xb88] sm:$0xff]
    %v477 = vld [vmem:[#allocation2 + $0xb90] sm:$0xff]
    %v478 = vld [vmem:[#allocation2 + $0xb98] sm:$0xff]
    %v479 = vld [vmem:[#allocation2 + $0xba0] sm:$0xff]
    %v480 = vld [vmem:[#allocation2 + $0xba8] sm:$0xff]
    %v481 = vld [vmem:[#allocation2 + $0xbb0] sm:$0xff]
    %v482 = vld [vmem:[#allocation2 + $0xbb8] sm:$0xff]
    %v483 = vld [vmem:[#allocation2 + $0xbc0] sm:$0xff]
    %v484 = vld [vmem:[#allocation2 + $0xbc8] sm:$0xff]
    %v485 = vld [vmem:[#allocation2 + $0xbd0] sm:$0xff]
    %v486 = vld [vmem:[#allocation2 + $0xbd8] sm:$0xff]
    %v487 = vld [vmem:[#allocation2 + $0xbe0] sm:$0xff]
    %v488 = vld [vmem:[#allocation2 + $0xbe8] sm:$0xff]
    %v489 = vld [vmem:[#allocation2 + $0xbf0] sm:$0xff]
    %v490 = vld [vmem:[#allocation2 + $0xbf8] sm:$0xff]
    %v491 = vld [vmem:[#allocation2 + $0xc00] sm:$0xff]
    %v492 = vld [vmem:[#allocation2 + $0xc08] sm:$0xff]
    %v493 = vld [vmem:[#allocation2 + $0xc10] sm:$0xff]
    %v494 = vld [vmem:[#allocation2 + $0xc18] sm:$0xff]
    %v495 = vld [vmem:[#allocation2 + $0xc20] sm:$0xff]
    %v496 = vld [vmem:[#allocation2 + $0xc28] sm:$0xff]
    %v497 = vld [vmem:[#allocation2 + $0xc30] sm:$0xff]
    %v498 = vld [vmem:[#allocation2 + $0xc38] sm:$0xff]
    %v499 = vld [vmem:[#allocation2 + $0xc40] sm:$0xff]
    %v500 = vld [vmem:[#allocation2 + $0xc48] sm:$0xff]
    %v501 = vld [vmem:[#allocation2 + $0xc50] sm:$0xff]
    %v502 = vld [vmem:[#allocation2 + $0xc58] sm:$0xff]
    %v503 = vld [vmem:[#allocation2 + $0xc60] sm:$0xff]
    %v504 = vld [vmem:[#allocation2 + $0xc68] sm:$0xff]
    %v505 = vld [vmem:[#allocation2 + $0xc70] sm:$0xff]
    %v506 = vld [vmem:[#allocation2 + $0xc78] sm:$0xff]
    %v507 = vld [vmem:[#allocation2 + $0xc80] sm:$0xff]
    %v508 = vld [vmem:[#allocation2 + $0xc88] sm:$0xff]
    %v509 = vld [vmem:[#allocation2 + $0xc90] sm:$0xff]
    %v510 = vld [vmem:[#allocation2 + $0xc98] sm:$0xff]
    %v511 = vld [vmem:[#allocation2 + $0xca0] sm:$0xff]
    %v512 = vld [vmem:[#allocation2 + $0xca8] sm:$0xff]
    %v513 = vld [vmem:[#allocation2 + $0xcb0] sm:$0xff]
    %v514 = vld [vmem:[#allocation2 + $0xcb8] sm:$0xff]
    %v515 = vld [vmem:[#allocation2 + $0xcc0] sm:$0xff]
    %v516 = vld [vmem:[#allocation2 + $0xcc8] sm:$0xff]
    %v517 = vld [vmem:[#allocation2 + $0xcd0] sm:$0xff]
    %v518 = vld [vmem:[#allocation2 + $0xcd8] sm:$0xff]
    %v519 = vld [vmem:[#allocation2 + $0xce0] sm:$0xff]
    %v520 = vld [vmem:[#allocation2 + $0xce8] sm:$0xff]
    %v521 = vld [vmem:[#allocation2 + $0xcf0] sm:$0xff]
    %v522 = vld [vmem:[#allocation2 + $0xcf8] sm:$0xff]
    %v523 = vld [vmem:[#allocation2 + $0xd00] sm:$0xff]
    %v524 = vld [vmem:[#allocation2 + $0xd08] sm:$0xff]
    %v525 = vld [vmem:[#allocation2 + $0xd10] sm:$0xff]
    %v526 = vld [vmem:[#allocation2 + $0xd18] sm:$0xff]
    %v527 = vld [vmem:[#allocation2 + $0xd20] sm:$0xff]
    %v528 = vld [vmem:[#allocation2 + $0xd28] sm:$0xff]
    %v529 = vld [vmem:[#allocation2 + $0xd30] sm:$0xff]
    %v530 = vld [vmem:[#allocation2 + $0xd38] sm:$0xff]
    %v531 = vld [vmem:[#allocation2 + $0xd40] sm:$0xff]
    %v532 = vld [vmem:[#allocation2 + $0xd48] sm:$0xff]
    %v533 = vld [vmem:[#allocation2 + $0xd50] sm:$0xff]
    %v534 = vld [vmem:[#allocation2 + $0xd58] sm:$0xff]
    %v535 = vld [vmem:[#allocation2 + $0xd60] sm:$0xff]
    %v536 = vld [vmem:[#allocation2 + $0xd68] sm:$0xff]
    %v537 = vld [vmem:[#allocation2 + $0xd70] sm:$0xff]
    %v538 = vld [vmem:[#allocation2 + $0xd78] sm:$0xff]
    %v539 = vld [vmem:[#allocation2 + $0xd80] sm:$0xff]
    %v540 = vld [vmem:[#allocation2 + $0xd88] sm:$0xff]
    %v541 = vld [vmem:[#allocation2 + $0xd90] sm:$0xff]
    %v542 = vld [vmem:[#allocation2 + $0xd98] sm:$0xff]
    %v543 = vld [vmem:[#allocation2 + $0xda0] sm:$0xff]
    %v544 = vld [vmem:[#allocation2 + $0xda8] sm:$0xff]
    %v545 = vld [vmem:[#allocation2 + $0xdb0] sm:$0xff]
    %v546 = vld [vmem:[#allocation2 + $0xdb8] sm:$0xff]
    %v547 = vld [vmem:[#allocation2 + $0xdc0] sm:$0xff]
    %v548 = vld [vmem:[#allocation2 + $0xdc8] sm:$0xff]
    %v549 = vld [vmem:[#allocation2 + $0xdd0] sm:$0xff]
    %v550 = vld [vmem:[#allocation2 + $0xdd8] sm:$0xff]
    %v551 = vld [vmem:[#allocation2 + $0xde0] sm:$0xff]
    %v552 = vld [vmem:[#allocation2 + $0xde8] sm:$0xff]
    %v553 = vld [vmem:[#allocation2 + $0xdf0] sm:$0xff]
    %v554 = vld [vmem:[#allocation2 + $0xdf8] sm:$0xff]
    %v555 = vld [vmem:[#allocation2 + $0xe00] sm:$0xff]
    %v556 = vld [vmem:[#allocation2 + $0xe08] sm:$0xff]
    %v557 = vld [vmem:[#allocation2 + $0xe10] sm:$0xff]
    %v558 = vld [vmem:[#allocation2 + $0xe18] sm:$0xff]
    %v559 = vld [vmem:[#allocation2 + $0xe20] sm:$0xff]
    %v560 = vld [vmem:[#allocation2 + $0xe28] sm:$0xff]
    %v561 = vld [vmem:[#allocation2 + $0xe30] sm:$0xff]
    %v562 = vld [vmem:[#allocation2 + $0xe38] sm:$0xff]
    %v563 = vld [vmem:[#allocation2 + $0xe40] sm:$0xff]
    %v564 = vld [vmem:[#allocation2 + $0xe48] sm:$0xff]
    %v565 = vld [vmem:[#allocation2 + $0xe50] sm:$0xff]
    %v566 = vld [vmem:[#allocation2 + $0xe58] sm:$0xff]
    %v567 = vld [vmem:[#allocation2 + $0xe60] sm:$0xff]
    %v568 = vld [vmem:[#allocation2 + $0xe68] sm:$0xff]
    %v569 = vld [vmem:[#allocation2 + $0xe70] sm:$0xff]
    %v570 = vld [vmem:[#allocation2 + $0xe78] sm:$0xff]
    %v571 = vld [vmem:[#allocation2 + $0xe80] sm:$0xff]
    %v572 = vld [vmem:[#allocation2 + $0xe88] sm:$0xff]
    %v573 = vld [vmem:[#allocation2 + $0xe90] sm:$0xff]
    %v574 = vld [vmem:[#allocation2 + $0xe98] sm:$0xff]
    %v575 = vld [vmem:[#allocation2 + $0xea0] sm:$0xff]
    %v576 = vld [vmem:[#allocation2 + $0xea8] sm:$0xff]
    %v577 = vld [vmem:[#allocation2 + $0xeb0] sm:$0xff]
    %v578 = vld [vmem:[#allocation2 + $0xeb8] sm:$0xff]
    %v579 = vld [vmem:[#allocation2 + $0xec0] sm:$0xff]
    %v580 = vld [vmem:[#allocation2 + $0xec8] sm:$0xff]
    %v581 = vld [vmem:[#allocation2 + $0xed0] sm:$0xff]
    %v582 = vld [vmem:[#allocation2 + $0xed8] sm:$0xff]
    %v583 = vld [vmem:[#allocation2 + $0xee0] sm:$0xff]
    %v584 = vld [vmem:[#allocation2 + $0xee8] sm:$0xff]
    %v585 = vld [vmem:[#allocation2 + $0xef0] sm:$0xff]
    %v586 = vld [vmem:[#allocation2 + $0xef8] sm:$0xff]
    %v587 = vld [vmem:[#allocation2 + $0xf00] sm:$0xff]
    %v588 = vld [vmem:[#allocation2 + $0xf08] sm:$0xff]
    %v589 = vld [vmem:[#allocation2 + $0xf10] sm:$0xff]
    %v590 = vld [vmem:[#allocation2 + $0xf18] sm:$0xff]
    %v591 = vld [vmem:[#allocation2 + $0xf20] sm:$0xff]
    %v592 = vld [vmem:[#allocation2 + $0xf28] sm:$0xff]
    %v593 = vld [vmem:[#allocation2 + $0xf30] sm:$0xff]
    %v594 = vld [vmem:[#allocation2 + $0xf38] sm:$0xff]
    %v595 = vld [vmem:[#allocation2 + $0xf40] sm:$0xff]
    %v596 = vld [vmem:[#allocation2 + $0xf48] sm:$0xff]
    %v597 = vld [vmem:[#allocation2 + $0xf50] sm:$0xff]
    %v598 = vld [vmem:[#allocation2 + $0xf58] sm:$0xff]
    %v599 = vld [vmem:[#allocation2 + $0xf60] sm:$0xff]
    %v600 = vld [vmem:[#allocation2 + $0xf68] sm:$0xff]
    %v601 = vld [vmem:[#allocation2 + $0xf70] sm:$0xff]
    %v602 = vld [vmem:[#allocation2 + $0xf78] sm:$0xff]
    %v603 = vld [vmem:[#allocation2 + $0xf80] sm:$0xff]
    %v604 = vld [vmem:[#allocation2 + $0xf88] sm:$0xff]
    %v605 = vld [vmem:[#allocation2 + $0xf90] sm:$0xff]
    %v606 = vld [vmem:[#allocation2 + $0xf98] sm:$0xff]
    %v607 = vld [vmem:[#allocation2 + $0xfa0] sm:$0xff]
    %v608 = vld [vmem:[#allocation2 + $0xfa8] sm:$0xff]
    %v609 = vld [vmem:[#allocation2 + $0xfb0] sm:$0xff]
    %v610 = vld [vmem:[#allocation2 + $0xfb8] sm:$0xff]
    %v611 = vld [vmem:[#allocation2 + $0xfc0] sm:$0xff]
    %v612 = vld [vmem:[#allocation2 + $0xfc8] sm:$0xff]
    %v613 = vld [vmem:[#allocation2 + $0xfd0] sm:$0xff]
    %v614 = vld [vmem:[#allocation2 + $0xfd8] sm:$0xff]
    %v615 = vld [vmem:[#allocation2 + $0xfe0] sm:$0xff]
    %v616 = vld [vmem:[#allocation2 + $0xfe8] sm:$0xff]
    %v617 = vld [vmem:[#allocation2 + $0xff0] sm:$0xff]
    %v618 = vld [vmem:[#allocation2 + $0xff8] sm:$0xff]
    %v619 = vld [vmem:[#allocation2 + $0x1000] sm:$0xff]
    %v620 = vld [vmem:[#allocation2 + $0x1008] sm:$0xff]
    %v621 = vld [vmem:[#allocation2 + $0x1010] sm:$0xff]
    %v622 = vld [vmem:[#allocation2 + $0x1018] sm:$0xff]
    %v623 = vld [vmem:[#allocation2 + $0x1020] sm:$0xff]
    %v624 = vld [vmem:[#allocation2 + $0x1028] sm:$0xff]
    %v625 = vld [vmem:[#allocation2 + $0x1030] sm:$0xff]
    %v626 = vld [vmem:[#allocation2 + $0x1038] sm:$0xff]
    %v627 = vld [vmem:[#allocation2 + $0x1040] sm:$0xff]
    %v628 = vld [vmem:[#allocation2 + $0x1048] sm:$0xff]
    %v629 = vld [vmem:[#allocation2 + $0x1050] sm:$0xff]
    %v630 = vld [vmem:[#allocation2 + $0x1058] sm:$0xff]
    %v631 = vld [vmem:[#allocation2 + $0x1060] sm:$0xff]
    %v632 = vld [vmem:[#allocation2 + $0x1068] sm:$0xff]
    %v633 = vld [vmem:[#allocation2 + $0x1070] sm:$0xff]
    %v634 = vld [vmem:[#allocation2 + $0x1078] sm:$0xff]
    %v635 = vld [vmem:[#allocation2 + $0x1080] sm:$0xff]
    %v636 = vld [vmem:[#allocation2 + $0x1088] sm:$0xff]
    %v637 = vld [vmem:[#allocation2 + $0x1090] sm:$0xff]
    %v638 = vld [vmem:[#allocation2 + $0x1098] sm:$0xff]
    %v639 = vld [vmem:[#allocation2 + $0x10a0] sm:$0xff]
    %v640 = vld [vmem:[#allocation2 + $0x10a8] sm:$0xff]
    %v641 = vld [vmem:[#allocation2 + $0x10b0] sm:$0xff]
    %v642 = vld [vmem:[#allocation2 + $0x10b8] sm:$0xff]
    %v643 = vld [vmem:[#allocation2 + $0x10c0] sm:$0xff]
    %v644 = vld [vmem:[#allocation2 + $0x10c8] sm:$0xff]
    %v645 = vld [vmem:[#allocation2 + $0x10d0] sm:$0xff]
    %v646 = vld [vmem:[#allocation2 + $0x10d8] sm:$0xff]
    %v647 = vld [vmem:[#allocation2 + $0x10e0] sm:$0xff]
    %v648 = vld [vmem:[#allocation2 + $0x10e8] sm:$0xff]
    %v649 = vld [vmem:[#allocation2 + $0x10f0] sm:$0xff]
    %v650 = vld [vmem:[#allocation2 + $0x10f8] sm:$0xff]
    %v651 = vld [vmem:[#allocation2 + $0x1100] sm:$0xff]
    %v652 = vld [vmem:[#allocation2 + $0x1108] sm:$0xff]
    %v653 = vld [vmem:[#allocation2 + $0x1110] sm:$0xff]
    %v654 = vld [vmem:[#allocation2 + $0x1118] sm:$0xff]
    %v655 = vld [vmem:[#allocation2 + $0x1120] sm:$0xff]
    %v656 = vld [vmem:[#allocation2 + $0x1128] sm:$0xff]
    %v657 = vld [vmem:[#allocation2 + $0x1130] sm:$0xff]
    %v658 = vld [vmem:[#allocation2 + $0x1138] sm:$0xff]
    %v659 = vld [vmem:[#allocation2 + $0x1140] sm:$0xff]
    %v660 = vld [vmem:[#allocation2 + $0x1148] sm:$0xff]
    %v661 = vld [vmem:[#allocation2 + $0x1150] sm:$0xff]
    %v662 = vld [vmem:[#allocation2 + $0x1158] sm:$0xff]
    %v663 = vld [vmem:[#allocation2 + $0x1160] sm:$0xff]
    %v664 = vld [vmem:[#allocation2 + $0x1168] sm:$0xff]
    %v665 = vld [vmem:[#allocation2 + $0x1170] sm:$0xff]
    %v666 = vld [vmem:[#allocation2 + $0x1178] sm:$0xff]
    %v667 = vld [vmem:[#allocation2 + $0x1180] sm:$0xff]
    %v668 = vld [vmem:[#allocation2 + $0x1188] sm:$0xff]
    %v669 = vld [vmem:[#allocation2 + $0x1190] sm:$0xff]
    %v670 = vld [vmem:[#allocation2 + $0x1198] sm:$0xff]
    %v671 = vld [vmem:[#allocation2 + $0x11a0] sm:$0xff]
    %v672 = vld [vmem:[#allocation2 + $0x11a8] sm:$0xff]
    %v673 = vld [vmem:[#allocation2 + $0x11b0] sm:$0xff]
    %v674 = vld [vmem:[#allocation2 + $0x11b8] sm:$0xff]
    %v675 = vld [vmem:[#allocation2 + $0x11c0] sm:$0xff]
    %v676 = vld [vmem:[#allocation2 + $0x11c8] sm:$0xff]
    %v677 = vld [vmem:[#allocation2 + $0x11d0] sm:$0xff]
    %v678 = vld [vmem:[#allocation2 + $0x11d8] sm:$0xff]
    %v679 = vld [vmem:[#allocation2 + $0x11e0] sm:$0xff]
    %v680 = vld [vmem:[#allocation2 + $0x11e8] sm:$0xff]
    %v681 = vld [vmem:[#allocation2 + $0x11f0] sm:$0xff]
    %v682 = vld [vmem:[#allocation2 + $0x11f8] sm:$0xff]
    %v683 = vld [vmem:[#allocation2 + $0x1200] sm:$0xff]
    %v684 = vld [vmem:[#allocation2 + $0x1208] sm:$0xff]
    %v685 = vld [vmem:[#allocation2 + $0x1210] sm:$0xff]
    %v686 = vld [vmem:[#allocation2 + $0x1218] sm:$0xff]
    %v687 = vld [vmem:[#allocation2 + $0x1220] sm:$0xff]
    %v688 = vld [vmem:[#allocation2 + $0x1228] sm:$0xff]
    %v689 = vld [vmem:[#allocation2 + $0x1230] sm:$0xff]
    %v690 = vld [vmem:[#allocation2 + $0x1238] sm:$0xff]
    %v691 = vld [vmem:[#allocation2 + $0x1240] sm:$0xff]
    %v692 = vld [vmem:[#allocation2 + $0x1248] sm:$0xff]
    %v693 = vld [vmem:[#allocation2 + $0x1250] sm:$0xff]
    %v694 = vld [vmem:[#allocation2 + $0x1258] sm:$0xff]
    %v695 = vld [vmem:[#allocation2 + $0x1260] sm:$0xff]
    %v696 = vld [vmem:[#allocation2 + $0x1268] sm:$0xff]
    %v697 = vld [vmem:[#allocation2 + $0x1270] sm:$0xff]
    %v698 = vld [vmem:[#allocation2 + $0x1278] sm:$0xff]
    %v699 = vld [vmem:[#allocation2 + $0x1280] sm:$0xff]
    %v700 = vld [vmem:[#allocation2 + $0x1288] sm:$0xff]
    %v701 = vld [vmem:[#allocation2 + $0x1290] sm:$0xff]
    %v702 = vld [vmem:[#allocation2 + $0x1298] sm:$0xff]
    %v703 = vld [vmem:[#allocation2 + $0x12a0] sm:$0xff]
    %v704 = vld [vmem:[#allocation2 + $0x12a8] sm:$0xff]
    %v705 = vld [vmem:[#allocation2 + $0x12b0] sm:$0xff]
    %v706 = vld [vmem:[#allocation2 + $0x12b8] sm:$0xff]
    %v707 = vld [vmem:[#allocation2 + $0x12c0] sm:$0xff]
    %v708 = vld [vmem:[#allocation2 + $0x12c8] sm:$0xff]
    %v709 = vld [vmem:[#allocation2 + $0x12d0] sm:$0xff]
    %v710 = vld [vmem:[#allocation2 + $0x12d8] sm:$0xff]
    %v711 = vld [vmem:[#allocation2 + $0x12e0] sm:$0xff]
    %v712 = vld [vmem:[#allocation2 + $0x12e8] sm:$0xff]
    %v713 = vld [vmem:[#allocation2 + $0x12f0] sm:$0xff]
    %v714 = vld [vmem:[#allocation2 + $0x12f8] sm:$0xff]
    %v715 = vld [vmem:[#allocation2 + $0x1300] sm:$0xff]
    %v716 = vld [vmem:[#allocation2 + $0x1308] sm:$0xff]
    %v717 = vld [vmem:[#allocation2 + $0x1310] sm:$0xff]
    %v718 = vld [vmem:[#allocation2 + $0x1318] sm:$0xff]
    %v719 = vld [vmem:[#allocation2 + $0x1320] sm:$0xff]
    %v720 = vld [vmem:[#allocation2 + $0x1328] sm:$0xff]
    %v721 = vld [vmem:[#allocation2 + $0x1330] sm:$0xff]
    %v722 = vld [vmem:[#allocation2 + $0x1338] sm:$0xff]
    %v723 = vld [vmem:[#allocation2 + $0x1340] sm:$0xff]
    %v724 = vld [vmem:[#allocation2 + $0x1348] sm:$0xff]
    %v725 = vld [vmem:[#allocation2 + $0x1350] sm:$0xff]
    %v726 = vld [vmem:[#allocation2 + $0x1358] sm:$0xff]
    %v727 = vld [vmem:[#allocation2 + $0x1360] sm:$0xff]
    %v728 = vld [vmem:[#allocation2 + $0x1368] sm:$0xff]
    %v729 = vld [vmem:[#allocation2 + $0x1370] sm:$0xff]
    %v730 = vld [vmem:[#allocation2 + $0x1378] sm:$0xff]
    %v731 = vld [vmem:[#allocation2 + $0x1380] sm:$0xff]
    %v732 = vld [vmem:[#allocation2 + $0x1388] sm:$0xff]
    %v733 = vld [vmem:[#allocation2 + $0x1390] sm:$0xff]
    %v734 = vld [vmem:[#allocation2 + $0x1398] sm:$0xff]
    %v735 = vld [vmem:[#allocation2 + $0x13a0] sm:$0xff]
    %v736 = vld [vmem:[#allocation2 + $0x13a8] sm:$0xff]
    %v737 = vld [vmem:[#allocation2 + $0x13b0] sm:$0xff]
    %v738 = vld [vmem:[#allocation2 + $0x13b8] sm:$0xff]
    %v739 = vld [vmem:[#allocation2 + $0x13c0] sm:$0xff]
    %v740 = vld [vmem:[#allocation2 + $0x13c8] sm:$0xff]
    %v741 = vld [vmem:[#allocation2 + $0x13d0] sm:$0xff]
    %v742 = vld [vmem:[#allocation2 + $0x13d8] sm:$0xff]
    %v743 = vld [vmem:[#allocation2 + $0x13e0] sm:$0xff]
    %v744 = vld [vmem:[#allocation2 + $0x13e8] sm:$0xff]
    %v745 = vld [vmem:[#allocation2 + $0x13f0] sm:$0xff]
    %v746 = vld [vmem:[#allocation2 + $0x13f8] sm:$0xff]
    %v747 = vld [vmem:[#allocation2 + $0x1400] sm:$0xff]
    %v748 = vld [vmem:[#allocation2 + $0x1408] sm:$0xff]
    %v749 = vld [vmem:[#allocation2 + $0x1410] sm:$0xff]
    %v750 = vld [vmem:[#allocation2 + $0x1418] sm:$0xff]
    %v751 = vld [vmem:[#allocation2 + $0x1420] sm:$0xff]
    %v752 = vld [vmem:[#allocation2 + $0x1428] sm:$0xff]
    %v753 = vld [vmem:[#allocation2 + $0x1430] sm:$0xff]
    %v754 = vld [vmem:[#allocation2 + $0x1438] sm:$0xff]
    %v755 = vld [vmem:[#allocation2 + $0x1440] sm:$0xff]
    %v756 = vld [vmem:[#allocation2 + $0x1448] sm:$0xff]
    %v757 = vld [vmem:[#allocation2 + $0x1450] sm:$0xff]
    %v758 = vld [vmem:[#allocation2 + $0x1458] sm:$0xff]
    %v759 = vld [vmem:[#allocation2 + $0x1460] sm:$0xff]
    %v760 = vld [vmem:[#allocation2 + $0x1468] sm:$0xff]
    %v761 = vld [vmem:[#allocation2 + $0x1470] sm:$0xff]
    %v762 = vld [vmem:[#allocation2 + $0x1478] sm:$0xff]
    %v763 = vld [vmem:[#allocation2 + $0x1480] sm:$0xff]
    %v764 = vld [vmem:[#allocation2 + $0x1488] sm:$0xff]
    %v765 = vld [vmem:[#allocation2 + $0x1490] sm:$0xff]
    %v766 = vld [vmem:[#allocation2 + $0x1498] sm:$0xff]
    %v767 = vld [vmem:[#allocation2 + $0x14a0] sm:$0xff]
    %v768 = vld [vmem:[#allocation2 + $0x14a8] sm:$0xff]
    %v769 = vld [vmem:[#allocation2 + $0x14b0] sm:$0xff]
    %v770 = vld [vmem:[#allocation2 + $0x14b8] sm:$0xff]
    %v771 = vld [vmem:[#allocation2 + $0x14c0] sm:$0xff]
    %v772 = vld [vmem:[#allocation2 + $0x14c8] sm:$0xff]
    %v773 = vld [vmem:[#allocation2 + $0x14d0] sm:$0xff]
    %v774 = vld [vmem:[#allocation2 + $0x14d8] sm:$0xff]
    %v775 = vld [vmem:[#allocation2 + $0x14e0] sm:$0xff]
    %v776 = vld [vmem:[#allocation2 + $0x14e8] sm:$0xff]
    %v777 = vld [vmem:[#allocation2 + $0x14f0] sm:$0xff]
    %v778 = vld [vmem:[#allocation2 + $0x14f8] sm:$0xff]
    %v779 = vld [vmem:[#allocation2 + $0x1500] sm:$0xff]
    %v780 = vld [vmem:[#allocation2 + $0x1508] sm:$0xff]
    %v781 = vld [vmem:[#allocation2 + $0x1510] sm:$0xff]
    %v782 = vld [vmem:[#allocation2 + $0x1518] sm:$0xff]
    %v783 = vld [vmem:[#allocation2 + $0x1520] sm:$0xff]
    %v784 = vld [vmem:[#allocation2 + $0x1528] sm:$0xff]
    %v785 = vld [vmem:[#allocation2 + $0x1530] sm:$0xff]
    %v786 = vld [vmem:[#allocation2 + $0x1538] sm:$0xff]
    %v787 = vld [vmem:[#allocation2 + $0x1540] sm:$0xff]
    %v788 = vld [vmem:[#allocation2 + $0x1548] sm:$0xff]
    %v789 = vld [vmem:[#allocation2 + $0x1550] sm:$0xff]
    %v790 = vld [vmem:[#allocation2 + $0x1558] sm:$0xff]
    %v791 = vld [vmem:[#allocation2 + $0x1560] sm:$0xff]
    %v792 = vld [vmem:[#allocation2 + $0x1568] sm:$0xff]
    %v793 = vld [vmem:[#allocation2 + $0x1570] sm:$0xff]
    %v794 = vld [vmem:[#allocation2 + $0x1578] sm:$0xff]
    %v795 = vld [vmem:[#allocation2 + $0x1580] sm:$0xff]
    %v796 = vld [vmem:[#allocation2 + $0x1588] sm:$0xff]
    %v797 = vld [vmem:[#allocation2 + $0x1590] sm:$0xff]
    %v798 = vld [vmem:[#allocation2 + $0x1598] sm:$0xff]
    %v799 = vld [vmem:[#allocation2 + $0x15a0] sm:$0xff]
    %v800 = vld [vmem:[#allocation2 + $0x15a8] sm:$0xff]
    %v801 = vld [vmem:[#allocation2 + $0x15b0] sm:$0xff]
    %v802 = vld [vmem:[#allocation2 + $0x15b8] sm:$0xff]
    %v803 = vld [vmem:[#allocation2 + $0x15c0] sm:$0xff]
    %v804 = vld [vmem:[#allocation2 + $0x15c8] sm:$0xff]
    %v805 = vld [vmem:[#allocation2 + $0x15d0] sm:$0xff]
    %v806 = vld [vmem:[#allocation2 + $0x15d8] sm:$0xff]
    %v807 = vld [vmem:[#allocation2 + $0x15e0] sm:$0xff]
    %v808 = vld [vmem:[#allocation2 + $0x15e8] sm:$0xff]
    %v809 = vld [vmem:[#allocation2 + $0x15f0] sm:$0xff]
    %v810 = vld [vmem:[#allocation2 + $0x15f8] sm:$0xff]
    %v811 = vld [vmem:[#allocation2 + $0x1600] sm:$0xff]
    %v812 = vld [vmem:[#allocation2 + $0x1608] sm:$0xff]
    %v813 = vld [vmem:[#allocation2 + $0x1610] sm:$0xff]
    %v814 = vld [vmem:[#allocation2 + $0x1618] sm:$0xff]
    %v815 = vld [vmem:[#allocation2 + $0x1620] sm:$0xff]
    %v816 = vld [vmem:[#allocation2 + $0x1628] sm:$0xff]
    %v817 = vld [vmem:[#allocation2 + $0x1630] sm:$0xff]
    %v818 = vld [vmem:[#allocation2 + $0x1638] sm:$0xff]
    %v819 = vld [vmem:[#allocation2 + $0x1640] sm:$0xff]
    %v820 = vld [vmem:[#allocation2 + $0x1648] sm:$0xff]
    %v821 = vld [vmem:[#allocation2 + $0x1650] sm:$0xff]
    %v822 = vld [vmem:[#allocation2 + $0x1658] sm:$0xff]
    %v823 = vld [vmem:[#allocation2 + $0x1660] sm:$0xff]
    %v824 = vld [vmem:[#allocation2 + $0x1668] sm:$0xff]
    %v825 = vld [vmem:[#allocation2 + $0x1670] sm:$0xff]
    %v826 = vld [vmem:[#allocation2 + $0x1678] sm:$0xff]
    %v827 = vld [vmem:[#allocation2 + $0x1680] sm:$0xff]
    %v828 = vld [vmem:[#allocation2 + $0x1688] sm:$0xff]
    %v829 = vld [vmem:[#allocation2 + $0x1690] sm:$0xff]
    %v830 = vld [vmem:[#allocation2 + $0x1698] sm:$0xff]
    %v831 = vld [vmem:[#allocation2 + $0x16a0] sm:$0xff]
    %v832 = vld [vmem:[#allocation2 + $0x16a8] sm:$0xff]
    %v833 = vld [vmem:[#allocation2 + $0x16b0] sm:$0xff]
    %v834 = vld [vmem:[#allocation2 + $0x16b8] sm:$0xff]
    %v835 = vld [vmem:[#allocation2 + $0x16c0] sm:$0xff]
    %v836 = vld [vmem:[#allocation2 + $0x16c8] sm:$0xff]
    %v837 = vld [vmem:[#allocation2 + $0x16d0] sm:$0xff]
    %v838 = vld [vmem:[#allocation2 + $0x16d8] sm:$0xff]
    %v839 = vld [vmem:[#allocation2 + $0x16e0] sm:$0xff]
    %v840 = vld [vmem:[#allocation2 + $0x16e8] sm:$0xff]
    %v841 = vld [vmem:[#allocation2 + $0x16f0] sm:$0xff]
    %v842 = vld [vmem:[#allocation2 + $0x16f8] sm:$0xff]
    %v843 = vld [vmem:[#allocation2 + $0x1700] sm:$0xff]
    %v844 = vld [vmem:[#allocation2 + $0x1708] sm:$0xff]
    %v845 = vld [vmem:[#allocation2 + $0x1710] sm:$0xff]
    %v846 = vld [vmem:[#allocation2 + $0x1718] sm:$0xff]
    %v847 = vld [vmem:[#allocation2 + $0x1720] sm:$0xff]
    %v848 = vld [vmem:[#allocation2 + $0x1728] sm:$0xff]
    %v849 = vld [vmem:[#allocation2 + $0x1730] sm:$0xff]
    %v850 = vld [vmem:[#allocation2 + $0x1738] sm:$0xff]
    %v851 = vld [vmem:[#allocation2 + $0x1740] sm:$0xff]
    %v852 = vld [vmem:[#allocation2 + $0x1748] sm:$0xff]
    %v853 = vld [vmem:[#allocation2 + $0x1750] sm:$0xff]
    %v854 = vld [vmem:[#allocation2 + $0x1758] sm:$0xff]
    %v855 = vld [vmem:[#allocation2 + $0x1760] sm:$0xff]
    %v856 = vld [vmem:[#allocation2 + $0x1768] sm:$0xff]
    %v857 = vld [vmem:[#allocation2 + $0x1770] sm:$0xff]
    %v858 = vld [vmem:[#allocation2 + $0x1778] sm:$0xff]
    %v859 = vld [vmem:[#allocation2 + $0x1780] sm:$0xff]
    %v860 = vld [vmem:[#allocation2 + $0x1788] sm:$0xff]
    %v861 = vld [vmem:[#allocation2 + $0x1790] sm:$0xff]
    %v862 = vld [vmem:[#allocation2 + $0x1798] sm:$0xff]
    %v863 = vld [vmem:[#allocation2 + $0x17a0] sm:$0xff]
    %v864 = vld [vmem:[#allocation2 + $0x17a8] sm:$0xff]
    %v865 = vld [vmem:[#allocation2 + $0x17b0] sm:$0xff]
    %v866 = vld [vmem:[#allocation2 + $0x17b8] sm:$0xff]
    %v867 = vld [vmem:[#allocation2 + $0x17c0] sm:$0xff]
    %v868 = vld [vmem:[#allocation2 + $0x17c8] sm:$0xff]
    %v869 = vld [vmem:[#allocation2 + $0x17d0] sm:$0xff]
    %v870 = vld [vmem:[#allocation2 + $0x17d8] sm:$0xff]
    %v871 = vld [vmem:[#allocation2 + $0x17e0] sm:$0xff]
    %v872 = vld [vmem:[#allocation2 + $0x17e8] sm:$0xff]
    %v873 = vld [vmem:[#allocation2 + $0x17f0] sm:$0xff]
    %v874 = vld [vmem:[#allocation2 + $0x17f8] sm:$0xff]
    %v875 = vld [vmem:[#allocation2 + $0x1800] sm:$0xff]
    %v876 = vld [vmem:[#allocation2 + $0x1808] sm:$0xff]
    %v877 = vld [vmem:[#allocation2 + $0x1810] sm:$0xff]
    %v878 = vld [vmem:[#allocation2 + $0x1818] sm:$0xff]
    %v879 = vld [vmem:[#allocation2 + $0x1820] sm:$0xff]
    %v880 = vld [vmem:[#allocation2 + $0x1828] sm:$0xff]
    %v881 = vld [vmem:[#allocation2 + $0x1830] sm:$0xff]
    %v882 = vld [vmem:[#allocation2 + $0x1838] sm:$0xff]
    %v883 = vld [vmem:[#allocation2 + $0x1840] sm:$0xff]
    %v884 = vld [vmem:[#allocation2 + $0x1848] sm:$0xff]
    %v885 = vld [vmem:[#allocation2 + $0x1850] sm:$0xff]
    %v886 = vld [vmem:[#allocation2 + $0x1858] sm:$0xff]
    %v887 = vld [vmem:[#allocation2 + $0x1860] sm:$0xff]
    %v888 = vld [vmem:[#allocation2 + $0x1868] sm:$0xff]
    %v889 = vld [vmem:[#allocation2 + $0x1870] sm:$0xff]
    %v890 = vld [vmem:[#allocation2 + $0x1878] sm:$0xff]
    %v891 = vld [vmem:[#allocation2 + $0x1880] sm:$0xff]
    %v892 = vld [vmem:[#allocation2 + $0x1888] sm:$0xff]
    %v893 = vld [vmem:[#allocation2 + $0x1890] sm:$0xff]
    %v894 = vld [vmem:[#allocation2 + $0x1898] sm:$0xff]
    %v895 = vld [vmem:[#allocation2 + $0x18a0] sm:$0xff]
    %v896 = vld [vmem:[#allocation2 + $0x18a8] sm:$0xff]
    %v897 = vld [vmem:[#allocation2 + $0x18b0] sm:$0xff]
    %v898 = vld [vmem:[#allocation2 + $0x18b8] sm:$0xff]
    %v899 = vld [vmem:[#allocation2 + $0x18c0] sm:$0xff]
    %v900 = vld [vmem:[#allocation2 + $0x18c8] sm:$0xff]
    %v901 = vld [vmem:[#allocation2 + $0x18d0] sm:$0xff]
    %v902 = vld [vmem:[#allocation2 + $0x18d8] sm:$0xff]
    %v903 = vld [vmem:[#allocation2 + $0x18e0] sm:$0xff]
    %v904 = vld [vmem:[#allocation2 + $0x18e8] sm:$0xff]
    %v905 = vld [vmem:[#allocation2 + $0x18f0] sm:$0xff]
    %v906 = vld [vmem:[#allocation2 + $0x18f8] sm:$0xff]
    %v907 = vld [vmem:[#allocation2 + $0x1900] sm:$0xff]
    %v908 = vld [vmem:[#allocation2 + $0x1908] sm:$0xff]
    %v909 = vld [vmem:[#allocation2 + $0x1910] sm:$0xff]
    %v910 = vld [vmem:[#allocation2 + $0x1918] sm:$0xff]
    %v911 = vld [vmem:[#allocation2 + $0x1920] sm:$0xff]
    %v912 = vld [vmem:[#allocation2 + $0x1928] sm:$0xff]
    %v913 = vld [vmem:[#allocation2 + $0x1930] sm:$0xff]
    %v914 = vld [vmem:[#allocation2 + $0x1938] sm:$0xff]
    %v915 = vld [vmem:[#allocation2 + $0x1940] sm:$0xff]
    %v916 = vld [vmem:[#allocation2 + $0x1948] sm:$0xff]
    %v917 = vld [vmem:[#allocation2 + $0x1950] sm:$0xff]
    %v918 = vld [vmem:[#allocation2 + $0x1958] sm:$0xff]
    %v919 = vld [vmem:[#allocation2 + $0x1960] sm:$0xff]
    %v920 = vld [vmem:[#allocation2 + $0x1968] sm:$0xff]
    %v921 = vld [vmem:[#allocation2 + $0x1970] sm:$0xff]
    %v922 = vld [vmem:[#allocation2 + $0x1978] sm:$0xff]
    %v923 = vld [vmem:[#allocation2 + $0x1980] sm:$0xff]
    %v924 = vld [vmem:[#allocation2 + $0x1988] sm:$0xff]
    %v925 = vld [vmem:[#allocation2 + $0x1990] sm:$0xff]
    %v926 = vld [vmem:[#allocation2 + $0x1998] sm:$0xff]
    %v927 = vld [vmem:[#allocation2 + $0x19a0] sm:$0xff]
    %v928 = vld [vmem:[#allocation2 + $0x19a8] sm:$0xff]
    %v929 = vld [vmem:[#allocation2 + $0x19b0] sm:$0xff]
    %v930 = vld [vmem:[#allocation2 + $0x19b8] sm:$0xff]
    %v931 = vld [vmem:[#allocation2 + $0x19c0] sm:$0xff]
    %v932 = vld [vmem:[#allocation2 + $0x19c8] sm:$0xff]
    %v933 = vld [vmem:[#allocation2 + $0x19d0] sm:$0xff]
    %v934 = vld [vmem:[#allocation2 + $0x19d8] sm:$0xff]
    %v935 = vld [vmem:[#allocation2 + $0x19e0] sm:$0xff]
    %v936 = vld [vmem:[#allocation2 + $0x19e8] sm:$0xff]
    %v937 = vld [vmem:[#allocation2 + $0x19f0] sm:$0xff]
    %v938 = vld [vmem:[#allocation2 + $0x19f8] sm:$0xff]
    %v939 = vld [vmem:[#allocation2 + $0x1a00] sm:$0xff]
    %v940 = vld [vmem:[#allocation2 + $0x1a08] sm:$0xff]
    %v941 = vld [vmem:[#allocation2 + $0x1a10] sm:$0xff]
    %v942 = vld [vmem:[#allocation2 + $0x1a18] sm:$0xff]
    %v943 = vld [vmem:[#allocation2 + $0x1a20] sm:$0xff]
    %v944 = vld [vmem:[#allocation2 + $0x1a28] sm:$0xff]
    %v945 = vld [vmem:[#allocation2 + $0x1a30] sm:$0xff]
    %v946 = vld [vmem:[#allocation2 + $0x1a38] sm:$0xff]
    %v947 = vld [vmem:[#allocation2 + $0x1a40] sm:$0xff]
    %v948 = vld [vmem:[#allocation2 + $0x1a48] sm:$0xff]
    %v949 = vld [vmem:[#allocation2 + $0x1a50] sm:$0xff]
    %v950 = vld [vmem:[#allocation2 + $0x1a58] sm:$0xff]
    %v951 = vld [vmem:[#allocation2 + $0x1a60] sm:$0xff]
    %v952 = vld [vmem:[#allocation2 + $0x1a68] sm:$0xff]
    %v953 = vld [vmem:[#allocation2 + $0x1a70] sm:$0xff]
    %v954 = vld [vmem:[#allocation2 + $0x1a78] sm:$0xff]
    %v955 = vld [vmem:[#allocation2 + $0x1a80] sm:$0xff]
    %v956 = vld [vmem:[#allocation2 + $0x1a88] sm:$0xff]
    %v957 = vld [vmem:[#allocation2 + $0x1a90] sm:$0xff]
    %v958 = vld [vmem:[#allocation2 + $0x1a98] sm:$0xff]
    %v959 = vld [vmem:[#allocation2 + $0x1aa0] sm:$0xff]
    %v960 = vld [vmem:[#allocation2 + $0x1aa8] sm:$0xff]
    %v961 = vld [vmem:[#allocation2 + $0x1ab0] sm:$0xff]
    %v962 = vld [vmem:[#allocation2 + $0x1ab8] sm:$0xff]
    %v963 = vld [vmem:[#allocation2 + $0x1ac0] sm:$0xff]
    %v964 = vld [vmem:[#allocation2 + $0x1ac8] sm:$0xff]
    %v965 = vld [vmem:[#allocation2 + $0x1ad0] sm:$0xff]
    %v966 = vld [vmem:[#allocation2 + $0x1ad8] sm:$0xff]
    %v967 = vld [vmem:[#allocation2 + $0x1ae0] sm:$0xff]
    %v968 = vld [vmem:[#allocation2 + $0x1ae8] sm:$0xff]
    %v969 = vld [vmem:[#allocation2 + $0x1af0] sm:$0xff]
    %v970 = vld [vmem:[#allocation2 + $0x1af8] sm:$0xff]
    %v971 = vld [vmem:[#allocation2 + $0x1b00] sm:$0xff]
    %v972 = vld [vmem:[#allocation2 + $0x1b08] sm:$0xff]
    %v973 = vld [vmem:[#allocation2 + $0x1b10] sm:$0xff]
    %v974 = vld [vmem:[#allocation2 + $0x1b18] sm:$0xff]
    %v975 = vld [vmem:[#allocation2 + $0x1b20] sm:$0xff]
    %v976 = vld [vmem:[#allocation2 + $0x1b28] sm:$0xff]
    %v977 = vld [vmem:[#allocation2 + $0x1b30] sm:$0xff]
    %v978 = vld [vmem:[#allocation2 + $0x1b38] sm:$0xff]
    %v979 = vld [vmem:[#allocation2 + $0x1b40] sm:$0xff]
    %v980 = vld [vmem:[#allocation2 + $0x1b48] sm:$0xff]
    %v981 = vld [vmem:[#allocation2 + $0x1b50] sm:$0xff]
    %v982 = vld [vmem:[#allocation2 + $0x1b58] sm:$0xff]
    %v983 = vld [vmem:[#allocation2 + $0x1b60] sm:$0xff]
    %v984 = vld [vmem:[#allocation2 + $0x1b68] sm:$0xff]
    %v985 = vld [vmem:[#allocation2 + $0x1b70] sm:$0xff]
    %v986 = vld [vmem:[#allocation2 + $0x1b78] sm:$0xff]
    %v987 = vld [vmem:[#allocation2 + $0x1b80] sm:$0xff]
    %v988 = vld [vmem:[#allocation2 + $0x1b88] sm:$0xff]
    %v989 = vld [vmem:[#allocation4] sm:$0xff]
    %v990 = vld [vmem:[#allocation4 + $0x8] sm:$0xff]
    %v991 = vld [vmem:[#allocation4 + $0x10] sm:$0x3]
    %v995 = vlaneseq
    %v996 = vshrl.u32 %v995, 7
    %v997 = vsub.s32 0, %v996
    %v998 = vrot.slane %v989, %v997
    %v999 = vlaneseq
    %v1000 = vshrl.u32 %v999, 7
    %v1001 = vsub.s32 1, %v1000
    %v1002 = vrot.slane %v989, %v1001
    %v1003 = vlaneseq
    %v1004 = vshrl.u32 %v1003, 7
    %v1005 = vsub.s32 2, %v1004
    %v1006 = vrot.slane %v989, %v1005
    %v1007 = vlaneseq
    %v1008 = vshrl.u32 %v1007, 7
    %v1009 = vsub.s32 3, %v1008
    %v1010 = vrot.slane %v989, %v1009
    %v1011 = vlaneseq
    %v1012 = vshrl.u32 %v1011, 7
    %v1013 = vsub.s32 4, %v1012
    %v1014 = vrot.slane %v989, %v1013
    %v1015 = vlaneseq
    %v1016 = vshrl.u32 %v1015, 7
    %v1017 = vsub.s32 5, %v1016
    %v1018 = vrot.slane %v989, %v1017
    %v1019 = vlaneseq
    %v1020 = vshrl.u32 %v1019, 7
    %v1021 = vsub.s32 6, %v1020
    %v1022 = vrot.slane %v989, %v1021
    %v1023 = vlaneseq
    %v1024 = vshrl.u32 %v1023, 7
    %v1025 = vsub.s32 7, %v1024
    %v1026 = vrot.slane %v989, %v1025
    %v1027 = vlaneseq
    %v1028 = vshrl.u32 %v1027, 7
    %v1029 = vsub.s32 0, %v1028
    %v1030 = vrot.slane %v990, %v1029
    %v1031 = vlaneseq
    %v1032 = vshrl.u32 %v1031, 7
    %v1033 = vsub.s32 1, %v1032
    %v1034 = vrot.slane %v990, %v1033
    %v1035 = vlaneseq
    %v1036 = vshrl.u32 %v1035, 7
    %v1037 = vsub.s32 2, %v1036
    %v1038 = vrot.slane %v990, %v1037
    %v1039 = vlaneseq
    %v1040 = vshrl.u32 %v1039, 7
    %v1041 = vsub.s32 3, %v1040
    %v1042 = vrot.slane %v990, %v1041
    %v1043 = vlaneseq
    %v1044 = vshrl.u32 %v1043, 7
    %v1045 = vsub.s32 4, %v1044
    %v1046 = vrot.slane %v990, %v1045
    %v1047 = vlaneseq
    %v1048 = vshrl.u32 %v1047, 7
    %v1049 = vsub.s32 5, %v1048
    %v1050 = vrot.slane %v990, %v1049
    %v1051 = vlaneseq
    %v1052 = vshrl.u32 %v1051, 7
    %v1053 = vsub.s32 6, %v1052
    %v1054 = vrot.slane %v990, %v1053
    %v1055 = vlaneseq
    %v1056 = vshrl.u32 %v1055, 7
    %v1057 = vsub.s32 7, %v1056
    %v1058 = vrot.slane %v990, %v1057
    %v1059 = vlaneseq
    %v1060 = vshrl.u32 %v1059, 7
    %v1061 = vsub.s32 0, %v1060
    %v1062 = vrot.slane %v991, %v1061
    %v1063 = vlaneseq
    %v1064 = vshrl.u32 %v1063, 7
    %v1065 = vsub.s32 1, %v1064
    %v1066 = vrot.slane %v991, %v1065
    %v1089 = vunpack.c.l.b16 %v103
    %v1090 = vunpack.c.h.b16 %v103
    %v1091 = vunpack.c.l.b16 %v104
    %v1092 = vunpack.c.h.b16 %v104
    %v1093 = vunpack.c.l.b16 %v105
    %v1094 = vunpack.c.h.b16 %v105
    %v1095 = vunpack.c.l.b16 %v106
    %v1096 = vpack.c.b16 %v1089, %v1089
    %v1097 = vpack.c.b16 %v1090, %v1090
    %v1098 = vpack.c.b16 %v1091, %v1091
    %v1099 = vpack.c.b16 %v1092, %v1092
    %v1100 = vpack.c.b16 %v1093, %v1093
    %v1101 = vpack.c.b16 %v1094, %v1094
    %v1102 = vpack.c.b16 %v1095, %v1095
    %v1991 = vunpack.c.l.b16 %v107
    %v1992 = vunpack.c.h.b16 %v107
    %v1993 = vunpack.c.l.b16 %v108
    %v1994 = vunpack.c.h.b16 %v108
    %v1995 = vunpack.c.l.b16 %v109
    %v1996 = vunpack.c.h.b16 %v109
    %v1997 = vunpack.c.l.b16 %v110
    %v1998 = vunpack.c.h.b16 %v110
    %v1999 = vunpack.c.l.b16 %v111
    %v2000 = vunpack.c.h.b16 %v111
    %v2001 = vunpack.c.l.b16 %v112
    %v2002 = vunpack.c.h.b16 %v112
    %v2003 = vunpack.c.l.b16 %v113
    %v2004 = vunpack.c.h.b16 %v113
    %v2005 = vunpack.c.l.b16 %v114
    %v2006 = vunpack.c.h.b16 %v114
    %v2007 = vunpack.c.l.b16 %v115
    %v2008 = vunpack.c.h.b16 %v115
    %v2009 = vunpack.c.l.b16 %v116
    %v2010 = vunpack.c.h.b16 %v116
    %v2011 = vunpack.c.l.b16 %v117
    %v2012 = vunpack.c.h.b16 %v117
    %v2013 = vunpack.c.l.b16 %v118
    %v2014 = vunpack.c.h.b16 %v118
    %v2015 = vunpack.c.l.b16 %v119
    %v2016 = vunpack.c.h.b16 %v119
    %v2017 = vunpack.c.l.b16 %v120
    %v2018 = vunpack.c.h.b16 %v120
    %v2019 = vunpack.c.l.b16 %v121
    %v2020 = vunpack.c.h.b16 %v121
    %v2021 = vunpack.c.l.b16 %v122
    %v2022 = vunpack.c.h.b16 %v122
    %v2023 = vunpack.c.l.b16 %v123
    %v2024 = vunpack.c.h.b16 %v123
    %v2025 = vunpack.c.l.b16 %v124
    %v2026 = vunpack.c.h.b16 %v124
    %v2027 = vunpack.c.l.b16 %v125
    %v2028 = vunpack.c.h.b16 %v125
    %v2029 = vunpack.c.l.b16 %v126
    %v2030 = vunpack.c.h.b16 %v126
    %v2031 = vunpack.c.l.b16 %v127
    %v2032 = vunpack.c.h.b16 %v127
    %v2033 = vunpack.c.l.b16 %v128
    %v2034 = vunpack.c.h.b16 %v128
    %v2035 = vunpack.c.l.b16 %v129
    %v2036 = vunpack.c.h.b16 %v129
    %v2037 = vunpack.c.l.b16 %v130
    %v2038 = vunpack.c.h.b16 %v130
    %v2039 = vunpack.c.l.b16 %v131
    %v2040 = vunpack.c.h.b16 %v131
    %v2041 = vunpack.c.l.b16 %v132
    %v2042 = vunpack.c.h.b16 %v132
    %v2043 = vunpack.c.l.b16 %v133
    %v2044 = vunpack.c.h.b16 %v133
    %v2045 = vunpack.c.l.b16 %v134
    %v2046 = vunpack.c.h.b16 %v134
    %v2047 = vunpack.c.l.b16 %v135
    %v2048 = vunpack.c.h.b16 %v135
    %v2049 = vunpack.c.l.b16 %v136
    %v2050 = vunpack.c.h.b16 %v136
    %v2051 = vunpack.c.l.b16 %v137
    %v2052 = vunpack.c.h.b16 %v137
    %v2053 = vunpack.c.l.b16 %v138
    %v2054 = vunpack.c.h.b16 %v138
    %v2055 = vunpack.c.l.b16 %v139
    %v2056 = vunpack.c.h.b16 %v139
    %v2057 = vunpack.c.l.b16 %v140
    %v2058 = vunpack.c.h.b16 %v140
    %v2059 = vunpack.c.l.b16 %v141
    %v2060 = vunpack.c.h.b16 %v141
    %v2061 = vunpack.c.l.b16 %v142
    %v2062 = vunpack.c.h.b16 %v142
    %v2063 = vunpack.c.l.b16 %v143
    %v2064 = vunpack.c.h.b16 %v143
    %v2065 = vunpack.c.l.b16 %v144
    %v2066 = vunpack.c.h.b16 %v144
    %v2067 = vunpack.c.l.b16 %v145
    %v2068 = vunpack.c.h.b16 %v145
    %v2069 = vunpack.c.l.b16 %v146
    %v2070 = vunpack.c.h.b16 %v146
    %v2071 = vunpack.c.l.b16 %v147
    %v2072 = vunpack.c.h.b16 %v147
    %v2073 = vunpack.c.l.b16 %v148
    %v2074 = vunpack.c.h.b16 %v148
    %v2075 = vunpack.c.l.b16 %v149
    %v2076 = vunpack.c.h.b16 %v149
    %v2077 = vunpack.c.l.b16 %v150
    %v2078 = vunpack.c.h.b16 %v150
    %v2079 = vunpack.c.l.b16 %v151
    %v2080 = vunpack.c.h.b16 %v151
    %v2081 = vunpack.c.l.b16 %v152
    %v2082 = vunpack.c.h.b16 %v152
    %v2083 = vunpack.c.l.b16 %v153
    %v2084 = vunpack.c.h.b16 %v153
    %v2085 = vunpack.c.l.b16 %v154
    %v2086 = vunpack.c.h.b16 %v154
    %v2087 = vunpack.c.l.b16 %v155
    %v2088 = vunpack.c.h.b16 %v155
    %v2089 = vunpack.c.l.b16 %v156
    %v2090 = vunpack.c.h.b16 %v156
    %v2091 = vunpack.c.l.b16 %v157
    %v2092 = vunpack.c.h.b16 %v157
    %v2093 = vunpack.c.l.b16 %v158
    %v2094 = vunpack.c.h.b16 %v158
    %v2095 = vunpack.c.l.b16 %v159
    %v2096 = vunpack.c.h.b16 %v159
    %v2097 = vunpack.c.l.b16 %v160
    %v2098 = vunpack.c.h.b16 %v160
    %v2099 = vunpack.c.l.b16 %v161
    %v2100 = vunpack.c.h.b16 %v161
    %v2101 = vunpack.c.l.b16 %v162
    %v2102 = vunpack.c.h.b16 %v162
    %v2103 = vunpack.c.l.b16 %v163
    %v2104 = vunpack.c.h.b16 %v163
    %v2105 = vunpack.c.l.b16 %v164
    %v2106 = vunpack.c.h.b16 %v164
    %v2107 = vunpack.c.l.b16 %v165
    %v2108 = vunpack.c.h.b16 %v165
    %v2109 = vunpack.c.l.b16 %v166
    %v2110 = vunpack.c.h.b16 %v166
    %v2111 = vunpack.c.l.b16 %v167
    %v2112 = vunpack.c.h.b16 %v167
    %v2113 = vunpack.c.l.b16 %v168
    %v2114 = vunpack.c.h.b16 %v168
    %v2115 = vunpack.c.l.b16 %v169
    %v2116 = vunpack.c.h.b16 %v169
    %v2117 = vunpack.c.l.b16 %v170
    %v2118 = vunpack.c.h.b16 %v170
    %v2119 = vunpack.c.l.b16 %v171
    %v2120 = vunpack.c.h.b16 %v171
    %v2121 = vunpack.c.l.b16 %v172
    %v2122 = vunpack.c.h.b16 %v172
    %v2123 = vunpack.c.l.b16 %v173
    %v2124 = vunpack.c.h.b16 %v173
    %v2125 = vunpack.c.l.b16 %v174
    %v2126 = vunpack.c.h.b16 %v174
    %v2127 = vunpack.c.l.b16 %v175
    %v2128 = vunpack.c.h.b16 %v175
    %v2129 = vunpack.c.l.b16 %v176
    %v2130 = vunpack.c.h.b16 %v176
    %v2131 = vunpack.c.l.b16 %v177
    %v2132 = vunpack.c.h.b16 %v177
    %v2133 = vunpack.c.l.b16 %v178
    %v2134 = vunpack.c.h.b16 %v178
    %v2135 = vunpack.c.l.b16 %v179
    %v2136 = vunpack.c.h.b16 %v179
    %v2137 = vunpack.c.l.b16 %v180
    %v2138 = vunpack.c.h.b16 %v180
    %v2139 = vunpack.c.l.b16 %v181
    %v2140 = vunpack.c.h.b16 %v181
    %v2141 = vunpack.c.l.b16 %v182
    %v2142 = vunpack.c.h.b16 %v182
    %v2143 = vunpack.c.l.b16 %v183
    %v2144 = vunpack.c.h.b16 %v183
    %v2145 = vunpack.c.l.b16 %v184
    %v2146 = vunpack.c.h.b16 %v184
    %v2147 = vunpack.c.l.b16 %v185
    %v2148 = vunpack.c.h.b16 %v185
    %v2149 = vunpack.c.l.b16 %v186
    %v2150 = vunpack.c.h.b16 %v186
    %v2151 = vunpack.c.l.b16 %v187
    %v2152 = vunpack.c.h.b16 %v187
    %v2153 = vunpack.c.l.b16 %v188
    %v2154 = vunpack.c.h.b16 %v188
    %v2155 = vunpack.c.l.b16 %v189
    %v2156 = vunpack.c.h.b16 %v189
    %v2157 = vunpack.c.l.b16 %v190
    %v2158 = vunpack.c.h.b16 %v190
    %v2159 = vunpack.c.l.b16 %v191
    %v2160 = vunpack.c.h.b16 %v191
    %v2161 = vunpack.c.l.b16 %v192
    %v2162 = vunpack.c.h.b16 %v192
    %v2163 = vunpack.c.l.b16 %v193
    %v2164 = vunpack.c.h.b16 %v193
    %v2165 = vunpack.c.l.b16 %v194
    %v2166 = vunpack.c.h.b16 %v194
    %v2167 = vunpack.c.l.b16 %v195
    %v2168 = vunpack.c.h.b16 %v195
    %v2169 = vunpack.c.l.b16 %v196
    %v2170 = vunpack.c.h.b16 %v196
    %v2171 = vunpack.c.l.b16 %v197
    %v2172 = vunpack.c.h.b16 %v197
    %v2173 = vunpack.c.l.b16 %v198
    %v2174 = vunpack.c.h.b16 %v198
    %v2175 = vunpack.c.l.b16 %v199
    %v2176 = vunpack.c.h.b16 %v199
    %v2177 = vunpack.c.l.b16 %v200
    %v2178 = vunpack.c.h.b16 %v200
    %v2179 = vunpack.c.l.b16 %v201
    %v2180 = vunpack.c.h.b16 %v201
    %v2181 = vunpack.c.l.b16 %v202
    %v2182 = vunpack.c.h.b16 %v202
    %v2183 = vunpack.c.l.b16 %v203
    %v2184 = vunpack.c.h.b16 %v203
    %v2185 = vunpack.c.l.b16 %v204
    %v2186 = vunpack.c.h.b16 %v204
    %v2187 = vunpack.c.l.b16 %v205
    %v2188 = vunpack.c.h.b16 %v205
    %v2189 = vunpack.c.l.b16 %v206
    %v2190 = vunpack.c.h.b16 %v206
    %v2191 = vunpack.c.l.b16 %v207
    %v2192 = vunpack.c.h.b16 %v207
    %v2193 = vunpack.c.l.b16 %v208
    %v2194 = vunpack.c.h.b16 %v208
    %v2195 = vunpack.c.l.b16 %v209
    %v2196 = vunpack.c.h.b16 %v209
    %v2197 = vunpack.c.l.b16 %v210
    %v2198 = vunpack.c.h.b16 %v210
    %v2199 = vunpack.c.l.b16 %v211
    %v2200 = vunpack.c.h.b16 %v211
    %v2201 = vunpack.c.l.b16 %v212
    %v2202 = vunpack.c.h.b16 %v212
    %v2203 = vunpack.c.l.b16 %v213
    %v2204 = vunpack.c.h.b16 %v213
    %v2205 = vunpack.c.l.b16 %v214
    %v2206 = vunpack.c.h.b16 %v214
    %v2207 = vunpack.c.l.b16 %v215
    %v2208 = vunpack.c.h.b16 %v215
    %v2209 = vunpack.c.l.b16 %v216
    %v2210 = vunpack.c.h.b16 %v216
    %v2211 = vunpack.c.l.b16 %v217
    %v2212 = vunpack.c.h.b16 %v217
    %v2213 = vunpack.c.l.b16 %v218
    %v2214 = vunpack.c.h.b16 %v218
    %v2215 = vunpack.c.l.b16 %v219
    %v2216 = vunpack.c.h.b16 %v219
    %v2217 = vunpack.c.l.b16 %v220
    %v2218 = vunpack.c.h.b16 %v220
    %v2219 = vunpack.c.l.b16 %v221
    %v2220 = vunpack.c.h.b16 %v221
    %v2221 = vunpack.c.l.b16 %v222
    %v2222 = vunpack.c.h.b16 %v222
    %v2223 = vunpack.c.l.b16 %v223
    %v2224 = vunpack.c.h.b16 %v223
    %v2225 = vunpack.c.l.b16 %v224
    %v2226 = vunpack.c.h.b16 %v224
    %v2227 = vunpack.c.l.b16 %v225
    %v2228 = vunpack.c.h.b16 %v225
    %v2229 = vunpack.c.l.b16 %v226
    %v2230 = vunpack.c.h.b16 %v226
    %v2231 = vunpack.c.l.b16 %v227
    %v2232 = vunpack.c.h.b16 %v227
    %v2233 = vunpack.c.l.b16 %v228
    %v2234 = vunpack.c.h.b16 %v228
    %v2235 = vunpack.c.l.b16 %v229
    %v2236 = vunpack.c.h.b16 %v229
    %v2237 = vunpack.c.l.b16 %v230
    %v2238 = vunpack.c.h.b16 %v230
    %v2239 = vunpack.c.l.b16 %v231
    %v2240 = vunpack.c.h.b16 %v231
    %v2241 = vunpack.c.l.b16 %v232
    %v2242 = vunpack.c.h.b16 %v232
    %v2243 = vunpack.c.l.b16 %v233
    %v2244 = vunpack.c.h.b16 %v233
    %v2245 = vunpack.c.l.b16 %v234
    %v2246 = vunpack.c.h.b16 %v234
    %v2247 = vunpack.c.l.b16 %v235
    %v2248 = vunpack.c.h.b16 %v235
    %v2249 = vunpack.c.l.b16 %v236
    %v2250 = vunpack.c.h.b16 %v236
    %v2251 = vunpack.c.l.b16 %v237
    %v2252 = vunpack.c.h.b16 %v237
    %v2253 = vunpack.c.l.b16 %v238
    %v2254 = vunpack.c.h.b16 %v238
    %v2255 = vunpack.c.l.b16 %v239
    %v2256 = vunpack.c.h.b16 %v239
    %v2257 = vunpack.c.l.b16 %v240
    %v2258 = vunpack.c.h.b16 %v240
    %v2259 = vunpack.c.l.b16 %v241
    %v2260 = vunpack.c.h.b16 %v241
    %v2261 = vunpack.c.l.b16 %v242
    %v2262 = vunpack.c.h.b16 %v242
    %v2263 = vunpack.c.l.b16 %v243
    %v2264 = vunpack.c.h.b16 %v243
    %v2265 = vunpack.c.l.b16 %v244
    %v2266 = vunpack.c.h.b16 %v244
    %v2267 = vunpack.c.l.b16 %v245
    %v2268 = vunpack.c.h.b16 %v245
    %v2269 = vunpack.c.l.b16 %v246
    %v2270 = vunpack.c.h.b16 %v246
    %v2271 = vunpack.c.l.b16 %v247
    %v2272 = vunpack.c.h.b16 %v247
    %v2273 = vunpack.c.l.b16 %v248
    %v2274 = vunpack.c.h.b16 %v248
    %v2275 = vunpack.c.l.b16 %v249
    %v2276 = vunpack.c.h.b16 %v249
    %v2277 = vunpack.c.l.b16 %v250
    %v2278 = vunpack.c.h.b16 %v250
    %v2279 = vunpack.c.l.b16 %v251
    %v2280 = vunpack.c.h.b16 %v251
    %v2281 = vunpack.c.l.b16 %v252
    %v2282 = vunpack.c.h.b16 %v252
    %v2283 = vunpack.c.l.b16 %v253
    %v2284 = vunpack.c.h.b16 %v253
    %v2285 = vunpack.c.l.b16 %v254
    %v2286 = vunpack.c.h.b16 %v254
    %v2287 = vunpack.c.l.b16 %v255
    %v2288 = vunpack.c.h.b16 %v255
    %v2289 = vunpack.c.l.b16 %v256
    %v2290 = vunpack.c.h.b16 %v256
    %v2291 = vunpack.c.l.b16 %v257
    %v2292 = vunpack.c.h.b16 %v257
    %v2293 = vunpack.c.l.b16 %v258
    %v2294 = vunpack.c.h.b16 %v258
    %v2295 = vunpack.c.l.b16 %v259
    %v2296 = vunpack.c.h.b16 %v259
    %v2297 = vunpack.c.l.b16 %v260
    %v2298 = vunpack.c.h.b16 %v260
    %v2299 = vunpack.c.l.b16 %v261
    %v2300 = vunpack.c.h.b16 %v261
    %v2301 = vunpack.c.l.b16 %v262
    %v2302 = vunpack.c.h.b16 %v262
    %v2303 = vunpack.c.l.b16 %v263
    %v2304 = vunpack.c.h.b16 %v263
    %v2305 = vunpack.c.l.b16 %v264
    %v2306 = vunpack.c.h.b16 %v264
    %v2307 = vunpack.c.l.b16 %v265
    %v2308 = vunpack.c.h.b16 %v265
    %v2309 = vunpack.c.l.b16 %v266
    %v2310 = vunpack.c.h.b16 %v266
    %v2311 = vunpack.c.l.b16 %v267
    %v2312 = vunpack.c.h.b16 %v267
    %v2313 = vunpack.c.l.b16 %v268
    %v2314 = vunpack.c.h.b16 %v268
    %v2315 = vunpack.c.l.b16 %v269
    %v2316 = vunpack.c.h.b16 %v269
    %v2317 = vunpack.c.l.b16 %v270
    %v2318 = vunpack.c.h.b16 %v270
    %v2319 = vunpack.c.l.b16 %v271
    %v2320 = vunpack.c.h.b16 %v271
    %v2321 = vunpack.c.l.b16 %v272
    %v2322 = vunpack.c.h.b16 %v272
    %v2323 = vunpack.c.l.b16 %v273
    %v2324 = vunpack.c.h.b16 %v273
    %v2325 = vunpack.c.l.b16 %v274
    %v2326 = vunpack.c.h.b16 %v274
    %v2327 = vunpack.c.l.b16 %v275
    %v2328 = vunpack.c.h.b16 %v275
    %v2329 = vunpack.c.l.b16 %v276
    %v2330 = vunpack.c.h.b16 %v276
    %v2331 = vunpack.c.l.b16 %v277
    %v2332 = vunpack.c.h.b16 %v277
    %v2333 = vunpack.c.l.b16 %v278
    %v2334 = vunpack.c.h.b16 %v278
    %v2335 = vunpack.c.l.b16 %v279
    %v2336 = vunpack.c.h.b16 %v279
    %v2337 = vunpack.c.l.b16 %v280
    %v2338 = vunpack.c.h.b16 %v280
    %v2339 = vunpack.c.l.b16 %v281
    %v2340 = vunpack.c.h.b16 %v281
    %v2341 = vunpack.c.l.b16 %v282
    %v2342 = vunpack.c.h.b16 %v282
    %v2343 = vunpack.c.l.b16 %v283
    %v2344 = vunpack.c.h.b16 %v283
    %v2345 = vunpack.c.l.b16 %v284
    %v2346 = vunpack.c.h.b16 %v284
    %v2347 = vunpack.c.l.b16 %v285
    %v2348 = vunpack.c.h.b16 %v285
    %v2349 = vunpack.c.l.b16 %v286
    %v2350 = vunpack.c.h.b16 %v286
    %v2351 = vunpack.c.l.b16 %v287
    %v2352 = vunpack.c.h.b16 %v287
    %v2353 = vunpack.c.l.b16 %v288
    %v2354 = vunpack.c.h.b16 %v288
    %v2355 = vunpack.c.l.b16 %v289
    %v2356 = vunpack.c.h.b16 %v289
    %v2357 = vunpack.c.l.b16 %v290
    %v2358 = vunpack.c.h.b16 %v290
    %v2359 = vunpack.c.l.b16 %v291
    %v2360 = vunpack.c.h.b16 %v291
    %v2361 = vunpack.c.l.b16 %v292
    %v2362 = vunpack.c.h.b16 %v292
    %v2363 = vunpack.c.l.b16 %v293
    %v2364 = vunpack.c.h.b16 %v293
    %v2365 = vunpack.c.l.b16 %v294
    %v2366 = vunpack.c.h.b16 %v294
    %v2367 = vunpack.c.l.b16 %v295
    %v2368 = vunpack.c.h.b16 %v295
    %v2369 = vunpack.c.l.b16 %v296
    %v2370 = vunpack.c.h.b16 %v296
    %v2371 = vunpack.c.l.b16 %v297
    %v2372 = vunpack.c.h.b16 %v297
    %v2373 = vunpack.c.l.b16 %v298
    %v2374 = vunpack.c.h.b16 %v298
    %v2375 = vunpack.c.l.b16 %v299
    %v2376 = vunpack.c.h.b16 %v299
    %v2377 = vunpack.c.l.b16 %v300
    %v2378 = vunpack.c.h.b16 %v300
    %v2379 = vunpack.c.l.b16 %v301
    %v2380 = vunpack.c.h.b16 %v301
    %v2381 = vunpack.c.l.b16 %v302
    %v2382 = vunpack.c.h.b16 %v302
    %v2383 = vunpack.c.l.b16 %v303
    %v2384 = vunpack.c.h.b16 %v303
    %v2385 = vunpack.c.l.b16 %v304
    %v2386 = vunpack.c.h.b16 %v304
    %v2387 = vunpack.c.l.b16 %v305
    %v2388 = vunpack.c.h.b16 %v305
    %v2389 = vunpack.c.l.b16 %v306
    %v2390 = vunpack.c.h.b16 %v306
    %v2391 = vunpack.c.l.b16 %v307
    %v2392 = vunpack.c.h.b16 %v307
    %v2393 = vunpack.c.l.b16 %v308
    %v2394 = vunpack.c.h.b16 %v308
    %v2395 = vunpack.c.l.b16 %v309
    %v2396 = vunpack.c.h.b16 %v309
    %v2397 = vunpack.c.l.b16 %v310
    %v2398 = vunpack.c.h.b16 %v310
    %v2399 = vunpack.c.l.b16 %v311
    %v2400 = vunpack.c.h.b16 %v311
    %v2401 = vunpack.c.l.b16 %v312
    %v2402 = vunpack.c.h.b16 %v312
    %v2403 = vunpack.c.l.b16 %v313
    %v2404 = vunpack.c.h.b16 %v313
    %v2405 = vunpack.c.l.b16 %v314
    %v2406 = vunpack.c.h.b16 %v314
    %v2407 = vunpack.c.l.b16 %v315
    %v2408 = vunpack.c.h.b16 %v315
    %v2409 = vunpack.c.l.b16 %v316
    %v2410 = vunpack.c.h.b16 %v316
    %v2411 = vunpack.c.l.b16 %v317
    %v2412 = vunpack.c.h.b16 %v317
    %v2413 = vunpack.c.l.b16 %v318
    %v2414 = vunpack.c.h.b16 %v318
    %v2415 = vunpack.c.l.b16 %v319
    %v2416 = vunpack.c.h.b16 %v319
    %v2417 = vunpack.c.l.b16 %v320
    %v2418 = vunpack.c.h.b16 %v320
    %v2419 = vunpack.c.l.b16 %v321
    %v2420 = vunpack.c.h.b16 %v321
    %v2421 = vunpack.c.l.b16 %v322
    %v2422 = vunpack.c.h.b16 %v322
    %v2423 = vunpack.c.l.b16 %v323
    %v2424 = vunpack.c.h.b16 %v323
    %v2425 = vunpack.c.l.b16 %v324
    %v2426 = vunpack.c.h.b16 %v324
    %v2427 = vunpack.c.l.b16 %v325
    %v2428 = vunpack.c.h.b16 %v325
    %v2429 = vunpack.c.l.b16 %v326
    %v2430 = vunpack.c.h.b16 %v326
    %v2431 = vunpack.c.l.b16 %v327
    %v2432 = vunpack.c.h.b16 %v327
    %v2433 = vunpack.c.l.b16 %v328
    %v2434 = vunpack.c.h.b16 %v328
    %v2435 = vunpack.c.l.b16 %v329
    %v2436 = vunpack.c.h.b16 %v329
    %v2437 = vunpack.c.l.b16 %v330
    %v2438 = vunpack.c.h.b16 %v330
    %v2439 = vunpack.c.l.b16 %v331
    %v2440 = vunpack.c.h.b16 %v331
    %v2441 = vunpack.c.l.b16 %v332
    %v2442 = vunpack.c.h.b16 %v332
    %v2443 = vunpack.c.l.b16 %v333
    %v2444 = vunpack.c.h.b16 %v333
    %v2445 = vunpack.c.l.b16 %v334
    %v2446 = vunpack.c.h.b16 %v334
    %v2447 = vunpack.c.l.b16 %v335
    %v2448 = vunpack.c.h.b16 %v335
    %v2449 = vunpack.c.l.b16 %v336
    %v2450 = vunpack.c.h.b16 %v336
    %v2451 = vunpack.c.l.b16 %v337
    %v2452 = vunpack.c.h.b16 %v337
    %v2453 = vunpack.c.l.b16 %v338
    %v2454 = vunpack.c.h.b16 %v338
    %v2455 = vunpack.c.l.b16 %v339
    %v2456 = vunpack.c.h.b16 %v339
    %v2457 = vunpack.c.l.b16 %v340
    %v2458 = vunpack.c.h.b16 %v340
    %v2459 = vunpack.c.l.b16 %v341
    %v2460 = vunpack.c.h.b16 %v341
    %v2461 = vunpack.c.l.b16 %v342
    %v2462 = vunpack.c.h.b16 %v342
    %v2463 = vunpack.c.l.b16 %v343
    %v2464 = vunpack.c.h.b16 %v343
    %v2465 = vunpack.c.l.b16 %v344
    %v2466 = vunpack.c.h.b16 %v344
    %v2467 = vunpack.c.l.b16 %v345
    %v2468 = vunpack.c.h.b16 %v345
    %v2469 = vunpack.c.l.b16 %v346
    %v2470 = vunpack.c.h.b16 %v346
    %v2471 = vunpack.c.l.b16 %v347
    %v2472 = vunpack.c.h.b16 %v347
    %v2473 = vunpack.c.l.b16 %v348
    %v2474 = vunpack.c.h.b16 %v348
    %v2475 = vunpack.c.l.b16 %v349
    %v2476 = vunpack.c.h.b16 %v349
    %v2477 = vunpack.c.l.b16 %v350
    %v2478 = vunpack.c.h.b16 %v350
    %v2479 = vunpack.c.l.b16 %v351
    %v2480 = vunpack.c.h.b16 %v351
    %v2481 = vunpack.c.l.b16 %v352
    %v2482 = vunpack.c.h.b16 %v352
    %v2483 = vunpack.c.l.b16 %v353
    %v2484 = vunpack.c.h.b16 %v353
    %v2485 = vunpack.c.l.b16 %v354
    %v2486 = vunpack.c.h.b16 %v354
    %v2487 = vunpack.c.l.b16 %v355
    %v2488 = vunpack.c.h.b16 %v355
    %v2489 = vunpack.c.l.b16 %v356
    %v2490 = vunpack.c.h.b16 %v356
    %v2491 = vunpack.c.l.b16 %v357
    %v2492 = vunpack.c.h.b16 %v357
    %v2493 = vunpack.c.l.b16 %v358
    %v2494 = vunpack.c.h.b16 %v358
    %v2495 = vunpack.c.l.b16 %v359
    %v2496 = vunpack.c.h.b16 %v359
    %v2497 = vunpack.c.l.b16 %v360
    %v2498 = vunpack.c.h.b16 %v360
    %v2499 = vunpack.c.l.b16 %v361
    %v2500 = vunpack.c.h.b16 %v361
    %v2501 = vunpack.c.l.b16 %v362
    %v2502 = vunpack.c.h.b16 %v362
    %v2503 = vunpack.c.l.b16 %v363
    %v2504 = vunpack.c.h.b16 %v363
    %v2505 = vunpack.c.l.b16 %v364
    %v2506 = vunpack.c.h.b16 %v364
    %v2507 = vunpack.c.l.b16 %v365
    %v2508 = vunpack.c.h.b16 %v365
    %v2509 = vunpack.c.l.b16 %v366
    %v2510 = vunpack.c.h.b16 %v366
    %v2511 = vunpack.c.l.b16 %v367
    %v2512 = vunpack.c.h.b16 %v367
    %v2513 = vunpack.c.l.b16 %v368
    %v2514 = vunpack.c.h.b16 %v368
    %v2515 = vunpack.c.l.b16 %v369
    %v2516 = vunpack.c.h.b16 %v369
    %v2517 = vunpack.c.l.b16 %v370
    %v2518 = vunpack.c.h.b16 %v370
    %v2519 = vunpack.c.l.b16 %v371
    %v2520 = vunpack.c.h.b16 %v371
    %v2521 = vunpack.c.l.b16 %v372
    %v2522 = vunpack.c.h.b16 %v372
    %v2523 = vunpack.c.l.b16 %v373
    %v2524 = vunpack.c.h.b16 %v373
    %v2525 = vunpack.c.l.b16 %v374
    %v2526 = vunpack.c.h.b16 %v374
    %v2527 = vunpack.c.l.b16 %v375
    %v2528 = vunpack.c.h.b16 %v375
    %v2529 = vunpack.c.l.b16 %v376
    %v2530 = vunpack.c.h.b16 %v376
    %v2531 = vunpack.c.l.b16 %v377
    %v2532 = vunpack.c.h.b16 %v377
    %v2533 = vunpack.c.l.b16 %v378
    %v2534 = vunpack.c.h.b16 %v378
    %v2535 = vunpack.c.l.b16 %v379
    %v2536 = vunpack.c.h.b16 %v379
    %v2537 = vunpack.c.l.b16 %v380
    %v2538 = vunpack.c.h.b16 %v380
    %v2539 = vunpack.c.l.b16 %v381
    %v2540 = vunpack.c.h.b16 %v381
    %v2541 = vunpack.c.l.b16 %v382
    %v2542 = vunpack.c.h.b16 %v382
    %v2543 = vunpack.c.l.b16 %v383
    %v2544 = vunpack.c.h.b16 %v383
    %v2545 = vunpack.c.l.b16 %v384
    %v2546 = vunpack.c.h.b16 %v384
    %v2547 = vunpack.c.l.b16 %v385
    %v2548 = vunpack.c.h.b16 %v385
    %v2549 = vunpack.c.l.b16 %v386
    %v2550 = vunpack.c.h.b16 %v386
    %v2551 = vunpack.c.l.b16 %v387
    %v2552 = vunpack.c.h.b16 %v387
    %v2553 = vunpack.c.l.b16 %v388
    %v2554 = vunpack.c.h.b16 %v388
    %v2555 = vunpack.c.l.b16 %v389
    %v2556 = vunpack.c.h.b16 %v389
    %v2557 = vunpack.c.l.b16 %v390
    %v2558 = vunpack.c.h.b16 %v390
    %v2559 = vunpack.c.l.b16 %v391
    %v2560 = vunpack.c.h.b16 %v391
    %v2561 = vunpack.c.l.b16 %v392
    %v2562 = vunpack.c.h.b16 %v392
    %v2563 = vunpack.c.l.b16 %v393
    %v2564 = vunpack.c.h.b16 %v393
    %v2565 = vunpack.c.l.b16 %v394
    %v2566 = vunpack.c.h.b16 %v394
    %v2567 = vunpack.c.l.b16 %v395
    %v2568 = vunpack.c.h.b16 %v395
    %v2569 = vunpack.c.l.b16 %v396
    %v2570 = vunpack.c.h.b16 %v396
    %v2571 = vunpack.c.l.b16 %v397
    %v2572 = vunpack.c.h.b16 %v397
    %v2573 = vunpack.c.l.b16 %v398
    %v2574 = vunpack.c.h.b16 %v398
    %v2575 = vunpack.c.l.b16 %v399
    %v2576 = vunpack.c.h.b16 %v399
    %v2577 = vunpack.c.l.b16 %v400
    %v2578 = vunpack.c.h.b16 %v400
    %v2579 = vunpack.c.l.b16 %v401
    %v2580 = vunpack.c.h.b16 %v401
    %v2581 = vunpack.c.l.b16 %v402
    %v2582 = vunpack.c.h.b16 %v402
    %v2583 = vunpack.c.l.b16 %v403
    %v2584 = vunpack.c.h.b16 %v403
    %v2585 = vunpack.c.l.b16 %v404
    %v2586 = vunpack.c.h.b16 %v404
    %v2587 = vunpack.c.l.b16 %v405
    %v2588 = vunpack.c.h.b16 %v405
    %v2589 = vunpack.c.l.b16 %v406
    %v2590 = vunpack.c.h.b16 %v406
    %v2591 = vunpack.c.l.b16 %v407
    %v2592 = vunpack.c.h.b16 %v407
    %v2593 = vunpack.c.l.b16 %v408
    %v2594 = vunpack.c.h.b16 %v408
    %v2595 = vunpack.c.l.b16 %v409
    %v2596 = vunpack.c.h.b16 %v409
    %v2597 = vunpack.c.l.b16 %v410
    %v2598 = vunpack.c.h.b16 %v410
    %v2599 = vunpack.c.l.b16 %v411
    %v2600 = vunpack.c.h.b16 %v411
    %v2601 = vunpack.c.l.b16 %v412
    %v2602 = vunpack.c.h.b16 %v412
    %v2603 = vunpack.c.l.b16 %v413
    %v2604 = vunpack.c.h.b16 %v413
    %v2605 = vunpack.c.l.b16 %v414
    %v2606 = vunpack.c.h.b16 %v414
    %v2607 = vunpack.c.l.b16 %v415
    %v2608 = vunpack.c.h.b16 %v415
    %v2609 = vunpack.c.l.b16 %v416
    %v2610 = vunpack.c.h.b16 %v416
    %v2611 = vunpack.c.l.b16 %v417
    %v2612 = vunpack.c.h.b16 %v417
    %v2613 = vunpack.c.l.b16 %v418
    %v2614 = vunpack.c.h.b16 %v418
    %v2615 = vunpack.c.l.b16 %v419
    %v2616 = vunpack.c.h.b16 %v419
    %v2617 = vunpack.c.l.b16 %v420
    %v2618 = vunpack.c.h.b16 %v420
    %v2619 = vunpack.c.l.b16 %v421
    %v2620 = vunpack.c.h.b16 %v421
    %v2621 = vunpack.c.l.b16 %v422
    %v2622 = vunpack.c.h.b16 %v422
    %v2623 = vunpack.c.l.b16 %v423
    %v2624 = vunpack.c.h.b16 %v423
    %v2625 = vunpack.c.l.b16 %v424
    %v2626 = vunpack.c.h.b16 %v424
    %v2627 = vunpack.c.l.b16 %v425
    %v2628 = vunpack.c.h.b16 %v425
    %v2629 = vunpack.c.l.b16 %v426
    %v2630 = vunpack.c.h.b16 %v426
    %v2631 = vunpack.c.l.b16 %v427
    %v2632 = vunpack.c.h.b16 %v427
    %v2633 = vunpack.c.l.b16 %v428
    %v2634 = vunpack.c.h.b16 %v428
    %v2635 = vunpack.c.l.b16 %v429
    %v2636 = vunpack.c.h.b16 %v429
    %v2637 = vunpack.c.l.b16 %v430
    %v2638 = vunpack.c.h.b16 %v430
    %v2639 = vunpack.c.l.b16 %v431
    %v2640 = vunpack.c.h.b16 %v431
    %v2641 = vunpack.c.l.b16 %v432
    %v2642 = vunpack.c.h.b16 %v432
    %v2643 = vunpack.c.l.b16 %v433
    %v2644 = vunpack.c.h.b16 %v433
    %v2645 = vunpack.c.l.b16 %v434
    %v2646 = vunpack.c.h.b16 %v434
    %v2647 = vunpack.c.l.b16 %v435
    %v2648 = vunpack.c.h.b16 %v435
    %v2649 = vunpack.c.l.b16 %v436
    %v2650 = vunpack.c.h.b16 %v436
    %v2651 = vunpack.c.l.b16 %v437
    %v2652 = vunpack.c.h.b16 %v437
    %v2653 = vunpack.c.l.b16 %v438
    %v2654 = vunpack.c.h.b16 %v438
    %v2655 = vunpack.c.l.b16 %v439
    %v2656 = vunpack.c.h.b16 %v439
    %v2657 = vunpack.c.l.b16 %v440
    %v2658 = vunpack.c.h.b16 %v440
    %v2659 = vunpack.c.l.b16 %v441
    %v2660 = vunpack.c.h.b16 %v441
    %v2661 = vunpack.c.l.b16 %v442
    %v2662 = vunpack.c.h.b16 %v442
    %v2663 = vunpack.c.l.b16 %v443
    %v2664 = vunpack.c.h.b16 %v443
    %v2665 = vunpack.c.l.b16 %v444
    %v2666 = vunpack.c.h.b16 %v444
    %v2667 = vunpack.c.l.b16 %v445
    %v2668 = vunpack.c.h.b16 %v445
    %v2669 = vunpack.c.l.b16 %v446
    %v2670 = vunpack.c.h.b16 %v446
    %v2671 = vunpack.c.l.b16 %v447
    %v2672 = vunpack.c.h.b16 %v447
    %v2673 = vunpack.c.l.b16 %v448
    %v2674 = vunpack.c.h.b16 %v448
    %v2675 = vunpack.c.l.b16 %v449
    %v2676 = vunpack.c.h.b16 %v449
    %v2677 = vunpack.c.l.b16 %v450
    %v2678 = vunpack.c.h.b16 %v450
    %v2679 = vunpack.c.l.b16 %v451
    %v2680 = vunpack.c.h.b16 %v451
    %v2681 = vunpack.c.l.b16 %v452
    %v2682 = vunpack.c.h.b16 %v452
    %v2683 = vunpack.c.l.b16 %v453
    %v2684 = vunpack.c.h.b16 %v453
    %v2685 = vunpack.c.l.b16 %v454
    %v2686 = vunpack.c.h.b16 %v454
    %v2687 = vunpack.c.l.b16 %v455
    %v2688 = vunpack.c.h.b16 %v455
    %v2689 = vunpack.c.l.b16 %v456
    %v2690 = vunpack.c.h.b16 %v456
    %v2691 = vunpack.c.l.b16 %v457
    %v2692 = vunpack.c.h.b16 %v457
    %v2693 = vunpack.c.l.b16 %v458
    %v2694 = vunpack.c.h.b16 %v458
    %v2695 = vunpack.c.l.b16 %v459
    %v2696 = vunpack.c.h.b16 %v459
    %v2697 = vunpack.c.l.b16 %v460
    %v2698 = vunpack.c.h.b16 %v460
    %v2699 = vunpack.c.l.b16 %v461
    %v2700 = vunpack.c.h.b16 %v461
    %v2701 = vunpack.c.l.b16 %v462
    %v2702 = vunpack.c.h.b16 %v462
    %v2703 = vunpack.c.l.b16 %v463
    %v2704 = vunpack.c.h.b16 %v463
    %v2705 = vunpack.c.l.b16 %v464
    %v2706 = vunpack.c.h.b16 %v464
    %v2707 = vunpack.c.l.b16 %v465
    %v2708 = vunpack.c.h.b16 %v465
    %v2709 = vunpack.c.l.b16 %v466
    %v2710 = vunpack.c.h.b16 %v466
    %v2711 = vunpack.c.l.b16 %v467
    %v2712 = vunpack.c.h.b16 %v467
    %v2713 = vunpack.c.l.b16 %v468
    %v2714 = vunpack.c.h.b16 %v468
    %v2715 = vunpack.c.l.b16 %v469
    %v2716 = vunpack.c.h.b16 %v469
    %v2717 = vunpack.c.l.b16 %v470
    %v2718 = vunpack.c.h.b16 %v470
    %v2719 = vunpack.c.l.b16 %v471
    %v2720 = vunpack.c.h.b16 %v471
    %v2721 = vunpack.c.l.b16 %v472
    %v2722 = vunpack.c.h.b16 %v472
    %v2723 = vunpack.c.l.b16 %v473
    %v2724 = vunpack.c.h.b16 %v473
    %v2725 = vunpack.c.l.b16 %v474
    %v2726 = vunpack.c.h.b16 %v474
    %v2727 = vunpack.c.l.b16 %v475
    %v2728 = vunpack.c.h.b16 %v475
    %v2729 = vunpack.c.l.b16 %v476
    %v2730 = vunpack.c.h.b16 %v476
    %v2731 = vunpack.c.l.b16 %v477
    %v2732 = vunpack.c.h.b16 %v477
    %v2733 = vunpack.c.l.b16 %v478
    %v2734 = vunpack.c.h.b16 %v478
    %v2735 = vunpack.c.l.b16 %v479
    %v2736 = vunpack.c.h.b16 %v479
    %v2737 = vunpack.c.l.b16 %v480
    %v2738 = vunpack.c.h.b16 %v480
    %v2739 = vunpack.c.l.b16 %v481
    %v2740 = vunpack.c.h.b16 %v481
    %v2741 = vunpack.c.l.b16 %v482
    %v2742 = vunpack.c.h.b16 %v482
    %v2743 = vunpack.c.l.b16 %v483
    %v2744 = vunpack.c.h.b16 %v483
    %v2745 = vunpack.c.l.b16 %v484
    %v2746 = vunpack.c.h.b16 %v484
    %v2747 = vunpack.c.l.b16 %v485
    %v2748 = vunpack.c.h.b16 %v485
    %v2749 = vunpack.c.l.b16 %v486
    %v2750 = vunpack.c.h.b16 %v486
    %v2751 = vunpack.c.l.b16 %v487
    %v2752 = vunpack.c.h.b16 %v487
    %v2753 = vunpack.c.l.b16 %v488
    %v2754 = vunpack.c.h.b16 %v488
    %v2755 = vunpack.c.l.b16 %v489
    %v2756 = vunpack.c.h.b16 %v489
    %v2757 = vunpack.c.l.b16 %v490
    %v2758 = vunpack.c.h.b16 %v490
    %v2759 = vunpack.c.l.b16 %v491
    %v2760 = vunpack.c.h.b16 %v491
    %v2761 = vunpack.c.l.b16 %v492
    %v2762 = vunpack.c.h.b16 %v492
    %v2763 = vunpack.c.l.b16 %v493
    %v2764 = vunpack.c.h.b16 %v493
    %v2765 = vunpack.c.l.b16 %v494
    %v2766 = vunpack.c.h.b16 %v494
    %v2767 = vunpack.c.l.b16 %v495
    %v2768 = vunpack.c.h.b16 %v495
    %v2769 = vunpack.c.l.b16 %v496
    %v2770 = vunpack.c.h.b16 %v496
    %v2771 = vunpack.c.l.b16 %v497
    %v2772 = vunpack.c.h.b16 %v497
    %v2773 = vunpack.c.l.b16 %v498
    %v2774 = vunpack.c.h.b16 %v498
    %v2775 = vunpack.c.l.b16 %v499
    %v2776 = vunpack.c.h.b16 %v499
    %v2777 = vunpack.c.l.b16 %v500
    %v2778 = vunpack.c.h.b16 %v500
    %v2779 = vunpack.c.l.b16 %v501
    %v2780 = vunpack.c.h.b16 %v501
    %v2781 = vunpack.c.l.b16 %v502
    %v2782 = vunpack.c.h.b16 %v502
    %v2783 = vunpack.c.l.b16 %v503
    %v2784 = vunpack.c.h.b16 %v503
    %v2785 = vunpack.c.l.b16 %v504
    %v2786 = vunpack.c.h.b16 %v504
    %v2787 = vunpack.c.l.b16 %v505
    %v2788 = vunpack.c.h.b16 %v505
    %v2789 = vunpack.c.l.b16 %v506
    %v2790 = vunpack.c.h.b16 %v506
    %v2791 = vunpack.c.l.b16 %v507
    %v2792 = vunpack.c.h.b16 %v507
    %v2793 = vunpack.c.l.b16 %v508
    %v2794 = vunpack.c.h.b16 %v508
    %v2795 = vunpack.c.l.b16 %v509
    %v2796 = vunpack.c.h.b16 %v509
    %v2797 = vunpack.c.l.b16 %v510
    %v2798 = vunpack.c.h.b16 %v510
    %v2799 = vunpack.c.l.b16 %v511
    %v2800 = vunpack.c.h.b16 %v511
    %v2801 = vunpack.c.l.b16 %v512
    %v2802 = vunpack.c.h.b16 %v512
    %v2803 = vunpack.c.l.b16 %v513
    %v2804 = vunpack.c.h.b16 %v513
    %v2805 = vunpack.c.l.b16 %v514
    %v2806 = vunpack.c.h.b16 %v514
    %v2807 = vunpack.c.l.b16 %v515
    %v2808 = vunpack.c.h.b16 %v515
    %v2809 = vunpack.c.l.b16 %v516
    %v2810 = vunpack.c.h.b16 %v516
    %v2811 = vunpack.c.l.b16 %v517
    %v2812 = vunpack.c.h.b16 %v517
    %v2813 = vunpack.c.l.b16 %v518
    %v2814 = vunpack.c.h.b16 %v518
    %v2815 = vunpack.c.l.b16 %v519
    %v2816 = vunpack.c.h.b16 %v519
    %v2817 = vunpack.c.l.b16 %v520
    %v2818 = vunpack.c.h.b16 %v520
    %v2819 = vunpack.c.l.b16 %v521
    %v2820 = vunpack.c.h.b16 %v521
    %v2821 = vunpack.c.l.b16 %v522
    %v2822 = vunpack.c.h.b16 %v522
    %v2823 = vunpack.c.l.b16 %v523
    %v2824 = vunpack.c.h.b16 %v523
    %v2825 = vunpack.c.l.b16 %v524
    %v2826 = vunpack.c.h.b16 %v524
    %v2827 = vunpack.c.l.b16 %v525
    %v2828 = vunpack.c.h.b16 %v525
    %v2829 = vunpack.c.l.b16 %v526
    %v2830 = vunpack.c.h.b16 %v526
    %v2831 = vunpack.c.l.b16 %v527
    %v2832 = vunpack.c.h.b16 %v527
    %v2833 = vunpack.c.l.b16 %v528
    %v2834 = vunpack.c.h.b16 %v528
    %v2835 = vunpack.c.l.b16 %v529
    %v2836 = vunpack.c.h.b16 %v529
    %v2837 = vunpack.c.l.b16 %v530
    %v2838 = vunpack.c.h.b16 %v530
    %v2839 = vunpack.c.l.b16 %v531
    %v2840 = vunpack.c.h.b16 %v531
    %v2841 = vunpack.c.l.b16 %v532
    %v2842 = vunpack.c.h.b16 %v532
    %v2843 = vunpack.c.l.b16 %v533
    %v2844 = vunpack.c.h.b16 %v533
    %v2845 = vunpack.c.l.b16 %v534
    %v2846 = vunpack.c.h.b16 %v534
    %v2847 = vunpack.c.l.b16 %v535
    %v2848 = vunpack.c.h.b16 %v535
    %v2849 = vunpack.c.l.b16 %v536
    %v2850 = vunpack.c.h.b16 %v536
    %v2851 = vunpack.c.l.b16 %v537
    %v2852 = vunpack.c.h.b16 %v537
    %v2853 = vunpack.c.l.b16 %v538
    %v2854 = vunpack.c.h.b16 %v538
    %v2855 = vunpack.c.l.b16 %v539
    %v2856 = vunpack.c.h.b16 %v539
    %v2857 = vunpack.c.l.b16 %v540
    %v2858 = vunpack.c.h.b16 %v540
    %v2859 = vunpack.c.l.b16 %v541
    %v2860 = vunpack.c.h.b16 %v541
    %v2861 = vunpack.c.l.b16 %v542
    %v2862 = vunpack.c.h.b16 %v542
    %v2863 = vunpack.c.l.b16 %v543
    %v2864 = vunpack.c.h.b16 %v543
    %v2865 = vunpack.c.l.b16 %v544
    %v2866 = vunpack.c.h.b16 %v544
    %v2867 = vunpack.c.l.b16 %v545
    %v2868 = vunpack.c.h.b16 %v545
    %v2869 = vunpack.c.l.b16 %v546
    %v2870 = vunpack.c.h.b16 %v546
    %v2871 = vunpack.c.l.b16 %v547
    %v2872 = vunpack.c.h.b16 %v547
    %v2873 = vunpack.c.l.b16 %v548
    %v2874 = vunpack.c.h.b16 %v548
    %v2875 = vunpack.c.l.b16 %v549
    %v2876 = vunpack.c.h.b16 %v549
    %v2877 = vunpack.c.l.b16 %v550
    %v2878 = vunpack.c.h.b16 %v550
    %v2879 = vunpack.c.l.b16 %v551
    %v2880 = vunpack.c.h.b16 %v551
    %v2881 = vunpack.c.l.b16 %v552
    %v2882 = vunpack.c.h.b16 %v552
    %v2883 = vunpack.c.l.b16 %v553
    %v2884 = vunpack.c.h.b16 %v553
    %v2885 = vunpack.c.l.b16 %v554
    %v2886 = vunpack.c.h.b16 %v554
    %v2887 = vunpack.c.l.b16 %v555
    %v2888 = vunpack.c.h.b16 %v555
    %v2889 = vunpack.c.l.b16 %v556
    %v2890 = vunpack.c.h.b16 %v556
    %v2891 = vunpack.c.l.b16 %v557
    %v2892 = vunpack.c.h.b16 %v557
    %v2893 = vunpack.c.l.b16 %v558
    %v2894 = vunpack.c.h.b16 %v558
    %v2895 = vunpack.c.l.b16 %v559
    %v2896 = vunpack.c.h.b16 %v559
    %v2897 = vunpack.c.l.b16 %v560
    %v2898 = vunpack.c.h.b16 %v560
    %v2899 = vunpack.c.l.b16 %v561
    %v2900 = vunpack.c.h.b16 %v561
    %v2901 = vunpack.c.l.b16 %v562
    %v2902 = vunpack.c.h.b16 %v562
    %v2903 = vunpack.c.l.b16 %v563
    %v2904 = vunpack.c.h.b16 %v563
    %v2905 = vunpack.c.l.b16 %v564
    %v2906 = vunpack.c.h.b16 %v564
    %v2907 = vunpack.c.l.b16 %v565
    %v2908 = vunpack.c.h.b16 %v565
    %v2909 = vunpack.c.l.b16 %v566
    %v2910 = vunpack.c.h.b16 %v566
    %v2911 = vunpack.c.l.b16 %v567
    %v2912 = vunpack.c.h.b16 %v567
    %v2913 = vunpack.c.l.b16 %v568
    %v2914 = vunpack.c.h.b16 %v568
    %v2915 = vunpack.c.l.b16 %v569
    %v2916 = vunpack.c.h.b16 %v569
    %v2917 = vunpack.c.l.b16 %v570
    %v2918 = vunpack.c.h.b16 %v570
    %v2919 = vunpack.c.l.b16 %v571
    %v2920 = vunpack.c.h.b16 %v571
    %v2921 = vunpack.c.l.b16 %v572
    %v2922 = vunpack.c.h.b16 %v572
    %v2923 = vunpack.c.l.b16 %v573
    %v2924 = vunpack.c.h.b16 %v573
    %v2925 = vunpack.c.l.b16 %v574
    %v2926 = vunpack.c.h.b16 %v574
    %v2927 = vunpack.c.l.b16 %v575
    %v2928 = vunpack.c.h.b16 %v575
    %v2929 = vunpack.c.l.b16 %v576
    %v2930 = vunpack.c.h.b16 %v576
    %v2931 = vunpack.c.l.b16 %v577
    %v2932 = vunpack.c.h.b16 %v577
    %v2933 = vunpack.c.l.b16 %v578
    %v2934 = vunpack.c.h.b16 %v578
    %v2935 = vunpack.c.l.b16 %v579
    %v2936 = vunpack.c.h.b16 %v579
    %v2937 = vunpack.c.l.b16 %v580
    %v2938 = vunpack.c.h.b16 %v580
    %v2939 = vunpack.c.l.b16 %v581
    %v2940 = vunpack.c.h.b16 %v581
    %v2941 = vunpack.c.l.b16 %v582
    %v2942 = vunpack.c.h.b16 %v582
    %v2943 = vunpack.c.l.b16 %v583
    %v2944 = vunpack.c.h.b16 %v583
    %v2945 = vunpack.c.l.b16 %v584
    %v2946 = vunpack.c.h.b16 %v584
    %v2947 = vunpack.c.l.b16 %v585
    %v2948 = vunpack.c.h.b16 %v585
    %v2949 = vunpack.c.l.b16 %v586
    %v2950 = vunpack.c.h.b16 %v586
    %v2951 = vunpack.c.l.b16 %v587
    %v2952 = vunpack.c.h.b16 %v587
    %v2953 = vunpack.c.l.b16 %v588
    %v2954 = vunpack.c.h.b16 %v588
    %v2955 = vunpack.c.l.b16 %v589
    %v2956 = vunpack.c.h.b16 %v589
    %v2957 = vunpack.c.l.b16 %v590
    %v2958 = vunpack.c.h.b16 %v590
    %v2959 = vunpack.c.l.b16 %v591
    %v2960 = vunpack.c.h.b16 %v591
    %v2961 = vunpack.c.l.b16 %v592
    %v2962 = vunpack.c.h.b16 %v592
    %v2963 = vunpack.c.l.b16 %v593
    %v2964 = vunpack.c.h.b16 %v593
    %v2965 = vunpack.c.l.b16 %v594
    %v2966 = vunpack.c.h.b16 %v594
    %v2967 = vunpack.c.l.b16 %v595
    %v2968 = vunpack.c.h.b16 %v595
    %v2969 = vunpack.c.l.b16 %v596
    %v2970 = vunpack.c.h.b16 %v596
    %v2971 = vunpack.c.l.b16 %v597
    %v2972 = vunpack.c.h.b16 %v597
    %v2973 = vunpack.c.l.b16 %v598
    %v2974 = vunpack.c.h.b16 %v598
    %v2975 = vunpack.c.l.b16 %v599
    %v2976 = vunpack.c.h.b16 %v599
    %v2977 = vunpack.c.l.b16 %v600
    %v2978 = vunpack.c.h.b16 %v600
    %v2979 = vunpack.c.l.b16 %v601
    %v2980 = vunpack.c.h.b16 %v601
    %v2981 = vunpack.c.l.b16 %v602
    %v2982 = vunpack.c.h.b16 %v602
    %v2983 = vunpack.c.l.b16 %v603
    %v2984 = vunpack.c.h.b16 %v603
    %v2985 = vunpack.c.l.b16 %v604
    %v2986 = vunpack.c.h.b16 %v604
    %v2987 = vunpack.c.l.b16 %v605
    %v2988 = vunpack.c.h.b16 %v605
    %v2989 = vunpack.c.l.b16 %v606
    %v2990 = vunpack.c.h.b16 %v606
    %v2991 = vunpack.c.l.b16 %v607
    %v2992 = vunpack.c.h.b16 %v607
    %v2993 = vunpack.c.l.b16 %v608
    %v2994 = vunpack.c.h.b16 %v608
    %v2995 = vunpack.c.l.b16 %v609
    %v2996 = vunpack.c.h.b16 %v609
    %v2997 = vunpack.c.l.b16 %v610
    %v2998 = vunpack.c.h.b16 %v610
    %v2999 = vunpack.c.l.b16 %v611
    %v3000 = vunpack.c.h.b16 %v611
    %v3001 = vunpack.c.l.b16 %v612
    %v3002 = vunpack.c.h.b16 %v612
    %v3003 = vunpack.c.l.b16 %v613
    %v3004 = vunpack.c.h.b16 %v613
    %v3005 = vunpack.c.l.b16 %v614
    %v3006 = vunpack.c.h.b16 %v614
    %v3007 = vunpack.c.l.b16 %v615
    %v3008 = vunpack.c.h.b16 %v615
    %v3009 = vunpack.c.l.b16 %v616
    %v3010 = vunpack.c.h.b16 %v616
    %v3011 = vunpack.c.l.b16 %v617
    %v3012 = vunpack.c.h.b16 %v617
    %v3013 = vunpack.c.l.b16 %v618
    %v3014 = vunpack.c.h.b16 %v618
    %v3015 = vunpack.c.l.b16 %v619
    %v3016 = vunpack.c.h.b16 %v619
    %v3017 = vunpack.c.l.b16 %v620
    %v3018 = vunpack.c.h.b16 %v620
    %v3019 = vunpack.c.l.b16 %v621
    %v3020 = vunpack.c.h.b16 %v621
    %v3021 = vunpack.c.l.b16 %v622
    %v3022 = vunpack.c.h.b16 %v622
    %v3023 = vunpack.c.l.b16 %v623
    %v3024 = vunpack.c.h.b16 %v623
    %v3025 = vunpack.c.l.b16 %v624
    %v3026 = vunpack.c.h.b16 %v624
    %v3027 = vunpack.c.l.b16 %v625
    %v3028 = vunpack.c.h.b16 %v625
    %v3029 = vunpack.c.l.b16 %v626
    %v3030 = vunpack.c.h.b16 %v626
    %v3031 = vunpack.c.l.b16 %v627
    %v3032 = vunpack.c.h.b16 %v627
    %v3033 = vunpack.c.l.b16 %v628
    %v3034 = vunpack.c.h.b16 %v628
    %v3035 = vunpack.c.l.b16 %v629
    %v3036 = vunpack.c.h.b16 %v629
    %v3037 = vunpack.c.l.b16 %v630
    %v3038 = vunpack.c.h.b16 %v630
    %v3039 = vunpack.c.l.b16 %v631
    %v3040 = vunpack.c.h.b16 %v631
    %v3041 = vunpack.c.l.b16 %v632
    %v3042 = vunpack.c.h.b16 %v632
    %v3043 = vunpack.c.l.b16 %v633
    %v3044 = vunpack.c.h.b16 %v633
    %v3045 = vunpack.c.l.b16 %v634
    %v3046 = vunpack.c.h.b16 %v634
    %v3047 = vunpack.c.l.b16 %v635
    %v3048 = vunpack.c.h.b16 %v635
    %v3049 = vunpack.c.l.b16 %v636
    %v3050 = vunpack.c.h.b16 %v636
    %v3051 = vunpack.c.l.b16 %v637
    %v3052 = vunpack.c.h.b16 %v637
    %v3053 = vunpack.c.l.b16 %v638
    %v3054 = vunpack.c.h.b16 %v638
    %v3055 = vunpack.c.l.b16 %v639
    %v3056 = vunpack.c.h.b16 %v639
    %v3057 = vunpack.c.l.b16 %v640
    %v3058 = vunpack.c.h.b16 %v640
    %v3059 = vunpack.c.l.b16 %v641
    %v3060 = vunpack.c.h.b16 %v641
    %v3061 = vunpack.c.l.b16 %v642
    %v3062 = vunpack.c.h.b16 %v642
    %v3063 = vunpack.c.l.b16 %v643
    %v3064 = vunpack.c.h.b16 %v643
    %v3065 = vunpack.c.l.b16 %v644
    %v3066 = vunpack.c.h.b16 %v644
    %v3067 = vunpack.c.l.b16 %v645
    %v3068 = vunpack.c.h.b16 %v645
    %v3069 = vunpack.c.l.b16 %v646
    %v3070 = vunpack.c.h.b16 %v646
    %v3071 = vunpack.c.l.b16 %v647
    %v3072 = vunpack.c.h.b16 %v647
    %v3073 = vunpack.c.l.b16 %v648
    %v3074 = vunpack.c.h.b16 %v648
    %v3075 = vunpack.c.l.b16 %v649
    %v3076 = vunpack.c.h.b16 %v649
    %v3077 = vunpack.c.l.b16 %v650
    %v3078 = vunpack.c.h.b16 %v650
    %v3079 = vunpack.c.l.b16 %v651
    %v3080 = vunpack.c.h.b16 %v651
    %v3081 = vunpack.c.l.b16 %v652
    %v3082 = vunpack.c.h.b16 %v652
    %v3083 = vunpack.c.l.b16 %v653
    %v3084 = vunpack.c.h.b16 %v653
    %v3085 = vunpack.c.l.b16 %v654
    %v3086 = vunpack.c.h.b16 %v654
    %v3087 = vunpack.c.l.b16 %v655
    %v3088 = vunpack.c.h.b16 %v655
    %v3089 = vunpack.c.l.b16 %v656
    %v3090 = vunpack.c.h.b16 %v656
    %v3091 = vunpack.c.l.b16 %v657
    %v3092 = vunpack.c.h.b16 %v657
    %v3093 = vunpack.c.l.b16 %v658
    %v3094 = vunpack.c.h.b16 %v658
    %v3095 = vunpack.c.l.b16 %v659
    %v3096 = vunpack.c.h.b16 %v659
    %v3097 = vunpack.c.l.b16 %v660
    %v3098 = vunpack.c.h.b16 %v660
    %v3099 = vunpack.c.l.b16 %v661
    %v3100 = vunpack.c.h.b16 %v661
    %v3101 = vunpack.c.l.b16 %v662
    %v3102 = vunpack.c.h.b16 %v662
    %v3103 = vunpack.c.l.b16 %v663
    %v3104 = vunpack.c.h.b16 %v663
    %v3105 = vunpack.c.l.b16 %v664
    %v3106 = vunpack.c.h.b16 %v664
    %v3107 = vunpack.c.l.b16 %v665
    %v3108 = vunpack.c.h.b16 %v665
    %v3109 = vunpack.c.l.b16 %v666
    %v3110 = vunpack.c.h.b16 %v666
    %v3111 = vunpack.c.l.b16 %v667
    %v3112 = vunpack.c.h.b16 %v667
    %v3113 = vunpack.c.l.b16 %v668
    %v3114 = vunpack.c.h.b16 %v668
    %v3115 = vunpack.c.l.b16 %v669
    %v3116 = vunpack.c.h.b16 %v669
    %v3117 = vunpack.c.l.b16 %v670
    %v3118 = vunpack.c.h.b16 %v670
    %v3119 = vunpack.c.l.b16 %v671
    %v3120 = vunpack.c.h.b16 %v671
    %v3121 = vunpack.c.l.b16 %v672
    %v3122 = vunpack.c.h.b16 %v672
    %v3123 = vunpack.c.l.b16 %v673
    %v3124 = vunpack.c.h.b16 %v673
    %v3125 = vunpack.c.l.b16 %v674
    %v3126 = vunpack.c.h.b16 %v674
    %v3127 = vunpack.c.l.b16 %v675
    %v3128 = vunpack.c.h.b16 %v675
    %v3129 = vunpack.c.l.b16 %v676
    %v3130 = vunpack.c.h.b16 %v676
    %v3131 = vunpack.c.l.b16 %v677
    %v3132 = vunpack.c.h.b16 %v677
    %v3133 = vunpack.c.l.b16 %v678
    %v3134 = vunpack.c.h.b16 %v678
    %v3135 = vunpack.c.l.b16 %v679
    %v3136 = vunpack.c.h.b16 %v679
    %v3137 = vunpack.c.l.b16 %v680
    %v3138 = vunpack.c.h.b16 %v680
    %v3139 = vunpack.c.l.b16 %v681
    %v3140 = vunpack.c.h.b16 %v681
    %v3141 = vunpack.c.l.b16 %v682
    %v3142 = vunpack.c.h.b16 %v682
    %v3143 = vunpack.c.l.b16 %v683
    %v3144 = vunpack.c.h.b16 %v683
    %v3145 = vunpack.c.l.b16 %v684
    %v3146 = vunpack.c.h.b16 %v684
    %v3147 = vunpack.c.l.b16 %v685
    %v3148 = vunpack.c.h.b16 %v685
    %v3149 = vunpack.c.l.b16 %v686
    %v3150 = vunpack.c.h.b16 %v686
    %v3151 = vunpack.c.l.b16 %v687
    %v3152 = vunpack.c.h.b16 %v687
    %v3153 = vunpack.c.l.b16 %v688
    %v3154 = vunpack.c.h.b16 %v688
    %v3155 = vunpack.c.l.b16 %v689
    %v3156 = vunpack.c.h.b16 %v689
    %v3157 = vunpack.c.l.b16 %v690
    %v3158 = vunpack.c.h.b16 %v690
    %v3159 = vunpack.c.l.b16 %v691
    %v3160 = vunpack.c.h.b16 %v691
    %v3161 = vunpack.c.l.b16 %v692
    %v3162 = vunpack.c.h.b16 %v692
    %v3163 = vunpack.c.l.b16 %v693
    %v3164 = vunpack.c.h.b16 %v693
    %v3165 = vunpack.c.l.b16 %v694
    %v3166 = vunpack.c.h.b16 %v694
    %v3167 = vunpack.c.l.b16 %v695
    %v3168 = vunpack.c.h.b16 %v695
    %v3169 = vunpack.c.l.b16 %v696
    %v3170 = vunpack.c.h.b16 %v696
    %v3171 = vunpack.c.l.b16 %v697
    %v3172 = vunpack.c.h.b16 %v697
    %v3173 = vunpack.c.l.b16 %v698
    %v3174 = vunpack.c.h.b16 %v698
    %v3175 = vunpack.c.l.b16 %v699
    %v3176 = vunpack.c.h.b16 %v699
    %v3177 = vunpack.c.l.b16 %v700
    %v3178 = vunpack.c.h.b16 %v700
    %v3179 = vunpack.c.l.b16 %v701
    %v3180 = vunpack.c.h.b16 %v701
    %v3181 = vunpack.c.l.b16 %v702
    %v3182 = vunpack.c.h.b16 %v702
    %v3183 = vunpack.c.l.b16 %v703
    %v3184 = vunpack.c.h.b16 %v703
    %v3185 = vunpack.c.l.b16 %v704
    %v3186 = vunpack.c.h.b16 %v704
    %v3187 = vunpack.c.l.b16 %v705
    %v3188 = vunpack.c.h.b16 %v705
    %v3189 = vunpack.c.l.b16 %v706
    %v3190 = vunpack.c.h.b16 %v706
    %v3191 = vunpack.c.l.b16 %v707
    %v3192 = vunpack.c.h.b16 %v707
    %v3193 = vunpack.c.l.b16 %v708
    %v3194 = vunpack.c.h.b16 %v708
    %v3195 = vunpack.c.l.b16 %v709
    %v3196 = vunpack.c.h.b16 %v709
    %v3197 = vunpack.c.l.b16 %v710
    %v3198 = vunpack.c.h.b16 %v710
    %v3199 = vunpack.c.l.b16 %v711
    %v3200 = vunpack.c.h.b16 %v711
    %v3201 = vunpack.c.l.b16 %v712
    %v3202 = vunpack.c.h.b16 %v712
    %v3203 = vunpack.c.l.b16 %v713
    %v3204 = vunpack.c.h.b16 %v713
    %v3205 = vunpack.c.l.b16 %v714
    %v3206 = vunpack.c.h.b16 %v714
    %v3207 = vunpack.c.l.b16 %v715
    %v3208 = vunpack.c.h.b16 %v715
    %v3209 = vunpack.c.l.b16 %v716
    %v3210 = vunpack.c.h.b16 %v716
    %v3211 = vunpack.c.l.b16 %v717
    %v3212 = vunpack.c.h.b16 %v717
    %v3213 = vunpack.c.l.b16 %v718
    %v3214 = vunpack.c.h.b16 %v718
    %v3215 = vunpack.c.l.b16 %v719
    %v3216 = vunpack.c.h.b16 %v719
    %v3217 = vunpack.c.l.b16 %v720
    %v3218 = vunpack.c.h.b16 %v720
    %v3219 = vunpack.c.l.b16 %v721
    %v3220 = vunpack.c.h.b16 %v721
    %v3221 = vunpack.c.l.b16 %v722
    %v3222 = vunpack.c.h.b16 %v722
    %v3223 = vunpack.c.l.b16 %v723
    %v3224 = vunpack.c.h.b16 %v723
    %v3225 = vunpack.c.l.b16 %v724
    %v3226 = vunpack.c.h.b16 %v724
    %v3227 = vunpack.c.l.b16 %v725
    %v3228 = vunpack.c.h.b16 %v725
    %v3229 = vunpack.c.l.b16 %v726
    %v3230 = vunpack.c.h.b16 %v726
    %v3231 = vunpack.c.l.b16 %v727
    %v3232 = vunpack.c.h.b16 %v727
    %v3233 = vunpack.c.l.b16 %v728
    %v3234 = vunpack.c.h.b16 %v728
    %v3235 = vunpack.c.l.b16 %v729
    %v3236 = vunpack.c.h.b16 %v729
    %v3237 = vunpack.c.l.b16 %v730
    %v3238 = vunpack.c.h.b16 %v730
    %v3239 = vunpack.c.l.b16 %v731
    %v3240 = vunpack.c.h.b16 %v731
    %v3241 = vunpack.c.l.b16 %v732
    %v3242 = vunpack.c.h.b16 %v732
    %v3243 = vunpack.c.l.b16 %v733
    %v3244 = vunpack.c.h.b16 %v733
    %v3245 = vunpack.c.l.b16 %v734
    %v3246 = vunpack.c.h.b16 %v734
    %v3247 = vunpack.c.l.b16 %v735
    %v3248 = vunpack.c.h.b16 %v735
    %v3249 = vunpack.c.l.b16 %v736
    %v3250 = vunpack.c.h.b16 %v736
    %v3251 = vunpack.c.l.b16 %v737
    %v3252 = vunpack.c.h.b16 %v737
    %v3253 = vunpack.c.l.b16 %v738
    %v3254 = vunpack.c.h.b16 %v738
    %v3255 = vunpack.c.l.b16 %v739
    %v3256 = vunpack.c.h.b16 %v739
    %v3257 = vunpack.c.l.b16 %v740
    %v3258 = vunpack.c.h.b16 %v740
    %v3259 = vunpack.c.l.b16 %v741
    %v3260 = vunpack.c.h.b16 %v741
    %v3261 = vunpack.c.l.b16 %v742
    %v3262 = vunpack.c.h.b16 %v742
    %v3263 = vunpack.c.l.b16 %v743
    %v3264 = vunpack.c.h.b16 %v743
    %v3265 = vunpack.c.l.b16 %v744
    %v3266 = vunpack.c.h.b16 %v744
    %v3267 = vunpack.c.l.b16 %v745
    %v3268 = vunpack.c.h.b16 %v745
    %v3269 = vunpack.c.l.b16 %v746
    %v3270 = vunpack.c.h.b16 %v746
    %v3271 = vunpack.c.l.b16 %v747
    %v3272 = vunpack.c.h.b16 %v747
    %v3273 = vunpack.c.l.b16 %v748
    %v3274 = vunpack.c.h.b16 %v748
    %v3275 = vunpack.c.l.b16 %v749
    %v3276 = vunpack.c.h.b16 %v749
    %v3277 = vunpack.c.l.b16 %v750
    %v3278 = vunpack.c.h.b16 %v750
    %v3279 = vunpack.c.l.b16 %v751
    %v3280 = vunpack.c.h.b16 %v751
    %v3281 = vunpack.c.l.b16 %v752
    %v3282 = vunpack.c.h.b16 %v752
    %v3283 = vunpack.c.l.b16 %v753
    %v3284 = vunpack.c.h.b16 %v753
    %v3285 = vunpack.c.l.b16 %v754
    %v3286 = vunpack.c.h.b16 %v754
    %v3287 = vunpack.c.l.b16 %v755
    %v3288 = vunpack.c.h.b16 %v755
    %v3289 = vunpack.c.l.b16 %v756
    %v3290 = vunpack.c.h.b16 %v756
    %v3291 = vunpack.c.l.b16 %v757
    %v3292 = vunpack.c.h.b16 %v757
    %v3293 = vunpack.c.l.b16 %v758
    %v3294 = vunpack.c.h.b16 %v758
    %v3295 = vunpack.c.l.b16 %v759
    %v3296 = vunpack.c.h.b16 %v759
    %v3297 = vunpack.c.l.b16 %v760
    %v3298 = vunpack.c.h.b16 %v760
    %v3299 = vunpack.c.l.b16 %v761
    %v3300 = vunpack.c.h.b16 %v761
    %v3301 = vunpack.c.l.b16 %v762
    %v3302 = vunpack.c.h.b16 %v762
    %v3303 = vunpack.c.l.b16 %v763
    %v3304 = vunpack.c.h.b16 %v763
    %v3305 = vunpack.c.l.b16 %v764
    %v3306 = vunpack.c.h.b16 %v764
    %v3307 = vunpack.c.l.b16 %v765
    %v3308 = vunpack.c.h.b16 %v765
    %v3309 = vunpack.c.l.b16 %v766
    %v3310 = vunpack.c.h.b16 %v766
    %v3311 = vunpack.c.l.b16 %v767
    %v3312 = vunpack.c.h.b16 %v767
    %v3313 = vunpack.c.l.b16 %v768
    %v3314 = vunpack.c.h.b16 %v768
    %v3315 = vunpack.c.l.b16 %v769
    %v3316 = vunpack.c.h.b16 %v769
    %v3317 = vunpack.c.l.b16 %v770
    %v3318 = vunpack.c.h.b16 %v770
    %v3319 = vunpack.c.l.b16 %v771
    %v3320 = vunpack.c.h.b16 %v771
    %v3321 = vunpack.c.l.b16 %v772
    %v3322 = vunpack.c.h.b16 %v772
    %v3323 = vunpack.c.l.b16 %v773
    %v3324 = vunpack.c.h.b16 %v773
    %v3325 = vunpack.c.l.b16 %v774
    %v3326 = vunpack.c.h.b16 %v774
    %v3327 = vunpack.c.l.b16 %v775
    %v3328 = vunpack.c.h.b16 %v775
    %v3329 = vunpack.c.l.b16 %v776
    %v3330 = vunpack.c.h.b16 %v776
    %v3331 = vunpack.c.l.b16 %v777
    %v3332 = vunpack.c.h.b16 %v777
    %v3333 = vunpack.c.l.b16 %v778
    %v3334 = vunpack.c.h.b16 %v778
    %v3335 = vunpack.c.l.b16 %v779
    %v3336 = vunpack.c.h.b16 %v779
    %v3337 = vunpack.c.l.b16 %v780
    %v3338 = vunpack.c.h.b16 %v780
    %v3339 = vunpack.c.l.b16 %v781
    %v3340 = vunpack.c.h.b16 %v781
    %v3341 = vunpack.c.l.b16 %v782
    %v3342 = vunpack.c.h.b16 %v782
    %v3343 = vunpack.c.l.b16 %v783
    %v3344 = vunpack.c.h.b16 %v783
    %v3345 = vunpack.c.l.b16 %v784
    %v3346 = vunpack.c.h.b16 %v784
    %v3347 = vunpack.c.l.b16 %v785
    %v3348 = vunpack.c.h.b16 %v785
    %v3349 = vunpack.c.l.b16 %v786
    %v3350 = vunpack.c.h.b16 %v786
    %v3351 = vunpack.c.l.b16 %v787
    %v3352 = vunpack.c.h.b16 %v787
    %v3353 = vunpack.c.l.b16 %v788
    %v3354 = vunpack.c.h.b16 %v788
    %v3355 = vunpack.c.l.b16 %v789
    %v3356 = vunpack.c.h.b16 %v789
    %v3357 = vunpack.c.l.b16 %v790
    %v3358 = vunpack.c.h.b16 %v790
    %v3359 = vunpack.c.l.b16 %v791
    %v3360 = vunpack.c.h.b16 %v791
    %v3361 = vunpack.c.l.b16 %v792
    %v3362 = vunpack.c.h.b16 %v792
    %v3363 = vunpack.c.l.b16 %v793
    %v3364 = vunpack.c.h.b16 %v793
    %v3365 = vunpack.c.l.b16 %v794
    %v3366 = vunpack.c.h.b16 %v794
    %v3367 = vunpack.c.l.b16 %v795
    %v3368 = vunpack.c.h.b16 %v795
    %v3369 = vunpack.c.l.b16 %v796
    %v3370 = vunpack.c.h.b16 %v796
    %v3371 = vunpack.c.l.b16 %v797
    %v3372 = vunpack.c.h.b16 %v797
    %v3373 = vunpack.c.l.b16 %v798
    %v3374 = vunpack.c.h.b16 %v798
    %v3375 = vunpack.c.l.b16 %v799
    %v3376 = vunpack.c.h.b16 %v799
    %v3377 = vunpack.c.l.b16 %v800
    %v3378 = vunpack.c.h.b16 %v800
    %v3379 = vunpack.c.l.b16 %v801
    %v3380 = vunpack.c.h.b16 %v801
    %v3381 = vunpack.c.l.b16 %v802
    %v3382 = vunpack.c.h.b16 %v802
    %v3383 = vunpack.c.l.b16 %v803
    %v3384 = vunpack.c.h.b16 %v803
    %v3385 = vunpack.c.l.b16 %v804
    %v3386 = vunpack.c.h.b16 %v804
    %v3387 = vunpack.c.l.b16 %v805
    %v3388 = vunpack.c.h.b16 %v805
    %v3389 = vunpack.c.l.b16 %v806
    %v3390 = vunpack.c.h.b16 %v806
    %v3391 = vunpack.c.l.b16 %v807
    %v3392 = vunpack.c.h.b16 %v807
    %v3393 = vunpack.c.l.b16 %v808
    %v3394 = vunpack.c.h.b16 %v808
    %v3395 = vunpack.c.l.b16 %v809
    %v3396 = vunpack.c.h.b16 %v809
    %v3397 = vunpack.c.l.b16 %v810
    %v3398 = vunpack.c.h.b16 %v810
    %v3399 = vunpack.c.l.b16 %v811
    %v3400 = vunpack.c.h.b16 %v811
    %v3401 = vunpack.c.l.b16 %v812
    %v3402 = vunpack.c.h.b16 %v812
    %v3403 = vunpack.c.l.b16 %v813
    %v3404 = vunpack.c.h.b16 %v813
    %v3405 = vunpack.c.l.b16 %v814
    %v3406 = vunpack.c.h.b16 %v814
    %v3407 = vunpack.c.l.b16 %v815
    %v3408 = vunpack.c.h.b16 %v815
    %v3409 = vunpack.c.l.b16 %v816
    %v3410 = vunpack.c.h.b16 %v816
    %v3411 = vunpack.c.l.b16 %v817
    %v3412 = vunpack.c.h.b16 %v817
    %v3413 = vunpack.c.l.b16 %v818
    %v3414 = vunpack.c.h.b16 %v818
    %v3415 = vunpack.c.l.b16 %v819
    %v3416 = vunpack.c.h.b16 %v819
    %v3417 = vunpack.c.l.b16 %v820
    %v3418 = vunpack.c.h.b16 %v820
    %v3419 = vunpack.c.l.b16 %v821
    %v3420 = vunpack.c.h.b16 %v821
    %v3421 = vunpack.c.l.b16 %v822
    %v3422 = vunpack.c.h.b16 %v822
    %v3423 = vunpack.c.l.b16 %v823
    %v3424 = vunpack.c.h.b16 %v823
    %v3425 = vunpack.c.l.b16 %v824
    %v3426 = vunpack.c.h.b16 %v824
    %v3427 = vunpack.c.l.b16 %v825
    %v3428 = vunpack.c.h.b16 %v825
    %v3429 = vunpack.c.l.b16 %v826
    %v3430 = vunpack.c.h.b16 %v826
    %v3431 = vunpack.c.l.b16 %v827
    %v3432 = vunpack.c.h.b16 %v827
    %v3433 = vunpack.c.l.b16 %v828
    %v3434 = vunpack.c.h.b16 %v828
    %v3435 = vunpack.c.l.b16 %v829
    %v3436 = vunpack.c.h.b16 %v829
    %v3437 = vunpack.c.l.b16 %v830
    %v3438 = vunpack.c.h.b16 %v830
    %v3439 = vunpack.c.l.b16 %v831
    %v3440 = vunpack.c.h.b16 %v831
    %v3441 = vunpack.c.l.b16 %v832
    %v3442 = vunpack.c.h.b16 %v832
    %v3443 = vunpack.c.l.b16 %v833
    %v3444 = vunpack.c.h.b16 %v833
    %v3445 = vunpack.c.l.b16 %v834
    %v3446 = vunpack.c.h.b16 %v834
    %v3447 = vunpack.c.l.b16 %v835
    %v3448 = vunpack.c.h.b16 %v835
    %v3449 = vunpack.c.l.b16 %v836
    %v3450 = vunpack.c.h.b16 %v836
    %v3451 = vunpack.c.l.b16 %v837
    %v3452 = vunpack.c.h.b16 %v837
    %v3453 = vunpack.c.l.b16 %v838
    %v3454 = vunpack.c.h.b16 %v838
    %v3455 = vunpack.c.l.b16 %v839
    %v3456 = vunpack.c.h.b16 %v839
    %v3457 = vunpack.c.l.b16 %v840
    %v3458 = vunpack.c.h.b16 %v840
    %v3459 = vunpack.c.l.b16 %v841
    %v3460 = vunpack.c.h.b16 %v841
    %v3461 = vunpack.c.l.b16 %v842
    %v3462 = vunpack.c.h.b16 %v842
    %v3463 = vunpack.c.l.b16 %v843
    %v3464 = vunpack.c.h.b16 %v843
    %v3465 = vunpack.c.l.b16 %v844
    %v3466 = vunpack.c.h.b16 %v844
    %v3467 = vunpack.c.l.b16 %v845
    %v3468 = vunpack.c.h.b16 %v845
    %v3469 = vunpack.c.l.b16 %v846
    %v3470 = vunpack.c.h.b16 %v846
    %v3471 = vunpack.c.l.b16 %v847
    %v3472 = vunpack.c.h.b16 %v847
    %v3473 = vunpack.c.l.b16 %v848
    %v3474 = vunpack.c.h.b16 %v848
    %v3475 = vunpack.c.l.b16 %v849
    %v3476 = vunpack.c.h.b16 %v849
    %v3477 = vunpack.c.l.b16 %v850
    %v3478 = vunpack.c.h.b16 %v850
    %v3479 = vunpack.c.l.b16 %v851
    %v3480 = vunpack.c.h.b16 %v851
    %v3481 = vunpack.c.l.b16 %v852
    %v3482 = vunpack.c.h.b16 %v852
    %v3483 = vunpack.c.l.b16 %v853
    %v3484 = vunpack.c.h.b16 %v853
    %v3485 = vunpack.c.l.b16 %v854
    %v3486 = vunpack.c.h.b16 %v854
    %v3487 = vunpack.c.l.b16 %v855
    %v3488 = vunpack.c.h.b16 %v855
    %v3489 = vunpack.c.l.b16 %v856
    %v3490 = vunpack.c.h.b16 %v856
    %v3491 = vunpack.c.l.b16 %v857
    %v3492 = vunpack.c.h.b16 %v857
    %v3493 = vunpack.c.l.b16 %v858
    %v3494 = vunpack.c.h.b16 %v858
    %v3495 = vunpack.c.l.b16 %v859
    %v3496 = vunpack.c.h.b16 %v859
    %v3497 = vunpack.c.l.b16 %v860
    %v3498 = vunpack.c.h.b16 %v860
    %v3499 = vunpack.c.l.b16 %v861
    %v3500 = vunpack.c.h.b16 %v861
    %v3501 = vunpack.c.l.b16 %v862
    %v3502 = vunpack.c.h.b16 %v862
    %v3503 = vunpack.c.l.b16 %v863
    %v3504 = vunpack.c.h.b16 %v863
    %v3505 = vunpack.c.l.b16 %v864
    %v3506 = vunpack.c.h.b16 %v864
    %v3507 = vunpack.c.l.b16 %v865
    %v3508 = vunpack.c.h.b16 %v865
    %v3509 = vunpack.c.l.b16 %v866
    %v3510 = vunpack.c.h.b16 %v866
    %v3511 = vunpack.c.l.b16 %v867
    %v3512 = vunpack.c.h.b16 %v867
    %v3513 = vunpack.c.l.b16 %v868
    %v3514 = vunpack.c.h.b16 %v868
    %v3515 = vunpack.c.l.b16 %v869
    %v3516 = vunpack.c.h.b16 %v869
    %v3517 = vunpack.c.l.b16 %v870
    %v3518 = vunpack.c.h.b16 %v870
    %v3519 = vunpack.c.l.b16 %v871
    %v3520 = vunpack.c.h.b16 %v871
    %v3521 = vunpack.c.l.b16 %v872
    %v3522 = vunpack.c.h.b16 %v872
    %v3523 = vunpack.c.l.b16 %v873
    %v3524 = vunpack.c.h.b16 %v873
    %v3525 = vunpack.c.l.b16 %v874
    %v3526 = vunpack.c.h.b16 %v874
    %v3527 = vunpack.c.l.b16 %v875
    %v3528 = vunpack.c.h.b16 %v875
    %v3529 = vunpack.c.l.b16 %v876
    %v3530 = vunpack.c.h.b16 %v876
    %v3531 = vunpack.c.l.b16 %v877
    %v3532 = vunpack.c.h.b16 %v877
    %v3533 = vunpack.c.l.b16 %v878
    %v3534 = vunpack.c.h.b16 %v878
    %v3535 = vunpack.c.l.b16 %v879
    %v3536 = vunpack.c.h.b16 %v879
    %v3537 = vunpack.c.l.b16 %v880
    %v3538 = vunpack.c.h.b16 %v880
    %v3539 = vunpack.c.l.b16 %v881
    %v3540 = vunpack.c.h.b16 %v881
    %v3541 = vunpack.c.l.b16 %v882
    %v3542 = vunpack.c.h.b16 %v882
    %v3543 = vunpack.c.l.b16 %v883
    %v3544 = vunpack.c.h.b16 %v883
    %v3545 = vunpack.c.l.b16 %v884
    %v3546 = vunpack.c.h.b16 %v884
    %v3547 = vunpack.c.l.b16 %v885
    %v3548 = vunpack.c.h.b16 %v885
    %v3549 = vunpack.c.l.b16 %v886
    %v3550 = vunpack.c.h.b16 %v886
    %v3551 = vunpack.c.l.b16 %v887
    %v3552 = vunpack.c.h.b16 %v887
    %v3553 = vunpack.c.l.b16 %v888
    %v3554 = vunpack.c.h.b16 %v888
    %v3555 = vunpack.c.l.b16 %v889
    %v3556 = vunpack.c.h.b16 %v889
    %v3557 = vunpack.c.l.b16 %v890
    %v3558 = vunpack.c.h.b16 %v890
    %v3559 = vunpack.c.l.b16 %v891
    %v3560 = vunpack.c.h.b16 %v891
    %v3561 = vunpack.c.l.b16 %v892
    %v3562 = vunpack.c.h.b16 %v892
    %v3563 = vunpack.c.l.b16 %v893
    %v3564 = vunpack.c.h.b16 %v893
    %v3565 = vunpack.c.l.b16 %v894
    %v3566 = vunpack.c.h.b16 %v894
    %v3567 = vunpack.c.l.b16 %v895
    %v3568 = vunpack.c.h.b16 %v895
    %v3569 = vunpack.c.l.b16 %v896
    %v3570 = vunpack.c.h.b16 %v896
    %v3571 = vunpack.c.l.b16 %v897
    %v3572 = vunpack.c.h.b16 %v897
    %v3573 = vunpack.c.l.b16 %v898
    %v3574 = vunpack.c.h.b16 %v898
    %v3575 = vunpack.c.l.b16 %v899
    %v3576 = vunpack.c.h.b16 %v899
    %v3577 = vunpack.c.l.b16 %v900
    %v3578 = vunpack.c.h.b16 %v900
    %v3579 = vunpack.c.l.b16 %v901
    %v3580 = vunpack.c.h.b16 %v901
    %v3581 = vunpack.c.l.b16 %v902
    %v3582 = vunpack.c.h.b16 %v902
    %v3583 = vunpack.c.l.b16 %v903
    %v3584 = vunpack.c.h.b16 %v903
    %v3585 = vunpack.c.l.b16 %v904
    %v3586 = vunpack.c.h.b16 %v904
    %v3587 = vunpack.c.l.b16 %v905
    %v3588 = vunpack.c.h.b16 %v905
    %v3589 = vunpack.c.l.b16 %v906
    %v3590 = vunpack.c.h.b16 %v906
    %v3591 = vunpack.c.l.b16 %v907
    %v3592 = vunpack.c.h.b16 %v907
    %v3593 = vunpack.c.l.b16 %v908
    %v3594 = vunpack.c.h.b16 %v908
    %v3595 = vunpack.c.l.b16 %v909
    %v3596 = vunpack.c.h.b16 %v909
    %v3597 = vunpack.c.l.b16 %v910
    %v3598 = vunpack.c.h.b16 %v910
    %v3599 = vunpack.c.l.b16 %v911
    %v3600 = vunpack.c.h.b16 %v911
    %v3601 = vunpack.c.l.b16 %v912
    %v3602 = vunpack.c.h.b16 %v912
    %v3603 = vunpack.c.l.b16 %v913
    %v3604 = vunpack.c.h.b16 %v913
    %v3605 = vunpack.c.l.b16 %v914
    %v3606 = vunpack.c.h.b16 %v914
    %v3607 = vunpack.c.l.b16 %v915
    %v3608 = vunpack.c.h.b16 %v915
    %v3609 = vunpack.c.l.b16 %v916
    %v3610 = vunpack.c.h.b16 %v916
    %v3611 = vunpack.c.l.b16 %v917
    %v3612 = vunpack.c.h.b16 %v917
    %v3613 = vunpack.c.l.b16 %v918
    %v3614 = vunpack.c.h.b16 %v918
    %v3615 = vunpack.c.l.b16 %v919
    %v3616 = vunpack.c.h.b16 %v919
    %v3617 = vunpack.c.l.b16 %v920
    %v3618 = vunpack.c.h.b16 %v920
    %v3619 = vunpack.c.l.b16 %v921
    %v3620 = vunpack.c.h.b16 %v921
    %v3621 = vunpack.c.l.b16 %v922
    %v3622 = vunpack.c.h.b16 %v922
    %v3623 = vunpack.c.l.b16 %v923
    %v3624 = vunpack.c.h.b16 %v923
    %v3625 = vunpack.c.l.b16 %v924
    %v3626 = vunpack.c.h.b16 %v924
    %v3627 = vunpack.c.l.b16 %v925
    %v3628 = vunpack.c.h.b16 %v925
    %v3629 = vunpack.c.l.b16 %v926
    %v3630 = vunpack.c.h.b16 %v926
    %v3631 = vunpack.c.l.b16 %v927
    %v3632 = vunpack.c.h.b16 %v927
    %v3633 = vunpack.c.l.b16 %v928
    %v3634 = vunpack.c.h.b16 %v928
    %v3635 = vunpack.c.l.b16 %v929
    %v3636 = vunpack.c.h.b16 %v929
    %v3637 = vunpack.c.l.b16 %v930
    %v3638 = vunpack.c.h.b16 %v930
    %v3639 = vunpack.c.l.b16 %v931
    %v3640 = vunpack.c.h.b16 %v931
    %v3641 = vunpack.c.l.b16 %v932
    %v3642 = vunpack.c.h.b16 %v932
    %v3643 = vunpack.c.l.b16 %v933
    %v3644 = vunpack.c.h.b16 %v933
    %v3645 = vunpack.c.l.b16 %v934
    %v3646 = vunpack.c.h.b16 %v934
    %v3647 = vunpack.c.l.b16 %v935
    %v3648 = vunpack.c.h.b16 %v935
    %v3649 = vunpack.c.l.b16 %v936
    %v3650 = vunpack.c.h.b16 %v936
    %v3651 = vunpack.c.l.b16 %v937
    %v3652 = vunpack.c.h.b16 %v937
    %v3653 = vunpack.c.l.b16 %v938
    %v3654 = vunpack.c.h.b16 %v938
    %v3655 = vunpack.c.l.b16 %v939
    %v3656 = vunpack.c.h.b16 %v939
    %v3657 = vunpack.c.l.b16 %v940
    %v3658 = vunpack.c.h.b16 %v940
    %v3659 = vunpack.c.l.b16 %v941
    %v3660 = vunpack.c.h.b16 %v941
    %v3661 = vunpack.c.l.b16 %v942
    %v3662 = vunpack.c.h.b16 %v942
    %v3663 = vunpack.c.l.b16 %v943
    %v3664 = vunpack.c.h.b16 %v943
    %v3665 = vunpack.c.l.b16 %v944
    %v3666 = vunpack.c.h.b16 %v944
    %v3667 = vunpack.c.l.b16 %v945
    %v3668 = vunpack.c.h.b16 %v945
    %v3669 = vunpack.c.l.b16 %v946
    %v3670 = vunpack.c.h.b16 %v946
    %v3671 = vunpack.c.l.b16 %v947
    %v3672 = vunpack.c.h.b16 %v947
    %v3673 = vunpack.c.l.b16 %v948
    %v3674 = vunpack.c.h.b16 %v948
    %v3675 = vunpack.c.l.b16 %v949
    %v3676 = vunpack.c.h.b16 %v949
    %v3677 = vunpack.c.l.b16 %v950
    %v3678 = vunpack.c.h.b16 %v950
    %v3679 = vunpack.c.l.b16 %v951
    %v3680 = vunpack.c.h.b16 %v951
    %v3681 = vunpack.c.l.b16 %v952
    %v3682 = vunpack.c.h.b16 %v952
    %v3683 = vunpack.c.l.b16 %v953
    %v3684 = vunpack.c.h.b16 %v953
    %v3685 = vunpack.c.l.b16 %v954
    %v3686 = vunpack.c.h.b16 %v954
    %v3687 = vunpack.c.l.b16 %v955
    %v3688 = vunpack.c.h.b16 %v955
    %v3689 = vunpack.c.l.b16 %v956
    %v3690 = vunpack.c.h.b16 %v956
    %v3691 = vunpack.c.l.b16 %v957
    %v3692 = vunpack.c.h.b16 %v957
    %v3693 = vunpack.c.l.b16 %v958
    %v3694 = vunpack.c.h.b16 %v958
    %v3695 = vunpack.c.l.b16 %v959
    %v3696 = vunpack.c.h.b16 %v959
    %v3697 = vunpack.c.l.b16 %v960
    %v3698 = vunpack.c.h.b16 %v960
    %v3699 = vunpack.c.l.b16 %v961
    %v3700 = vunpack.c.h.b16 %v961
    %v3701 = vunpack.c.l.b16 %v962
    %v3702 = vunpack.c.h.b16 %v962
    %v3703 = vunpack.c.l.b16 %v963
    %v3704 = vunpack.c.h.b16 %v963
    %v3705 = vunpack.c.l.b16 %v964
    %v3706 = vunpack.c.h.b16 %v964
    %v3707 = vunpack.c.l.b16 %v965
    %v3708 = vunpack.c.h.b16 %v965
    %v3709 = vunpack.c.l.b16 %v966
    %v3710 = vunpack.c.h.b16 %v966
    %v3711 = vunpack.c.l.b16 %v967
    %v3712 = vunpack.c.h.b16 %v967
    %v3713 = vunpack.c.l.b16 %v968
    %v3714 = vunpack.c.h.b16 %v968
    %v3715 = vunpack.c.l.b16 %v969
    %v3716 = vunpack.c.h.b16 %v969
    %v3717 = vunpack.c.l.b16 %v970
    %v3718 = vunpack.c.h.b16 %v970
    %v3719 = vunpack.c.l.b16 %v971
    %v3720 = vunpack.c.h.b16 %v971
    %v3721 = vunpack.c.l.b16 %v972
    %v3722 = vunpack.c.h.b16 %v972
    %v3723 = vunpack.c.l.b16 %v973
    %v3724 = vunpack.c.h.b16 %v973
    %v3725 = vunpack.c.l.b16 %v974
    %v3726 = vunpack.c.h.b16 %v974
    %v3727 = vunpack.c.l.b16 %v975
    %v3728 = vunpack.c.h.b16 %v975
    %v3729 = vunpack.c.l.b16 %v976
    %v3730 = vunpack.c.h.b16 %v976
    %v3731 = vunpack.c.l.b16 %v977
    %v3732 = vunpack.c.h.b16 %v977
    %v3733 = vunpack.c.l.b16 %v978
    %v3734 = vunpack.c.h.b16 %v978
    %v3735 = vunpack.c.l.b16 %v979
    %v3736 = vunpack.c.h.b16 %v979
    %v3737 = vunpack.c.l.b16 %v980
    %v3738 = vunpack.c.h.b16 %v980
    %v3739 = vunpack.c.l.b16 %v981
    %v3740 = vunpack.c.h.b16 %v981
    %v3741 = vunpack.c.l.b16 %v982
    %v3742 = vunpack.c.h.b16 %v982
    %v3743 = vunpack.c.l.b16 %v983
    %v3744 = vunpack.c.h.b16 %v983
    %v3745 = vunpack.c.l.b16 %v984
    %v3746 = vunpack.c.h.b16 %v984
    %v3747 = vunpack.c.l.b16 %v985
    %v3748 = vunpack.c.h.b16 %v985
    %v3749 = vunpack.c.l.b16 %v986
    %v3750 = vunpack.c.h.b16 %v986
    %v3751 = vunpack.c.l.b16 %v987
    %v3752 = vunpack.c.h.b16 %v987
    %v3753 = vunpack.c.l.b16 %v988
    %v3754 = vunpack.c.h.b16 %v988
    %v3755 = vpack.c.b16 %v2009, %v1991
    %v3756 = vpack.c.b16 %v2010, %v1992
    %v3757 = vpack.c.b16 %v2011, %v1993
    %v3758 = vpack.c.b16 %v2012, %v1994
    %v3759 = vpack.c.b16 %v2013, %v1995
    %v3760 = vpack.c.b16 %v2014, %v1996
    %v3761 = vpack.c.b16 %v2015, %v1997
    %v3762 = vpack.c.b16 %v2016, %v1998
    %v3763 = vpack.c.b16 %v2017, %v1999
    %v3764 = vpack.c.b16 %v2018, %v2000
    %v3765 = vpack.c.b16 %v2019, %v2001
    %v3766 = vpack.c.b16 %v2020, %v2002
    %v3767 = vpack.c.b16 %v2021, %v2003
    %v3768 = vpack.c.b16 %v2022, %v2004
    %v3769 = vpack.c.b16 %v2023, %v2005
    %v3770 = vpack.c.b16 %v2024, %v2006
    %v3771 = vpack.c.b16 %v2025, %v2007
    %v3772 = vpack.c.b16 %v2026, %v2008
    %v3773 = vpack.c.b16 %v2045, %v2027
    %v3774 = vpack.c.b16 %v2046, %v2028
    %v3775 = vpack.c.b16 %v2047, %v2029
    %v3776 = vpack.c.b16 %v2048, %v2030
    %v3777 = vpack.c.b16 %v2049, %v2031
    %v3778 = vpack.c.b16 %v2050, %v2032
    %v3779 = vpack.c.b16 %v2051, %v2033
    %v3780 = vpack.c.b16 %v2052, %v2034
    %v3781 = vpack.c.b16 %v2053, %v2035
    %v3782 = vpack.c.b16 %v2054, %v2036
    %v3783 = vpack.c.b16 %v2055, %v2037
    %v3784 = vpack.c.b16 %v2056, %v2038
    %v3785 = vpack.c.b16 %v2057, %v2039
    %v3786 = vpack.c.b16 %v2058, %v2040
    %v3787 = vpack.c.b16 %v2059, %v2041
    %v3788 = vpack.c.b16 %v2060, %v2042
    %v3789 = vpack.c.b16 %v2061, %v2043
    %v3790 = vpack.c.b16 %v2062, %v2044
    %v3791 = vpack.c.b16 %v2081, %v2063
    %v3792 = vpack.c.b16 %v2082, %v2064
    %v3793 = vpack.c.b16 %v2083, %v2065
    %v3794 = vpack.c.b16 %v2084, %v2066
    %v3795 = vpack.c.b16 %v2085, %v2067
    %v3796 = vpack.c.b16 %v2086, %v2068
    %v3797 = vpack.c.b16 %v2087, %v2069
    %v3798 = vpack.c.b16 %v2088, %v2070
    %v3799 = vpack.c.b16 %v2089, %v2071
    %v3800 = vpack.c.b16 %v2090, %v2072
    %v3801 = vpack.c.b16 %v2091, %v2073
    %v3802 = vpack.c.b16 %v2092, %v2074
    %v3803 = vpack.c.b16 %v2093, %v2075
    %v3804 = vpack.c.b16 %v2094, %v2076
    %v3805 = vpack.c.b16 %v2095, %v2077
    %v3806 = vpack.c.b16 %v2096, %v2078
    %v3807 = vpack.c.b16 %v2097, %v2079
    %v3808 = vpack.c.b16 %v2098, %v2080
    %v3809 = vpack.c.b16 %v2117, %v2099
    %v3810 = vpack.c.b16 %v2118, %v2100
    %v3811 = vpack.c.b16 %v2119, %v2101
    %v3812 = vpack.c.b16 %v2120, %v2102
    %v3813 = vpack.c.b16 %v2121, %v2103
    %v3814 = vpack.c.b16 %v2122, %v2104
    %v3815 = vpack.c.b16 %v2123, %v2105
    %v3816 = vpack.c.b16 %v2124, %v2106
    %v3817 = vpack.c.b16 %v2125, %v2107
    %v3818 = vpack.c.b16 %v2126, %v2108
    %v3819 = vpack.c.b16 %v2127, %v2109
    %v3820 = vpack.c.b16 %v2128, %v2110
    %v3821 = vpack.c.b16 %v2129, %v2111
    %v3822 = vpack.c.b16 %v2130, %v2112
    %v3823 = vpack.c.b16 %v2131, %v2113
    %v3824 = vpack.c.b16 %v2132, %v2114
    %v3825 = vpack.c.b16 %v2133, %v2115
    %v3826 = vpack.c.b16 %v2134, %v2116
    %v3827 = vpack.c.b16 %v2153, %v2135
    %v3828 = vpack.c.b16 %v2154, %v2136
    %v3829 = vpack.c.b16 %v2155, %v2137
    %v3830 = vpack.c.b16 %v2156, %v2138
    %v3831 = vpack.c.b16 %v2157, %v2139
    %v3832 = vpack.c.b16 %v2158, %v2140
    %v3833 = vpack.c.b16 %v2159, %v2141
    %v3834 = vpack.c.b16 %v2160, %v2142
    %v3835 = vpack.c.b16 %v2161, %v2143
    %v3836 = vpack.c.b16 %v2162, %v2144
    %v3837 = vpack.c.b16 %v2163, %v2145
    %v3838 = vpack.c.b16 %v2164, %v2146
    %v3839 = vpack.c.b16 %v2165, %v2147
    %v3840 = vpack.c.b16 %v2166, %v2148
    %v3841 = vpack.c.b16 %v2167, %v2149
    %v3842 = vpack.c.b16 %v2168, %v2150
    %v3843 = vpack.c.b16 %v2169, %v2151
    %v3844 = vpack.c.b16 %v2170, %v2152
    %v3845 = vpack.c.b16 %v2189, %v2171
    %v3846 = vpack.c.b16 %v2190, %v2172
    %v3847 = vpack.c.b16 %v2191, %v2173
    %v3848 = vpack.c.b16 %v2192, %v2174
    %v3849 = vpack.c.b16 %v2193, %v2175
    %v3850 = vpack.c.b16 %v2194, %v2176
    %v3851 = vpack.c.b16 %v2195, %v2177
    %v3852 = vpack.c.b16 %v2196, %v2178
    %v3853 = vpack.c.b16 %v2197, %v2179
    %v3854 = vpack.c.b16 %v2198, %v2180
    %v3855 = vpack.c.b16 %v2199, %v2181
    %v3856 = vpack.c.b16 %v2200, %v2182
    %v3857 = vpack.c.b16 %v2201, %v2183
    %v3858 = vpack.c.b16 %v2202, %v2184
    %v3859 = vpack.c.b16 %v2203, %v2185
    %v3860 = vpack.c.b16 %v2204, %v2186
    %v3861 = vpack.c.b16 %v2205, %v2187
    %v3862 = vpack.c.b16 %v2206, %v2188
    %v3863 = vpack.c.b16 %v2225, %v2207
    %v3864 = vpack.c.b16 %v2226, %v2208
    %v3865 = vpack.c.b16 %v2227, %v2209
    %v3866 = vpack.c.b16 %v2228, %v2210
    %v3867 = vpack.c.b16 %v2229, %v2211
    %v3868 = vpack.c.b16 %v2230, %v2212
    %v3869 = vpack.c.b16 %v2231, %v2213
    %v3870 = vpack.c.b16 %v2232, %v2214
    %v3871 = vpack.c.b16 %v2233, %v2215
    %v3872 = vpack.c.b16 %v2234, %v2216
    %v3873 = vpack.c.b16 %v2235, %v2217
    %v3874 = vpack.c.b16 %v2236, %v2218
    %v3875 = vpack.c.b16 %v2237, %v2219
    %v3876 = vpack.c.b16 %v2238, %v2220
    %v3877 = vpack.c.b16 %v2239, %v2221
    %v3878 = vpack.c.b16 %v2240, %v2222
    %v3879 = vpack.c.b16 %v2241, %v2223
    %v3880 = vpack.c.b16 %v2242, %v2224
    %v3881 = vpack.c.b16 %v2261, %v2243
    %v3882 = vpack.c.b16 %v2262, %v2244
    %v3883 = vpack.c.b16 %v2263, %v2245
    %v3884 = vpack.c.b16 %v2264, %v2246
    %v3885 = vpack.c.b16 %v2265, %v2247
    %v3886 = vpack.c.b16 %v2266, %v2248
    %v3887 = vpack.c.b16 %v2267, %v2249
    %v3888 = vpack.c.b16 %v2268, %v2250
    %v3889 = vpack.c.b16 %v2269, %v2251
    %v3890 = vpack.c.b16 %v2270, %v2252
    %v3891 = vpack.c.b16 %v2271, %v2253
    %v3892 = vpack.c.b16 %v2272, %v2254
    %v3893 = vpack.c.b16 %v2273, %v2255
    %v3894 = vpack.c.b16 %v2274, %v2256
    %v3895 = vpack.c.b16 %v2275, %v2257
    %v3896 = vpack.c.b16 %v2276, %v2258
    %v3897 = vpack.c.b16 %v2277, %v2259
    %v3898 = vpack.c.b16 %v2278, %v2260
    %v3899 = vpack.c.b16 %v2297, %v2279
    %v3900 = vpack.c.b16 %v2298, %v2280
    %v3901 = vpack.c.b16 %v2299, %v2281
    %v3902 = vpack.c.b16 %v2300, %v2282
    %v3903 = vpack.c.b16 %v2301, %v2283
    %v3904 = vpack.c.b16 %v2302, %v2284
    %v3905 = vpack.c.b16 %v2303, %v2285
    %v3906 = vpack.c.b16 %v2304, %v2286
    %v3907 = vpack.c.b16 %v2305, %v2287
    %v3908 = vpack.c.b16 %v2306, %v2288
    %v3909 = vpack.c.b16 %v2307, %v2289
    %v3910 = vpack.c.b16 %v2308, %v2290
    %v3911 = vpack.c.b16 %v2309, %v2291
    %v3912 = vpack.c.b16 %v2310, %v2292
    %v3913 = vpack.c.b16 %v2311, %v2293
    %v3914 = vpack.c.b16 %v2312, %v2294
    %v3915 = vpack.c.b16 %v2313, %v2295
    %v3916 = vpack.c.b16 %v2314, %v2296
    %v3917 = vpack.c.b16 %v2333, %v2315
    %v3918 = vpack.c.b16 %v2334, %v2316
    %v3919 = vpack.c.b16 %v2335, %v2317
    %v3920 = vpack.c.b16 %v2336, %v2318
    %v3921 = vpack.c.b16 %v2337, %v2319
    %v3922 = vpack.c.b16 %v2338, %v2320
    %v3923 = vpack.c.b16 %v2339, %v2321
    %v3924 = vpack.c.b16 %v2340, %v2322
    %v3925 = vpack.c.b16 %v2341, %v2323
    %v3926 = vpack.c.b16 %v2342, %v2324
    %v3927 = vpack.c.b16 %v2343, %v2325
    %v3928 = vpack.c.b16 %v2344, %v2326
    %v3929 = vpack.c.b16 %v2345, %v2327
    %v3930 = vpack.c.b16 %v2346, %v2328
    %v3931 = vpack.c.b16 %v2347, %v2329
    %v3932 = vpack.c.b16 %v2348, %v2330
    %v3933 = vpack.c.b16 %v2349, %v2331
    %v3934 = vpack.c.b16 %v2350, %v2332
    %v3935 = vpack.c.b16 %v2369, %v2351
    %v3936 = vpack.c.b16 %v2370, %v2352
    %v3937 = vpack.c.b16 %v2371, %v2353
    %v3938 = vpack.c.b16 %v2372, %v2354
    %v3939 = vpack.c.b16 %v2373, %v2355
    %v3940 = vpack.c.b16 %v2374, %v2356
    %v3941 = vpack.c.b16 %v2375, %v2357
    %v3942 = vpack.c.b16 %v2376, %v2358
    %v3943 = vpack.c.b16 %v2377, %v2359
    %v3944 = vpack.c.b16 %v2378, %v2360
    %v3945 = vpack.c.b16 %v2379, %v2361
    %v3946 = vpack.c.b16 %v2380, %v2362
    %v3947 = vpack.c.b16 %v2381, %v2363
    %v3948 = vpack.c.b16 %v2382, %v2364
    %v3949 = vpack.c.b16 %v2383, %v2365
    %v3950 = vpack.c.b16 %v2384, %v2366
    %v3951 = vpack.c.b16 %v2385, %v2367
    %v3952 = vpack.c.b16 %v2386, %v2368
    %v3953 = vpack.c.b16 %v2405, %v2387
    %v3954 = vpack.c.b16 %v2406, %v2388
    %v3955 = vpack.c.b16 %v2407, %v2389
    %v3956 = vpack.c.b16 %v2408, %v2390
    %v3957 = vpack.c.b16 %v2409, %v2391
    %v3958 = vpack.c.b16 %v2410, %v2392
    %v3959 = vpack.c.b16 %v2411, %v2393
    %v3960 = vpack.c.b16 %v2412, %v2394
    %v3961 = vpack.c.b16 %v2413, %v2395
    %v3962 = vpack.c.b16 %v2414, %v2396
    %v3963 = vpack.c.b16 %v2415, %v2397
    %v3964 = vpack.c.b16 %v2416, %v2398
    %v3965 = vpack.c.b16 %v2417, %v2399
    %v3966 = vpack.c.b16 %v2418, %v2400
    %v3967 = vpack.c.b16 %v2419, %v2401
    %v3968 = vpack.c.b16 %v2420, %v2402
    %v3969 = vpack.c.b16 %v2421, %v2403
    %v3970 = vpack.c.b16 %v2422, %v2404
    %v3971 = vpack.c.b16 %v2441, %v2423
    %v3972 = vpack.c.b16 %v2442, %v2424
    %v3973 = vpack.c.b16 %v2443, %v2425
    %v3974 = vpack.c.b16 %v2444, %v2426
    %v3975 = vpack.c.b16 %v2445, %v2427
    %v3976 = vpack.c.b16 %v2446, %v2428
    %v3977 = vpack.c.b16 %v2447, %v2429
    %v3978 = vpack.c.b16 %v2448, %v2430
    %v3979 = vpack.c.b16 %v2449, %v2431
    %v3980 = vpack.c.b16 %v2450, %v2432
    %v3981 = vpack.c.b16 %v2451, %v2433
    %v3982 = vpack.c.b16 %v2452, %v2434
    %v3983 = vpack.c.b16 %v2453, %v2435
    %v3984 = vpack.c.b16 %v2454, %v2436
    %v3985 = vpack.c.b16 %v2455, %v2437
    %v3986 = vpack.c.b16 %v2456, %v2438
    %v3987 = vpack.c.b16 %v2457, %v2439
    %v3988 = vpack.c.b16 %v2458, %v2440
    %v3989 = vpack.c.b16 %v2477, %v2459
    %v3990 = vpack.c.b16 %v2478, %v2460
    %v3991 = vpack.c.b16 %v2479, %v2461
    %v3992 = vpack.c.b16 %v2480, %v2462
    %v3993 = vpack.c.b16 %v2481, %v2463
    %v3994 = vpack.c.b16 %v2482, %v2464
    %v3995 = vpack.c.b16 %v2483, %v2465
    %v3996 = vpack.c.b16 %v2484, %v2466
    %v3997 = vpack.c.b16 %v2485, %v2467
    %v3998 = vpack.c.b16 %v2486, %v2468
    %v3999 = vpack.c.b16 %v2487, %v2469
    %v4000 = vpack.c.b16 %v2488, %v2470
    %v4001 = vpack.c.b16 %v2489, %v2471
    %v4002 = vpack.c.b16 %v2490, %v2472
    %v4003 = vpack.c.b16 %v2491, %v2473
    %v4004 = vpack.c.b16 %v2492, %v2474
    %v4005 = vpack.c.b16 %v2493, %v2475
    %v4006 = vpack.c.b16 %v2494, %v2476
    %v4007 = vpack.c.b16 %v2513, %v2495
    %v4008 = vpack.c.b16 %v2514, %v2496
    %v4009 = vpack.c.b16 %v2515, %v2497
    %v4010 = vpack.c.b16 %v2516, %v2498
    %v4011 = vpack.c.b16 %v2517, %v2499
    %v4012 = vpack.c.b16 %v2518, %v2500
    %v4013 = vpack.c.b16 %v2519, %v2501
    %v4014 = vpack.c.b16 %v2520, %v2502
    %v4015 = vpack.c.b16 %v2521, %v2503
    %v4016 = vpack.c.b16 %v2522, %v2504
    %v4017 = vpack.c.b16 %v2523, %v2505
    %v4018 = vpack.c.b16 %v2524, %v2506
    %v4019 = vpack.c.b16 %v2525, %v2507
    %v4020 = vpack.c.b16 %v2526, %v2508
    %v4021 = vpack.c.b16 %v2527, %v2509
    %v4022 = vpack.c.b16 %v2528, %v2510
    %v4023 = vpack.c.b16 %v2529, %v2511
    %v4024 = vpack.c.b16 %v2530, %v2512
    %v4025 = vpack.c.b16 %v2549, %v2531
    %v4026 = vpack.c.b16 %v2550, %v2532
    %v4027 = vpack.c.b16 %v2551, %v2533
    %v4028 = vpack.c.b16 %v2552, %v2534
    %v4029 = vpack.c.b16 %v2553, %v2535
    %v4030 = vpack.c.b16 %v2554, %v2536
    %v4031 = vpack.c.b16 %v2555, %v2537
    %v4032 = vpack.c.b16 %v2556, %v2538
    %v4033 = vpack.c.b16 %v2557, %v2539
    %v4034 = vpack.c.b16 %v2558, %v2540
    %v4035 = vpack.c.b16 %v2559, %v2541
    %v4036 = vpack.c.b16 %v2560, %v2542
    %v4037 = vpack.c.b16 %v2561, %v2543
    %v4038 = vpack.c.b16 %v2562, %v2544
    %v4039 = vpack.c.b16 %v2563, %v2545
    %v4040 = vpack.c.b16 %v2564, %v2546
    %v4041 = vpack.c.b16 %v2565, %v2547
    %v4042 = vpack.c.b16 %v2566, %v2548
    %v4043 = vpack.c.b16 %v2585, %v2567
    %v4044 = vpack.c.b16 %v2586, %v2568
    %v4045 = vpack.c.b16 %v2587, %v2569
    %v4046 = vpack.c.b16 %v2588, %v2570
    %v4047 = vpack.c.b16 %v2589, %v2571
    %v4048 = vpack.c.b16 %v2590, %v2572
    %v4049 = vpack.c.b16 %v2591, %v2573
    %v4050 = vpack.c.b16 %v2592, %v2574
    %v4051 = vpack.c.b16 %v2593, %v2575
    %v4052 = vpack.c.b16 %v2594, %v2576
    %v4053 = vpack.c.b16 %v2595, %v2577
    %v4054 = vpack.c.b16 %v2596, %v2578
    %v4055 = vpack.c.b16 %v2597, %v2579
    %v4056 = vpack.c.b16 %v2598, %v2580
    %v4057 = vpack.c.b16 %v2599, %v2581
    %v4058 = vpack.c.b16 %v2600, %v2582
    %v4059 = vpack.c.b16 %v2601, %v2583
    %v4060 = vpack.c.b16 %v2602, %v2584
    %v4061 = vpack.c.b16 %v2621, %v2603
    %v4062 = vpack.c.b16 %v2622, %v2604
    %v4063 = vpack.c.b16 %v2623, %v2605
    %v4064 = vpack.c.b16 %v2624, %v2606
    %v4065 = vpack.c.b16 %v2625, %v2607
    %v4066 = vpack.c.b16 %v2626, %v2608
    %v4067 = vpack.c.b16 %v2627, %v2609
    %v4068 = vpack.c.b16 %v2628, %v2610
    %v4069 = vpack.c.b16 %v2629, %v2611
    %v4070 = vpack.c.b16 %v2630, %v2612
    %v4071 = vpack.c.b16 %v2631, %v2613
    %v4072 = vpack.c.b16 %v2632, %v2614
    %v4073 = vpack.c.b16 %v2633, %v2615
    %v4074 = vpack.c.b16 %v2634, %v2616
    %v4075 = vpack.c.b16 %v2635, %v2617
    %v4076 = vpack.c.b16 %v2636, %v2618
    %v4077 = vpack.c.b16 %v2637, %v2619
    %v4078 = vpack.c.b16 %v2638, %v2620
    %v4079 = vpack.c.b16 %v2657, %v2639
    %v4080 = vpack.c.b16 %v2658, %v2640
    %v4081 = vpack.c.b16 %v2659, %v2641
    %v4082 = vpack.c.b16 %v2660, %v2642
    %v4083 = vpack.c.b16 %v2661, %v2643
    %v4084 = vpack.c.b16 %v2662, %v2644
    %v4085 = vpack.c.b16 %v2663, %v2645
    %v4086 = vpack.c.b16 %v2664, %v2646
    %v4087 = vpack.c.b16 %v2665, %v2647
    %v4088 = vpack.c.b16 %v2666, %v2648
    %v4089 = vpack.c.b16 %v2667, %v2649
    %v4090 = vpack.c.b16 %v2668, %v2650
    %v4091 = vpack.c.b16 %v2669, %v2651
    %v4092 = vpack.c.b16 %v2670, %v2652
    %v4093 = vpack.c.b16 %v2671, %v2653
    %v4094 = vpack.c.b16 %v2672, %v2654
    %v4095 = vpack.c.b16 %v2673, %v2655
    %v4096 = vpack.c.b16 %v2674, %v2656
    %v4097 = vpack.c.b16 %v2693, %v2675
    %v4098 = vpack.c.b16 %v2694, %v2676
    %v4099 = vpack.c.b16 %v2695, %v2677
    %v4100 = vpack.c.b16 %v2696, %v2678
    %v4101 = vpack.c.b16 %v2697, %v2679
    %v4102 = vpack.c.b16 %v2698, %v2680
    %v4103 = vpack.c.b16 %v2699, %v2681
    %v4104 = vpack.c.b16 %v2700, %v2682
    %v4105 = vpack.c.b16 %v2701, %v2683
    %v4106 = vpack.c.b16 %v2702, %v2684
    %v4107 = vpack.c.b16 %v2703, %v2685
    %v4108 = vpack.c.b16 %v2704, %v2686
    %v4109 = vpack.c.b16 %v2705, %v2687
    %v4110 = vpack.c.b16 %v2706, %v2688
    %v4111 = vpack.c.b16 %v2707, %v2689
    %v4112 = vpack.c.b16 %v2708, %v2690
    %v4113 = vpack.c.b16 %v2709, %v2691
    %v4114 = vpack.c.b16 %v2710, %v2692
    %v4115 = vpack.c.b16 %v2729, %v2711
    %v4116 = vpack.c.b16 %v2730, %v2712
    %v4117 = vpack.c.b16 %v2731, %v2713
    %v4118 = vpack.c.b16 %v2732, %v2714
    %v4119 = vpack.c.b16 %v2733, %v2715
    %v4120 = vpack.c.b16 %v2734, %v2716
    %v4121 = vpack.c.b16 %v2735, %v2717
    %v4122 = vpack.c.b16 %v2736, %v2718
    %v4123 = vpack.c.b16 %v2737, %v2719
    %v4124 = vpack.c.b16 %v2738, %v2720
    %v4125 = vpack.c.b16 %v2739, %v2721
    %v4126 = vpack.c.b16 %v2740, %v2722
    %v4127 = vpack.c.b16 %v2741, %v2723
    %v4128 = vpack.c.b16 %v2742, %v2724
    %v4129 = vpack.c.b16 %v2743, %v2725
    %v4130 = vpack.c.b16 %v2744, %v2726
    %v4131 = vpack.c.b16 %v2745, %v2727
    %v4132 = vpack.c.b16 %v2746, %v2728
    %v4133 = vpack.c.b16 %v2765, %v2747
    %v4134 = vpack.c.b16 %v2766, %v2748
    %v4135 = vpack.c.b16 %v2767, %v2749
    %v4136 = vpack.c.b16 %v2768, %v2750
    %v4137 = vpack.c.b16 %v2769, %v2751
    %v4138 = vpack.c.b16 %v2770, %v2752
    %v4139 = vpack.c.b16 %v2771, %v2753
    %v4140 = vpack.c.b16 %v2772, %v2754
    %v4141 = vpack.c.b16 %v2773, %v2755
    %v4142 = vpack.c.b16 %v2774, %v2756
    %v4143 = vpack.c.b16 %v2775, %v2757
    %v4144 = vpack.c.b16 %v2776, %v2758
    %v4145 = vpack.c.b16 %v2777, %v2759
    %v4146 = vpack.c.b16 %v2778, %v2760
    %v4147 = vpack.c.b16 %v2779, %v2761
    %v4148 = vpack.c.b16 %v2780, %v2762
    %v4149 = vpack.c.b16 %v2781, %v2763
    %v4150 = vpack.c.b16 %v2782, %v2764
    %v4151 = vpack.c.b16 %v2801, %v2783
    %v4152 = vpack.c.b16 %v2802, %v2784
    %v4153 = vpack.c.b16 %v2803, %v2785
    %v4154 = vpack.c.b16 %v2804, %v2786
    %v4155 = vpack.c.b16 %v2805, %v2787
    %v4156 = vpack.c.b16 %v2806, %v2788
    %v4157 = vpack.c.b16 %v2807, %v2789
    %v4158 = vpack.c.b16 %v2808, %v2790
    %v4159 = vpack.c.b16 %v2809, %v2791
    %v4160 = vpack.c.b16 %v2810, %v2792
    %v4161 = vpack.c.b16 %v2811, %v2793
    %v4162 = vpack.c.b16 %v2812, %v2794
    %v4163 = vpack.c.b16 %v2813, %v2795
    %v4164 = vpack.c.b16 %v2814, %v2796
    %v4165 = vpack.c.b16 %v2815, %v2797
    %v4166 = vpack.c.b16 %v2816, %v2798
    %v4167 = vpack.c.b16 %v2817, %v2799
    %v4168 = vpack.c.b16 %v2818, %v2800
    %v4169 = vpack.c.b16 %v2837, %v2819
    %v4170 = vpack.c.b16 %v2838, %v2820
    %v4171 = vpack.c.b16 %v2839, %v2821
    %v4172 = vpack.c.b16 %v2840, %v2822
    %v4173 = vpack.c.b16 %v2841, %v2823
    %v4174 = vpack.c.b16 %v2842, %v2824
    %v4175 = vpack.c.b16 %v2843, %v2825
    %v4176 = vpack.c.b16 %v2844, %v2826
    %v4177 = vpack.c.b16 %v2845, %v2827
    %v4178 = vpack.c.b16 %v2846, %v2828
    %v4179 = vpack.c.b16 %v2847, %v2829
    %v4180 = vpack.c.b16 %v2848, %v2830
    %v4181 = vpack.c.b16 %v2849, %v2831
    %v4182 = vpack.c.b16 %v2850, %v2832
    %v4183 = vpack.c.b16 %v2851, %v2833
    %v4184 = vpack.c.b16 %v2852, %v2834
    %v4185 = vpack.c.b16 %v2853, %v2835
    %v4186 = vpack.c.b16 %v2854, %v2836
    %v4187 = vpack.c.b16 %v2873, %v2855
    %v4188 = vpack.c.b16 %v2874, %v2856
    %v4189 = vpack.c.b16 %v2875, %v2857
    %v4190 = vpack.c.b16 %v2876, %v2858
    %v4191 = vpack.c.b16 %v2877, %v2859
    %v4192 = vpack.c.b16 %v2878, %v2860
    %v4193 = vpack.c.b16 %v2879, %v2861
    %v4194 = vpack.c.b16 %v2880, %v2862
    %v4195 = vpack.c.b16 %v2881, %v2863
    %v4196 = vpack.c.b16 %v2882, %v2864
    %v4197 = vpack.c.b16 %v2883, %v2865
    %v4198 = vpack.c.b16 %v2884, %v2866
    %v4199 = vpack.c.b16 %v2885, %v2867
    %v4200 = vpack.c.b16 %v2886, %v2868
    %v4201 = vpack.c.b16 %v2887, %v2869
    %v4202 = vpack.c.b16 %v2888, %v2870
    %v4203 = vpack.c.b16 %v2889, %v2871
    %v4204 = vpack.c.b16 %v2890, %v2872
    %v4205 = vpack.c.b16 %v2909, %v2891
    %v4206 = vpack.c.b16 %v2910, %v2892
    %v4207 = vpack.c.b16 %v2911, %v2893
    %v4208 = vpack.c.b16 %v2912, %v2894
    %v4209 = vpack.c.b16 %v2913, %v2895
    %v4210 = vpack.c.b16 %v2914, %v2896
    %v4211 = vpack.c.b16 %v2915, %v2897
    %v4212 = vpack.c.b16 %v2916, %v2898
    %v4213 = vpack.c.b16 %v2917, %v2899
    %v4214 = vpack.c.b16 %v2918, %v2900
    %v4215 = vpack.c.b16 %v2919, %v2901
    %v4216 = vpack.c.b16 %v2920, %v2902
    %v4217 = vpack.c.b16 %v2921, %v2903
    %v4218 = vpack.c.b16 %v2922, %v2904
    %v4219 = vpack.c.b16 %v2923, %v2905
    %v4220 = vpack.c.b16 %v2924, %v2906
    %v4221 = vpack.c.b16 %v2925, %v2907
    %v4222 = vpack.c.b16 %v2926, %v2908
    %v4223 = vpack.c.b16 %v2945, %v2927
    %v4224 = vpack.c.b16 %v2946, %v2928
    %v4225 = vpack.c.b16 %v2947, %v2929
    %v4226 = vpack.c.b16 %v2948, %v2930
    %v4227 = vpack.c.b16 %v2949, %v2931
    %v4228 = vpack.c.b16 %v2950, %v2932
    %v4229 = vpack.c.b16 %v2951, %v2933
    %v4230 = vpack.c.b16 %v2952, %v2934
    %v4231 = vpack.c.b16 %v2953, %v2935
    %v4232 = vpack.c.b16 %v2954, %v2936
    %v4233 = vpack.c.b16 %v2955, %v2937
    %v4234 = vpack.c.b16 %v2956, %v2938
    %v4235 = vpack.c.b16 %v2957, %v2939
    %v4236 = vpack.c.b16 %v2958, %v2940
    %v4237 = vpack.c.b16 %v2959, %v2941
    %v4238 = vpack.c.b16 %v2960, %v2942
    %v4239 = vpack.c.b16 %v2961, %v2943
    %v4240 = vpack.c.b16 %v2962, %v2944
    %v4241 = vpack.c.b16 %v2981, %v2963
    %v4242 = vpack.c.b16 %v2982, %v2964
    %v4243 = vpack.c.b16 %v2983, %v2965
    %v4244 = vpack.c.b16 %v2984, %v2966
    %v4245 = vpack.c.b16 %v2985, %v2967
    %v4246 = vpack.c.b16 %v2986, %v2968
    %v4247 = vpack.c.b16 %v2987, %v2969
    %v4248 = vpack.c.b16 %v2988, %v2970
    %v4249 = vpack.c.b16 %v2989, %v2971
    %v4250 = vpack.c.b16 %v2990, %v2972
    %v4251 = vpack.c.b16 %v2991, %v2973
    %v4252 = vpack.c.b16 %v2992, %v2974
    %v4253 = vpack.c.b16 %v2993, %v2975
    %v4254 = vpack.c.b16 %v2994, %v2976
    %v4255 = vpack.c.b16 %v2995, %v2977
    %v4256 = vpack.c.b16 %v2996, %v2978
    %v4257 = vpack.c.b16 %v2997, %v2979
    %v4258 = vpack.c.b16 %v2998, %v2980
    %v4259 = vpack.c.b16 %v3017, %v2999
    %v4260 = vpack.c.b16 %v3018, %v3000
    %v4261 = vpack.c.b16 %v3019, %v3001
    %v4262 = vpack.c.b16 %v3020, %v3002
    %v4263 = vpack.c.b16 %v3021, %v3003
    %v4264 = vpack.c.b16 %v3022, %v3004
    %v4265 = vpack.c.b16 %v3023, %v3005
    %v4266 = vpack.c.b16 %v3024, %v3006
    %v4267 = vpack.c.b16 %v3025, %v3007
    %v4268 = vpack.c.b16 %v3026, %v3008
    %v4269 = vpack.c.b16 %v3027, %v3009
    %v4270 = vpack.c.b16 %v3028, %v3010
    %v4271 = vpack.c.b16 %v3029, %v3011
    %v4272 = vpack.c.b16 %v3030, %v3012
    %v4273 = vpack.c.b16 %v3031, %v3013
    %v4274 = vpack.c.b16 %v3032, %v3014
    %v4275 = vpack.c.b16 %v3033, %v3015
    %v4276 = vpack.c.b16 %v3034, %v3016
    %v4277 = vpack.c.b16 %v3053, %v3035
    %v4278 = vpack.c.b16 %v3054, %v3036
    %v4279 = vpack.c.b16 %v3055, %v3037
    %v4280 = vpack.c.b16 %v3056, %v3038
    %v4281 = vpack.c.b16 %v3057, %v3039
    %v4282 = vpack.c.b16 %v3058, %v3040
    %v4283 = vpack.c.b16 %v3059, %v3041
    %v4284 = vpack.c.b16 %v3060, %v3042
    %v4285 = vpack.c.b16 %v3061, %v3043
    %v4286 = vpack.c.b16 %v3062, %v3044
    %v4287 = vpack.c.b16 %v3063, %v3045
    %v4288 = vpack.c.b16 %v3064, %v3046
    %v4289 = vpack.c.b16 %v3065, %v3047
    %v4290 = vpack.c.b16 %v3066, %v3048
    %v4291 = vpack.c.b16 %v3067, %v3049
    %v4292 = vpack.c.b16 %v3068, %v3050
    %v4293 = vpack.c.b16 %v3069, %v3051
    %v4294 = vpack.c.b16 %v3070, %v3052
    %v4295 = vpack.c.b16 %v3089, %v3071
    %v4296 = vpack.c.b16 %v3090, %v3072
    %v4297 = vpack.c.b16 %v3091, %v3073
    %v4298 = vpack.c.b16 %v3092, %v3074
    %v4299 = vpack.c.b16 %v3093, %v3075
    %v4300 = vpack.c.b16 %v3094, %v3076
    %v4301 = vpack.c.b16 %v3095, %v3077
    %v4302 = vpack.c.b16 %v3096, %v3078
    %v4303 = vpack.c.b16 %v3097, %v3079
    %v4304 = vpack.c.b16 %v3098, %v3080
    %v4305 = vpack.c.b16 %v3099, %v3081
    %v4306 = vpack.c.b16 %v3100, %v3082
    %v4307 = vpack.c.b16 %v3101, %v3083
    %v4308 = vpack.c.b16 %v3102, %v3084
    %v4309 = vpack.c.b16 %v3103, %v3085
    %v4310 = vpack.c.b16 %v3104, %v3086
    %v4311 = vpack.c.b16 %v3105, %v3087
    %v4312 = vpack.c.b16 %v3106, %v3088
    %v4313 = vpack.c.b16 %v3125, %v3107
    %v4314 = vpack.c.b16 %v3126, %v3108
    %v4315 = vpack.c.b16 %v3127, %v3109
    %v4316 = vpack.c.b16 %v3128, %v3110
    %v4317 = vpack.c.b16 %v3129, %v3111
    %v4318 = vpack.c.b16 %v3130, %v3112
    %v4319 = vpack.c.b16 %v3131, %v3113
    %v4320 = vpack.c.b16 %v3132, %v3114
    %v4321 = vpack.c.b16 %v3133, %v3115
    %v4322 = vpack.c.b16 %v3134, %v3116
    %v4323 = vpack.c.b16 %v3135, %v3117
    %v4324 = vpack.c.b16 %v3136, %v3118
    %v4325 = vpack.c.b16 %v3137, %v3119
    %v4326 = vpack.c.b16 %v3138, %v3120
    %v4327 = vpack.c.b16 %v3139, %v3121
    %v4328 = vpack.c.b16 %v3140, %v3122
    %v4329 = vpack.c.b16 %v3141, %v3123
    %v4330 = vpack.c.b16 %v3142, %v3124
    %v4331 = vpack.c.b16 %v3161, %v3143
    %v4332 = vpack.c.b16 %v3162, %v3144
    %v4333 = vpack.c.b16 %v3163, %v3145
    %v4334 = vpack.c.b16 %v3164, %v3146
    %v4335 = vpack.c.b16 %v3165, %v3147
    %v4336 = vpack.c.b16 %v3166, %v3148
    %v4337 = vpack.c.b16 %v3167, %v3149
    %v4338 = vpack.c.b16 %v3168, %v3150
    %v4339 = vpack.c.b16 %v3169, %v3151
    %v4340 = vpack.c.b16 %v3170, %v3152
    %v4341 = vpack.c.b16 %v3171, %v3153
    %v4342 = vpack.c.b16 %v3172, %v3154
    %v4343 = vpack.c.b16 %v3173, %v3155
    %v4344 = vpack.c.b16 %v3174, %v3156
    %v4345 = vpack.c.b16 %v3175, %v3157
    %v4346 = vpack.c.b16 %v3176, %v3158
    %v4347 = vpack.c.b16 %v3177, %v3159
    %v4348 = vpack.c.b16 %v3178, %v3160
    %v4349 = vpack.c.b16 %v3197, %v3179
    %v4350 = vpack.c.b16 %v3198, %v3180
    %v4351 = vpack.c.b16 %v3199, %v3181
    %v4352 = vpack.c.b16 %v3200, %v3182
    %v4353 = vpack.c.b16 %v3201, %v3183
    %v4354 = vpack.c.b16 %v3202, %v3184
    %v4355 = vpack.c.b16 %v3203, %v3185
    %v4356 = vpack.c.b16 %v3204, %v3186
    %v4357 = vpack.c.b16 %v3205, %v3187
    %v4358 = vpack.c.b16 %v3206, %v3188
    %v4359 = vpack.c.b16 %v3207, %v3189
    %v4360 = vpack.c.b16 %v3208, %v3190
    %v4361 = vpack.c.b16 %v3209, %v3191
    %v4362 = vpack.c.b16 %v3210, %v3192
    %v4363 = vpack.c.b16 %v3211, %v3193
    %v4364 = vpack.c.b16 %v3212, %v3194
    %v4365 = vpack.c.b16 %v3213, %v3195
    %v4366 = vpack.c.b16 %v3214, %v3196
    %v4367 = vpack.c.b16 %v3233, %v3215
    %v4368 = vpack.c.b16 %v3234, %v3216
    %v4369 = vpack.c.b16 %v3235, %v3217
    %v4370 = vpack.c.b16 %v3236, %v3218
    %v4371 = vpack.c.b16 %v3237, %v3219
    %v4372 = vpack.c.b16 %v3238, %v3220
    %v4373 = vpack.c.b16 %v3239, %v3221
    %v4374 = vpack.c.b16 %v3240, %v3222
    %v4375 = vpack.c.b16 %v3241, %v3223
    %v4376 = vpack.c.b16 %v3242, %v3224
    %v4377 = vpack.c.b16 %v3243, %v3225
    %v4378 = vpack.c.b16 %v3244, %v3226
    %v4379 = vpack.c.b16 %v3245, %v3227
    %v4380 = vpack.c.b16 %v3246, %v3228
    %v4381 = vpack.c.b16 %v3247, %v3229
    %v4382 = vpack.c.b16 %v3248, %v3230
    %v4383 = vpack.c.b16 %v3249, %v3231
    %v4384 = vpack.c.b16 %v3250, %v3232
    %v4385 = vpack.c.b16 %v3269, %v3251
    %v4386 = vpack.c.b16 %v3270, %v3252
    %v4387 = vpack.c.b16 %v3271, %v3253
    %v4388 = vpack.c.b16 %v3272, %v3254
    %v4389 = vpack.c.b16 %v3273, %v3255
    %v4390 = vpack.c.b16 %v3274, %v3256
    %v4391 = vpack.c.b16 %v3275, %v3257
    %v4392 = vpack.c.b16 %v3276, %v3258
    %v4393 = vpack.c.b16 %v3277, %v3259
    %v4394 = vpack.c.b16 %v3278, %v3260
    %v4395 = vpack.c.b16 %v3279, %v3261
    %v4396 = vpack.c.b16 %v3280, %v3262
    %v4397 = vpack.c.b16 %v3281, %v3263
    %v4398 = vpack.c.b16 %v3282, %v3264
    %v4399 = vpack.c.b16 %v3283, %v3265
    %v4400 = vpack.c.b16 %v3284, %v3266
    %v4401 = vpack.c.b16 %v3285, %v3267
    %v4402 = vpack.c.b16 %v3286, %v3268
    %v4403 = vpack.c.b16 %v3305, %v3287
    %v4404 = vpack.c.b16 %v3306, %v3288
    %v4405 = vpack.c.b16 %v3307, %v3289
    %v4406 = vpack.c.b16 %v3308, %v3290
    %v4407 = vpack.c.b16 %v3309, %v3291
    %v4408 = vpack.c.b16 %v3310, %v3292
    %v4409 = vpack.c.b16 %v3311, %v3293
    %v4410 = vpack.c.b16 %v3312, %v3294
    %v4411 = vpack.c.b16 %v3313, %v3295
    %v4412 = vpack.c.b16 %v3314, %v3296
    %v4413 = vpack.c.b16 %v3315, %v3297
    %v4414 = vpack.c.b16 %v3316, %v3298
    %v4415 = vpack.c.b16 %v3317, %v3299
    %v4416 = vpack.c.b16 %v3318, %v3300
    %v4417 = vpack.c.b16 %v3319, %v3301
    %v4418 = vpack.c.b16 %v3320, %v3302
    %v4419 = vpack.c.b16 %v3321, %v3303
    %v4420 = vpack.c.b16 %v3322, %v3304
    %v4421 = vpack.c.b16 %v3341, %v3323
    %v4422 = vpack.c.b16 %v3342, %v3324
    %v4423 = vpack.c.b16 %v3343, %v3325
    %v4424 = vpack.c.b16 %v3344, %v3326
    %v4425 = vpack.c.b16 %v3345, %v3327
    %v4426 = vpack.c.b16 %v3346, %v3328
    %v4427 = vpack.c.b16 %v3347, %v3329
    %v4428 = vpack.c.b16 %v3348, %v3330
    %v4429 = vpack.c.b16 %v3349, %v3331
    %v4430 = vpack.c.b16 %v3350, %v3332
    %v4431 = vpack.c.b16 %v3351, %v3333
    %v4432 = vpack.c.b16 %v3352, %v3334
    %v4433 = vpack.c.b16 %v3353, %v3335
    %v4434 = vpack.c.b16 %v3354, %v3336
    %v4435 = vpack.c.b16 %v3355, %v3337
    %v4436 = vpack.c.b16 %v3356, %v3338
    %v4437 = vpack.c.b16 %v3357, %v3339
    %v4438 = vpack.c.b16 %v3358, %v3340
    %v4439 = vpack.c.b16 %v3377, %v3359
    %v4440 = vpack.c.b16 %v3378, %v3360
    %v4441 = vpack.c.b16 %v3379, %v3361
    %v4442 = vpack.c.b16 %v3380, %v3362
    %v4443 = vpack.c.b16 %v3381, %v3363
    %v4444 = vpack.c.b16 %v3382, %v3364
    %v4445 = vpack.c.b16 %v3383, %v3365
    %v4446 = vpack.c.b16 %v3384, %v3366
    %v4447 = vpack.c.b16 %v3385, %v3367
    %v4448 = vpack.c.b16 %v3386, %v3368
    %v4449 = vpack.c.b16 %v3387, %v3369
    %v4450 = vpack.c.b16 %v3388, %v3370
    %v4451 = vpack.c.b16 %v3389, %v3371
    %v4452 = vpack.c.b16 %v3390, %v3372
    %v4453 = vpack.c.b16 %v3391, %v3373
    %v4454 = vpack.c.b16 %v3392, %v3374
    %v4455 = vpack.c.b16 %v3393, %v3375
    %v4456 = vpack.c.b16 %v3394, %v3376
    %v4457 = vpack.c.b16 %v3413, %v3395
    %v4458 = vpack.c.b16 %v3414, %v3396
    %v4459 = vpack.c.b16 %v3415, %v3397
    %v4460 = vpack.c.b16 %v3416, %v3398
    %v4461 = vpack.c.b16 %v3417, %v3399
    %v4462 = vpack.c.b16 %v3418, %v3400
    %v4463 = vpack.c.b16 %v3419, %v3401
    %v4464 = vpack.c.b16 %v3420, %v3402
    %v4465 = vpack.c.b16 %v3421, %v3403
    %v4466 = vpack.c.b16 %v3422, %v3404
    %v4467 = vpack.c.b16 %v3423, %v3405
    %v4468 = vpack.c.b16 %v3424, %v3406
    %v4469 = vpack.c.b16 %v3425, %v3407
    %v4470 = vpack.c.b16 %v3426, %v3408
    %v4471 = vpack.c.b16 %v3427, %v3409
    %v4472 = vpack.c.b16 %v3428, %v3410
    %v4473 = vpack.c.b16 %v3429, %v3411
    %v4474 = vpack.c.b16 %v3430, %v3412
    %v4475 = vpack.c.b16 %v3449, %v3431
    %v4476 = vpack.c.b16 %v3450, %v3432
    %v4477 = vpack.c.b16 %v3451, %v3433
    %v4478 = vpack.c.b16 %v3452, %v3434
    %v4479 = vpack.c.b16 %v3453, %v3435
    %v4480 = vpack.c.b16 %v3454, %v3436
    %v4481 = vpack.c.b16 %v3455, %v3437
    %v4482 = vpack.c.b16 %v3456, %v3438
    %v4483 = vpack.c.b16 %v3457, %v3439
    %v4484 = vpack.c.b16 %v3458, %v3440
    %v4485 = vpack.c.b16 %v3459, %v3441
    %v4486 = vpack.c.b16 %v3460, %v3442
    %v4487 = vpack.c.b16 %v3461, %v3443
    %v4488 = vpack.c.b16 %v3462, %v3444
    %v4489 = vpack.c.b16 %v3463, %v3445
    %v4490 = vpack.c.b16 %v3464, %v3446
    %v4491 = vpack.c.b16 %v3465, %v3447
    %v4492 = vpack.c.b16 %v3466, %v3448
    %v4493 = vpack.c.b16 %v3485, %v3467
    %v4494 = vpack.c.b16 %v3486, %v3468
    %v4495 = vpack.c.b16 %v3487, %v3469
    %v4496 = vpack.c.b16 %v3488, %v3470
    %v4497 = vpack.c.b16 %v3489, %v3471
    %v4498 = vpack.c.b16 %v3490, %v3472
    %v4499 = vpack.c.b16 %v3491, %v3473
    %v4500 = vpack.c.b16 %v3492, %v3474
    %v4501 = vpack.c.b16 %v3493, %v3475
    %v4502 = vpack.c.b16 %v3494, %v3476
    %v4503 = vpack.c.b16 %v3495, %v3477
    %v4504 = vpack.c.b16 %v3496, %v3478
    %v4505 = vpack.c.b16 %v3497, %v3479
    %v4506 = vpack.c.b16 %v3498, %v3480
    %v4507 = vpack.c.b16 %v3499, %v3481
    %v4508 = vpack.c.b16 %v3500, %v3482
    %v4509 = vpack.c.b16 %v3501, %v3483
    %v4510 = vpack.c.b16 %v3502, %v3484
    %v4511 = vpack.c.b16 %v3521, %v3503
    %v4512 = vpack.c.b16 %v3522, %v3504
    %v4513 = vpack.c.b16 %v3523, %v3505
    %v4514 = vpack.c.b16 %v3524, %v3506
    %v4515 = vpack.c.b16 %v3525, %v3507
    %v4516 = vpack.c.b16 %v3526, %v3508
    %v4517 = vpack.c.b16 %v3527, %v3509
    %v4518 = vpack.c.b16 %v3528, %v3510
    %v4519 = vpack.c.b16 %v3529, %v3511
    %v4520 = vpack.c.b16 %v3530, %v3512
    %v4521 = vpack.c.b16 %v3531, %v3513
    %v4522 = vpack.c.b16 %v3532, %v3514
    %v4523 = vpack.c.b16 %v3533, %v3515
    %v4524 = vpack.c.b16 %v3534, %v3516
    %v4525 = vpack.c.b16 %v3535, %v3517
    %v4526 = vpack.c.b16 %v3536, %v3518
    %v4527 = vpack.c.b16 %v3537, %v3519
    %v4528 = vpack.c.b16 %v3538, %v3520
    %v4529 = vpack.c.b16 %v3557, %v3539
    %v4530 = vpack.c.b16 %v3558, %v3540
    %v4531 = vpack.c.b16 %v3559, %v3541
    %v4532 = vpack.c.b16 %v3560, %v3542
    %v4533 = vpack.c.b16 %v3561, %v3543
    %v4534 = vpack.c.b16 %v3562, %v3544
    %v4535 = vpack.c.b16 %v3563, %v3545
    %v4536 = vpack.c.b16 %v3564, %v3546
    %v4537 = vpack.c.b16 %v3565, %v3547
    %v4538 = vpack.c.b16 %v3566, %v3548
    %v4539 = vpack.c.b16 %v3567, %v3549
    %v4540 = vpack.c.b16 %v3568, %v3550
    %v4541 = vpack.c.b16 %v3569, %v3551
    %v4542 = vpack.c.b16 %v3570, %v3552
    %v4543 = vpack.c.b16 %v3571, %v3553
    %v4544 = vpack.c.b16 %v3572, %v3554
    %v4545 = vpack.c.b16 %v3573, %v3555
    %v4546 = vpack.c.b16 %v3574, %v3556
    %v4547 = vpack.c.b16 %v3593, %v3575
    %v4548 = vpack.c.b16 %v3594, %v3576
    %v4549 = vpack.c.b16 %v3595, %v3577
    %v4550 = vpack.c.b16 %v3596, %v3578
    %v4551 = vpack.c.b16 %v3597, %v3579
    %v4552 = vpack.c.b16 %v3598, %v3580
    %v4553 = vpack.c.b16 %v3599, %v3581
    %v4554 = vpack.c.b16 %v3600, %v3582
    %v4555 = vpack.c.b16 %v3601, %v3583
    %v4556 = vpack.c.b16 %v3602, %v3584
    %v4557 = vpack.c.b16 %v3603, %v3585
    %v4558 = vpack.c.b16 %v3604, %v3586
    %v4559 = vpack.c.b16 %v3605, %v3587
    %v4560 = vpack.c.b16 %v3606, %v3588
    %v4561 = vpack.c.b16 %v3607, %v3589
    %v4562 = vpack.c.b16 %v3608, %v3590
    %v4563 = vpack.c.b16 %v3609, %v3591
    %v4564 = vpack.c.b16 %v3610, %v3592
    %v4565 = vpack.c.b16 %v3629, %v3611
    %v4566 = vpack.c.b16 %v3630, %v3612
    %v4567 = vpack.c.b16 %v3631, %v3613
    %v4568 = vpack.c.b16 %v3632, %v3614
    %v4569 = vpack.c.b16 %v3633, %v3615
    %v4570 = vpack.c.b16 %v3634, %v3616
    %v4571 = vpack.c.b16 %v3635, %v3617
    %v4572 = vpack.c.b16 %v3636, %v3618
    %v4573 = vpack.c.b16 %v3637, %v3619
    %v4574 = vpack.c.b16 %v3638, %v3620
    %v4575 = vpack.c.b16 %v3639, %v3621
    %v4576 = vpack.c.b16 %v3640, %v3622
    %v4577 = vpack.c.b16 %v3641, %v3623
    %v4578 = vpack.c.b16 %v3642, %v3624
    %v4579 = vpack.c.b16 %v3643, %v3625
    %v4580 = vpack.c.b16 %v3644, %v3626
    %v4581 = vpack.c.b16 %v3645, %v3627
    %v4582 = vpack.c.b16 %v3646, %v3628
    %v4583 = vpack.c.b16 %v3665, %v3647
    %v4584 = vpack.c.b16 %v3666, %v3648
    %v4585 = vpack.c.b16 %v3667, %v3649
    %v4586 = vpack.c.b16 %v3668, %v3650
    %v4587 = vpack.c.b16 %v3669, %v3651
    %v4588 = vpack.c.b16 %v3670, %v3652
    %v4589 = vpack.c.b16 %v3671, %v3653
    %v4590 = vpack.c.b16 %v3672, %v3654
    %v4591 = vpack.c.b16 %v3673, %v3655
    %v4592 = vpack.c.b16 %v3674, %v3656
    %v4593 = vpack.c.b16 %v3675, %v3657
    %v4594 = vpack.c.b16 %v3676, %v3658
    %v4595 = vpack.c.b16 %v3677, %v3659
    %v4596 = vpack.c.b16 %v3678, %v3660
    %v4597 = vpack.c.b16 %v3679, %v3661
    %v4598 = vpack.c.b16 %v3680, %v3662
    %v4599 = vpack.c.b16 %v3681, %v3663
    %v4600 = vpack.c.b16 %v3682, %v3664
    %v4601 = vpack.c.b16 %v3701, %v3683
    %v4602 = vpack.c.b16 %v3702, %v3684
    %v4603 = vpack.c.b16 %v3703, %v3685
    %v4604 = vpack.c.b16 %v3704, %v3686
    %v4605 = vpack.c.b16 %v3705, %v3687
    %v4606 = vpack.c.b16 %v3706, %v3688
    %v4607 = vpack.c.b16 %v3707, %v3689
    %v4608 = vpack.c.b16 %v3708, %v3690
    %v4609 = vpack.c.b16 %v3709, %v3691
    %v4610 = vpack.c.b16 %v3710, %v3692
    %v4611 = vpack.c.b16 %v3711, %v3693
    %v4612 = vpack.c.b16 %v3712, %v3694
    %v4613 = vpack.c.b16 %v3713, %v3695
    %v4614 = vpack.c.b16 %v3714, %v3696
    %v4615 = vpack.c.b16 %v3715, %v3697
    %v4616 = vpack.c.b16 %v3716, %v3698
    %v4617 = vpack.c.b16 %v3717, %v3699
    %v4618 = vpack.c.b16 %v3718, %v3700
    %v4619 = vpack.c.b16 %v3737, %v3719
    %v4620 = vpack.c.b16 %v3738, %v3720
    %v4621 = vpack.c.b16 %v3739, %v3721
    %v4622 = vpack.c.b16 %v3740, %v3722
    %v4623 = vpack.c.b16 %v3741, %v3723
    %v4624 = vpack.c.b16 %v3742, %v3724
    %v4625 = vpack.c.b16 %v3743, %v3725
    %v4626 = vpack.c.b16 %v3744, %v3726
    %v4627 = vpack.c.b16 %v3745, %v3727
    %v4628 = vpack.c.b16 %v3746, %v3728
    %v4629 = vpack.c.b16 %v3747, %v3729
    %v4630 = vpack.c.b16 %v3748, %v3730
    %v4631 = vpack.c.b16 %v3749, %v3731
    %v4632 = vpack.c.b16 %v3750, %v3732
    %v4633 = vpack.c.b16 %v3751, %v3733
    %v4634 = vpack.c.b16 %v3752, %v3734
    %v4635 = vpack.c.b16 %v3753, %v3735
    %v4636 = vpack.c.b16 %v3754, %v3736
    %vm5519 = vcmask 130048
    %v5521 = vsel %vm5519, %v1102, 0
    %5523 = vmatprep.subr.bf16.mxu0 %v3756
    %5524 = vmatpush1.bf16.msra.mxu0 %v3755
    %5525 = vmatprep.subr.bf16.mxu0 %v3774
    %5526 = vmatpush1.bf16.msra.mxu0 %v3773
    %5527 = vmatprep.subr.bf16.mxu0 %v3792
    %5528 = vmatpush1.bf16.msra.mxu0 %v3791
    %5529 = vmatprep.subr.bf16.mxu0 %v3810
    %5530 = vmatpush1.bf16.msra.mxu0 %v3809
    %5531 = vmatprep.subr.bf16.mxu0 %v3828
    %5532 = vmatpush1.bf16.msra.mxu0 %v3827
    %5533 = vmatprep.subr.bf16.mxu0 %v3846
    %5534 = vmatpush1.bf16.msra.mxu0 %v3845
    %5535 = vmatprep.subr.bf16.mxu0 %v3864
    %5536 = vmatpush1.bf16.msra.mxu0 %v3863
    %5537 = vmatprep.subr.bf16.mxu0 %v3882
    %5538 = vmatpush1.bf16.msra.mxu0 %v3881
    %5539 = vmatprep.subr.bf16.mxu0 %v3900
    %5540 = vmatpush1.bf16.msra.mxu0 %v3899
    %5541 = vmatprep.subr.bf16.mxu0 %v3918
    %5542 = vmatpush1.bf16.msra.mxu0 %v3917
    %5543 = vmatprep.subr.bf16.mxu0 %v3936
    %5544 = vmatpush1.bf16.msra.mxu0 %v3935
    %5545 = vmatprep.subr.bf16.mxu0 %v3954
    %5546 = vmatpush1.bf16.msra.mxu0 %v3953
    %5547 = vmatprep.subr.bf16.mxu0 %v3972
    %5548 = vmatpush1.bf16.msra.mxu0 %v3971
    %5549 = vmatprep.subr.bf16.mxu0 %v3990
    %5550 = vmatpush1.bf16.msra.mxu0 %v3989
    %5551 = vmatprep.subr.bf16.mxu0 %v4008
    %5552 = vmatpush1.bf16.msra.mxu0 %v4007
    %5553 = vmatprep.subr.bf16.mxu0 %v4026
    %5554 = vmatpush1.bf16.msra.mxu0 %v4025
    %5555 = vmatprep.mubr.bf16.mxu0 %v1097
    %5556 = vmatmul.mubr.bf16.gmra.mrb[0].mxu0 %v1096
    %v5557 = vpop.f32.mrb[0].mxu0
    %v5558 = vadd.f32 %v998, %v5557
    %v5559 = vpop.f32.mrb[0].mxu0
    %v5560 = vadd.f32 %v1002, %v5559
    %v5561 = vpop.f32.mrb[0].mxu0
    %v5562 = vpop.f32.mrb[0].mxu0
    %5563 = vdwg.mxu0
    %5564 = vmatprep.subr.bf16.mxu0 %v4044
    %5565 = vmatpush1.bf16.msra.mxu0 %v4043
    %5566 = vmatprep.subr.bf16.mxu0 %v4062
    %5567 = vmatpush1.bf16.msra.mxu0 %v4061
    %5568 = vmatprep.subr.bf16.mxu0 %v4080
    %5569 = vmatpush1.bf16.msra.mxu0 %v4079
    %5570 = vmatprep.subr.bf16.mxu0 %v4098
    %5571 = vmatpush1.bf16.msra.mxu0 %v4097
    %5572 = vmatprep.subr.bf16.mxu0 %v4116
    %5573 = vmatpush1.bf16.msra.mxu0 %v4115
    %5574 = vmatprep.subr.bf16.mxu0 %v4134
    %5575 = vmatpush1.bf16.msra.mxu0 %v4133
    %5576 = vmatprep.subr.bf16.mxu0 %v4152
    %5577 = vmatpush1.bf16.msra.mxu0 %v4151
    %5578 = vmatprep.subr.bf16.mxu0 %v4170
    %5579 = vmatpush1.bf16.msra.mxu0 %v4169
    %5580 = vmatprep.subr.bf16.mxu0 %v4188
    %5581 = vmatpush1.bf16.msra.mxu0 %v4187
    %5582 = vmatprep.subr.bf16.mxu0 %v4206
    %5583 = vmatpush1.bf16.msra.mxu0 %v4205
    %5584 = vmatprep.subr.bf16.mxu0 %v4224
    %5585 = vmatpush1.bf16.msra.mxu0 %v4223
    %5586 = vmatprep.subr.bf16.mxu0 %v4242
    %5587 = vmatpush1.bf16.msra.mxu0 %v4241
    %5588 = vmatprep.subr.bf16.mxu0 %v4260
    %5589 = vmatpush1.bf16.msra.mxu0 %v4259
    %5590 = vmatprep.subr.bf16.mxu0 %v4278
    %5591 = vmatpush1.bf16.msra.mxu0 %v4277
    %5592 = vmatprep.subr.bf16.mxu0 %v4296
    %5593 = vmatpush1.bf16.msra.mxu0 %v4295
    %5594 = vmatprep.subr.bf16.mxu0 %v4314
    %5595 = vmatpush1.bf16.msra.mxu0 %v4313
    %5596 = vmatprep.mubr.bf16.mxu0 %v1099
    %5597 = vmatmul.mubr.bf16.gmra.mrb[0].mxu0 %v1098
    %v5598 = vpop.f32.mrb[0].mxu0
    %v5599 = vadd.f32 %v5558, %v5598
    %v5600 = vpop.f32.mrb[0].mxu0
    %v5601 = vadd.f32 %v5560, %v5600
    %v5602 = vpop.f32.mrb[0].mxu0
    %v5603 = vpop.f32.mrb[0].mxu0
    %5604 = vdwg.mxu0
    %5605 = vmatprep.subr.bf16.mxu0 %v4332
    %5606 = vmatpush1.bf16.msra.mxu0 %v4331
    %5607 = vmatprep.subr.bf16.mxu0 %v4350
    %5608 = vmatpush1.bf16.msra.mxu0 %v4349
    %5609 = vmatprep.subr.bf16.mxu0 %v4368
    %5610 = vmatpush1.bf16.msra.mxu0 %v4367
    %5611 = vmatprep.subr.bf16.mxu0 %v4386
    %5612 = vmatpush1.bf16.msra.mxu0 %v4385
    %5613 = vmatprep.subr.bf16.mxu0 %v4404
    %5614 = vmatpush1.bf16.msra.mxu0 %v4403
    %5615 = vmatprep.subr.bf16.mxu0 %v4422
    %5616 = vmatpush1.bf16.msra.mxu0 %v4421
    %5617 = vmatprep.subr.bf16.mxu0 %v4440
    %5618 = vmatpush1.bf16.msra.mxu0 %v4439
    %5619 = vmatprep.subr.bf16.mxu0 %v4458
    %5620 = vmatpush1.bf16.msra.mxu0 %v4457
    %5621 = vmatprep.subr.bf16.mxu0 %v4476
    %5622 = vmatpush1.bf16.msra.mxu0 %v4475
    %5623 = vmatprep.subr.bf16.mxu0 %v4494
    %5624 = vmatpush1.bf16.msra.mxu0 %v4493
    %5625 = vmatprep.subr.bf16.mxu0 %v4512
    %5626 = vmatpush1.bf16.msra.mxu0 %v4511
    %5627 = vmatprep.subr.bf16.mxu0 %v4530
    %5628 = vmatpush1.bf16.msra.mxu0 %v4529
    %5629 = vmatprep.subr.bf16.mxu0 %v4548
    %5630 = vmatpush1.bf16.msra.mxu0 %v4547
    %5631 = vmatprep.subr.bf16.mxu0 %v4566
    %5632 = vmatpush1.bf16.msra.mxu0 %v4565
    %5633 = vmatprep.subr.bf16.mxu0 %v4584
    %5634 = vmatpush1.bf16.msra.mxu0 %v4583
    %5635 = vmatprep.subr.bf16.mxu0 %v4602
    %5636 = vmatpush1.bf16.msra.mxu0 %v4601
    %5637 = vmatprep.mubr.bf16.mxu0 %v1101
    %5638 = vmatmul.mubr.bf16.gmra.mrb[0].mxu0 %v1100
    %v5639 = vpop.f32.mrb[0].mxu0
    %v5640 = vadd.f32 %v5599, %v5639
    %v5641 = vpop.f32.mrb[0].mxu0
    %v5642 = vadd.f32 %v5601, %v5641
    %v5643 = vpop.f32.mrb[0].mxu0
    %v5644 = vpop.f32.mrb[0].mxu0
    %5645 = vdwg.mxu0
    %5646 = vmatprep.subr.bf16.mxu0 %v4620
    %5647 = vmatpush1.bf16.msra.mxu0 %v4619
    %5648 = vmatprep.subr.bf16.mxu0 0
    %5649 = vmatpush1.bf16.msra.mxu0 0
    %5650 = vmatprep.subr.bf16.mxu0 0
    %5651 = vmatpush1.bf16.msra.mxu0 0
    %5652 = vmatprep.subr.bf16.mxu0 0
    %5653 = vmatpush1.bf16.msra.mxu0 0
    %5654 = vmatprep.subr.bf16.mxu0 0
    %5655 = vmatpush1.bf16.msra.mxu0 0
    %5656 = vmatprep.subr.bf16.mxu0 0
    %5657 = vmatpush1.bf16.msra.mxu0 0
    %5658 = vmatprep.subr.bf16.mxu0 0
    %5659 = vmatpush1.bf16.msra.mxu0 0
    %5660 = vmatprep.subr.bf16.mxu0 0
    %5661 = vmatpush1.bf16.msra.mxu0 0
    %5662 = vmatprep.subr.bf16.mxu0 0
    %5663 = vmatpush1.bf16.msra.mxu0 0
    %5664 = vmatprep.subr.bf16.mxu0 0
    %5665 = vmatpush1.bf16.msra.mxu0 0
    %5666 = vmatprep.subr.bf16.mxu0 0
    %5667 = vmatpush1.bf16.msra.mxu0 0
    %5668 = vmatprep.subr.bf16.mxu0 0
    %5669 = vmatpush1.bf16.msra.mxu0 0
    %5670 = vmatprep.subr.bf16.mxu0 0
    %5671 = vmatpush1.bf16.msra.mxu0 0
    %5672 = vmatprep.subr.bf16.mxu0 0
    %5673 = vmatpush1.bf16.msra.mxu0 0
    %5674 = vmatprep.subr.bf16.mxu0 0
    %5675 = vmatpush1.bf16.msra.mxu0 0
    %5676 = vmatprep.subr.bf16.mxu0 0
    %5677 = vmatpush1.bf16.msra.mxu0 0
    %5678 = vmatprep.mubr.bf16.mxu0 0
    %5679 = vmatmul.mubr.bf16.gmra.mrb[0].mxu0 %v5521
    %v5680 = vpop.f32.mrb[0].mxu0
    %v5681 = vadd.f32 %v5640, %v5680
    %v5682 = vpop.f32.mrb[0].mxu0
    %v5683 = vadd.f32 %v5642, %v5682
    %v5684 = vpop.f32.mrb[0].mxu0
    %v5685 = vpop.f32.mrb[0].mxu0
    %5686 = vdwg.mxu0
    %5687 = vmatprep.subr.bf16.mxu0 %v3758
    %5688 = vmatpush1.bf16.msra.mxu0 %v3757
    %5689 = vmatprep.subr.bf16.mxu0 %v3776
    %5690 = vmatpush1.bf16.msra.mxu0 %v3775
    %5691 = vmatprep.subr.bf16.mxu0 %v3794
    %5692 = vmatpush1.bf16.msra.mxu0 %v3793
    %5693 = vmatprep.subr.bf16.mxu0 %v3812
    %5694 = vmatpush1.bf16.msra.mxu0 %v3811
    %5695 = vmatprep.subr.bf16.mxu0 %v3830
    %5696 = vmatpush1.bf16.msra.mxu0 %v3829
    %5697 = vmatprep.subr.bf16.mxu0 %v3848
    %5698 = vmatpush1.bf16.msra.mxu0 %v3847
    %5699 = vmatprep.subr.bf16.mxu0 %v3866
    %5700 = vmatpush1.bf16.msra.mxu0 %v3865
    %5701 = vmatprep.subr.bf16.mxu0 %v3884
    %5702 = vmatpush1.bf16.msra.mxu0 %v3883
    %5703 = vmatprep.subr.bf16.mxu0 %v3902
    %5704 = vmatpush1.bf16.msra.mxu0 %v3901
    %5705 = vmatprep.subr.bf16.mxu0 %v3920
    %5706 = vmatpush1.bf16.msra.mxu0 %v3919
    %5707 = vmatprep.subr.bf16.mxu0 %v3938
    %5708 = vmatpush1.bf16.msra.mxu0 %v3937
    %5709 = vmatprep.subr.bf16.mxu0 %v3956
    %5710 = vmatpush1.bf16.msra.mxu0 %v3955
    %5711 = vmatprep.subr.bf16.mxu0 %v3974
    %5712 = vmatpush1.bf16.msra.mxu0 %v3973
    %5713 = vmatprep.subr.bf16.mxu0 %v3992
    %5714 = vmatpush1.bf16.msra.mxu0 %v3991
    %5715 = vmatprep.subr.bf16.mxu0 %v4010
    %5716 = vmatpush1.bf16.msra.mxu0 %v4009
    %5717 = vmatprep.subr.bf16.mxu0 %v4028
    %5718 = vmatpush1.bf16.msra.mxu0 %v4027
    %5719 = vmatprep.mubr.bf16.mxu0 %v1097
    %5720 = vmatmul.mubr.bf16.gmra.mrb[0].mxu0 %v1096
    %v5721 = vpop.f32.mrb[0].mxu0
    %v5722 = vadd.f32 %v1006, %v5721
    %v5723 = vpop.f32.mrb[0].mxu0
    %v5724 = vadd.f32 %v1010, %v5723
    %v5725 = vpop.f32.mrb[0].mxu0
    %v5726 = vpop.f32.mrb[0].mxu0
    %5727 = vdwg.mxu0
    %5728 = vmatprep.subr.bf16.mxu0 %v4046
    %5729 = vmatpush1.bf16.msra.mxu0 %v4045
    %5730 = vmatprep.subr.bf16.mxu0 %v4064
    %5731 = vmatpush1.bf16.msra.mxu0 %v4063
    %5732 = vmatprep.subr.bf16.mxu0 %v4082
    %5733 = vmatpush1.bf16.msra.mxu0 %v4081
    %5734 = vmatprep.subr.bf16.mxu0 %v4100
    %5735 = vmatpush1.bf16.msra.mxu0 %v4099
    %5736 = vmatprep.subr.bf16.mxu0 %v4118
    %5737 = vmatpush1.bf16.msra.mxu0 %v4117
    %5738 = vmatprep.subr.bf16.mxu0 %v4136
    %5739 = vmatpush1.bf16.msra.mxu0 %v4135
    %5740 = vmatprep.subr.bf16.mxu0 %v4154
    %5741 = vmatpush1.bf16.msra.mxu0 %v4153
    %5742 = vmatprep.subr.bf16.mxu0 %v4172
    %5743 = vmatpush1.bf16.msra.mxu0 %v4171
    %5744 = vmatprep.subr.bf16.mxu0 %v4190
    %5745 = vmatpush1.bf16.msra.mxu0 %v4189
    %5746 = vmatprep.subr.bf16.mxu0 %v4208
    %5747 = vmatpush1.bf16.msra.mxu0 %v4207
    %5748 = vmatprep.subr.bf16.mxu0 %v4226
    %5749 = vmatpush1.bf16.msra.mxu0 %v4225
    %5750 = vmatprep.subr.bf16.mxu0 %v4244
    %5751 = vmatpush1.bf16.msra.mxu0 %v4243
    %5752 = vmatprep.subr.bf16.mxu0 %v4262
    %5753 = vmatpush1.bf16.msra.mxu0 %v4261
    %5754 = vmatprep.subr.bf16.mxu0 %v4280
    %5755 = vmatpush1.bf16.msra.mxu0 %v4279
    %5756 = vmatprep.subr.bf16.mxu0 %v4298
    %5757 = vmatpush1.bf16.msra.mxu0 %v4297
    %5758 = vmatprep.subr.bf16.mxu0 %v4316
    %5759 = vmatpush1.bf16.msra.mxu0 %v4315
    %5760 = vmatprep.mubr.bf16.mxu0 %v1099
    %5761 = vmatmul.mubr.bf16.gmra.mrb[0].mxu0 %v1098
    %v5762 = vpop.f32.mrb[0].mxu0
    %v5763 = vadd.f32 %v5722, %v5762
    %v5764 = vpop.f32.mrb[0].mxu0
    %v5765 = vadd.f32 %v5724, %v5764
    %v5766 = vpop.f32.mrb[0].mxu0
    %v5767 = vpop.f32.mrb[0].mxu0
    %5768 = vdwg.mxu0
    %5769 = vmatprep.subr.bf16.mxu0 %v4334
    %5770 = vmatpush1.bf16.msra.mxu0 %v4333
    %5771 = vmatprep.subr.bf16.mxu0 %v4352
    %5772 = vmatpush1.bf16.msra.mxu0 %v4351
    %5773 = vmatprep.subr.bf16.mxu0 %v4370
    %5774 = vmatpush1.bf16.msra.mxu0 %v4369
    %5775 = vmatprep.subr.bf16.mxu0 %v4388
    %5776 = vmatpush1.bf16.msra.mxu0 %v4387
    %5777 = vmatprep.subr.bf16.mxu0 %v4406
    %5778 = vmatpush1.bf16.msra.mxu0 %v4405
    %5779 = vmatprep.subr.bf16.mxu0 %v4424
    %5780 = vmatpush1.bf16.msra.mxu0 %v4423
    %5781 = vmatprep.subr.bf16.mxu0 %v4442
    %5782 = vmatpush1.bf16.msra.mxu0 %v4441
    %5783 = vmatprep.subr.bf16.mxu0 %v4460
    %5784 = vmatpush1.bf16.msra.mxu0 %v4459
    %5785 = vmatprep.subr.bf16.mxu0 %v4478
    %5786 = vmatpush1.bf16.msra.mxu0 %v4477
    %5787 = vmatprep.subr.bf16.mxu0 %v4496
    %5788 = vmatpush1.bf16.msra.mxu0 %v4495
    %5789 = vmatprep.subr.bf16.mxu0 %v4514
    %5790 = vmatpush1.bf16.msra.mxu0 %v4513
    %5791 = vmatprep.subr.bf16.mxu0 %v4532
    %5792 = vmatpush1.bf16.msra.mxu0 %v4531
    %5793 = vmatprep.subr.bf16.mxu0 %v4550
    %5794 = vmatpush1.bf16.msra.mxu0 %v4549
    %5795 = vmatprep.subr.bf16.mxu0 %v4568
    %5796 = vmatpush1.bf16.msra.mxu0 %v4567
    %5797 = vmatprep.subr.bf16.mxu0 %v4586
    %5798 = vmatpush1.bf16.msra.mxu0 %v4585
    %5799 = vmatprep.subr.bf16.mxu0 %v4604
    %5800 = vmatpush1.bf16.msra.mxu0 %v4603
    %5801 = vmatprep.mubr.bf16.mxu0 %v1101
    %5802 = vmatmul.mubr.bf16.gmra.mrb[0].mxu0 %v1100
    %v5803 = vpop.f32.mrb[0].mxu0
    %v5804 = vadd.f32 %v5763, %v5803
    %v5805 = vpop.f32.mrb[0].mxu0
    %v5806 = vadd.f32 %v5765, %v5805
    %v5807 = vpop.f32.mrb[0].mxu0
    %v5808 = vpop.f32.mrb[0].mxu0
    %5809 = vdwg.mxu0
    %5810 = vmatprep.subr.bf16.mxu0 %v4622
    %5811 = vmatpush1.bf16.msra.mxu0 %v4621
    %5812 = vmatprep.subr.bf16.mxu0 0
    %5813 = vmatpush1.bf16.msra.mxu0 0
    %5814 = vmatprep.subr.bf16.mxu0 0
    %5815 = vmatpush1.bf16.msra.mxu0 0
    %5816 = vmatprep.subr.bf16.mxu0 0
    %5817 = vmatpush1.bf16.msra.mxu0 0
    %5818 = vmatprep.subr.bf16.mxu0 0
    %5819 = vmatpush1.bf16.msra.mxu0 0
    %5820 = vmatprep.subr.bf16.mxu0 0
    %5821 = vmatpush1.bf16.msra.mxu0 0
    %5822 = vmatprep.subr.bf16.mxu0 0
    %5823 = vmatpush1.bf16.msra.mxu0 0
    %5824 = vmatprep.subr.bf16.mxu0 0
    %5825 = vmatpush1.bf16.msra.mxu0 0
    %5826 = vmatprep.subr.bf16.mxu0 0
    %5827 = vmatpush1.bf16.msra.mxu0 0
    %5828 = vmatprep.subr.bf16.mxu0 0
    %5829 = vmatpush1.bf16.msra.mxu0 0
    %5830 = vmatprep.subr.bf16.mxu0 0
    %5831 = vmatpush1.bf16.msra.mxu0 0
    %5832 = vmatprep.subr.bf16.mxu0 0
    %5833 = vmatpush1.bf16.msra.mxu0 0
    %5834 = vmatprep.subr.bf16.mxu0 0
    %5835 = vmatpush1.bf16.msra.mxu0 0
    %5836 = vmatprep.subr.bf16.mxu0 0
    %5837 = vmatpush1.bf16.msra.mxu0 0
    %5838 = vmatprep.subr.bf16.mxu0 0
    %5839 = vmatpush1.bf16.msra.mxu0 0
    %5840 = vmatprep.subr.bf16.mxu0 0
    %5841 = vmatpush1.bf16.msra.mxu0 0
    %5842 = vmatprep.mubr.bf16.mxu0 0
    %5843 = vmatmul.mubr.bf16.gmra.mrb[0].mxu0 %v5521
    %v5844 = vpop.f32.mrb[0].mxu0
    %v5845 = vadd.f32 %v5804, %v5844
    %v5846 = vpop.f32.mrb[0].mxu0
    %v5847 = vadd.f32 %v5806, %v5846
    %v5848 = vpop.f32.mrb[0].mxu0
    %v5849 = vpop.f32.mrb[0].mxu0
    %5850 = vdwg.mxu0
    %5851 = vmatprep.subr.bf16.mxu0 %v3760
    %5852 = vmatpush1.bf16.msra.mxu0 %v3759
    %5853 = vmatprep.subr.bf16.mxu0 %v3778
    %5854 = vmatpush1.bf16.msra.mxu0 %v3777
    %5855 = vmatprep.subr.bf16.mxu0 %v3796
    %5856 = vmatpush1.bf16.msra.mxu0 %v3795
    %5857 = vmatprep.subr.bf16.mxu0 %v3814
    %5858 = vmatpush1.bf16.msra.mxu0 %v3813
    %5859 = vmatprep.subr.bf16.mxu0 %v3832
    %5860 = vmatpush1.bf16.msra.mxu0 %v3831
    %5861 = vmatprep.subr.bf16.mxu0 %v3850
    %5862 = vmatpush1.bf16.msra.mxu0 %v3849
    %5863 = vmatprep.subr.bf16.mxu0 %v3868
    %5864 = vmatpush1.bf16.msra.mxu0 %v3867
    %5865 = vmatprep.subr.bf16.mxu0 %v3886
    %5866 = vmatpush1.bf16.msra.mxu0 %v3885
    %5867 = vmatprep.subr.bf16.mxu0 %v3904
    %5868 = vmatpush1.bf16.msra.mxu0 %v3903
    %5869 = vmatprep.subr.bf16.mxu0 %v3922
    %5870 = vmatpush1.bf16.msra.mxu0 %v3921
    %5871 = vmatprep.subr.bf16.mxu0 %v3940
    %5872 = vmatpush1.bf16.msra.mxu0 %v3939
    %5873 = vmatprep.subr.bf16.mxu0 %v3958
    %5874 = vmatpush1.bf16.msra.mxu0 %v3957
    %5875 = vmatprep.subr.bf16.mxu0 %v3976
    %5876 = vmatpush1.bf16.msra.mxu0 %v3975
    %5877 = vmatprep.subr.bf16.mxu0 %v3994
    %5878 = vmatpush1.bf16.msra.mxu0 %v3993
    %5879 = vmatprep.subr.bf16.mxu0 %v4012
    %5880 = vmatpush1.bf16.msra.mxu0 %v4011
    %5881 = vmatprep.subr.bf16.mxu0 %v4030
    %5882 = vmatpush1.bf16.msra.mxu0 %v4029
    %5883 = vmatprep.mubr.bf16.mxu0 %v1097
    %5884 = vmatmul.mubr.bf16.gmra.mrb[0].mxu0 %v1096
    %v5885 = vpop.f32.mrb[0].mxu0
    %v5886 = vadd.f32 %v1014, %v5885
    %v5887 = vpop.f32.mrb[0].mxu0
    %v5888 = vadd.f32 %v1018, %v5887
    %v5889 = vpop.f32.mrb[0].mxu0
    %v5890 = vpop.f32.mrb[0].mxu0
    %5891 = vdwg.mxu0
    %5892 = vmatprep.subr.bf16.mxu0 %v4048
    %5893 = vmatpush1.bf16.msra.mxu0 %v4047
    %5894 = vmatprep.subr.bf16.mxu0 %v4066
    %5895 = vmatpush1.bf16.msra.mxu0 %v4065
    %5896 = vmatprep.subr.bf16.mxu0 %v4084
    %5897 = vmatpush1.bf16.msra.mxu0 %v4083
    %5898 = vmatprep.subr.bf16.mxu0 %v4102
    %5899 = vmatpush1.bf16.msra.mxu0 %v4101
    %5900 = vmatprep.subr.bf16.mxu0 %v4120
    %5901 = vmatpush1.bf16.msra.mxu0 %v4119
    %5902 = vmatprep.subr.bf16.mxu0 %v4138
    %5903 = vmatpush1.bf16.msra.mxu0 %v4137
    %5904 = vmatprep.subr.bf16.mxu0 %v4156
    %5905 = vmatpush1.bf16.msra.mxu0 %v4155
    %5906 = vmatprep.subr.bf16.mxu0 %v4174
    %5907 = vmatpush1.bf16.msra.mxu0 %v4173
    %5908 = vmatprep.subr.bf16.mxu0 %v4192
    %5909 = vmatpush1.bf16.msra.mxu0 %v4191
    %5910 = vmatprep.subr.bf16.mxu0 %v4210
    %5911 = vmatpush1.bf16.msra.mxu0 %v4209
    %5912 = vmatprep.subr.bf16.mxu0 %v4228
    %5913 = vmatpush1.bf16.msra.mxu0 %v4227
    %5914 = vmatprep.subr.bf16.mxu0 %v4246
    %5915 = vmatpush1.bf16.msra.mxu0 %v4245
    %5916 = vmatprep.subr.bf16.mxu0 %v4264
    %5917 = vmatpush1.bf16.msra.mxu0 %v4263
    %5918 = vmatprep.subr.bf16.mxu0 %v4282
    %5919 = vmatpush1.bf16.msra.mxu0 %v4281
    %5920 = vmatprep.subr.bf16.mxu0 %v4300
    %5921 = vmatpush1.bf16.msra.mxu0 %v4299
    %5922 = vmatprep.subr.bf16.mxu0 %v4318
    %5923 = vmatpush1.bf16.msra.mxu0 %v4317
    %5924 = vmatprep.mubr.bf16.mxu0 %v1099
    %5925 = vmatmul.mubr.bf16.gmra.mrb[0].mxu0 %v1098
    %v5926 = vpop.f32.mrb[0].mxu0
    %v5927 = vadd.f32 %v5886, %v5926
    %v5928 = vpop.f32.mrb[0].mxu0
    %v5929 = vadd.f32 %v5888, %v5928
    %v5930 = vpop.f32.mrb[0].mxu0
    %v5931 = vpop.f32.mrb[0].mxu0
    %5932 = vdwg.mxu0
    %5933 = vmatprep.subr.bf16.mxu0 %v4336
    %5934 = vmatpush1.bf16.msra.mxu0 %v4335
    %5935 = vmatprep.subr.bf16.mxu0 %v4354
    %5936 = vmatpush1.bf16.msra.mxu0 %v4353
    %5937 = vmatprep.subr.bf16.mxu0 %v4372
    %5938 = vmatpush1.bf16.msra.mxu0 %v4371
    %5939 = vmatprep.subr.bf16.mxu0 %v4390
    %5940 = vmatpush1.bf16.msra.mxu0 %v4389
    %5941 = vmatprep.subr.bf16.mxu0 %v4408
    %5942 = vmatpush1.bf16.msra.mxu0 %v4407
    %5943 = vmatprep.subr.bf16.mxu0 %v4426
    %5944 = vmatpush1.bf16.msra.mxu0 %v4425
    %5945 = vmatprep.subr.bf16.mxu0 %v4444
    %5946 = vmatpush1.bf16.msra.mxu0 %v4443
    %5947 = vmatprep.subr.bf16.mxu0 %v4462
    %5948 = vmatpush1.bf16.msra.mxu0 %v4461
    %5949 = vmatprep.subr.bf16.mxu0 %v4480
    %5950 = vmatpush1.bf16.msra.mxu0 %v4479
    %5951 = vmatprep.subr.bf16.mxu0 %v4498
    %5952 = vmatpush1.bf16.msra.mxu0 %v4497
    %5953 = vmatprep.subr.bf16.mxu0 %v4516
    %5954 = vmatpush1.bf16.msra.mxu0 %v4515
    %5955 = vmatprep.subr.bf16.mxu0 %v4534
    %5956 = vmatpush1.bf16.msra.mxu0 %v4533
    %5957 = vmatprep.subr.bf16.mxu0 %v4552
    %5958 = vmatpush1.bf16.msra.mxu0 %v4551
    %5959 = vmatprep.subr.bf16.mxu0 %v4570
    %5960 = vmatpush1.bf16.msra.mxu0 %v4569
    %5961 = vmatprep.subr.bf16.mxu0 %v4588
    %5962 = vmatpush1.bf16.msra.mxu0 %v4587
    %5963 = vmatprep.subr.bf16.mxu0 %v4606
    %5964 = vmatpush1.bf16.msra.mxu0 %v4605
    %5965 = vmatprep.mubr.bf16.mxu0 %v1101
    %5966 = vmatmul.mubr.bf16.gmra.mrb[0].mxu0 %v1100
    %v5967 = vpop.f32.mrb[0].mxu0
    %v5968 = vadd.f32 %v5927, %v5967
    %v5969 = vpop.f32.mrb[0].mxu0
    %v5970 = vadd.f32 %v5929, %v5969
    %v5971 = vpop.f32.mrb[0].mxu0
    %v5972 = vpop.f32.mrb[0].mxu0
    %5973 = vdwg.mxu0
    %5974 = vmatprep.subr.bf16.mxu0 %v4624
    %5975 = vmatpush1.bf16.msra.mxu0 %v4623
    %5976 = vmatprep.subr.bf16.mxu0 0
    %5977 = vmatpush1.bf16.msra.mxu0 0
    %5978 = vmatprep.subr.bf16.mxu0 0
    %5979 = vmatpush1.bf16.msra.mxu0 0
    %5980 = vmatprep.subr.bf16.mxu0 0
    %5981 = vmatpush1.bf16.msra.mxu0 0
    %5982 = vmatprep.subr.bf16.mxu0 0
    %5983 = vmatpush1.bf16.msra.mxu0 0
    %5984 = vmatprep.subr.bf16.mxu0 0
    %5985 = vmatpush1.bf16.msra.mxu0 0
    %5986 = vmatprep.subr.bf16.mxu0 0
    %5987 = vmatpush1.bf16.msra.mxu0 0
    %5988 = vmatprep.subr.bf16.mxu0 0
    %5989 = vmatpush1.bf16.msra.mxu0 0
    %5990 = vmatprep.subr.bf16.mxu0 0
    %5991 = vmatpush1.bf16.msra.mxu0 0
    %5992 = vmatprep.subr.bf16.mxu0 0
    %5993 = vmatpush1.bf16.msra.mxu0 0
    %5994 = vmatprep.subr.bf16.mxu0 0
    %5995 = vmatpush1.bf16.msra.mxu0 0
    %5996 = vmatprep.subr.bf16.mxu0 0
    %5997 = vmatpush1.bf16.msra.mxu0 0
    %5998 = vmatprep.subr.bf16.mxu0 0
    %5999 = vmatpush1.bf16.msra.mxu0 0
    %6000 = vmatprep.subr.bf16.mxu0 0
    %6001 = vmatpush1.bf16.msra.mxu0 0
    %6002 = vmatprep.subr.bf16.mxu0 0
    %6003 = vmatpush1.bf16.msra.mxu0 0
    %6004 = vmatprep.subr.bf16.mxu0 0
    %6005 = vmatpush1.bf16.msra.mxu0 0
    %6006 = vmatprep.mubr.bf16.mxu0 0
    %6007 = vmatmul.mubr.bf16.gmra.mrb[0].mxu0 %v5521
    %v6008 = vpop.f32.mrb[0].mxu0
    %v6009 = vadd.f32 %v5968, %v6008
    %v6010 = vpop.f32.mrb[0].mxu0
    %v6011 = vadd.f32 %v5970, %v6010
    %v6012 = vpop.f32.mrb[0].mxu0
    %v6013 = vpop.f32.mrb[0].mxu0
    %6014 = vdwg.mxu0
    %6015 = vmatprep.subr.bf16.mxu0 %v3762
    %6016 = vmatpush1.bf16.msra.mxu0 %v3761
    %6017 = vmatprep.subr.bf16.mxu0 %v3780
    %6018 = vmatpush1.bf16.msra.mxu0 %v3779
    %6019 = vmatprep.subr.bf16.mxu0 %v3798
    %6020 = vmatpush1.bf16.msra.mxu0 %v3797
    %6021 = vmatprep.subr.bf16.mxu0 %v3816
    %6022 = vmatpush1.bf16.msra.mxu0 %v3815
    %6023 = vmatprep.subr.bf16.mxu0 %v3834
    %6024 = vmatpush1.bf16.msra.mxu0 %v3833
    %6025 = vmatprep.subr.bf16.mxu0 %v3852
    %6026 = vmatpush1.bf16.msra.mxu0 %v3851
    %6027 = vmatprep.subr.bf16.mxu0 %v3870
    %6028 = vmatpush1.bf16.msra.mxu0 %v3869
    %6029 = vmatprep.subr.bf16.mxu0 %v3888
    %6030 = vmatpush1.bf16.msra.mxu0 %v3887
    %6031 = vmatprep.subr.bf16.mxu0 %v3906
    %6032 = vmatpush1.bf16.msra.mxu0 %v3905
    %6033 = vmatprep.subr.bf16.mxu0 %v3924
    %6034 = vmatpush1.bf16.msra.mxu0 %v3923
    %6035 = vmatprep.subr.bf16.mxu0 %v3942
    %6036 = vmatpush1.bf16.msra.mxu0 %v3941
    %6037 = vmatprep.subr.bf16.mxu0 %v3960
    %6038 = vmatpush1.bf16.msra.mxu0 %v3959
    %6039 = vmatprep.subr.bf16.mxu0 %v3978
    %6040 = vmatpush1.bf16.msra.mxu0 %v3977
    %6041 = vmatprep.subr.bf16.mxu0 %v3996
    %6042 = vmatpush1.bf16.msra.mxu0 %v3995
    %6043 = vmatprep.subr.bf16.mxu0 %v4014
    %6044 = vmatpush1.bf16.msra.mxu0 %v4013
    %6045 = vmatprep.subr.bf16.mxu0 %v4032
    %6046 = vmatpush1.bf16.msra.mxu0 %v4031
    %6047 = vmatprep.mubr.bf16.mxu0 %v1097
    %6048 = vmatmul.mubr.bf16.gmra.mrb[0].mxu0 %v1096
    %v6049 = vpop.f32.mrb[0].mxu0
    %v6050 = vadd.f32 %v1022, %v6049
    %v6051 = vpop.f32.mrb[0].mxu0
    %v6052 = vadd.f32 %v1026, %v6051
    %v6053 = vpop.f32.mrb[0].mxu0
    %v6054 = vpop.f32.mrb[0].mxu0
    %6055 = vdwg.mxu0
    %6056 = vmatprep.subr.bf16.mxu0 %v4050
    %6057 = vmatpush1.bf16.msra.mxu0 %v4049
    %6058 = vmatprep.subr.bf16.mxu0 %v4068
    %6059 = vmatpush1.bf16.msra.mxu0 %v4067
    %6060 = vmatprep.subr.bf16.mxu0 %v4086
    %6061 = vmatpush1.bf16.msra.mxu0 %v4085
    %6062 = vmatprep.subr.bf16.mxu0 %v4104
    %6063 = vmatpush1.bf16.msra.mxu0 %v4103
    %6064 = vmatprep.subr.bf16.mxu0 %v4122
    %6065 = vmatpush1.bf16.msra.mxu0 %v4121
    %6066 = vmatprep.subr.bf16.mxu0 %v4140
    %6067 = vmatpush1.bf16.msra.mxu0 %v4139
    %6068 = vmatprep.subr.bf16.mxu0 %v4158
    %6069 = vmatpush1.bf16.msra.mxu0 %v4157
    %6070 = vmatprep.subr.bf16.mxu0 %v4176
    %6071 = vmatpush1.bf16.msra.mxu0 %v4175
    %6072 = vmatprep.subr.bf16.mxu0 %v4194
    %6073 = vmatpush1.bf16.msra.mxu0 %v4193
    %6074 = vmatprep.subr.bf16.mxu0 %v4212
    %6075 = vmatpush1.bf16.msra.mxu0 %v4211
    %6076 = vmatprep.subr.bf16.mxu0 %v4230
    %6077 = vmatpush1.bf16.msra.mxu0 %v4229
    %6078 = vmatprep.subr.bf16.mxu0 %v4248
    %6079 = vmatpush1.bf16.msra.mxu0 %v4247
    %6080 = vmatprep.subr.bf16.mxu0 %v4266
    %6081 = vmatpush1.bf16.msra.mxu0 %v4265
    %6082 = vmatprep.subr.bf16.mxu0 %v4284
    %6083 = vmatpush1.bf16.msra.mxu0 %v4283
    %6084 = vmatprep.subr.bf16.mxu0 %v4302
    %6085 = vmatpush1.bf16.msra.mxu0 %v4301
    %6086 = vmatprep.subr.bf16.mxu0 %v4320
    %6087 = vmatpush1.bf16.msra.mxu0 %v4319
    %6088 = vmatprep.mubr.bf16.mxu0 %v1099
    %6089 = vmatmul.mubr.bf16.gmra.mrb[0].mxu0 %v1098
    %v6090 = vpop.f32.mrb[0].mxu0
    %v6091 = vadd.f32 %v6050, %v6090
    %v6092 = vpop.f32.mrb[0].mxu0
    %v6093 = vadd.f32 %v6052, %v6092
    %v6094 = vpop.f32.mrb[0].mxu0
    %v6095 = vpop.f32.mrb[0].mxu0
    %6096 = vdwg.mxu0
    %6097 = vmatprep.subr.bf16.mxu0 %v4338
    %6098 = vmatpush1.bf16.msra.mxu0 %v4337
    %6099 = vmatprep.subr.bf16.mxu0 %v4356
    %6100 = vmatpush1.bf16.msra.mxu0 %v4355
    %6101 = vmatprep.subr.bf16.mxu0 %v4374
    %6102 = vmatpush1.bf16.msra.mxu0 %v4373
    %6103 = vmatprep.subr.bf16.mxu0 %v4392
    %6104 = vmatpush1.bf16.msra.mxu0 %v4391
    %6105 = vmatprep.subr.bf16.mxu0 %v4410
    %6106 = vmatpush1.bf16.msra.mxu0 %v4409
    %6107 = vmatprep.subr.bf16.mxu0 %v4428
    %6108 = vmatpush1.bf16.msra.mxu0 %v4427
    %6109 = vmatprep.subr.bf16.mxu0 %v4446
    %6110 = vmatpush1.bf16.msra.mxu0 %v4445
    %6111 = vmatprep.subr.bf16.mxu0 %v4464
    %6112 = vmatpush1.bf16.msra.mxu0 %v4463
    %6113 = vmatprep.subr.bf16.mxu0 %v4482
    %6114 = vmatpush1.bf16.msra.mxu0 %v4481
    %6115 = vmatprep.subr.bf16.mxu0 %v4500
    %6116 = vmatpush1.bf16.msra.mxu0 %v4499
    %6117 = vmatprep.subr.bf16.mxu0 %v4518
    %6118 = vmatpush1.bf16.msra.mxu0 %v4517
    %6119 = vmatprep.subr.bf16.mxu0 %v4536
    %6120 = vmatpush1.bf16.msra.mxu0 %v4535
    %6121 = vmatprep.subr.bf16.mxu0 %v4554
    %6122 = vmatpush1.bf16.msra.mxu0 %v4553
    %6123 = vmatprep.subr.bf16.mxu0 %v4572
    %6124 = vmatpush1.bf16.msra.mxu0 %v4571
    %6125 = vmatprep.subr.bf16.mxu0 %v4590
    %6126 = vmatpush1.bf16.msra.mxu0 %v4589
    %6127 = vmatprep.subr.bf16.mxu0 %v4608
    %6128 = vmatpush1.bf16.msra.mxu0 %v4607
    %6129 = vmatprep.mubr.bf16.mxu0 %v1101
    %6130 = vmatmul.mubr.bf16.gmra.mrb[0].mxu0 %v1100
    %v6131 = vpop.f32.mrb[0].mxu0
    %v6132 = vadd.f32 %v6091, %v6131
    %v6133 = vpop.f32.mrb[0].mxu0
    %v6134 = vadd.f32 %v6093, %v6133
    %v6135 = vpop.f32.mrb[0].mxu0
    %v6136 = vpop.f32.mrb[0].mxu0
    %6137 = vdwg.mxu0
    %6138 = vmatprep.subr.bf16.mxu0 %v4626
    %6139 = vmatpush1.bf16.msra.mxu0 %v4625
    %6140 = vmatprep.subr.bf16.mxu0 0
    %6141 = vmatpush1.bf16.msra.mxu0 0
    %6142 = vmatprep.subr.bf16.mxu0 0
    %6143 = vmatpush1.bf16.msra.mxu0 0
    %6144 = vmatprep.subr.bf16.mxu0 0
    %6145 = vmatpush1.bf16.msra.mxu0 0
    %6146 = vmatprep.subr.bf16.mxu0 0
    %6147 = vmatpush1.bf16.msra.mxu0 0
    %6148 = vmatprep.subr.bf16.mxu0 0
    %6149 = vmatpush1.bf16.msra.mxu0 0
    %6150 = vmatprep.subr.bf16.mxu0 0
    %6151 = vmatpush1.bf16.msra.mxu0 0
    %6152 = vmatprep.subr.bf16.mxu0 0
    %6153 = vmatpush1.bf16.msra.mxu0 0
    %6154 = vmatprep.subr.bf16.mxu0 0
    %6155 = vmatpush1.bf16.msra.mxu0 0
    %6156 = vmatprep.subr.bf16.mxu0 0
    %6157 = vmatpush1.bf16.msra.mxu0 0
    %6158 = vmatprep.subr.bf16.mxu0 0
    %6159 = vmatpush1.bf16.msra.mxu0 0
    %6160 = vmatprep.subr.bf16.mxu0 0
    %6161 = vmatpush1.bf16.msra.mxu0 0
    %6162 = vmatprep.subr.bf16.mxu0 0
    %6163 = vmatpush1.bf16.msra.mxu0 0
    %6164 = vmatprep.subr.bf16.mxu0 0
    %6165 = vmatpush1.bf16.msra.mxu0 0
    %6166 = vmatprep.subr.bf16.mxu0 0
    %6167 = vmatpush1.bf16.msra.mxu0 0
    %6168 = vmatprep.subr.bf16.mxu0 0
    %6169 = vmatpush1.bf16.msra.mxu0 0
    %6170 = vmatprep.mubr.bf16.mxu0 0
    %6171 = vmatmul.mubr.bf16.gmra.mrb[0].mxu0 %v5521
    %v6172 = vpop.f32.mrb[0].mxu0
    %v6173 = vadd.f32 %v6132, %v6172
    %v6174 = vpop.f32.mrb[0].mxu0
    %v6175 = vadd.f32 %v6134, %v6174
    %v6176 = vpop.f32.mrb[0].mxu0
    %v6177 = vpop.f32.mrb[0].mxu0
    %6178 = vdwg.mxu0
    %6179 = vmatprep.subr.bf16.mxu0 %v3764
    %6180 = vmatpush1.bf16.msra.mxu0 %v3763
    %6181 = vmatprep.subr.bf16.mxu0 %v3782
    %6182 = vmatpush1.bf16.msra.mxu0 %v3781
    %6183 = vmatprep.subr.bf16.mxu0 %v3800
    %6184 = vmatpush1.bf16.msra.mxu0 %v3799
    %6185 = vmatprep.subr.bf16.mxu0 %v3818
    %6186 = vmatpush1.bf16.msra.mxu0 %v3817
    %6187 = vmatprep.subr.bf16.mxu0 %v3836
    %6188 = vmatpush1.bf16.msra.mxu0 %v3835
    %6189 = vmatprep.subr.bf16.mxu0 %v3854
    %6190 = vmatpush1.bf16.msra.mxu0 %v3853
    %6191 = vmatprep.subr.bf16.mxu0 %v3872
    %6192 = vmatpush1.bf16.msra.mxu0 %v3871
    %6193 = vmatprep.subr.bf16.mxu0 %v3890
    %6194 = vmatpush1.bf16.msra.mxu0 %v3889
    %6195 = vmatprep.subr.bf16.mxu0 %v3908
    %6196 = vmatpush1.bf16.msra.mxu0 %v3907
    %6197 = vmatprep.subr.bf16.mxu0 %v3926
    %6198 = vmatpush1.bf16.msra.mxu0 %v3925
    %6199 = vmatprep.subr.bf16.mxu0 %v3944
    %6200 = vmatpush1.bf16.msra.mxu0 %v3943
    %6201 = vmatprep.subr.bf16.mxu0 %v3962
    %6202 = vmatpush1.bf16.msra.mxu0 %v3961
    %6203 = vmatprep.subr.bf16.mxu0 %v3980
    %6204 = vmatpush1.bf16.msra.mxu0 %v3979
    %6205 = vmatprep.subr.bf16.mxu0 %v3998
    %6206 = vmatpush1.bf16.msra.mxu0 %v3997
    %6207 = vmatprep.subr.bf16.mxu0 %v4016
    %6208 = vmatpush1.bf16.msra.mxu0 %v4015
    %6209 = vmatprep.subr.bf16.mxu0 %v4034
    %6210 = vmatpush1.bf16.msra.mxu0 %v4033
    %6211 = vmatprep.mubr.bf16.mxu0 %v1097
    %6212 = vmatmul.mubr.bf16.gmra.mrb[0].mxu0 %v1096
    %v6213 = vpop.f32.mrb[0].mxu0
    %v6214 = vadd.f32 %v1030, %v6213
    %v6215 = vpop.f32.mrb[0].mxu0
    %v6216 = vadd.f32 %v1034, %v6215
    %v6217 = vpop.f32.mrb[0].mxu0
    %v6218 = vpop.f32.mrb[0].mxu0
    %6219 = vdwg.mxu0
    %6220 = vmatprep.subr.bf16.mxu0 %v4052
    %6221 = vmatpush1.bf16.msra.mxu0 %v4051
    %6222 = vmatprep.subr.bf16.mxu0 %v4070
    %6223 = vmatpush1.bf16.msra.mxu0 %v4069
    %6224 = vmatprep.subr.bf16.mxu0 %v4088
    %6225 = vmatpush1.bf16.msra.mxu0 %v4087
    %6226 = vmatprep.subr.bf16.mxu0 %v4106
    %6227 = vmatpush1.bf16.msra.mxu0 %v4105
    %6228 = vmatprep.subr.bf16.mxu0 %v4124
    %6229 = vmatpush1.bf16.msra.mxu0 %v4123
    %6230 = vmatprep.subr.bf16.mxu0 %v4142
    %6231 = vmatpush1.bf16.msra.mxu0 %v4141
    %6232 = vmatprep.subr.bf16.mxu0 %v4160
    %6233 = vmatpush1.bf16.msra.mxu0 %v4159
    %6234 = vmatprep.subr.bf16.mxu0 %v4178
    %6235 = vmatpush1.bf16.msra.mxu0 %v4177
    %6236 = vmatprep.subr.bf16.mxu0 %v4196
    %6237 = vmatpush1.bf16.msra.mxu0 %v4195
    %6238 = vmatprep.subr.bf16.mxu0 %v4214
    %6239 = vmatpush1.bf16.msra.mxu0 %v4213
    %6240 = vmatprep.subr.bf16.mxu0 %v4232
    %6241 = vmatpush1.bf16.msra.mxu0 %v4231
    %6242 = vmatprep.subr.bf16.mxu0 %v4250
    %6243 = vmatpush1.bf16.msra.mxu0 %v4249
    %6244 = vmatprep.subr.bf16.mxu0 %v4268
    %6245 = vmatpush1.bf16.msra.mxu0 %v4267
    %6246 = vmatprep.subr.bf16.mxu0 %v4286
    %6247 = vmatpush1.bf16.msra.mxu0 %v4285
    %6248 = vmatprep.subr.bf16.mxu0 %v4304
    %6249 = vmatpush1.bf16.msra.mxu0 %v4303
    %6250 = vmatprep.subr.bf16.mxu0 %v4322
    %6251 = vmatpush1.bf16.msra.mxu0 %v4321
    %6252 = vmatprep.mubr.bf16.mxu0 %v1099
    %6253 = vmatmul.mubr.bf16.gmra.mrb[0].mxu0 %v1098
    %v6254 = vpop.f32.mrb[0].mxu0
    %v6255 = vadd.f32 %v6214, %v6254
    %v6256 = vpop.f32.mrb[0].mxu0
    %v6257 = vadd.f32 %v6216, %v6256
    %v6258 = vpop.f32.mrb[0].mxu0
    %v6259 = vpop.f32.mrb[0].mxu0
    %6260 = vdwg.mxu0
    %6261 = vmatprep.subr.bf16.mxu0 %v4340
    %6262 = vmatpush1.bf16.msra.mxu0 %v4339
    %6263 = vmatprep.subr.bf16.mxu0 %v4358
    %6264 = vmatpush1.bf16.msra.mxu0 %v4357
    %6265 = vmatprep.subr.bf16.mxu0 %v4376
    %6266 = vmatpush1.bf16.msra.mxu0 %v4375
    %6267 = vmatprep.subr.bf16.mxu0 %v4394
    %6268 = vmatpush1.bf16.msra.mxu0 %v4393
    %6269 = vmatprep.subr.bf16.mxu0 %v4412
    %6270 = vmatpush1.bf16.msra.mxu0 %v4411
    %6271 = vmatprep.subr.bf16.mxu0 %v4430
    %6272 = vmatpush1.bf16.msra.mxu0 %v4429
    %6273 = vmatprep.subr.bf16.mxu0 %v4448
    %6274 = vmatpush1.bf16.msra.mxu0 %v4447
    %6275 = vmatprep.subr.bf16.mxu0 %v4466
    %6276 = vmatpush1.bf16.msra.mxu0 %v4465
    %6277 = vmatprep.subr.bf16.mxu0 %v4484
    %6278 = vmatpush1.bf16.msra.mxu0 %v4483
    %6279 = vmatprep.subr.bf16.mxu0 %v4502
    %6280 = vmatpush1.bf16.msra.mxu0 %v4501
    %6281 = vmatprep.subr.bf16.mxu0 %v4520
    %6282 = vmatpush1.bf16.msra.mxu0 %v4519
    %6283 = vmatprep.subr.bf16.mxu0 %v4538
    %6284 = vmatpush1.bf16.msra.mxu0 %v4537
    %6285 = vmatprep.subr.bf16.mxu0 %v4556
    %6286 = vmatpush1.bf16.msra.mxu0 %v4555
    %6287 = vmatprep.subr.bf16.mxu0 %v4574
    %6288 = vmatpush1.bf16.msra.mxu0 %v4573
    %6289 = vmatprep.subr.bf16.mxu0 %v4592
    %6290 = vmatpush1.bf16.msra.mxu0 %v4591
    %6291 = vmatprep.subr.bf16.mxu0 %v4610
    %6292 = vmatpush1.bf16.msra.mxu0 %v4609
    %6293 = vmatprep.mubr.bf16.mxu0 %v1101
    %6294 = vmatmul.mubr.bf16.gmra.mrb[0].mxu0 %v1100
    %v6295 = vpop.f32.mrb[0].mxu0
    %v6296 = vadd.f32 %v6255, %v6295
    %v6297 = vpop.f32.mrb[0].mxu0
    %v6298 = vadd.f32 %v6257, %v6297
    %v6299 = vpop.f32.mrb[0].mxu0
    %v6300 = vpop.f32.mrb[0].mxu0
    %6301 = vdwg.mxu0
    %6302 = vmatprep.subr.bf16.mxu0 %v4628
    %6303 = vmatpush1.bf16.msra.mxu0 %v4627
    %6304 = vmatprep.subr.bf16.mxu0 0
    %6305 = vmatpush1.bf16.msra.mxu0 0
    %6306 = vmatprep.subr.bf16.mxu0 0
    %6307 = vmatpush1.bf16.msra.mxu0 0
    %6308 = vmatprep.subr.bf16.mxu0 0
    %6309 = vmatpush1.bf16.msra.mxu0 0
    %6310 = vmatprep.subr.bf16.mxu0 0
    %6311 = vmatpush1.bf16.msra.mxu0 0
    %6312 = vmatprep.subr.bf16.mxu0 0
    %6313 = vmatpush1.bf16.msra.mxu0 0
    %6314 = vmatprep.subr.bf16.mxu0 0
    %6315 = vmatpush1.bf16.msra.mxu0 0
    %6316 = vmatprep.subr.bf16.mxu0 0
    %6317 = vmatpush1.bf16.msra.mxu0 0
    %6318 = vmatprep.subr.bf16.mxu0 0
    %6319 = vmatpush1.bf16.msra.mxu0 0
    %6320 = vmatprep.subr.bf16.mxu0 0
    %6321 = vmatpush1.bf16.msra.mxu0 0
    %6322 = vmatprep.subr.bf16.mxu0 0
    %6323 = vmatpush1.bf16.msra.mxu0 0
    %6324 = vmatprep.subr.bf16.mxu0 0
    %6325 = vmatpush1.bf16.msra.mxu0 0
    %6326 = vmatprep.subr.bf16.mxu0 0
    %6327 = vmatpush1.bf16.msra.mxu0 0
    %6328 = vmatprep.subr.bf16.mxu0 0
    %6329 = vmatpush1.bf16.msra.mxu0 0
    %6330 = vmatprep.subr.bf16.mxu0 0
    %6331 = vmatpush1.bf16.msra.mxu0 0
    %6332 = vmatprep.subr.bf16.mxu0 0
    %6333 = vmatpush1.bf16.msra.mxu0 0
    %6334 = vmatprep.mubr.bf16.mxu0 0
    %6335 = vmatmul.mubr.bf16.gmra.mrb[0].mxu0 %v5521
    %v6336 = vpop.f32.mrb[0].mxu0
    %v6337 = vadd.f32 %v6296, %v6336
    %v6338 = vpop.f32.mrb[0].mxu0
    %v6339 = vadd.f32 %v6298, %v6338
    %v6340 = vpop.f32.mrb[0].mxu0
    %v6341 = vpop.f32.mrb[0].mxu0
    %6342 = vdwg.mxu0
    %6343 = vmatprep.subr.bf16.mxu0 %v3766
    %6344 = vmatpush1.bf16.msra.mxu0 %v3765
    %6345 = vmatprep.subr.bf16.mxu0 %v3784
    %6346 = vmatpush1.bf16.msra.mxu0 %v3783
    %6347 = vmatprep.subr.bf16.mxu0 %v3802
    %6348 = vmatpush1.bf16.msra.mxu0 %v3801
    %6349 = vmatprep.subr.bf16.mxu0 %v3820
    %6350 = vmatpush1.bf16.msra.mxu0 %v3819
    %6351 = vmatprep.subr.bf16.mxu0 %v3838
    %6352 = vmatpush1.bf16.msra.mxu0 %v3837
    %6353 = vmatprep.subr.bf16.mxu0 %v3856
    %6354 = vmatpush1.bf16.msra.mxu0 %v3855
    %6355 = vmatprep.subr.bf16.mxu0 %v3874
    %6356 = vmatpush1.bf16.msra.mxu0 %v3873
    %6357 = vmatprep.subr.bf16.mxu0 %v3892
    %6358 = vmatpush1.bf16.msra.mxu0 %v3891
    %6359 = vmatprep.subr.bf16.mxu0 %v3910
    %6360 = vmatpush1.bf16.msra.mxu0 %v3909
    %6361 = vmatprep.subr.bf16.mxu0 %v3928
    %6362 = vmatpush1.bf16.msra.mxu0 %v3927
    %6363 = vmatprep.subr.bf16.mxu0 %v3946
    %6364 = vmatpush1.bf16.msra.mxu0 %v3945
    %6365 = vmatprep.subr.bf16.mxu0 %v3964
    %6366 = vmatpush1.bf16.msra.mxu0 %v3963
    %6367 = vmatprep.subr.bf16.mxu0 %v3982
    %6368 = vmatpush1.bf16.msra.mxu0 %v3981
    %6369 = vmatprep.subr.bf16.mxu0 %v4000
    %6370 = vmatpush1.bf16.msra.mxu0 %v3999
    %6371 = vmatprep.subr.bf16.mxu0 %v4018
    %6372 = vmatpush1.bf16.msra.mxu0 %v4017
    %6373 = vmatprep.subr.bf16.mxu0 %v4036
    %6374 = vmatpush1.bf16.msra.mxu0 %v4035
    %6375 = vmatprep.mubr.bf16.mxu0 %v1097
    %6376 = vmatmul.mubr.bf16.gmra.mrb[0].mxu0 %v1096
    %v6377 = vpop.f32.mrb[0].mxu0
    %v6378 = vadd.f32 %v1038, %v6377
    %v6379 = vpop.f32.mrb[0].mxu0
    %v6380 = vadd.f32 %v1042, %v6379
    %v6381 = vpop.f32.mrb[0].mxu0
    %v6382 = vpop.f32.mrb[0].mxu0
    %6383 = vdwg.mxu0
    %6384 = vmatprep.subr.bf16.mxu0 %v4054
    %6385 = vmatpush1.bf16.msra.mxu0 %v4053
    %6386 = vmatprep.subr.bf16.mxu0 %v4072
    %6387 = vmatpush1.bf16.msra.mxu0 %v4071
    %6388 = vmatprep.subr.bf16.mxu0 %v4090
    %6389 = vmatpush1.bf16.msra.mxu0 %v4089
    %6390 = vmatprep.subr.bf16.mxu0 %v4108
    %6391 = vmatpush1.bf16.msra.mxu0 %v4107
    %6392 = vmatprep.subr.bf16.mxu0 %v4126
    %6393 = vmatpush1.bf16.msra.mxu0 %v4125
    %6394 = vmatprep.subr.bf16.mxu0 %v4144
    %6395 = vmatpush1.bf16.msra.mxu0 %v4143
    %6396 = vmatprep.subr.bf16.mxu0 %v4162
    %6397 = vmatpush1.bf16.msra.mxu0 %v4161
    %6398 = vmatprep.subr.bf16.mxu0 %v4180
    %6399 = vmatpush1.bf16.msra.mxu0 %v4179
    %6400 = vmatprep.subr.bf16.mxu0 %v4198
    %6401 = vmatpush1.bf16.msra.mxu0 %v4197
    %6402 = vmatprep.subr.bf16.mxu0 %v4216
    %6403 = vmatpush1.bf16.msra.mxu0 %v4215
    %6404 = vmatprep.subr.bf16.mxu0 %v4234
    %6405 = vmatpush1.bf16.msra.mxu0 %v4233
    %6406 = vmatprep.subr.bf16.mxu0 %v4252
    %6407 = vmatpush1.bf16.msra.mxu0 %v4251
    %6408 = vmatprep.subr.bf16.mxu0 %v4270
    %6409 = vmatpush1.bf16.msra.mxu0 %v4269
    %6410 = vmatprep.subr.bf16.mxu0 %v4288
    %6411 = vmatpush1.bf16.msra.mxu0 %v4287
    %6412 = vmatprep.subr.bf16.mxu0 %v4306
    %6413 = vmatpush1.bf16.msra.mxu0 %v4305
    %6414 = vmatprep.subr.bf16.mxu0 %v4324
    %6415 = vmatpush1.bf16.msra.mxu0 %v4323
    %6416 = vmatprep.mubr.bf16.mxu0 %v1099
    %6417 = vmatmul.mubr.bf16.gmra.mrb[0].mxu0 %v1098
    %v6418 = vpop.f32.mrb[0].mxu0
    %v6419 = vadd.f32 %v6378, %v6418
    %v6420 = vpop.f32.mrb[0].mxu0
    %v6421 = vadd.f32 %v6380, %v6420
    %v6422 = vpop.f32.mrb[0].mxu0
    %v6423 = vpop.f32.mrb[0].mxu0
    %6424 = vdwg.mxu0
    %6425 = vmatprep.subr.bf16.mxu0 %v4342
    %6426 = vmatpush1.bf16.msra.mxu0 %v4341
    %6427 = vmatprep.subr.bf16.mxu0 %v4360
    %6428 = vmatpush1.bf16.msra.mxu0 %v4359
    %6429 = vmatprep.subr.bf16.mxu0 %v4378
    %6430 = vmatpush1.bf16.msra.mxu0 %v4377
    %6431 = vmatprep.subr.bf16.mxu0 %v4396
    %6432 = vmatpush1.bf16.msra.mxu0 %v4395
    %6433 = vmatprep.subr.bf16.mxu0 %v4414
    %6434 = vmatpush1.bf16.msra.mxu0 %v4413
    %6435 = vmatprep.subr.bf16.mxu0 %v4432
    %6436 = vmatpush1.bf16.msra.mxu0 %v4431
    %6437 = vmatprep.subr.bf16.mxu0 %v4450
    %6438 = vmatpush1.bf16.msra.mxu0 %v4449
    %6439 = vmatprep.subr.bf16.mxu0 %v4468
    %6440 = vmatpush1.bf16.msra.mxu0 %v4467
    %6441 = vmatprep.subr.bf16.mxu0 %v4486
    %6442 = vmatpush1.bf16.msra.mxu0 %v4485
    %6443 = vmatprep.subr.bf16.mxu0 %v4504
    %6444 = vmatpush1.bf16.msra.mxu0 %v4503
    %6445 = vmatprep.subr.bf16.mxu0 %v4522
    %6446 = vmatpush1.bf16.msra.mxu0 %v4521
    %6447 = vmatprep.subr.bf16.mxu0 %v4540
    %6448 = vmatpush1.bf16.msra.mxu0 %v4539
    %6449 = vmatprep.subr.bf16.mxu0 %v4558
    %6450 = vmatpush1.bf16.msra.mxu0 %v4557
    %6451 = vmatprep.subr.bf16.mxu0 %v4576
    %6452 = vmatpush1.bf16.msra.mxu0 %v4575
    %6453 = vmatprep.subr.bf16.mxu0 %v4594
    %6454 = vmatpush1.bf16.msra.mxu0 %v4593
    %6455 = vmatprep.subr.bf16.mxu0 %v4612
    %6456 = vmatpush1.bf16.msra.mxu0 %v4611
    %6457 = vmatprep.mubr.bf16.mxu0 %v1101
    %6458 = vmatmul.mubr.bf16.gmra.mrb[0].mxu0 %v1100
    %v6459 = vpop.f32.mrb[0].mxu0
    %v6460 = vadd.f32 %v6419, %v6459
    %v6461 = vpop.f32.mrb[0].mxu0
    %v6462 = vadd.f32 %v6421, %v6461
    %v6463 = vpop.f32.mrb[0].mxu0
    %v6464 = vpop.f32.mrb[0].mxu0
    %6465 = vdwg.mxu0
    %6466 = vmatprep.subr.bf16.mxu0 %v4630
    %6467 = vmatpush1.bf16.msra.mxu0 %v4629
    %6468 = vmatprep.subr.bf16.mxu0 0
    %6469 = vmatpush1.bf16.msra.mxu0 0
    %6470 = vmatprep.subr.bf16.mxu0 0
    %6471 = vmatpush1.bf16.msra.mxu0 0
    %6472 = vmatprep.subr.bf16.mxu0 0
    %6473 = vmatpush1.bf16.msra.mxu0 0
    %6474 = vmatprep.subr.bf16.mxu0 0
    %6475 = vmatpush1.bf16.msra.mxu0 0
    %6476 = vmatprep.subr.bf16.mxu0 0
    %6477 = vmatpush1.bf16.msra.mxu0 0
    %6478 = vmatprep.subr.bf16.mxu0 0
    %6479 = vmatpush1.bf16.msra.mxu0 0
    %6480 = vmatprep.subr.bf16.mxu0 0
    %6481 = vmatpush1.bf16.msra.mxu0 0
    %6482 = vmatprep.subr.bf16.mxu0 0
    %6483 = vmatpush1.bf16.msra.mxu0 0
    %6484 = vmatprep.subr.bf16.mxu0 0
    %6485 = vmatpush1.bf16.msra.mxu0 0
    %6486 = vmatprep.subr.bf16.mxu0 0
    %6487 = vmatpush1.bf16.msra.mxu0 0
    %6488 = vmatprep.subr.bf16.mxu0 0
    %6489 = vmatpush1.bf16.msra.mxu0 0
    %6490 = vmatprep.subr.bf16.mxu0 0
    %6491 = vmatpush1.bf16.msra.mxu0 0
    %6492 = vmatprep.subr.bf16.mxu0 0
    %6493 = vmatpush1.bf16.msra.mxu0 0
    %6494 = vmatprep.subr.bf16.mxu0 0
    %6495 = vmatpush1.bf16.msra.mxu0 0
    %6496 = vmatprep.subr.bf16.mxu0 0
    %6497 = vmatpush1.bf16.msra.mxu0 0
    %6498 = vmatprep.mubr.bf16.mxu0 0
    %6499 = vmatmul.mubr.bf16.gmra.mrb[0].mxu0 %v5521
    %v6500 = vpop.f32.mrb[0].mxu0
    %v6501 = vadd.f32 %v6460, %v6500
    %v6502 = vpop.f32.mrb[0].mxu0
    %v6503 = vadd.f32 %v6462, %v6502
    %v6504 = vpop.f32.mrb[0].mxu0
    %v6505 = vpop.f32.mrb[0].mxu0
    %6506 = vdwg.mxu0
    %6507 = vmatprep.subr.bf16.mxu0 %v3768
    %6508 = vmatpush1.bf16.msra.mxu0 %v3767
    %6509 = vmatprep.subr.bf16.mxu0 %v3786
    %6510 = vmatpush1.bf16.msra.mxu0 %v3785
    %6511 = vmatprep.subr.bf16.mxu0 %v3804
    %6512 = vmatpush1.bf16.msra.mxu0 %v3803
    %6513 = vmatprep.subr.bf16.mxu0 %v3822
    %6514 = vmatpush1.bf16.msra.mxu0 %v3821
    %6515 = vmatprep.subr.bf16.mxu0 %v3840
    %6516 = vmatpush1.bf16.msra.mxu0 %v3839
    %6517 = vmatprep.subr.bf16.mxu0 %v3858
    %6518 = vmatpush1.bf16.msra.mxu0 %v3857
    %6519 = vmatprep.subr.bf16.mxu0 %v3876
    %6520 = vmatpush1.bf16.msra.mxu0 %v3875
    %6521 = vmatprep.subr.bf16.mxu0 %v3894
    %6522 = vmatpush1.bf16.msra.mxu0 %v3893
    %6523 = vmatprep.subr.bf16.mxu0 %v3912
    %6524 = vmatpush1.bf16.msra.mxu0 %v3911
    %6525 = vmatprep.subr.bf16.mxu0 %v3930
    %6526 = vmatpush1.bf16.msra.mxu0 %v3929
    %6527 = vmatprep.subr.bf16.mxu0 %v3948
    %6528 = vmatpush1.bf16.msra.mxu0 %v3947
    %6529 = vmatprep.subr.bf16.mxu0 %v3966
    %6530 = vmatpush1.bf16.msra.mxu0 %v3965
    %6531 = vmatprep.subr.bf16.mxu0 %v3984
    %6532 = vmatpush1.bf16.msra.mxu0 %v3983
    %6533 = vmatprep.subr.bf16.mxu0 %v4002
    %6534 = vmatpush1.bf16.msra.mxu0 %v4001
    %6535 = vmatprep.subr.bf16.mxu0 %v4020
    %6536 = vmatpush1.bf16.msra.mxu0 %v4019
    %6537 = vmatprep.subr.bf16.mxu0 %v4038
    %6538 = vmatpush1.bf16.msra.mxu0 %v4037
    %6539 = vmatprep.mubr.bf16.mxu0 %v1097
    %6540 = vmatmul.mubr.bf16.gmra.mrb[0].mxu0 %v1096
    %v6541 = vpop.f32.mrb[0].mxu0
    %v6542 = vadd.f32 %v1046, %v6541
    %v6543 = vpop.f32.mrb[0].mxu0
    %v6544 = vadd.f32 %v1050, %v6543
    %v6545 = vpop.f32.mrb[0].mxu0
    %v6546 = vpop.f32.mrb[0].mxu0
    %6547 = vdwg.mxu0
    %6548 = vmatprep.subr.bf16.mxu0 %v4056
    %6549 = vmatpush1.bf16.msra.mxu0 %v4055
    %6550 = vmatprep.subr.bf16.mxu0 %v4074
    %6551 = vmatpush1.bf16.msra.mxu0 %v4073
    %6552 = vmatprep.subr.bf16.mxu0 %v4092
    %6553 = vmatpush1.bf16.msra.mxu0 %v4091
    %6554 = vmatprep.subr.bf16.mxu0 %v4110
    %6555 = vmatpush1.bf16.msra.mxu0 %v4109
    %6556 = vmatprep.subr.bf16.mxu0 %v4128
    %6557 = vmatpush1.bf16.msra.mxu0 %v4127
    %6558 = vmatprep.subr.bf16.mxu0 %v4146
    %6559 = vmatpush1.bf16.msra.mxu0 %v4145
    %6560 = vmatprep.subr.bf16.mxu0 %v4164
    %6561 = vmatpush1.bf16.msra.mxu0 %v4163
    %6562 = vmatprep.subr.bf16.mxu0 %v4182
    %6563 = vmatpush1.bf16.msra.mxu0 %v4181
    %6564 = vmatprep.subr.bf16.mxu0 %v4200
    %6565 = vmatpush1.bf16.msra.mxu0 %v4199
    %6566 = vmatprep.subr.bf16.mxu0 %v4218
    %6567 = vmatpush1.bf16.msra.mxu0 %v4217
    %6568 = vmatprep.subr.bf16.mxu0 %v4236
    %6569 = vmatpush1.bf16.msra.mxu0 %v4235
    %6570 = vmatprep.subr.bf16.mxu0 %v4254
    %6571 = vmatpush1.bf16.msra.mxu0 %v4253
    %6572 = vmatprep.subr.bf16.mxu0 %v4272
    %6573 = vmatpush1.bf16.msra.mxu0 %v4271
    %6574 = vmatprep.subr.bf16.mxu0 %v4290
    %6575 = vmatpush1.bf16.msra.mxu0 %v4289
    %6576 = vmatprep.subr.bf16.mxu0 %v4308
    %6577 = vmatpush1.bf16.msra.mxu0 %v4307
    %6578 = vmatprep.subr.bf16.mxu0 %v4326
    %6579 = vmatpush1.bf16.msra.mxu0 %v4325
    %6580 = vmatprep.mubr.bf16.mxu0 %v1099
    %6581 = vmatmul.mubr.bf16.gmra.mrb[0].mxu0 %v1098
    %v6582 = vpop.f32.mrb[0].mxu0
    %v6583 = vadd.f32 %v6542, %v6582
    %v6584 = vpop.f32.mrb[0].mxu0
    %v6585 = vadd.f32 %v6544, %v6584
    %v6586 = vpop.f32.mrb[0].mxu0
    %v6587 = vpop.f32.mrb[0].mxu0
    %6588 = vdwg.mxu0
    %6589 = vmatprep.subr.bf16.mxu0 %v4344
    %6590 = vmatpush1.bf16.msra.mxu0 %v4343
    %6591 = vmatprep.subr.bf16.mxu0 %v4362
    %6592 = vmatpush1.bf16.msra.mxu0 %v4361
    %6593 = vmatprep.subr.bf16.mxu0 %v4380
    %6594 = vmatpush1.bf16.msra.mxu0 %v4379
    %6595 = vmatprep.subr.bf16.mxu0 %v4398
    %6596 = vmatpush1.bf16.msra.mxu0 %v4397
    %6597 = vmatprep.subr.bf16.mxu0 %v4416
    %6598 = vmatpush1.bf16.msra.mxu0 %v4415
    %6599 = vmatprep.subr.bf16.mxu0 %v4434
    %6600 = vmatpush1.bf16.msra.mxu0 %v4433
    %6601 = vmatprep.subr.bf16.mxu0 %v4452
    %6602 = vmatpush1.bf16.msra.mxu0 %v4451
    %6603 = vmatprep.subr.bf16.mxu0 %v4470
    %6604 = vmatpush1.bf16.msra.mxu0 %v4469
    %6605 = vmatprep.subr.bf16.mxu0 %v4488
    %6606 = vmatpush1.bf16.msra.mxu0 %v4487
    %6607 = vmatprep.subr.bf16.mxu0 %v4506
    %6608 = vmatpush1.bf16.msra.mxu0 %v4505
    %6609 = vmatprep.subr.bf16.mxu0 %v4524
    %6610 = vmatpush1.bf16.msra.mxu0 %v4523
    %6611 = vmatprep.subr.bf16.mxu0 %v4542
    %6612 = vmatpush1.bf16.msra.mxu0 %v4541
    %6613 = vmatprep.subr.bf16.mxu0 %v4560
    %6614 = vmatpush1.bf16.msra.mxu0 %v4559
    %6615 = vmatprep.subr.bf16.mxu0 %v4578
    %6616 = vmatpush1.bf16.msra.mxu0 %v4577
    %6617 = vmatprep.subr.bf16.mxu0 %v4596
    %6618 = vmatpush1.bf16.msra.mxu0 %v4595
    %6619 = vmatprep.subr.bf16.mxu0 %v4614
    %6620 = vmatpush1.bf16.msra.mxu0 %v4613
    %6621 = vmatprep.mubr.bf16.mxu0 %v1101
    %6622 = vmatmul.mubr.bf16.gmra.mrb[0].mxu0 %v1100
    %v6623 = vpop.f32.mrb[0].mxu0
    %v6624 = vadd.f32 %v6583, %v6623
    %v6625 = vpop.f32.mrb[0].mxu0
    %v6626 = vadd.f32 %v6585, %v6625
    %v6627 = vpop.f32.mrb[0].mxu0
    %v6628 = vpop.f32.mrb[0].mxu0
    %6629 = vdwg.mxu0
    %6630 = vmatprep.subr.bf16.mxu0 %v4632
    %6631 = vmatpush1.bf16.msra.mxu0 %v4631
    %6632 = vmatprep.subr.bf16.mxu0 0
    %6633 = vmatpush1.bf16.msra.mxu0 0
    %6634 = vmatprep.subr.bf16.mxu0 0
    %6635 = vmatpush1.bf16.msra.mxu0 0
    %6636 = vmatprep.subr.bf16.mxu0 0
    %6637 = vmatpush1.bf16.msra.mxu0 0
    %6638 = vmatprep.subr.bf16.mxu0 0
    %6639 = vmatpush1.bf16.msra.mxu0 0
    %6640 = vmatprep.subr.bf16.mxu0 0
    %6641 = vmatpush1.bf16.msra.mxu0 0
    %6642 = vmatprep.subr.bf16.mxu0 0
    %6643 = vmatpush1.bf16.msra.mxu0 0
    %6644 = vmatprep.subr.bf16.mxu0 0
    %6645 = vmatpush1.bf16.msra.mxu0 0
    %6646 = vmatprep.subr.bf16.mxu0 0
    %6647 = vmatpush1.bf16.msra.mxu0 0
    %6648 = vmatprep.subr.bf16.mxu0 0
    %6649 = vmatpush1.bf16.msra.mxu0 0
    %6650 = vmatprep.subr.bf16.mxu0 0
    %6651 = vmatpush1.bf16.msra.mxu0 0
    %6652 = vmatprep.subr.bf16.mxu0 0
    %6653 = vmatpush1.bf16.msra.mxu0 0
    %6654 = vmatprep.subr.bf16.mxu0 0
    %6655 = vmatpush1.bf16.msra.mxu0 0
    %6656 = vmatprep.subr.bf16.mxu0 0
    %6657 = vmatpush1.bf16.msra.mxu0 0
    %6658 = vmatprep.subr.bf16.mxu0 0
    %6659 = vmatpush1.bf16.msra.mxu0 0
    %6660 = vmatprep.subr.bf16.mxu0 0
    %6661 = vmatpush1.bf16.msra.mxu0 0
    %6662 = vmatprep.mubr.bf16.mxu0 0
    %6663 = vmatmul.mubr.bf16.gmra.mrb[0].mxu0 %v5521
    %v6664 = vpop.f32.mrb[0].mxu0
    %v6665 = vadd.f32 %v6624, %v6664
    %v6666 = vpop.f32.mrb[0].mxu0
    %v6667 = vadd.f32 %v6626, %v6666
    %v6668 = vpop.f32.mrb[0].mxu0
    %v6669 = vpop.f32.mrb[0].mxu0
    %6670 = vdwg.mxu0
    %6671 = vmatprep.subr.bf16.mxu0 %v3770
    %6672 = vmatpush1.bf16.msra.mxu0 %v3769
    %6673 = vmatprep.subr.bf16.mxu0 %v3788
    %6674 = vmatpush1.bf16.msra.mxu0 %v3787
    %6675 = vmatprep.subr.bf16.mxu0 %v3806
    %6676 = vmatpush1.bf16.msra.mxu0 %v3805
    %6677 = vmatprep.subr.bf16.mxu0 %v3824
    %6678 = vmatpush1.bf16.msra.mxu0 %v3823
    %6679 = vmatprep.subr.bf16.mxu0 %v3842
    %6680 = vmatpush1.bf16.msra.mxu0 %v3841
    %6681 = vmatprep.subr.bf16.mxu0 %v3860
    %6682 = vmatpush1.bf16.msra.mxu0 %v3859
    %6683 = vmatprep.subr.bf16.mxu0 %v3878
    %6684 = vmatpush1.bf16.msra.mxu0 %v3877
    %6685 = vmatprep.subr.bf16.mxu0 %v3896
    %6686 = vmatpush1.bf16.msra.mxu0 %v3895
    %6687 = vmatprep.subr.bf16.mxu0 %v3914
    %6688 = vmatpush1.bf16.msra.mxu0 %v3913
    %6689 = vmatprep.subr.bf16.mxu0 %v3932
    %6690 = vmatpush1.bf16.msra.mxu0 %v3931
    %6691 = vmatprep.subr.bf16.mxu0 %v3950
    %6692 = vmatpush1.bf16.msra.mxu0 %v3949
    %6693 = vmatprep.subr.bf16.mxu0 %v3968
    %6694 = vmatpush1.bf16.msra.mxu0 %v3967
    %6695 = vmatprep.subr.bf16.mxu0 %v3986
    %6696 = vmatpush1.bf16.msra.mxu0 %v3985
    %6697 = vmatprep.subr.bf16.mxu0 %v4004
    %6698 = vmatpush1.bf16.msra.mxu0 %v4003
    %6699 = vmatprep.subr.bf16.mxu0 %v4022
    %6700 = vmatpush1.bf16.msra.mxu0 %v4021
    %6701 = vmatprep.subr.bf16.mxu0 %v4040
    %6702 = vmatpush1.bf16.msra.mxu0 %v4039
    %6703 = vmatprep.mubr.bf16.mxu0 %v1097
    %6704 = vmatmul.mubr.bf16.gmra.mrb[0].mxu0 %v1096
    %v6705 = vpop.f32.mrb[0].mxu0
    %v6706 = vadd.f32 %v1054, %v6705
    %v6707 = vpop.f32.mrb[0].mxu0
    %v6708 = vadd.f32 %v1058, %v6707
    %v6709 = vpop.f32.mrb[0].mxu0
    %v6710 = vpop.f32.mrb[0].mxu0
    %6711 = vdwg.mxu0
    %6712 = vmatprep.subr.bf16.mxu0 %v4058
    %6713 = vmatpush1.bf16.msra.mxu0 %v4057
    %6714 = vmatprep.subr.bf16.mxu0 %v4076
    %6715 = vmatpush1.bf16.msra.mxu0 %v4075
    %6716 = vmatprep.subr.bf16.mxu0 %v4094
    %6717 = vmatpush1.bf16.msra.mxu0 %v4093
    %6718 = vmatprep.subr.bf16.mxu0 %v4112
    %6719 = vmatpush1.bf16.msra.mxu0 %v4111
    %6720 = vmatprep.subr.bf16.mxu0 %v4130
    %6721 = vmatpush1.bf16.msra.mxu0 %v4129
    %6722 = vmatprep.subr.bf16.mxu0 %v4148
    %6723 = vmatpush1.bf16.msra.mxu0 %v4147
    %6724 = vmatprep.subr.bf16.mxu0 %v4166
    %6725 = vmatpush1.bf16.msra.mxu0 %v4165
    %6726 = vmatprep.subr.bf16.mxu0 %v4184
    %6727 = vmatpush1.bf16.msra.mxu0 %v4183
    %6728 = vmatprep.subr.bf16.mxu0 %v4202
    %6729 = vmatpush1.bf16.msra.mxu0 %v4201
    %6730 = vmatprep.subr.bf16.mxu0 %v4220
    %6731 = vmatpush1.bf16.msra.mxu0 %v4219
    %6732 = vmatprep.subr.bf16.mxu0 %v4238
    %6733 = vmatpush1.bf16.msra.mxu0 %v4237
    %6734 = vmatprep.subr.bf16.mxu0 %v4256
    %6735 = vmatpush1.bf16.msra.mxu0 %v4255
    %6736 = vmatprep.subr.bf16.mxu0 %v4274
    %6737 = vmatpush1.bf16.msra.mxu0 %v4273
    %6738 = vmatprep.subr.bf16.mxu0 %v4292
    %6739 = vmatpush1.bf16.msra.mxu0 %v4291
    %6740 = vmatprep.subr.bf16.mxu0 %v4310
    %6741 = vmatpush1.bf16.msra.mxu0 %v4309
    %6742 = vmatprep.subr.bf16.mxu0 %v4328
    %6743 = vmatpush1.bf16.msra.mxu0 %v4327
    %6744 = vmatprep.mubr.bf16.mxu0 %v1099
    %6745 = vmatmul.mubr.bf16.gmra.mrb[0].mxu0 %v1098
    %v6746 = vpop.f32.mrb[0].mxu0
    %v6747 = vadd.f32 %v6706, %v6746
    %v6748 = vpop.f32.mrb[0].mxu0
    %v6749 = vadd.f32 %v6708, %v6748
    %v6750 = vpop.f32.mrb[0].mxu0
    %v6751 = vpop.f32.mrb[0].mxu0
    %6752 = vdwg.mxu0
    %6753 = vmatprep.subr.bf16.mxu0 %v4346
    %6754 = vmatpush1.bf16.msra.mxu0 %v4345
    %6755 = vmatprep.subr.bf16.mxu0 %v4364
    %6756 = vmatpush1.bf16.msra.mxu0 %v4363
    %6757 = vmatprep.subr.bf16.mxu0 %v4382
    %6758 = vmatpush1.bf16.msra.mxu0 %v4381
    %6759 = vmatprep.subr.bf16.mxu0 %v4400
    %6760 = vmatpush1.bf16.msra.mxu0 %v4399
    %6761 = vmatprep.subr.bf16.mxu0 %v4418
    %6762 = vmatpush1.bf16.msra.mxu0 %v4417
    %6763 = vmatprep.subr.bf16.mxu0 %v4436
    %6764 = vmatpush1.bf16.msra.mxu0 %v4435
    %6765 = vmatprep.subr.bf16.mxu0 %v4454
    %6766 = vmatpush1.bf16.msra.mxu0 %v4453
    %6767 = vmatprep.subr.bf16.mxu0 %v4472
    %6768 = vmatpush1.bf16.msra.mxu0 %v4471
    %6769 = vmatprep.subr.bf16.mxu0 %v4490
    %6770 = vmatpush1.bf16.msra.mxu0 %v4489
    %6771 = vmatprep.subr.bf16.mxu0 %v4508
    %6772 = vmatpush1.bf16.msra.mxu0 %v4507
    %6773 = vmatprep.subr.bf16.mxu0 %v4526
    %6774 = vmatpush1.bf16.msra.mxu0 %v4525
    %6775 = vmatprep.subr.bf16.mxu0 %v4544
    %6776 = vmatpush1.bf16.msra.mxu0 %v4543
    %6777 = vmatprep.subr.bf16.mxu0 %v4562
    %6778 = vmatpush1.bf16.msra.mxu0 %v4561
    %6779 = vmatprep.subr.bf16.mxu0 %v4580
    %6780 = vmatpush1.bf16.msra.mxu0 %v4579
    %6781 = vmatprep.subr.bf16.mxu0 %v4598
    %6782 = vmatpush1.bf16.msra.mxu0 %v4597
    %6783 = vmatprep.subr.bf16.mxu0 %v4616
    %6784 = vmatpush1.bf16.msra.mxu0 %v4615
    %6785 = vmatprep.mubr.bf16.mxu0 %v1101
    %6786 = vmatmul.mubr.bf16.gmra.mrb[0].mxu0 %v1100
    %v6787 = vpop.f32.mrb[0].mxu0
    %v6788 = vadd.f32 %v6747, %v6787
    %v6789 = vpop.f32.mrb[0].mxu0
    %v6790 = vadd.f32 %v6749, %v6789
    %v6791 = vpop.f32.mrb[0].mxu0
    %v6792 = vpop.f32.mrb[0].mxu0
    %6793 = vdwg.mxu0
    %6794 = vmatprep.subr.bf16.mxu0 %v4634
    %6795 = vmatpush1.bf16.msra.mxu0 %v4633
    %6796 = vmatprep.subr.bf16.mxu0 0
    %6797 = vmatpush1.bf16.msra.mxu0 0
    %6798 = vmatprep.subr.bf16.mxu0 0
    %6799 = vmatpush1.bf16.msra.mxu0 0
    %6800 = vmatprep.subr.bf16.mxu0 0
    %6801 = vmatpush1.bf16.msra.mxu0 0
    %6802 = vmatprep.subr.bf16.mxu0 0
    %6803 = vmatpush1.bf16.msra.mxu0 0
    %6804 = vmatprep.subr.bf16.mxu0 0
    %6805 = vmatpush1.bf16.msra.mxu0 0
    %6806 = vmatprep.subr.bf16.mxu0 0
    %6807 = vmatpush1.bf16.msra.mxu0 0
    %6808 = vmatprep.subr.bf16.mxu0 0
    %6809 = vmatpush1.bf16.msra.mxu0 0
    %6810 = vmatprep.subr.bf16.mxu0 0
    %6811 = vmatpush1.bf16.msra.mxu0 0
    %6812 = vmatprep.subr.bf16.mxu0 0
    %6813 = vmatpush1.bf16.msra.mxu0 0
    %6814 = vmatprep.subr.bf16.mxu0 0
    %6815 = vmatpush1.bf16.msra.mxu0 0
    %6816 = vmatprep.subr.bf16.mxu0 0
    %6817 = vmatpush1.bf16.msra.mxu0 0
    %6818 = vmatprep.subr.bf16.mxu0 0
    %6819 = vmatpush1.bf16.msra.mxu0 0
    %6820 = vmatprep.subr.bf16.mxu0 0
    %6821 = vmatpush1.bf16.msra.mxu0 0
    %6822 = vmatprep.subr.bf16.mxu0 0
    %6823 = vmatpush1.bf16.msra.mxu0 0
    %6824 = vmatprep.subr.bf16.mxu0 0
    %6825 = vmatpush1.bf16.msra.mxu0 0
    %6826 = vmatprep.mubr.bf16.mxu0 0
    %6827 = vmatmul.mubr.bf16.gmra.mrb[0].mxu0 %v5521
    %v6828 = vpop.f32.mrb[0].mxu0
    %v6829 = vadd.f32 %v6788, %v6828
    %v6830 = vpop.f32.mrb[0].mxu0
    %v6831 = vadd.f32 %v6790, %v6830
    %v6832 = vpop.f32.mrb[0].mxu0
    %v6833 = vpop.f32.mrb[0].mxu0
    %6834 = vdwg.mxu0
    %6835 = vmatprep.subr.bf16.mxu0 %v3772
    %6836 = vmatpush1.bf16.msra.mxu0 %v3771
    %6837 = vmatprep.subr.bf16.mxu0 %v3790
    %6838 = vmatpush1.bf16.msra.mxu0 %v3789
    %6839 = vmatprep.subr.bf16.mxu0 %v3808
    %6840 = vmatpush1.bf16.msra.mxu0 %v3807
    %6841 = vmatprep.subr.bf16.mxu0 %v3826
    %6842 = vmatpush1.bf16.msra.mxu0 %v3825
    %6843 = vmatprep.subr.bf16.mxu0 %v3844
    %6844 = vmatpush1.bf16.msra.mxu0 %v3843
    %6845 = vmatprep.subr.bf16.mxu0 %v3862
    %6846 = vmatpush1.bf16.msra.mxu0 %v3861
    %6847 = vmatprep.subr.bf16.mxu0 %v3880
    %6848 = vmatpush1.bf16.msra.mxu0 %v3879
    %6849 = vmatprep.subr.bf16.mxu0 %v3898
    %6850 = vmatpush1.bf16.msra.mxu0 %v3897
    %6851 = vmatprep.subr.bf16.mxu0 %v3916
    %6852 = vmatpush1.bf16.msra.mxu0 %v3915
    %6853 = vmatprep.subr.bf16.mxu0 %v3934
    %6854 = vmatpush1.bf16.msra.mxu0 %v3933
    %6855 = vmatprep.subr.bf16.mxu0 %v3952
    %6856 = vmatpush1.bf16.msra.mxu0 %v3951
    %6857 = vmatprep.subr.bf16.mxu0 %v3970
    %6858 = vmatpush1.bf16.msra.mxu0 %v3969
    %6859 = vmatprep.subr.bf16.mxu0 %v3988
    %6860 = vmatpush1.bf16.msra.mxu0 %v3987
    %6861 = vmatprep.subr.bf16.mxu0 %v4006
    %6862 = vmatpush1.bf16.msra.mxu0 %v4005
    %6863 = vmatprep.subr.bf16.mxu0 %v4024
    %6864 = vmatpush1.bf16.msra.mxu0 %v4023
    %6865 = vmatprep.subr.bf16.mxu0 %v4042
    %6866 = vmatpush1.bf16.msra.mxu0 %v4041
    %6867 = vmatprep.mubr.bf16.mxu0 %v1097
    %6868 = vmatmul.mubr.bf16.gmra.mrb[0].mxu0 %v1096
    %v6869 = vpop.f32.mrb[0].mxu0
    %v6870 = vadd.f32 %v1062, %v6869
    %v6871 = vpop.f32.mrb[0].mxu0
    %v6872 = vadd.f32 %v1066, %v6871
    %v6873 = vpop.f32.mrb[0].mxu0
    %v6874 = vpop.f32.mrb[0].mxu0
    %6875 = vdwg.mxu0
    %6876 = vmatprep.subr.bf16.mxu0 %v4060
    %6877 = vmatpush1.bf16.msra.mxu0 %v4059
    %6878 = vmatprep.subr.bf16.mxu0 %v4078
    %6879 = vmatpush1.bf16.msra.mxu0 %v4077
    %6880 = vmatprep.subr.bf16.mxu0 %v4096
    %6881 = vmatpush1.bf16.msra.mxu0 %v4095
    %6882 = vmatprep.subr.bf16.mxu0 %v4114
    %6883 = vmatpush1.bf16.msra.mxu0 %v4113
    %6884 = vmatprep.subr.bf16.mxu0 %v4132
    %6885 = vmatpush1.bf16.msra.mxu0 %v4131
    %6886 = vmatprep.subr.bf16.mxu0 %v4150
    %6887 = vmatpush1.bf16.msra.mxu0 %v4149
    %6888 = vmatprep.subr.bf16.mxu0 %v4168
    %6889 = vmatpush1.bf16.msra.mxu0 %v4167
    %6890 = vmatprep.subr.bf16.mxu0 %v4186
    %6891 = vmatpush1.bf16.msra.mxu0 %v4185
    %6892 = vmatprep.subr.bf16.mxu0 %v4204
    %6893 = vmatpush1.bf16.msra.mxu0 %v4203
    %6894 = vmatprep.subr.bf16.mxu0 %v4222
    %6895 = vmatpush1.bf16.msra.mxu0 %v4221
    %6896 = vmatprep.subr.bf16.mxu0 %v4240
    %6897 = vmatpush1.bf16.msra.mxu0 %v4239
    %6898 = vmatprep.subr.bf16.mxu0 %v4258
    %6899 = vmatpush1.bf16.msra.mxu0 %v4257
    %6900 = vmatprep.subr.bf16.mxu0 %v4276
    %6901 = vmatpush1.bf16.msra.mxu0 %v4275
    %6902 = vmatprep.subr.bf16.mxu0 %v4294
    %6903 = vmatpush1.bf16.msra.mxu0 %v4293
    %6904 = vmatprep.subr.bf16.mxu0 %v4312
    %6905 = vmatpush1.bf16.msra.mxu0 %v4311
    %6906 = vmatprep.subr.bf16.mxu0 %v4330
    %6907 = vmatpush1.bf16.msra.mxu0 %v4329
    %6908 = vmatprep.mubr.bf16.mxu0 %v1099
    %6909 = vmatmul.mubr.bf16.gmra.mrb[0].mxu0 %v1098
    %v6910 = vpop.f32.mrb[0].mxu0
    %v6911 = vadd.f32 %v6870, %v6910
    %v6912 = vpop.f32.mrb[0].mxu0
    %v6913 = vadd.f32 %v6872, %v6912
    %v6914 = vpop.f32.mrb[0].mxu0
    %v6915 = vpop.f32.mrb[0].mxu0
    %6916 = vdwg.mxu0
    %6917 = vmatprep.subr.bf16.mxu0 %v4348
    %6918 = vmatpush1.bf16.msra.mxu0 %v4347
    %6919 = vmatprep.subr.bf16.mxu0 %v4366
    %6920 = vmatpush1.bf16.msra.mxu0 %v4365
    %6921 = vmatprep.subr.bf16.mxu0 %v4384
    %6922 = vmatpush1.bf16.msra.mxu0 %v4383
    %6923 = vmatprep.subr.bf16.mxu0 %v4402
    %6924 = vmatpush1.bf16.msra.mxu0 %v4401
    %6925 = vmatprep.subr.bf16.mxu0 %v4420
    %6926 = vmatpush1.bf16.msra.mxu0 %v4419
    %6927 = vmatprep.subr.bf16.mxu0 %v4438
    %6928 = vmatpush1.bf16.msra.mxu0 %v4437
    %6929 = vmatprep.subr.bf16.mxu0 %v4456
    %6930 = vmatpush1.bf16.msra.mxu0 %v4455
    %6931 = vmatprep.subr.bf16.mxu0 %v4474
    %6932 = vmatpush1.bf16.msra.mxu0 %v4473
    %6933 = vmatprep.subr.bf16.mxu0 %v4492
    %6934 = vmatpush1.bf16.msra.mxu0 %v4491
    %6935 = vmatprep.subr.bf16.mxu0 %v4510
    %6936 = vmatpush1.bf16.msra.mxu0 %v4509
    %6937 = vmatprep.subr.bf16.mxu0 %v4528
    %6938 = vmatpush1.bf16.msra.mxu0 %v4527
    %6939 = vmatprep.subr.bf16.mxu0 %v4546
    %6940 = vmatpush1.bf16.msra.mxu0 %v4545
    %6941 = vmatprep.subr.bf16.mxu0 %v4564
    %6942 = vmatpush1.bf16.msra.mxu0 %v4563
    %6943 = vmatprep.subr.bf16.mxu0 %v4582
    %6944 = vmatpush1.bf16.msra.mxu0 %v4581
    %6945 = vmatprep.subr.bf16.mxu0 %v4600
    %6946 = vmatpush1.bf16.msra.mxu0 %v4599
    %6947 = vmatprep.subr.bf16.mxu0 %v4618
    %6948 = vmatpush1.bf16.msra.mxu0 %v4617
    %6949 = vmatprep.mubr.bf16.mxu0 %v1101
    %6950 = vmatmul.mubr.bf16.gmra.mrb[0].mxu0 %v1100
    %v6951 = vpop.f32.mrb[0].mxu0
    %v6952 = vadd.f32 %v6911, %v6951
    %v6953 = vpop.f32.mrb[0].mxu0
    %v6954 = vadd.f32 %v6913, %v6953
    %v6955 = vpop.f32.mrb[0].mxu0
    %v6956 = vpop.f32.mrb[0].mxu0
    %6957 = vdwg.mxu0
    %6958 = vmatprep.subr.bf16.mxu0 %v4636
    %6959 = vmatpush1.bf16.msra.mxu0 %v4635
    %6960 = vmatprep.subr.bf16.mxu0 0
    %6961 = vmatpush1.bf16.msra.mxu0 0
    %6962 = vmatprep.subr.bf16.mxu0 0
    %6963 = vmatpush1.bf16.msra.mxu0 0
    %6964 = vmatprep.subr.bf16.mxu0 0
    %6965 = vmatpush1.bf16.msra.mxu0 0
    %6966 = vmatprep.subr.bf16.mxu0 0
    %6967 = vmatpush1.bf16.msra.mxu0 0
    %6968 = vmatprep.subr.bf16.mxu0 0
    %6969 = vmatpush1.bf16.msra.mxu0 0
    %6970 = vmatprep.subr.bf16.mxu0 0
    %6971 = vmatpush1.bf16.msra.mxu0 0
    %6972 = vmatprep.subr.bf16.mxu0 0
    %6973 = vmatpush1.bf16.msra.mxu0 0
    %6974 = vmatprep.subr.bf16.mxu0 0
    %6975 = vmatpush1.bf16.msra.mxu0 0
    %6976 = vmatprep.subr.bf16.mxu0 0
    %6977 = vmatpush1.bf16.msra.mxu0 0
    %6978 = vmatprep.subr.bf16.mxu0 0
    %6979 = vmatpush1.bf16.msra.mxu0 0
    %6980 = vmatprep.subr.bf16.mxu0 0
    %6981 = vmatpush1.bf16.msra.mxu0 0
    %6982 = vmatprep.subr.bf16.mxu0 0
    %6983 = vmatpush1.bf16.msra.mxu0 0
    %6984 = vmatprep.subr.bf16.mxu0 0
    %6985 = vmatpush1.bf16.msra.mxu0 0
    %6986 = vmatprep.subr.bf16.mxu0 0
    %6987 = vmatpush1.bf16.msra.mxu0 0
    %6988 = vmatprep.subr.bf16.mxu0 0
    %6989 = vmatpush1.bf16.msra.mxu0 0
    %6990 = vmatprep.mubr.bf16.mxu0 0
    %6991 = vmatmul.mubr.bf16.gmra.mrb[0].mxu0 %v5521
    %v6992 = vpop.f32.mrb[0].mxu0
    %v6993 = vadd.f32 %v6952, %v6992
    %v6994 = vpop.f32.mrb[0].mxu0
    %v6995 = vadd.f32 %v6954, %v6994
    %v6996 = vpop.f32.mrb[0].mxu0
    %v6997 = vpop.f32.mrb[0].mxu0
    %6998 = vdwg.mxu0
    %v6999 = vmul.f32 %v5681, %v5681
    %v7000 = vmul.f32 %v5683, %v5683
    %v7001 = vmul.f32 %v5845, %v5845
    %v7002 = vmul.f32 %v5847, %v5847
    %v7003 = vmul.f32 %v6009, %v6009
    %v7004 = vmul.f32 %v6011, %v6011
    %v7005 = vmul.f32 %v6173, %v6173
    %v7006 = vmul.f32 %v6175, %v6175
    %v7007 = vmul.f32 %v6337, %v6337
    %v7008 = vmul.f32 %v6339, %v6339
    %v7009 = vmul.f32 %v6501, %v6501
    %v7010 = vmul.f32 %v6503, %v6503
    %v7011 = vmul.f32 %v6665, %v6665
    %v7012 = vmul.f32 %v6667, %v6667
    %v7013 = vmul.f32 %v6829, %v6829
    %v7014 = vmul.f32 %v6831, %v6831
    %v7015 = vmul.f32 %v6993, %v6993
    %v7016 = vmul.f32 %v6995, %v6995
    %v7017 = vpack.c.bf16 %v6999, %v6999
    %v7018 = vpack.c.bf16 %v7000, %v7000
    %v7019 = vpack.c.bf16 %v7001, %v7001
    %v7020 = vpack.c.bf16 %v7002, %v7002
    %v7021 = vpack.c.bf16 %v7003, %v7003
    %v7022 = vpack.c.bf16 %v7004, %v7004
    %v7023 = vpack.c.bf16 %v7005, %v7005
    %v7024 = vpack.c.bf16 %v7006, %v7006
    %v7025 = vpack.c.bf16 %v7007, %v7007
    %v7026 = vpack.c.bf16 %v7008, %v7008
    %v7027 = vpack.c.bf16 %v7009, %v7009
    %v7028 = vpack.c.bf16 %v7010, %v7010
    %v7029 = vpack.c.bf16 %v7011, %v7011
    %v7030 = vpack.c.bf16 %v7012, %v7012
    %v7031 = vpack.c.bf16 %v7013, %v7013
    %v7032 = vpack.c.bf16 %v7014, %v7014
    %v7033 = vpack.c.bf16 %v7015, %v7015
    %v7034 = vpack.c.bf16 %v7016, %v7016
    %v7035 = vld [vmem:[#allocation6] sm:$0xff]
    %v7036 = vld [vmem:[#allocation6 + $0x8] sm:$0xff]
    %v7037 = vld [vmem:[#allocation6 + $0x10] sm:$0xff]
    %v7038 = vld [vmem:[#allocation6 + $0x18] sm:$0xff]
    %v7039 = vld [vmem:[#allocation6 + $0x20] sm:$0xff]
    %v7040 = vld [vmem:[#allocation6 + $0x28] sm:$0xff]
    %v7041 = vld [vmem:[#allocation6 + $0x30] sm:$0xff]
    %v7042 = vld [vmem:[#allocation6 + $0x38] sm:$0xff]
    %v7043 = vld [vmem:[#allocation6 + $0x40] sm:$0xff]
    %v7044 = vld [vmem:[#allocation6 + $0x48] sm:$0xff]
    %v7045 = vld [vmem:[#allocation6 + $0x50] sm:$0xff]
    %v7046 = vld [vmem:[#allocation6 + $0x58] sm:$0xff]
    %v7047 = vld [vmem:[#allocation6 + $0x60] sm:$0xff]
    %v7048 = vld [vmem:[#allocation6 + $0x68] sm:$0xff]
    %v7049 = vld [vmem:[#allocation6 + $0x70] sm:$0xff]
    %v7050 = vld [vmem:[#allocation6 + $0x78] sm:$0xff]
    %v7051 = vld [vmem:[#allocation6 + $0x80] sm:$0xff]
    %v7052 = vld [vmem:[#allocation6 + $0x88] sm:$0xff]
    %v7053 = vld [vmem:[#allocation6 + $0x90] sm:$0xff]
    %v7054 = vld [vmem:[#allocation6 + $0x98] sm:$0xff]
    %v7055 = vld [vmem:[#allocation6 + $0xa0] sm:$0xff]
    %v7056 = vld [vmem:[#allocation6 + $0xa8] sm:$0xff]
    %v7057 = vld [vmem:[#allocation6 + $0xb0] sm:$0xff]
    %v7058 = vld [vmem:[#allocation6 + $0xb8] sm:$0xff]
    %v7059 = vld [vmem:[#allocation6 + $0xc0] sm:$0xff]
    %v7060 = vld [vmem:[#allocation6 + $0xc8] sm:$0xff]
    %v7061 = vld [vmem:[#allocation6 + $0xd0] sm:$0xff]
    %v7062 = vld [vmem:[#allocation6 + $0xd8] sm:$0xff]
    %v7063 = vld [vmem:[#allocation6 + $0xe0] sm:$0xff]
    %v7064 = vld [vmem:[#allocation6 + $0xe8] sm:$0xff]
    %v7065 = vld [vmem:[#allocation6 + $0xf0] sm:$0xff]
    %v7066 = vld [vmem:[#allocation6 + $0xf8] sm:$0xff]
    %v7067 = vld [vmem:[#allocation6 + $0x100] sm:$0xff]
    %v7068 = vld [vmem:[#allocation6 + $0x108] sm:$0xff]
    %v7069 = vld [vmem:[#allocation6 + $0x110] sm:$0xff]
    %v7070 = vld [vmem:[#allocation6 + $0x118] sm:$0xff]
    %v7071 = vld [vmem:[#allocation6 + $0x120] sm:$0xff]
    %v7072 = vld [vmem:[#allocation6 + $0x128] sm:$0xff]
    %v7073 = vld [vmem:[#allocation6 + $0x130] sm:$0xff]
    %v7074 = vld [vmem:[#allocation6 + $0x138] sm:$0xff]
    %v7075 = vld [vmem:[#allocation6 + $0x140] sm:$0xff]
    %v7076 = vld [vmem:[#allocation6 + $0x148] sm:$0xff]
    %v7077 = vld [vmem:[#allocation6 + $0x150] sm:$0xff]
    %v7078 = vld [vmem:[#allocation6 + $0x158] sm:$0xff]
    %v7079 = vld [vmem:[#allocation6 + $0x160] sm:$0xff]
    %v7080 = vld [vmem:[#allocation6 + $0x168] sm:$0xff]
    %v7081 = vld [vmem:[#allocation6 + $0x170] sm:$0xff]
    %v7082 = vld [vmem:[#allocation6 + $0x178] sm:$0xff]
    %v7083 = vld [vmem:[#allocation6 + $0x180] sm:$0xff]
    %v7084 = vld [vmem:[#allocation6 + $0x188] sm:$0xff]
    %v7085 = vld [vmem:[#allocation6 + $0x190] sm:$0xff]
    %v7086 = vld [vmem:[#allocation6 + $0x198] sm:$0xff]
    %v7087 = vld [vmem:[#allocation6 + $0x1a0] sm:$0xff]
    %v7088 = vld [vmem:[#allocation6 + $0x1a8] sm:$0xff]
    %v7089 = vld [vmem:[#allocation6 + $0x1b0] sm:$0xff]
    %v7090 = vld [vmem:[#allocation6 + $0x1b8] sm:$0xff]
    %v7091 = vld [vmem:[#allocation6 + $0x1c0] sm:$0xff]
    %v7092 = vld [vmem:[#allocation6 + $0x1c8] sm:$0xff]
    %v7093 = vld [vmem:[#allocation6 + $0x1d0] sm:$0xff]
    %v7094 = vld [vmem:[#allocation6 + $0x1d8] sm:$0xff]
    %v7095 = vld [vmem:[#allocation6 + $0x1e0] sm:$0xff]
    %v7096 = vld [vmem:[#allocation6 + $0x1e8] sm:$0xff]
    %v7097 = vld [vmem:[#allocation6 + $0x1f0] sm:$0xff]
    %v7098 = vld [vmem:[#allocation6 + $0x1f8] sm:$0xff]
    %v7099 = vld [vmem:[#allocation6 + $0x200] sm:$0xff]
    %v7100 = vld [vmem:[#allocation6 + $0x208] sm:$0xff]
    %v7101 = vld [vmem:[#allocation6 + $0x210] sm:$0xff]
    %v7102 = vld [vmem:[#allocation6 + $0x218] sm:$0xff]
    %v7103 = vld [vmem:[#allocation6 + $0x220] sm:$0xff]
    %v7104 = vld [vmem:[#allocation6 + $0x228] sm:$0xff]
    %v7105 = vld [vmem:[#allocation6 + $0x230] sm:$0xff]
    %v7106 = vld [vmem:[#allocation6 + $0x238] sm:$0xff]
    %v7107 = vld [vmem:[#allocation6 + $0x240] sm:$0xff]
    %v7108 = vld [vmem:[#allocation6 + $0x248] sm:$0xff]
    %v7109 = vld [vmem:[#allocation6 + $0x250] sm:$0xff]
    %v7110 = vld [vmem:[#allocation6 + $0x258] sm:$0xff]
    %v7111 = vld [vmem:[#allocation6 + $0x260] sm:$0xff]
    %v7112 = vld [vmem:[#allocation6 + $0x268] sm:$0xff]
    %v7113 = vld [vmem:[#allocation6 + $0x270] sm:$0xff]
    %v7114 = vld [vmem:[#allocation6 + $0x278] sm:$0xff]
    %v7115 = vld [vmem:[#allocation6 + $0x280] sm:$0xff]
    %v7116 = vld [vmem:[#allocation6 + $0x288] sm:$0xff]
    %v7117 = vld [vmem:[#allocation6 + $0x290] sm:$0xff]
    %v7118 = vld [vmem:[#allocation6 + $0x298] sm:$0xff]
    %v7119 = vld [vmem:[#allocation6 + $0x2a0] sm:$0xff]
    %v7120 = vld [vmem:[#allocation6 + $0x2a8] sm:$0xff]
    %v7121 = vld [vmem:[#allocation6 + $0x2b0] sm:$0xff]
    %v7122 = vld [vmem:[#allocation6 + $0x2b8] sm:$0xff]
    %v7123 = vld [vmem:[#allocation6 + $0x2c0] sm:$0xff]
    %v7124 = vld [vmem:[#allocation6 + $0x2c8] sm:$0xff]
    %v7125 = vld [vmem:[#allocation6 + $0x2d0] sm:$0xff]
    %v7126 = vld [vmem:[#allocation6 + $0x2d8] sm:$0xff]
    %v7127 = vld [vmem:[#allocation6 + $0x2e0] sm:$0xff]
    %v7128 = vld [vmem:[#allocation6 + $0x2e8] sm:$0xff]
    %v7129 = vld [vmem:[#allocation6 + $0x2f0] sm:$0xff]
    %v7130 = vld [vmem:[#allocation6 + $0x2f8] sm:$0xff]
    %v7131 = vld [vmem:[#allocation6 + $0x300] sm:$0xff]
    %v7132 = vld [vmem:[#allocation6 + $0x308] sm:$0xff]
    %v7133 = vld [vmem:[#allocation6 + $0x310] sm:$0xff]
    %v7134 = vld [vmem:[#allocation6 + $0x318] sm:$0xff]
    %v7135 = vld [vmem:[#allocation6 + $0x320] sm:$0xff]
    %v7136 = vld [vmem:[#allocation6 + $0x328] sm:$0xff]
    %v7137 = vld [vmem:[#allocation6 + $0x330] sm:$0xff]
    %v7138 = vld [vmem:[#allocation6 + $0x338] sm:$0xff]
    %v7139 = vld [vmem:[#allocation6 + $0x340] sm:$0xff]
    %v7140 = vld [vmem:[#allocation6 + $0x348] sm:$0xff]
    %v7141 = vld [vmem:[#allocation6 + $0x350] sm:$0xff]
    %v7142 = vld [vmem:[#allocation6 + $0x358] sm:$0xff]
    %v7143 = vld [vmem:[#allocation6 + $0x360] sm:$0xff]
    %v7144 = vld [vmem:[#allocation6 + $0x368] sm:$0xff]
    %v7145 = vld [vmem:[#allocation6 + $0x370] sm:$0xff]
    %v7146 = vld [vmem:[#allocation6 + $0x378] sm:$0xff]
    %v7147 = vld [vmem:[#allocation6 + $0x380] sm:$0xff]
    %v7148 = vld [vmem:[#allocation6 + $0x388] sm:$0xff]
    %v7149 = vld [vmem:[#allocation6 + $0x390] sm:$0xff]
    %v7150 = vld [vmem:[#allocation6 + $0x398] sm:$0xff]
    %v7151 = vld [vmem:[#allocation6 + $0x3a0] sm:$0xff]
    %v7152 = vld [vmem:[#allocation6 + $0x3a8] sm:$0xff]
    %v7153 = vld [vmem:[#allocation6 + $0x3b0] sm:$0xff]
    %v7154 = vld [vmem:[#allocation6 + $0x3b8] sm:$0xff]
    %v7155 = vld [vmem:[#allocation6 + $0x3c0] sm:$0xff]
    %v7156 = vld [vmem:[#allocation6 + $0x3c8] sm:$0xff]
    %v7157 = vld [vmem:[#allocation6 + $0x3d0] sm:$0xff]
    %v7158 = vld [vmem:[#allocation6 + $0x3d8] sm:$0xff]
    %v7159 = vld [vmem:[#allocation6 + $0x3e0] sm:$0xff]
    %v7160 = vld [vmem:[#allocation6 + $0x3e8] sm:$0xff]
    %v7161 = vld [vmem:[#allocation6 + $0x3f0] sm:$0xff]
    %v7162 = vld [vmem:[#allocation6 + $0x3f8] sm:$0xff]
    %v7163 = vld [vmem:[#allocation6 + $0x400] sm:$0xff]
    %v7164 = vld [vmem:[#allocation6 + $0x408] sm:$0xff]
    %v7165 = vld [vmem:[#allocation6 + $0x410] sm:$0xff]
    %v7166 = vld [vmem:[#allocation6 + $0x418] sm:$0xff]
    %v7167 = vld [vmem:[#allocation6 + $0x420] sm:$0xff]
    %v7168 = vld [vmem:[#allocation6 + $0x428] sm:$0xff]
    %v7169 = vld [vmem:[#allocation6 + $0x430] sm:$0xff]
    %v7170 = vld [vmem:[#allocation6 + $0x438] sm:$0xff]
    %v7171 = vld [vmem:[#allocation6 + $0x440] sm:$0xff]
    %v7172 = vld [vmem:[#allocation6 + $0x448] sm:$0xff]
    %v7173 = vld [vmem:[#allocation6 + $0x450] sm:$0xff]
    %v7174 = vld [vmem:[#allocation6 + $0x458] sm:$0xff]
    %v7175 = vld [vmem:[#allocation6 + $0x460] sm:$0xff]
    %v7176 = vld [vmem:[#allocation6 + $0x468] sm:$0xff]
    %v7177 = vld [vmem:[#allocation6 + $0x470] sm:$0xff]
    %v7178 = vld [vmem:[#allocation6 + $0x478] sm:$0xff]
    %v7179 = vld [vmem:[#allocation6 + $0x480] sm:$0xff]
    %v7180 = vld [vmem:[#allocation6 + $0x488] sm:$0xff]
    %v7181 = vld [vmem:[#allocation6 + $0x490] sm:$0xff]
    %v7182 = vld [vmem:[#allocation6 + $0x498] sm:$0xff]
    %v7183 = vld [vmem:[#allocation6 + $0x4a0] sm:$0xff]
    %v7184 = vld [vmem:[#allocation6 + $0x4a8] sm:$0xff]
    %v7185 = vld [vmem:[#allocation6 + $0x4b0] sm:$0xff]
    %v7186 = vld [vmem:[#allocation6 + $0x4b8] sm:$0xff]
    %v7187 = vld [vmem:[#allocation6 + $0x4c0] sm:$0xff]
    %v7188 = vld [vmem:[#allocation6 + $0x4c8] sm:$0xff]
    %v7189 = vld [vmem:[#allocation6 + $0x4d0] sm:$0xff]
    %v7190 = vld [vmem:[#allocation6 + $0x4d8] sm:$0xff]
    %v7191 = vld [vmem:[#allocation6 + $0x4e0] sm:$0xff]
    %v7192 = vld [vmem:[#allocation6 + $0x4e8] sm:$0xff]
    %v7193 = vld [vmem:[#allocation6 + $0x4f0] sm:$0xff]
    %v7194 = vld [vmem:[#allocation6 + $0x4f8] sm:$0xff]
    %v7195 = vld [vmem:[#allocation6 + $0x500] sm:$0xff]
    %v7196 = vld [vmem:[#allocation6 + $0x508] sm:$0xff]
    %v7197 = vld [vmem:[#allocation6 + $0x510] sm:$0xff]
    %v7198 = vld [vmem:[#allocation6 + $0x518] sm:$0xff]
    %v7199 = vld [vmem:[#allocation6 + $0x520] sm:$0xff]
    %v7200 = vld [vmem:[#allocation6 + $0x528] sm:$0xff]
    %v7201 = vld [vmem:[#allocation6 + $0x530] sm:$0xff]
    %v7202 = vld [vmem:[#allocation6 + $0x538] sm:$0xff]
    %v7203 = vld [vmem:[#allocation6 + $0x540] sm:$0xff]
    %v7204 = vld [vmem:[#allocation6 + $0x548] sm:$0xff]
    %v7205 = vld [vmem:[#allocation6 + $0x550] sm:$0xff]
    %v7206 = vld [vmem:[#allocation6 + $0x558] sm:$0xff]
    %v7207 = vld [vmem:[#allocation6 + $0x560] sm:$0xff]
    %v7208 = vld [vmem:[#allocation6 + $0x568] sm:$0xff]
    %v7209 = vld [vmem:[#allocation6 + $0x570] sm:$0xff]
    %v7210 = vld [vmem:[#allocation6 + $0x578] sm:$0xff]
    %v7211 = vld [vmem:[#allocation6 + $0x580] sm:$0xff]
    %v7212 = vld [vmem:[#allocation6 + $0x588] sm:$0xff]
    %v7213 = vld [vmem:[#allocation6 + $0x590] sm:$0xff]
    %v7214 = vld [vmem:[#allocation6 + $0x598] sm:$0xff]
    %v7215 = vld [vmem:[#allocation6 + $0x5a0] sm:$0xff]
    %v7216 = vld [vmem:[#allocation6 + $0x5a8] sm:$0xff]
    %v7217 = vld [vmem:[#allocation6 + $0x5b0] sm:$0xff]
    %v7218 = vld [vmem:[#allocation6 + $0x5b8] sm:$0xff]
    %v7219 = vld [vmem:[#allocation6 + $0x5c0] sm:$0xff]
    %v7220 = vld [vmem:[#allocation6 + $0x5c8] sm:$0xff]
    %v7221 = vld [vmem:[#allocation6 + $0x5d0] sm:$0xff]
    %v7222 = vld [vmem:[#allocation6 + $0x5d8] sm:$0xff]
    %v7223 = vld [vmem:[#allocation6 + $0x5e0] sm:$0xff]
    %v7224 = vld [vmem:[#allocation6 + $0x5e8] sm:$0xff]
    %v7225 = vld [vmem:[#allocation6 + $0x5f0] sm:$0xff]
    %v7226 = vld [vmem:[#allocation6 + $0x5f8] sm:$0xff]
    %v7227 = vld [vmem:[#allocation6 + $0x600] sm:$0xff]
    %v7228 = vld [vmem:[#allocation6 + $0x608] sm:$0xff]
    %v7229 = vld [vmem:[#allocation6 + $0x610] sm:$0xff]
    %v7230 = vld [vmem:[#allocation6 + $0x618] sm:$0xff]
    %v7231 = vld [vmem:[#allocation6 + $0x620] sm:$0xff]
    %v7232 = vld [vmem:[#allocation6 + $0x628] sm:$0xff]
    %v7233 = vld [vmem:[#allocation6 + $0x630] sm:$0xff]
    %v7234 = vld [vmem:[#allocation6 + $0x638] sm:$0xff]
    %v7235 = vld [vmem:[#allocation6 + $0x640] sm:$0xff]
    %v7236 = vld [vmem:[#allocation6 + $0x648] sm:$0xff]
    %v7237 = vld [vmem:[#allocation6 + $0x650] sm:$0xff]
    %v7238 = vld [vmem:[#allocation6 + $0x658] sm:$0xff]
    %v7239 = vld [vmem:[#allocation6 + $0x660] sm:$0xff]
    %v7240 = vld [vmem:[#allocation6 + $0x668] sm:$0xff]
    %v7241 = vld [vmem:[#allocation6 + $0x670] sm:$0xff]
    %v7242 = vld [vmem:[#allocation6 + $0x678] sm:$0xff]
    %v7243 = vld [vmem:[#allocation6 + $0x680] sm:$0xff]
    %v7244 = vld [vmem:[#allocation6 + $0x688] sm:$0xff]
    %v7245 = vld [vmem:[#allocation6 + $0x690] sm:$0xff]
    %v7246 = vld [vmem:[#allocation6 + $0x698] sm:$0xff]
    %v7247 = vld [vmem:[#allocation6 + $0x6a0] sm:$0xff]
    %v7248 = vld [vmem:[#allocation6 + $0x6a8] sm:$0xff]
    %v7249 = vld [vmem:[#allocation6 + $0x6b0] sm:$0xff]
    %v7250 = vld [vmem:[#allocation6 + $0x6b8] sm:$0xff]
    %v7251 = vld [vmem:[#allocation6 + $0x6c0] sm:$0xff]
    %v7252 = vld [vmem:[#allocation6 + $0x6c8] sm:$0xff]
    %v7253 = vld [vmem:[#allocation6 + $0x6d0] sm:$0xff]
    %v7254 = vld [vmem:[#allocation6 + $0x6d8] sm:$0xff]
    %v7255 = vld [vmem:[#allocation6 + $0x6e0] sm:$0xff]
    %v7256 = vld [vmem:[#allocation6 + $0x6e8] sm:$0xff]
    %v7257 = vld [vmem:[#allocation6 + $0x6f0] sm:$0xff]
    %v7258 = vld [vmem:[#allocation6 + $0x6f8] sm:$0xff]
    %v7259 = vld [vmem:[#allocation6 + $0x700] sm:$0xff]
    %v7260 = vld [vmem:[#allocation6 + $0x708] sm:$0xff]
    %v7261 = vld [vmem:[#allocation6 + $0x710] sm:$0xff]
    %v7262 = vld [vmem:[#allocation6 + $0x718] sm:$0xff]
    %v7263 = vld [vmem:[#allocation6 + $0x720] sm:$0xff]
    %v7264 = vld [vmem:[#allocation6 + $0x728] sm:$0xff]
    %v7265 = vld [vmem:[#allocation6 + $0x730] sm:$0xff]
    %v7266 = vld [vmem:[#allocation6 + $0x738] sm:$0xff]
    %v7267 = vld [vmem:[#allocation6 + $0x740] sm:$0xff]
    %v7268 = vld [vmem:[#allocation6 + $0x748] sm:$0xff]
    %v7269 = vld [vmem:[#allocation6 + $0x750] sm:$0xff]
    %v7270 = vld [vmem:[#allocation6 + $0x758] sm:$0xff]
    %v7271 = vld [vmem:[#allocation6 + $0x760] sm:$0xff]
    %v7272 = vld [vmem:[#allocation6 + $0x768] sm:$0xff]
    %v7273 = vld [vmem:[#allocation6 + $0x770] sm:$0xff]
    %v7274 = vld [vmem:[#allocation6 + $0x778] sm:$0xff]
    %v7275 = vld [vmem:[#allocation6 + $0x780] sm:$0xff]
    %v7276 = vld [vmem:[#allocation6 + $0x788] sm:$0xff]
    %v7277 = vld [vmem:[#allocation6 + $0x790] sm:$0xff]
    %v7278 = vld [vmem:[#allocation6 + $0x798] sm:$0xff]
    %v7279 = vld [vmem:[#allocation6 + $0x7a0] sm:$0xff]
    %v7280 = vld [vmem:[#allocation6 + $0x7a8] sm:$0xff]
    %v7281 = vld [vmem:[#allocation6 + $0x7b0] sm:$0xff]
    %v7282 = vld [vmem:[#allocation6 + $0x7b8] sm:$0xff]
    %v7283 = vld [vmem:[#allocation6 + $0x7c0] sm:$0xff]
    %v7284 = vld [vmem:[#allocation6 + $0x7c8] sm:$0xff]
    %v7285 = vld [vmem:[#allocation6 + $0x7d0] sm:$0xff]
    %v7286 = vld [vmem:[#allocation6 + $0x7d8] sm:$0xff]
    %v7287 = vld [vmem:[#allocation6 + $0x7e0] sm:$0xff]
    %v7288 = vld [vmem:[#allocation6 + $0x7e8] sm:$0xff]
    %v7289 = vld [vmem:[#allocation6 + $0x7f0] sm:$0xff]
    %v7290 = vld [vmem:[#allocation6 + $0x7f8] sm:$0xff]
    %v7291 = vld [vmem:[#allocation6 + $0x800] sm:$0xff]
    %v7292 = vld [vmem:[#allocation6 + $0x808] sm:$0xff]
    %v7293 = vld [vmem:[#allocation6 + $0x810] sm:$0xff]
    %v7294 = vld [vmem:[#allocation6 + $0x818] sm:$0xff]
    %v7295 = vld [vmem:[#allocation6 + $0x820] sm:$0xff]
    %v7296 = vld [vmem:[#allocation6 + $0x828] sm:$0xff]
    %v7297 = vld [vmem:[#allocation6 + $0x830] sm:$0xff]
    %v7298 = vld [vmem:[#allocation6 + $0x838] sm:$0xff]
    %v7299 = vld [vmem:[#allocation6 + $0x840] sm:$0xff]
    %v7300 = vld [vmem:[#allocation6 + $0x848] sm:$0xff]
    %v7301 = vld [vmem:[#allocation6 + $0x850] sm:$0xff]
    %v7302 = vld [vmem:[#allocation6 + $0x858] sm:$0xff]
    %v7303 = vld [vmem:[#allocation6 + $0x860] sm:$0xff]
    %v7304 = vld [vmem:[#allocation6 + $0x868] sm:$0xff]
    %v7305 = vld [vmem:[#allocation6 + $0x870] sm:$0xff]
    %v7306 = vld [vmem:[#allocation6 + $0x878] sm:$0xff]
    %v7307 = vld [vmem:[#allocation6 + $0x880] sm:$0xff]
    %v7308 = vld [vmem:[#allocation6 + $0x888] sm:$0xff]
    %v7309 = vld [vmem:[#allocation6 + $0x890] sm:$0xff]
    %v7310 = vld [vmem:[#allocation6 + $0x898] sm:$0xff]
    %v7311 = vld [vmem:[#allocation6 + $0x8a0] sm:$0xff]
    %v7312 = vld [vmem:[#allocation6 + $0x8a8] sm:$0xff]
    %v7313 = vld [vmem:[#allocation6 + $0x8b0] sm:$0xff]
    %v7314 = vld [vmem:[#allocation6 + $0x8b8] sm:$0xff]
    %v7315 = vld [vmem:[#allocation6 + $0x8c0] sm:$0xff]
    %v7316 = vld [vmem:[#allocation6 + $0x8c8] sm:$0xff]
    %v7317 = vld [vmem:[#allocation6 + $0x8d0] sm:$0xff]
    %v7318 = vld [vmem:[#allocation6 + $0x8d8] sm:$0xff]
    %v7319 = vld [vmem:[#allocation6 + $0x8e0] sm:$0xff]
    %v7320 = vld [vmem:[#allocation6 + $0x8e8] sm:$0xff]
    %v7321 = vld [vmem:[#allocation6 + $0x8f0] sm:$0xff]
    %v7322 = vld [vmem:[#allocation6 + $0x8f8] sm:$0xff]
    %v7323 = vld [vmem:[#allocation6 + $0x900] sm:$0xff]
    %v7324 = vld [vmem:[#allocation6 + $0x908] sm:$0xff]
    %v7325 = vld [vmem:[#allocation6 + $0x910] sm:$0xff]
    %v7326 = vld [vmem:[#allocation6 + $0x918] sm:$0xff]
    %v7327 = vld [vmem:[#allocation6 + $0x920] sm:$0xff]
    %v7328 = vld [vmem:[#allocation6 + $0x928] sm:$0xff]
    %v7329 = vld [vmem:[#allocation6 + $0x930] sm:$0xff]
    %v7330 = vld [vmem:[#allocation6 + $0x938] sm:$0xff]
    %v7331 = vld [vmem:[#allocation6 + $0x940] sm:$0xff]
    %v7332 = vld [vmem:[#allocation6 + $0x948] sm:$0xff]
    %v7333 = vld [vmem:[#allocation6 + $0x950] sm:$0xff]
    %v7334 = vld [vmem:[#allocation6 + $0x958] sm:$0xff]
    %v7335 = vld [vmem:[#allocation6 + $0x960] sm:$0xff]
    %v7336 = vld [vmem:[#allocation6 + $0x968] sm:$0xff]
    %v7337 = vld [vmem:[#allocation6 + $0x970] sm:$0xff]
    %v7338 = vld [vmem:[#allocation6 + $0x978] sm:$0xff]
    %v7339 = vld [vmem:[#allocation6 + $0x980] sm:$0xff]
    %v7340 = vld [vmem:[#allocation6 + $0x988] sm:$0xff]
    %v7341 = vld [vmem:[#allocation6 + $0x990] sm:$0xff]
    %v7342 = vld [vmem:[#allocation6 + $0x998] sm:$0xff]
    %v7343 = vld [vmem:[#allocation6 + $0x9a0] sm:$0xff]
    %v7344 = vld [vmem:[#allocation6 + $0x9a8] sm:$0xff]
    %v7345 = vld [vmem:[#allocation6 + $0x9b0] sm:$0xff]
    %v7346 = vld [vmem:[#allocation6 + $0x9b8] sm:$0xff]
    %v7347 = vld [vmem:[#allocation6 + $0x9c0] sm:$0xff]
    %v7348 = vld [vmem:[#allocation6 + $0x9c8] sm:$0xff]
    %v7349 = vld [vmem:[#allocation6 + $0x9d0] sm:$0xff]
    %v7350 = vld [vmem:[#allocation6 + $0x9d8] sm:$0xff]
    %v7351 = vld [vmem:[#allocation6 + $0x9e0] sm:$0xff]
    %v7352 = vld [vmem:[#allocation6 + $0x9e8] sm:$0xff]
    %v7353 = vld [vmem:[#allocation6 + $0x9f0] sm:$0xff]
    %v7354 = vld [vmem:[#allocation6 + $0x9f8] sm:$0xff]
    %v7355 = vld [vmem:[#allocation6 + $0xa00] sm:$0xff]
    %v7356 = vld [vmem:[#allocation6 + $0xa08] sm:$0xff]
    %v7357 = vld [vmem:[#allocation6 + $0xa10] sm:$0xff]
    %v7358 = vld [vmem:[#allocation6 + $0xa18] sm:$0xff]
    %v7359 = vld [vmem:[#allocation6 + $0xa20] sm:$0xff]
    %v7360 = vld [vmem:[#allocation6 + $0xa28] sm:$0xff]
    %v7361 = vld [vmem:[#allocation6 + $0xa30] sm:$0xff]
    %v7362 = vld [vmem:[#allocation6 + $0xa38] sm:$0xff]
    %v7363 = vld [vmem:[#allocation6 + $0xa40] sm:$0xff]
    %v7364 = vld [vmem:[#allocation6 + $0xa48] sm:$0xff]
    %v7365 = vld [vmem:[#allocation6 + $0xa50] sm:$0xff]
    %v7366 = vld [vmem:[#allocation6 + $0xa58] sm:$0xff]
    %v7367 = vld [vmem:[#allocation6 + $0xa60] sm:$0xff]
    %v7368 = vld [vmem:[#allocation6 + $0xa68] sm:$0xff]
    %v7369 = vld [vmem:[#allocation6 + $0xa70] sm:$0xff]
    %v7370 = vld [vmem:[#allocation6 + $0xa78] sm:$0xff]
    %v7371 = vld [vmem:[#allocation6 + $0xa80] sm:$0xff]
    %v7372 = vld [vmem:[#allocation6 + $0xa88] sm:$0xff]
    %v7373 = vld [vmem:[#allocation6 + $0xa90] sm:$0xff]
    %v7374 = vld [vmem:[#allocation6 + $0xa98] sm:$0xff]
    %v7375 = vld [vmem:[#allocation6 + $0xaa0] sm:$0xff]
    %v7376 = vld [vmem:[#allocation6 + $0xaa8] sm:$0xff]
    %v7377 = vld [vmem:[#allocation6 + $0xab0] sm:$0xff]
    %v7378 = vld [vmem:[#allocation6 + $0xab8] sm:$0xff]
    %v7379 = vld [vmem:[#allocation6 + $0xac0] sm:$0xff]
    %v7380 = vld [vmem:[#allocation6 + $0xac8] sm:$0xff]
    %v7381 = vld [vmem:[#allocation6 + $0xad0] sm:$0xff]
    %v7382 = vld [vmem:[#allocation6 + $0xad8] sm:$0xff]
    %v7383 = vld [vmem:[#allocation6 + $0xae0] sm:$0xff]
    %v7384 = vld [vmem:[#allocation6 + $0xae8] sm:$0xff]
    %v7385 = vld [vmem:[#allocation6 + $0xaf0] sm:$0xff]
    %v7386 = vld [vmem:[#allocation6 + $0xaf8] sm:$0xff]
    %v7387 = vld [vmem:[#allocation6 + $0xb00] sm:$0xff]
    %v7388 = vld [vmem:[#allocation6 + $0xb08] sm:$0xff]
    %v7389 = vld [vmem:[#allocation6 + $0xb10] sm:$0xff]
    %v7390 = vld [vmem:[#allocation6 + $0xb18] sm:$0xff]
    %v7391 = vld [vmem:[#allocation6 + $0xb20] sm:$0xff]
    %v7392 = vld [vmem:[#allocation6 + $0xb28] sm:$0xff]
    %v7393 = vld [vmem:[#allocation6 + $0xb30] sm:$0xff]
    %v7394 = vld [vmem:[#allocation6 + $0xb38] sm:$0xff]
    %v7395 = vld [vmem:[#allocation6 + $0xb40] sm:$0xff]
    %v7396 = vld [vmem:[#allocation6 + $0xb48] sm:$0xff]
    %v7397 = vld [vmem:[#allocation6 + $0xb50] sm:$0xff]
    %v7398 = vld [vmem:[#allocation6 + $0xb58] sm:$0xff]
    %v7399 = vld [vmem:[#allocation6 + $0xb60] sm:$0xff]
    %v7400 = vld [vmem:[#allocation6 + $0xb68] sm:$0xff]
    %v7401 = vld [vmem:[#allocation6 + $0xb70] sm:$0xff]
    %v7402 = vld [vmem:[#allocation6 + $0xb78] sm:$0xff]
    %v7403 = vld [vmem:[#allocation6 + $0xb80] sm:$0xff]
    %v7404 = vld [vmem:[#allocation6 + $0xb88] sm:$0xff]
    %v7405 = vld [vmem:[#allocation6 + $0xb90] sm:$0xff]
    %v7406 = vld [vmem:[#allocation6 + $0xb98] sm:$0xff]
    %v7407 = vld [vmem:[#allocation6 + $0xba0] sm:$0xff]
    %v7408 = vld [vmem:[#allocation6 + $0xba8] sm:$0xff]
    %v7409 = vld [vmem:[#allocation6 + $0xbb0] sm:$0xff]
    %v7410 = vld [vmem:[#allocation6 + $0xbb8] sm:$0xff]
    %v7411 = vld [vmem:[#allocation6 + $0xbc0] sm:$0xff]
    %v7412 = vld [vmem:[#allocation6 + $0xbc8] sm:$0xff]
    %v7413 = vld [vmem:[#allocation6 + $0xbd0] sm:$0xff]
    %v7414 = vld [vmem:[#allocation6 + $0xbd8] sm:$0xff]
    %v7415 = vld [vmem:[#allocation6 + $0xbe0] sm:$0xff]
    %v7416 = vld [vmem:[#allocation6 + $0xbe8] sm:$0xff]
    %v7417 = vld [vmem:[#allocation6 + $0xbf0] sm:$0xff]
    %v7418 = vld [vmem:[#allocation6 + $0xbf8] sm:$0xff]
    %v7419 = vld [vmem:[#allocation6 + $0xc00] sm:$0xff]
    %v7420 = vld [vmem:[#allocation6 + $0xc08] sm:$0xff]
    %v7421 = vld [vmem:[#allocation6 + $0xc10] sm:$0xff]
    %v7422 = vld [vmem:[#allocation6 + $0xc18] sm:$0xff]
    %v7423 = vld [vmem:[#allocation6 + $0xc20] sm:$0xff]
    %v7424 = vld [vmem:[#allocation6 + $0xc28] sm:$0xff]
    %v7425 = vld [vmem:[#allocation6 + $0xc30] sm:$0xff]
    %v7426 = vld [vmem:[#allocation6 + $0xc38] sm:$0xff]
    %v7427 = vld [vmem:[#allocation6 + $0xc40] sm:$0xff]
    %v7428 = vld [vmem:[#allocation6 + $0xc48] sm:$0xff]
    %v7429 = vld [vmem:[#allocation6 + $0xc50] sm:$0xff]
    %v7430 = vld [vmem:[#allocation6 + $0xc58] sm:$0xff]
    %v7431 = vld [vmem:[#allocation6 + $0xc60] sm:$0xff]
    %v7432 = vld [vmem:[#allocation6 + $0xc68] sm:$0xff]
    %v7433 = vld [vmem:[#allocation6 + $0xc70] sm:$0xff]
    %v7434 = vld [vmem:[#allocation6 + $0xc78] sm:$0xff]
    %v7435 = vld [vmem:[#allocation6 + $0xc80] sm:$0xff]
    %v7436 = vld [vmem:[#allocation6 + $0xc88] sm:$0xff]
    %v7437 = vld [vmem:[#allocation6 + $0xc90] sm:$0xff]
    %v7438 = vld [vmem:[#allocation6 + $0xc98] sm:$0xff]
    %v7439 = vld [vmem:[#allocation6 + $0xca0] sm:$0xff]
    %v7440 = vld [vmem:[#allocation6 + $0xca8] sm:$0xff]
    %v7441 = vld [vmem:[#allocation6 + $0xcb0] sm:$0xff]
    %v7442 = vld [vmem:[#allocation6 + $0xcb8] sm:$0xff]
    %v7443 = vld [vmem:[#allocation6 + $0xcc0] sm:$0xff]
    %v7444 = vld [vmem:[#allocation6 + $0xcc8] sm:$0xff]
    %v7445 = vld [vmem:[#allocation6 + $0xcd0] sm:$0xff]
    %v7446 = vld [vmem:[#allocation6 + $0xcd8] sm:$0xff]
    %v7447 = vld [vmem:[#allocation6 + $0xce0] sm:$0xff]
    %v7448 = vld [vmem:[#allocation6 + $0xce8] sm:$0xff]
    %v7449 = vld [vmem:[#allocation6 + $0xcf0] sm:$0xff]
    %v7450 = vld [vmem:[#allocation6 + $0xcf8] sm:$0xff]
    %v7451 = vld [vmem:[#allocation6 + $0xd00] sm:$0xff]
    %v7452 = vld [vmem:[#allocation6 + $0xd08] sm:$0xff]
    %v7453 = vld [vmem:[#allocation6 + $0xd10] sm:$0xff]
    %v7454 = vld [vmem:[#allocation6 + $0xd18] sm:$0xff]
    %v7455 = vld [vmem:[#allocation6 + $0xd20] sm:$0xff]
    %v7456 = vld [vmem:[#allocation6 + $0xd28] sm:$0xff]
    %v7457 = vld [vmem:[#allocation6 + $0xd30] sm:$0xff]
    %v7458 = vld [vmem:[#allocation6 + $0xd38] sm:$0xff]
    %v7459 = vld [vmem:[#allocation6 + $0xd40] sm:$0xff]
    %v7460 = vld [vmem:[#allocation6 + $0xd48] sm:$0xff]
    %v7461 = vld [vmem:[#allocation6 + $0xd50] sm:$0xff]
    %v7462 = vld [vmem:[#allocation6 + $0xd58] sm:$0xff]
    %v7463 = vld [vmem:[#allocation6 + $0xd60] sm:$0xff]
    %v7464 = vld [vmem:[#allocation6 + $0xd68] sm:$0xff]
    %v7465 = vld [vmem:[#allocation6 + $0xd70] sm:$0xff]
    %v7466 = vld [vmem:[#allocation6 + $0xd78] sm:$0xff]
    %v7467 = vld [vmem:[#allocation6 + $0xd80] sm:$0xff]
    %v7468 = vld [vmem:[#allocation6 + $0xd88] sm:$0xff]
    %v7469 = vld [vmem:[#allocation6 + $0xd90] sm:$0xff]
    %v7470 = vld [vmem:[#allocation6 + $0xd98] sm:$0xff]
    %v7471 = vld [vmem:[#allocation6 + $0xda0] sm:$0xff]
    %v7472 = vld [vmem:[#allocation6 + $0xda8] sm:$0xff]
    %v7473 = vld [vmem:[#allocation6 + $0xdb0] sm:$0xff]
    %v7474 = vld [vmem:[#allocation6 + $0xdb8] sm:$0xff]
    %v7475 = vld [vmem:[#allocation6 + $0xdc0] sm:$0xff]
    %v7476 = vld [vmem:[#allocation6 + $0xdc8] sm:$0xff]
    %v7477 = vld [vmem:[#allocation6 + $0xdd0] sm:$0xff]
    %v7478 = vld [vmem:[#allocation6 + $0xdd8] sm:$0xff]
    %v7479 = vld [vmem:[#allocation6 + $0xde0] sm:$0xff]
    %v7480 = vld [vmem:[#allocation6 + $0xde8] sm:$0xff]
    %v7481 = vld [vmem:[#allocation6 + $0xdf0] sm:$0xff]
    %v7482 = vld [vmem:[#allocation6 + $0xdf8] sm:$0xff]
    %v7483 = vld [vmem:[#allocation6 + $0xe00] sm:$0xff]
    %v7484 = vld [vmem:[#allocation6 + $0xe08] sm:$0xff]
    %v7485 = vld [vmem:[#allocation6 + $0xe10] sm:$0xff]
    %v7486 = vld [vmem:[#allocation6 + $0xe18] sm:$0xff]
    %v7487 = vld [vmem:[#allocation6 + $0xe20] sm:$0xff]
    %v7488 = vld [vmem:[#allocation6 + $0xe28] sm:$0xff]
    %v7489 = vld [vmem:[#allocation6 + $0xe30] sm:$0xff]
    %v7490 = vld [vmem:[#allocation6 + $0xe38] sm:$0xff]
    %v7491 = vld [vmem:[#allocation6 + $0xe40] sm:$0xff]
    %v7492 = vld [vmem:[#allocation6 + $0xe48] sm:$0xff]
    %v7493 = vld [vmem:[#allocation6 + $0xe50] sm:$0xff]
    %v7494 = vld [vmem:[#allocation6 + $0xe58] sm:$0xff]
    %v7495 = vld [vmem:[#allocation6 + $0xe60] sm:$0xff]
    %v7496 = vld [vmem:[#allocation6 + $0xe68] sm:$0xff]
    %v7497 = vld [vmem:[#allocation6 + $0xe70] sm:$0xff]
    %v7498 = vld [vmem:[#allocation6 + $0xe78] sm:$0xff]
    %v7499 = vld [vmem:[#allocation6 + $0xe80] sm:$0xff]
    %v7500 = vld [vmem:[#allocation6 + $0xe88] sm:$0xff]
    %v7501 = vld [vmem:[#allocation6 + $0xe90] sm:$0xff]
    %v7502 = vld [vmem:[#allocation6 + $0xe98] sm:$0xff]
    %v7503 = vld [vmem:[#allocation6 + $0xea0] sm:$0xff]
    %v7504 = vld [vmem:[#allocation6 + $0xea8] sm:$0xff]
    %v7505 = vld [vmem:[#allocation6 + $0xeb0] sm:$0xff]
    %v7506 = vld [vmem:[#allocation6 + $0xeb8] sm:$0xff]
    %v7507 = vld [vmem:[#allocation6 + $0xec0] sm:$0xff]
    %v7508 = vld [vmem:[#allocation6 + $0xec8] sm:$0xff]
    %v7509 = vld [vmem:[#allocation6 + $0xed0] sm:$0xff]
    %v7510 = vld [vmem:[#allocation6 + $0xed8] sm:$0xff]
    %v7511 = vld [vmem:[#allocation6 + $0xee0] sm:$0xff]
    %v7512 = vld [vmem:[#allocation6 + $0xee8] sm:$0xff]
    %v7513 = vld [vmem:[#allocation6 + $0xef0] sm:$0xff]
    %v7514 = vld [vmem:[#allocation6 + $0xef8] sm:$0xff]
    %v7515 = vld [vmem:[#allocation6 + $0xf00] sm:$0xff]
    %v7516 = vld [vmem:[#allocation6 + $0xf08] sm:$0xff]
    %v7517 = vld [vmem:[#allocation6 + $0xf10] sm:$0xff]
    %v7518 = vld [vmem:[#allocation6 + $0xf18] sm:$0xff]
    %v7519 = vld [vmem:[#allocation6 + $0xf20] sm:$0xff]
    %v7520 = vld [vmem:[#allocation6 + $0xf28] sm:$0xff]
    %v7521 = vld [vmem:[#allocation6 + $0xf30] sm:$0xff]
    %v7522 = vld [vmem:[#allocation6 + $0xf38] sm:$0xff]
    %v7523 = vld [vmem:[#allocation6 + $0xf40] sm:$0xff]
    %v7524 = vld [vmem:[#allocation6 + $0xf48] sm:$0xff]
    %v7525 = vld [vmem:[#allocation6 + $0xf50] sm:$0xff]
    %v7526 = vld [vmem:[#allocation6 + $0xf58] sm:$0xff]
    %v7527 = vld [vmem:[#allocation6 + $0xf60] sm:$0xff]
    %v7528 = vld [vmem:[#allocation6 + $0xf68] sm:$0xff]
    %v7529 = vld [vmem:[#allocation6 + $0xf70] sm:$0xff]
    %v7530 = vld [vmem:[#allocation6 + $0xf78] sm:$0xff]
    %v7531 = vld [vmem:[#allocation6 + $0xf80] sm:$0xff]
    %v7532 = vld [vmem:[#allocation6 + $0xf88] sm:$0xff]
    %v7533 = vld [vmem:[#allocation6 + $0xf90] sm:$0xff]
    %v7534 = vld [vmem:[#allocation6 + $0xf98] sm:$0xff]
    %v7535 = vld [vmem:[#allocation6 + $0xfa0] sm:$0xff]
    %v7536 = vld [vmem:[#allocation6 + $0xfa8] sm:$0xff]
    %v7537 = vld [vmem:[#allocation6 + $0xfb0] sm:$0xff]
    %v7538 = vld [vmem:[#allocation6 + $0xfb8] sm:$0xff]
    %v7539 = vld [vmem:[#allocation6 + $0xfc0] sm:$0xff]
    %v7540 = vld [vmem:[#allocation6 + $0xfc8] sm:$0xff]
    %v7541 = vld [vmem:[#allocation6 + $0xfd0] sm:$0xff]
    %v7542 = vld [vmem:[#allocation6 + $0xfd8] sm:$0xff]
    %v7543 = vld [vmem:[#allocation6 + $0xfe0] sm:$0xff]
    %v7544 = vld [vmem:[#allocation6 + $0xfe8] sm:$0xff]
    %v7545 = vld [vmem:[#allocation6 + $0xff0] sm:$0xff]
    %v7546 = vld [vmem:[#allocation6 + $0xff8] sm:$0xff]
    %v7547 = vld [vmem:[#allocation6 + $0x1000] sm:$0xff]
    %v7548 = vld [vmem:[#allocation6 + $0x1008] sm:$0xff]
    %v7549 = vld [vmem:[#allocation6 + $0x1010] sm:$0xff]
    %v7550 = vld [vmem:[#allocation6 + $0x1018] sm:$0xff]
    %v7551 = vld [vmem:[#allocation6 + $0x1020] sm:$0xff]
    %v7552 = vld [vmem:[#allocation6 + $0x1028] sm:$0xff]
    %v7553 = vld [vmem:[#allocation6 + $0x1030] sm:$0xff]
    %v7554 = vld [vmem:[#allocation6 + $0x1038] sm:$0xff]
    %v7555 = vld [vmem:[#allocation6 + $0x1040] sm:$0xff]
    %v7556 = vld [vmem:[#allocation6 + $0x1048] sm:$0xff]
    %v7557 = vld [vmem:[#allocation6 + $0x1050] sm:$0xff]
    %v7558 = vld [vmem:[#allocation6 + $0x1058] sm:$0xff]
    %v7559 = vld [vmem:[#allocation6 + $0x1060] sm:$0xff]
    %v7560 = vld [vmem:[#allocation6 + $0x1068] sm:$0xff]
    %v7561 = vld [vmem:[#allocation6 + $0x1070] sm:$0xff]
    %v7562 = vld [vmem:[#allocation6 + $0x1078] sm:$0xff]
    %v7563 = vld [vmem:[#allocation6 + $0x1080] sm:$0xff]
    %v7564 = vld [vmem:[#allocation6 + $0x1088] sm:$0xff]
    %v7565 = vld [vmem:[#allocation6 + $0x1090] sm:$0xff]
    %v7566 = vld [vmem:[#allocation6 + $0x1098] sm:$0xff]
    %v7567 = vld [vmem:[#allocation6 + $0x10a0] sm:$0xff]
    %v7568 = vld [vmem:[#allocation6 + $0x10a8] sm:$0xff]
    %v7569 = vld [vmem:[#allocation6 + $0x10b0] sm:$0xff]
    %v7570 = vld [vmem:[#allocation6 + $0x10b8] sm:$0xff]
    %v7571 = vld [vmem:[#allocation6 + $0x10c0] sm:$0xff]
    %v7572 = vld [vmem:[#allocation6 + $0x10c8] sm:$0xff]
    %v7573 = vld [vmem:[#allocation6 + $0x10d0] sm:$0xff]
    %v7574 = vld [vmem:[#allocation6 + $0x10d8] sm:$0xff]
    %v7575 = vld [vmem:[#allocation6 + $0x10e0] sm:$0xff]
    %v7576 = vld [vmem:[#allocation6 + $0x10e8] sm:$0xff]
    %v7577 = vld [vmem:[#allocation6 + $0x10f0] sm:$0xff]
    %v7578 = vld [vmem:[#allocation6 + $0x10f8] sm:$0xff]
    %v7579 = vld [vmem:[#allocation6 + $0x1100] sm:$0xff]
    %v7580 = vld [vmem:[#allocation6 + $0x1108] sm:$0xff]
    %v7581 = vld [vmem:[#allocation6 + $0x1110] sm:$0xff]
    %v7582 = vld [vmem:[#allocation6 + $0x1118] sm:$0xff]
    %v7583 = vld [vmem:[#allocation6 + $0x1120] sm:$0xff]
    %v7584 = vld [vmem:[#allocation6 + $0x1128] sm:$0xff]
    %v7585 = vld [vmem:[#allocation6 + $0x1130] sm:$0xff]
    %v7586 = vld [vmem:[#allocation6 + $0x1138] sm:$0xff]
    %v7587 = vld [vmem:[#allocation6 + $0x1140] sm:$0xff]
    %v7588 = vld [vmem:[#allocation6 + $0x1148] sm:$0xff]
    %v7589 = vld [vmem:[#allocation6 + $0x1150] sm:$0xff]
    %v7590 = vld [vmem:[#allocation6 + $0x1158] sm:$0xff]
    %v7591 = vld [vmem:[#allocation6 + $0x1160] sm:$0xff]
    %v7592 = vld [vmem:[#allocation6 + $0x1168] sm:$0xff]
    %v7593 = vld [vmem:[#allocation6 + $0x1170] sm:$0xff]
    %v7594 = vld [vmem:[#allocation6 + $0x1178] sm:$0xff]
    %v7595 = vld [vmem:[#allocation6 + $0x1180] sm:$0xff]
    %v7596 = vld [vmem:[#allocation6 + $0x1188] sm:$0xff]
    %v7597 = vld [vmem:[#allocation6 + $0x1190] sm:$0xff]
    %v7598 = vld [vmem:[#allocation6 + $0x1198] sm:$0xff]
    %v7599 = vld [vmem:[#allocation6 + $0x11a0] sm:$0xff]
    %v7600 = vld [vmem:[#allocation6 + $0x11a8] sm:$0xff]
    %v7601 = vld [vmem:[#allocation6 + $0x11b0] sm:$0xff]
    %v7602 = vld [vmem:[#allocation6 + $0x11b8] sm:$0xff]
    %v7603 = vld [vmem:[#allocation6 + $0x11c0] sm:$0xff]
    %v7604 = vld [vmem:[#allocation6 + $0x11c8] sm:$0xff]
    %v7605 = vld [vmem:[#allocation6 + $0x11d0] sm:$0xff]
    %v7606 = vld [vmem:[#allocation6 + $0x11d8] sm:$0xff]
    %v7607 = vld [vmem:[#allocation6 + $0x11e0] sm:$0xff]
    %v7608 = vld [vmem:[#allocation6 + $0x11e8] sm:$0xff]
    %v7609 = vld [vmem:[#allocation6 + $0x11f0] sm:$0xff]
    %v7610 = vld [vmem:[#allocation6 + $0x11f8] sm:$0xff]
    %v7611 = vld [vmem:[#allocation6 + $0x1200] sm:$0xff]
    %v7612 = vld [vmem:[#allocation6 + $0x1208] sm:$0xff]
    %v7613 = vld [vmem:[#allocation6 + $0x1210] sm:$0xff]
    %v7614 = vld [vmem:[#allocation6 + $0x1218] sm:$0xff]
    %v7615 = vld [vmem:[#allocation6 + $0x1220] sm:$0xff]
    %v7616 = vld [vmem:[#allocation6 + $0x1228] sm:$0xff]
    %v7617 = vld [vmem:[#allocation6 + $0x1230] sm:$0xff]
    %v7618 = vld [vmem:[#allocation6 + $0x1238] sm:$0xff]
    %v7619 = vld [vmem:[#allocation6 + $0x1240] sm:$0xff]
    %v7620 = vld [vmem:[#allocation6 + $0x1248] sm:$0xff]
    %v7621 = vld [vmem:[#allocation6 + $0x1250] sm:$0xff]
    %v7622 = vld [vmem:[#allocation6 + $0x1258] sm:$0xff]
    %v7623 = vld [vmem:[#allocation6 + $0x1260] sm:$0xff]
    %v7624 = vld [vmem:[#allocation6 + $0x1268] sm:$0xff]
    %v7625 = vld [vmem:[#allocation6 + $0x1270] sm:$0xff]
    %v7626 = vld [vmem:[#allocation6 + $0x1278] sm:$0xff]
    %v7627 = vld [vmem:[#allocation6 + $0x1280] sm:$0xff]
    %v7628 = vld [vmem:[#allocation6 + $0x1288] sm:$0xff]
    %v7629 = vld [vmem:[#allocation6 + $0x1290] sm:$0xff]
    %v7630 = vld [vmem:[#allocation6 + $0x1298] sm:$0xff]
    %v7631 = vld [vmem:[#allocation6 + $0x12a0] sm:$0xff]
    %v7632 = vld [vmem:[#allocation6 + $0x12a8] sm:$0xff]
    %v7633 = vld [vmem:[#allocation6 + $0x12b0] sm:$0xff]
    %v7634 = vld [vmem:[#allocation6 + $0x12b8] sm:$0xff]
    %v7635 = vld [vmem:[#allocation6 + $0x12c0] sm:$0xff]
    %v7636 = vld [vmem:[#allocation6 + $0x12c8] sm:$0xff]
    %v7637 = vld [vmem:[#allocation6 + $0x12d0] sm:$0xff]
    %v7638 = vld [vmem:[#allocation6 + $0x12d8] sm:$0xff]
    %v7639 = vld [vmem:[#allocation6 + $0x12e0] sm:$0xff]
    %v7640 = vld [vmem:[#allocation6 + $0x12e8] sm:$0xff]
    %v7641 = vld [vmem:[#allocation6 + $0x12f0] sm:$0xff]
    %v7642 = vld [vmem:[#allocation6 + $0x12f8] sm:$0xff]
    %v7643 = vld [vmem:[#allocation6 + $0x1300] sm:$0xff]
    %v7644 = vld [vmem:[#allocation6 + $0x1308] sm:$0xff]
    %v7645 = vld [vmem:[#allocation6 + $0x1310] sm:$0xff]
    %v7646 = vld [vmem:[#allocation6 + $0x1318] sm:$0xff]
    %v7647 = vld [vmem:[#allocation6 + $0x1320] sm:$0xff]
    %v7648 = vld [vmem:[#allocation6 + $0x1328] sm:$0xff]
    %v7649 = vld [vmem:[#allocation6 + $0x1330] sm:$0xff]
    %v7650 = vld [vmem:[#allocation6 + $0x1338] sm:$0xff]
    %v7651 = vld [vmem:[#allocation6 + $0x1340] sm:$0xff]
    %v7652 = vld [vmem:[#allocation6 + $0x1348] sm:$0xff]
    %v7653 = vld [vmem:[#allocation6 + $0x1350] sm:$0xff]
    %v7654 = vld [vmem:[#allocation6 + $0x1358] sm:$0xff]
    %v7655 = vld [vmem:[#allocation6 + $0x1360] sm:$0xff]
    %v7656 = vld [vmem:[#allocation6 + $0x1368] sm:$0xff]
    %v7657 = vld [vmem:[#allocation6 + $0x1370] sm:$0xff]
    %v7658 = vld [vmem:[#allocation6 + $0x1378] sm:$0xff]
    %v7659 = vld [vmem:[#allocation6 + $0x1380] sm:$0xff]
    %v7660 = vld [vmem:[#allocation6 + $0x1388] sm:$0xff]
    %v7661 = vld [vmem:[#allocation6 + $0x1390] sm:$0xff]
    %v7662 = vld [vmem:[#allocation6 + $0x1398] sm:$0xff]
    %v7663 = vld [vmem:[#allocation6 + $0x13a0] sm:$0xff]
    %v7664 = vld [vmem:[#allocation6 + $0x13a8] sm:$0xff]
    %v7665 = vld [vmem:[#allocation6 + $0x13b0] sm:$0xff]
    %v7666 = vld [vmem:[#allocation6 + $0x13b8] sm:$0xff]
    %v7667 = vld [vmem:[#allocation6 + $0x13c0] sm:$0xff]
    %v7668 = vld [vmem:[#allocation6 + $0x13c8] sm:$0xff]
    %v7669 = vld [vmem:[#allocation6 + $0x13d0] sm:$0xff]
    %v7670 = vld [vmem:[#allocation6 + $0x13d8] sm:$0xff]
    %v7671 = vld [vmem:[#allocation6 + $0x13e0] sm:$0xff]
    %v7672 = vld [vmem:[#allocation6 + $0x13e8] sm:$0xff]
    %v7673 = vld [vmem:[#allocation6 + $0x13f0] sm:$0xff]
    %v7674 = vld [vmem:[#allocation6 + $0x13f8] sm:$0xff]
    %v7675 = vld [vmem:[#allocation6 + $0x1400] sm:$0xff]
    %v7676 = vld [vmem:[#allocation6 + $0x1408] sm:$0xff]
    %v7677 = vld [vmem:[#allocation6 + $0x1410] sm:$0xff]
    %v7678 = vld [vmem:[#allocation6 + $0x1418] sm:$0xff]
    %v7679 = vld [vmem:[#allocation6 + $0x1420] sm:$0xff]
    %v7680 = vld [vmem:[#allocation6 + $0x1428] sm:$0xff]
    %v7681 = vld [vmem:[#allocation6 + $0x1430] sm:$0xff]
    %v7682 = vld [vmem:[#allocation6 + $0x1438] sm:$0xff]
    %v7683 = vld [vmem:[#allocation6 + $0x1440] sm:$0xff]
    %v7684 = vld [vmem:[#allocation6 + $0x1448] sm:$0xff]
    %v7685 = vld [vmem:[#allocation6 + $0x1450] sm:$0xff]
    %v7686 = vld [vmem:[#allocation6 + $0x1458] sm:$0xff]
    %v7687 = vld [vmem:[#allocation6 + $0x1460] sm:$0xff]
    %v7688 = vld [vmem:[#allocation6 + $0x1468] sm:$0xff]
    %v7689 = vld [vmem:[#allocation6 + $0x1470] sm:$0xff]
    %v7690 = vld [vmem:[#allocation6 + $0x1478] sm:$0xff]
    %v7691 = vld [vmem:[#allocation6 + $0x1480] sm:$0xff]
    %v7692 = vld [vmem:[#allocation6 + $0x1488] sm:$0xff]
    %v7693 = vld [vmem:[#allocation6 + $0x1490] sm:$0xff]
    %v7694 = vld [vmem:[#allocation6 + $0x1498] sm:$0xff]
    %v7695 = vld [vmem:[#allocation6 + $0x14a0] sm:$0xff]
    %v7696 = vld [vmem:[#allocation6 + $0x14a8] sm:$0xff]
    %v7697 = vld [vmem:[#allocation6 + $0x14b0] sm:$0xff]
    %v7698 = vld [vmem:[#allocation6 + $0x14b8] sm:$0xff]
    %v7699 = vld [vmem:[#allocation6 + $0x14c0] sm:$0xff]
    %v7700 = vld [vmem:[#allocation6 + $0x14c8] sm:$0xff]
    %v7701 = vld [vmem:[#allocation6 + $0x14d0] sm:$0xff]
    %v7702 = vld [vmem:[#allocation6 + $0x14d8] sm:$0xff]
    %v7703 = vld [vmem:[#allocation6 + $0x14e0] sm:$0xff]
    %v7704 = vld [vmem:[#allocation6 + $0x14e8] sm:$0xff]
    %v7705 = vld [vmem:[#allocation6 + $0x14f0] sm:$0xff]
    %v7706 = vld [vmem:[#allocation6 + $0x14f8] sm:$0xff]
    %v7707 = vld [vmem:[#allocation6 + $0x1500] sm:$0xff]
    %v7708 = vld [vmem:[#allocation6 + $0x1508] sm:$0xff]
    %v7709 = vld [vmem:[#allocation6 + $0x1510] sm:$0xff]
    %v7710 = vld [vmem:[#allocation6 + $0x1518] sm:$0xff]
    %v7711 = vld [vmem:[#allocation6 + $0x1520] sm:$0xff]
    %v7712 = vld [vmem:[#allocation6 + $0x1528] sm:$0xff]
    %v7713 = vld [vmem:[#allocation6 + $0x1530] sm:$0xff]
    %v7714 = vld [vmem:[#allocation6 + $0x1538] sm:$0xff]
    %v7715 = vld [vmem:[#allocation6 + $0x1540] sm:$0xff]
    %v7716 = vld [vmem:[#allocation6 + $0x1548] sm:$0xff]
    %v7717 = vld [vmem:[#allocation6 + $0x1550] sm:$0xff]
    %v7718 = vld [vmem:[#allocation6 + $0x1558] sm:$0xff]
    %v7719 = vld [vmem:[#allocation6 + $0x1560] sm:$0xff]
    %v7720 = vld [vmem:[#allocation6 + $0x1568] sm:$0xff]
    %v7721 = vld [vmem:[#allocation6 + $0x1570] sm:$0xff]
    %v7722 = vld [vmem:[#allocation6 + $0x1578] sm:$0xff]
    %v7723 = vld [vmem:[#allocation6 + $0x1580] sm:$0xff]
    %v7724 = vld [vmem:[#allocation6 + $0x1588] sm:$0xff]
    %v7725 = vld [vmem:[#allocation6 + $0x1590] sm:$0xff]
    %v7726 = vld [vmem:[#allocation6 + $0x1598] sm:$0xff]
    %v7727 = vld [vmem:[#allocation6 + $0x15a0] sm:$0xff]
    %v7728 = vld [vmem:[#allocation6 + $0x15a8] sm:$0xff]
    %v7729 = vld [vmem:[#allocation6 + $0x15b0] sm:$0xff]
    %v7730 = vld [vmem:[#allocation6 + $0x15b8] sm:$0xff]
    %v7731 = vld [vmem:[#allocation6 + $0x15c0] sm:$0xff]
    %v7732 = vld [vmem:[#allocation6 + $0x15c8] sm:$0xff]
    %v7733 = vld [vmem:[#allocation6 + $0x15d0] sm:$0xff]
    %v7734 = vld [vmem:[#allocation6 + $0x15d8] sm:$0xff]
    %v7735 = vld [vmem:[#allocation6 + $0x15e0] sm:$0xff]
    %v7736 = vld [vmem:[#allocation6 + $0x15e8] sm:$0xff]
    %v7737 = vld [vmem:[#allocation6 + $0x15f0] sm:$0xff]
    %v7738 = vld [vmem:[#allocation6 + $0x15f8] sm:$0xff]
    %v7739 = vld [vmem:[#allocation6 + $0x1600] sm:$0xff]
    %v7740 = vld [vmem:[#allocation6 + $0x1608] sm:$0xff]
    %v7741 = vld [vmem:[#allocation6 + $0x1610] sm:$0xff]
    %v7742 = vld [vmem:[#allocation6 + $0x1618] sm:$0xff]
    %v7743 = vld [vmem:[#allocation6 + $0x1620] sm:$0xff]
    %v7744 = vld [vmem:[#allocation6 + $0x1628] sm:$0xff]
    %v7745 = vld [vmem:[#allocation6 + $0x1630] sm:$0xff]
    %v7746 = vld [vmem:[#allocation6 + $0x1638] sm:$0xff]
    %v7747 = vld [vmem:[#allocation6 + $0x1640] sm:$0xff]
    %v7748 = vld [vmem:[#allocation6 + $0x1648] sm:$0xff]
    %v7749 = vld [vmem:[#allocation6 + $0x1650] sm:$0xff]
    %v7750 = vld [vmem:[#allocation6 + $0x1658] sm:$0xff]
    %v7751 = vld [vmem:[#allocation6 + $0x1660] sm:$0xff]
    %v7752 = vld [vmem:[#allocation6 + $0x1668] sm:$0xff]
    %v7753 = vld [vmem:[#allocation6 + $0x1670] sm:$0xff]
    %v7754 = vld [vmem:[#allocation6 + $0x1678] sm:$0xff]
    %v7755 = vld [vmem:[#allocation6 + $0x1680] sm:$0xff]
    %v7756 = vld [vmem:[#allocation6 + $0x1688] sm:$0xff]
    %v7757 = vld [vmem:[#allocation6 + $0x1690] sm:$0xff]
    %v7758 = vld [vmem:[#allocation6 + $0x1698] sm:$0xff]
    %v7759 = vld [vmem:[#allocation6 + $0x16a0] sm:$0xff]
    %v7760 = vld [vmem:[#allocation6 + $0x16a8] sm:$0xff]
    %v7761 = vld [vmem:[#allocation6 + $0x16b0] sm:$0xff]
    %v7762 = vld [vmem:[#allocation6 + $0x16b8] sm:$0xff]
    %v7763 = vld [vmem:[#allocation6 + $0x16c0] sm:$0xff]
    %v7764 = vld [vmem:[#allocation6 + $0x16c8] sm:$0xff]
    %v7765 = vld [vmem:[#allocation6 + $0x16d0] sm:$0xff]
    %v7766 = vld [vmem:[#allocation6 + $0x16d8] sm:$0xff]
    %v7767 = vld [vmem:[#allocation6 + $0x16e0] sm:$0xff]
    %v7768 = vld [vmem:[#allocation6 + $0x16e8] sm:$0xff]
    %v7769 = vld [vmem:[#allocation6 + $0x16f0] sm:$0xff]
    %v7770 = vld [vmem:[#allocation6 + $0x16f8] sm:$0xff]
    %v7771 = vld [vmem:[#allocation6 + $0x1700] sm:$0xff]
    %v7772 = vld [vmem:[#allocation6 + $0x1708] sm:$0xff]
    %v7773 = vld [vmem:[#allocation6 + $0x1710] sm:$0xff]
    %v7774 = vld [vmem:[#allocation6 + $0x1718] sm:$0xff]
    %v7775 = vld [vmem:[#allocation6 + $0x1720] sm:$0xff]
    %v7776 = vld [vmem:[#allocation6 + $0x1728] sm:$0xff]
    %v7777 = vld [vmem:[#allocation6 + $0x1730] sm:$0xff]
    %v7778 = vld [vmem:[#allocation6 + $0x1738] sm:$0xff]
    %v7779 = vld [vmem:[#allocation6 + $0x1740] sm:$0xff]
    %v7780 = vld [vmem:[#allocation6 + $0x1748] sm:$0xff]
    %v7781 = vld [vmem:[#allocation6 + $0x1750] sm:$0xff]
    %v7782 = vld [vmem:[#allocation6 + $0x1758] sm:$0xff]
    %v7783 = vld [vmem:[#allocation6 + $0x1760] sm:$0xff]
    %v7784 = vld [vmem:[#allocation6 + $0x1768] sm:$0xff]
    %v7785 = vld [vmem:[#allocation6 + $0x1770] sm:$0xff]
    %v7786 = vld [vmem:[#allocation6 + $0x1778] sm:$0xff]
    %v7787 = vld [vmem:[#allocation6 + $0x1780] sm:$0xff]
    %v7788 = vld [vmem:[#allocation6 + $0x1788] sm:$0xff]
    %v7789 = vld [vmem:[#allocation6 + $0x1790] sm:$0xff]
    %v7790 = vld [vmem:[#allocation6 + $0x1798] sm:$0xff]
    %v7791 = vld [vmem:[#allocation6 + $0x17a0] sm:$0xff]
    %v7792 = vld [vmem:[#allocation6 + $0x17a8] sm:$0xff]
    %v7793 = vld [vmem:[#allocation6 + $0x17b0] sm:$0xff]
    %v7794 = vld [vmem:[#allocation6 + $0x17b8] sm:$0xff]
    %v7795 = vld [vmem:[#allocation6 + $0x17c0] sm:$0xff]
    %v7796 = vld [vmem:[#allocation6 + $0x17c8] sm:$0xff]
    %v7797 = vld [vmem:[#allocation6 + $0x17d0] sm:$0xff]
    %v7798 = vld [vmem:[#allocation6 + $0x17d8] sm:$0xff]
    %v7799 = vld [vmem:[#allocation6 + $0x17e0] sm:$0xff]
    %v7800 = vld [vmem:[#allocation6 + $0x17e8] sm:$0xff]
    %v7801 = vld [vmem:[#allocation6 + $0x17f0] sm:$0xff]
    %v7802 = vld [vmem:[#allocation6 + $0x17f8] sm:$0xff]
    %v7803 = vld [vmem:[#allocation6 + $0x1800] sm:$0xff]
    %v7804 = vld [vmem:[#allocation6 + $0x1808] sm:$0xff]
    %v7805 = vld [vmem:[#allocation6 + $0x1810] sm:$0xff]
    %v7806 = vld [vmem:[#allocation6 + $0x1818] sm:$0xff]
    %v7807 = vld [vmem:[#allocation6 + $0x1820] sm:$0xff]
    %v7808 = vld [vmem:[#allocation6 + $0x1828] sm:$0xff]
    %v7809 = vld [vmem:[#allocation6 + $0x1830] sm:$0xff]
    %v7810 = vld [vmem:[#allocation6 + $0x1838] sm:$0xff]
    %v7811 = vld [vmem:[#allocation6 + $0x1840] sm:$0xff]
    %v7812 = vld [vmem:[#allocation6 + $0x1848] sm:$0xff]
    %v7813 = vld [vmem:[#allocation6 + $0x1850] sm:$0xff]
    %v7814 = vld [vmem:[#allocation6 + $0x1858] sm:$0xff]
    %v7815 = vld [vmem:[#allocation6 + $0x1860] sm:$0xff]
    %v7816 = vld [vmem:[#allocation6 + $0x1868] sm:$0xff]
    %v7817 = vld [vmem:[#allocation6 + $0x1870] sm:$0xff]
    %v7818 = vld [vmem:[#allocation6 + $0x1878] sm:$0xff]
    %v7819 = vld [vmem:[#allocation6 + $0x1880] sm:$0xff]
    %v7820 = vld [vmem:[#allocation6 + $0x1888] sm:$0xff]
    %v7821 = vld [vmem:[#allocation6 + $0x1890] sm:$0xff]
    %v7822 = vld [vmem:[#allocation6 + $0x1898] sm:$0xff]
    %v7823 = vld [vmem:[#allocation6 + $0x18a0] sm:$0xff]
    %v7824 = vld [vmem:[#allocation6 + $0x18a8] sm:$0xff]
    %v7825 = vld [vmem:[#allocation6 + $0x18b0] sm:$0xff]
    %v7826 = vld [vmem:[#allocation6 + $0x18b8] sm:$0xff]
    %v7827 = vld [vmem:[#allocation6 + $0x18c0] sm:$0xff]
    %v7828 = vld [vmem:[#allocation6 + $0x18c8] sm:$0xff]
    %v7829 = vld [vmem:[#allocation6 + $0x18d0] sm:$0xff]
    %v7830 = vld [vmem:[#allocation6 + $0x18d8] sm:$0xff]
    %v7831 = vld [vmem:[#allocation6 + $0x18e0] sm:$0xff]
    %v7832 = vld [vmem:[#allocation6 + $0x18e8] sm:$0xff]
    %v7833 = vld [vmem:[#allocation6 + $0x18f0] sm:$0xff]
    %v7834 = vld [vmem:[#allocation6 + $0x18f8] sm:$0xff]
    %v7835 = vld [vmem:[#allocation6 + $0x1900] sm:$0xff]
    %v7836 = vld [vmem:[#allocation6 + $0x1908] sm:$0xff]
    %v7837 = vld [vmem:[#allocation6 + $0x1910] sm:$0xff]
    %v7838 = vld [vmem:[#allocation6 + $0x1918] sm:$0xff]
    %v7839 = vld [vmem:[#allocation6 + $0x1920] sm:$0xff]
    %v7840 = vld [vmem:[#allocation6 + $0x1928] sm:$0xff]
    %v7841 = vld [vmem:[#allocation6 + $0x1930] sm:$0xff]
    %v7842 = vld [vmem:[#allocation6 + $0x1938] sm:$0xff]
    %v7843 = vld [vmem:[#allocation6 + $0x1940] sm:$0xff]
    %v7844 = vld [vmem:[#allocation6 + $0x1948] sm:$0xff]
    %v7845 = vld [vmem:[#allocation6 + $0x1950] sm:$0xff]
    %v7846 = vld [vmem:[#allocation6 + $0x1958] sm:$0xff]
    %v7847 = vld [vmem:[#allocation6 + $0x1960] sm:$0xff]
    %v7848 = vld [vmem:[#allocation6 + $0x1968] sm:$0xff]
    %v7849 = vld [vmem:[#allocation6 + $0x1970] sm:$0xff]
    %v7850 = vld [vmem:[#allocation6 + $0x1978] sm:$0xff]
    %v7851 = vld [vmem:[#allocation6 + $0x1980] sm:$0xff]
    %v7852 = vld [vmem:[#allocation6 + $0x1988] sm:$0xff]
    %v7853 = vld [vmem:[#allocation6 + $0x1990] sm:$0xff]
    %v7854 = vld [vmem:[#allocation6 + $0x1998] sm:$0xff]
    %v7855 = vld [vmem:[#allocation6 + $0x19a0] sm:$0xff]
    %v7856 = vld [vmem:[#allocation6 + $0x19a8] sm:$0xff]
    %v7857 = vld [vmem:[#allocation6 + $0x19b0] sm:$0xff]
    %v7858 = vld [vmem:[#allocation6 + $0x19b8] sm:$0xff]
    %v7859 = vld [vmem:[#allocation6 + $0x19c0] sm:$0xff]
    %v7860 = vld [vmem:[#allocation6 + $0x19c8] sm:$0xff]
    %v7861 = vld [vmem:[#allocation6 + $0x19d0] sm:$0xff]
    %v7862 = vld [vmem:[#allocation6 + $0x19d8] sm:$0xff]
    %v7863 = vld [vmem:[#allocation6 + $0x19e0] sm:$0xff]
    %v7864 = vld [vmem:[#allocation6 + $0x19e8] sm:$0xff]
    %v7865 = vld [vmem:[#allocation6 + $0x19f0] sm:$0xff]
    %v7866 = vld [vmem:[#allocation6 + $0x19f8] sm:$0xff]
    %v7867 = vld [vmem:[#allocation6 + $0x1a00] sm:$0xff]
    %v7868 = vld [vmem:[#allocation6 + $0x1a08] sm:$0xff]
    %v7869 = vld [vmem:[#allocation6 + $0x1a10] sm:$0xff]
    %v7870 = vld [vmem:[#allocation6 + $0x1a18] sm:$0xff]
    %v7871 = vld [vmem:[#allocation6 + $0x1a20] sm:$0xff]
    %v7872 = vld [vmem:[#allocation6 + $0x1a28] sm:$0xff]
    %v7873 = vld [vmem:[#allocation6 + $0x1a30] sm:$0xff]
    %v7874 = vld [vmem:[#allocation6 + $0x1a38] sm:$0xff]
    %v7875 = vld [vmem:[#allocation6 + $0x1a40] sm:$0xff]
    %v7876 = vld [vmem:[#allocation6 + $0x1a48] sm:$0xff]
    %v7877 = vld [vmem:[#allocation6 + $0x1a50] sm:$0xff]
    %v7878 = vld [vmem:[#allocation6 + $0x1a58] sm:$0xff]
    %v7879 = vld [vmem:[#allocation6 + $0x1a60] sm:$0xff]
    %v7880 = vld [vmem:[#allocation6 + $0x1a68] sm:$0xff]
    %v7881 = vld [vmem:[#allocation6 + $0x1a70] sm:$0xff]
    %v7882 = vld [vmem:[#allocation6 + $0x1a78] sm:$0xff]
    %v7883 = vld [vmem:[#allocation6 + $0x1a80] sm:$0xff]
    %v7884 = vld [vmem:[#allocation6 + $0x1a88] sm:$0xff]
    %v7885 = vld [vmem:[#allocation6 + $0x1a90] sm:$0xff]
    %v7886 = vld [vmem:[#allocation6 + $0x1a98] sm:$0xff]
    %v7887 = vld [vmem:[#allocation6 + $0x1aa0] sm:$0xff]
    %v7888 = vld [vmem:[#allocation6 + $0x1aa8] sm:$0xff]
    %v7889 = vld [vmem:[#allocation6 + $0x1ab0] sm:$0xff]
    %v7890 = vld [vmem:[#allocation6 + $0x1ab8] sm:$0xff]
    %v7891 = vld [vmem:[#allocation6 + $0x1ac0] sm:$0xff]
    %v7892 = vld [vmem:[#allocation6 + $0x1ac8] sm:$0xff]
    %v7893 = vld [vmem:[#allocation6 + $0x1ad0] sm:$0xff]
    %v7894 = vld [vmem:[#allocation6 + $0x1ad8] sm:$0xff]
    %v7895 = vld [vmem:[#allocation6 + $0x1ae0] sm:$0xff]
    %v7896 = vld [vmem:[#allocation6 + $0x1ae8] sm:$0xff]
    %v7897 = vld [vmem:[#allocation6 + $0x1af0] sm:$0xff]
    %v7898 = vld [vmem:[#allocation6 + $0x1af8] sm:$0xff]
    %v7899 = vld [vmem:[#allocation7] sm:$0x3f]
    %v7901 = vlaneseq
    %v7902 = vshrl.u32 %v7901, 7
    %v7903 = vsub.s32 0, %v7902
    %v7904 = vrot.slane %v7899, %v7903
    %v7905 = vlaneseq
    %v7906 = vshrl.u32 %v7905, 7
    %v7907 = vsub.s32 1, %v7906
    %v7908 = vrot.slane %v7899, %v7907
    %v7909 = vlaneseq
    %v7910 = vshrl.u32 %v7909, 7
    %v7911 = vsub.s32 2, %v7910
    %v7912 = vrot.slane %v7899, %v7911
    %v7913 = vlaneseq
    %v7914 = vshrl.u32 %v7913, 7
    %v7915 = vsub.s32 3, %v7914
    %v7916 = vrot.slane %v7899, %v7915
    %v7917 = vlaneseq
    %v7918 = vshrl.u32 %v7917, 7
    %v7919 = vsub.s32 4, %v7918
    %v7920 = vrot.slane %v7899, %v7919
    %v7921 = vlaneseq
    %v7922 = vshrl.u32 %v7921, 7
    %v7923 = vsub.s32 5, %v7922
    %v7924 = vrot.slane %v7899, %v7923
    %v8795 = vunpack.c.l.b16 %v7035
    %v8796 = vunpack.c.h.b16 %v7035
    %v8797 = vunpack.c.l.b16 %v7036
    %v8798 = vunpack.c.h.b16 %v7036
    %v8799 = vunpack.c.l.b16 %v7037
    %v8800 = vunpack.c.h.b16 %v7037
    %v8801 = vunpack.c.l.b16 %v7038
    %v8802 = vunpack.c.h.b16 %v7038
    %v8803 = vunpack.c.l.b16 %v7039
    %v8804 = vunpack.c.h.b16 %v7039
    %v8805 = vunpack.c.l.b16 %v7040
    %v8806 = vunpack.c.h.b16 %v7040
    %v8807 = vunpack.c.l.b16 %v7041
    %v8808 = vunpack.c.h.b16 %v7041
    %v8809 = vunpack.c.l.b16 %v7042
    %v8810 = vunpack.c.h.b16 %v7042
    %v8811 = vunpack.c.l.b16 %v7043
    %v8812 = vunpack.c.h.b16 %v7043
    %v8813 = vunpack.c.l.b16 %v7044
    %v8814 = vunpack.c.h.b16 %v7044
    %v8815 = vunpack.c.l.b16 %v7045
    %v8816 = vunpack.c.h.b16 %v7045
    %v8817 = vunpack.c.l.b16 %v7046
    %v8818 = vunpack.c.h.b16 %v7046
    %v8819 = vunpack.c.l.b16 %v7047
    %v8820 = vunpack.c.h.b16 %v7047
    %v8821 = vunpack.c.l.b16 %v7048
    %v8822 = vunpack.c.h.b16 %v7048
    %v8823 = vunpack.c.l.b16 %v7049
    %v8824 = vunpack.c.h.b16 %v7049
    %v8825 = vunpack.c.l.b16 %v7050
    %v8826 = vunpack.c.h.b16 %v7050
    %v8827 = vunpack.c.l.b16 %v7051
    %v8828 = vunpack.c.h.b16 %v7051
    %v8829 = vunpack.c.l.b16 %v7052
    %v8830 = vunpack.c.h.b16 %v7052
    %v8831 = vunpack.c.l.b16 %v7053
    %v8832 = vunpack.c.h.b16 %v7053
    %v8833 = vunpack.c.l.b16 %v7054
    %v8834 = vunpack.c.h.b16 %v7054
    %v8835 = vunpack.c.l.b16 %v7055
    %v8836 = vunpack.c.h.b16 %v7055
    %v8837 = vunpack.c.l.b16 %v7056
    %v8838 = vunpack.c.h.b16 %v7056
    %v8839 = vunpack.c.l.b16 %v7057
    %v8840 = vunpack.c.h.b16 %v7057
    %v8841 = vunpack.c.l.b16 %v7058
    %v8842 = vunpack.c.h.b16 %v7058
    %v8843 = vunpack.c.l.b16 %v7059
    %v8844 = vunpack.c.h.b16 %v7059
    %v8845 = vunpack.c.l.b16 %v7060
    %v8846 = vunpack.c.h.b16 %v7060
    %v8847 = vunpack.c.l.b16 %v7061
    %v8848 = vunpack.c.h.b16 %v7061
    %v8849 = vunpack.c.l.b16 %v7062
    %v8850 = vunpack.c.h.b16 %v7062
    %v8851 = vunpack.c.l.b16 %v7063
    %v8852 = vunpack.c.h.b16 %v7063
    %v8853 = vunpack.c.l.b16 %v7064
    %v8854 = vunpack.c.h.b16 %v7064
    %v8855 = vunpack.c.l.b16 %v7065
    %v8856 = vunpack.c.h.b16 %v7065
    %v8857 = vunpack.c.l.b16 %v7066
    %v8858 = vunpack.c.h.b16 %v7066
    %v8859 = vunpack.c.l.b16 %v7067
    %v8860 = vunpack.c.h.b16 %v7067
    %v8861 = vunpack.c.l.b16 %v7068
    %v8862 = vunpack.c.h.b16 %v7068
    %v8863 = vunpack.c.l.b16 %v7069
    %v8864 = vunpack.c.h.b16 %v7069
    %v8865 = vunpack.c.l.b16 %v7070
    %v8866 = vunpack.c.h.b16 %v7070
    %v8867 = vunpack.c.l.b16 %v7071
    %v8868 = vunpack.c.h.b16 %v7071
    %v8869 = vunpack.c.l.b16 %v7072
    %v8870 = vunpack.c.h.b16 %v7072
    %v8871 = vunpack.c.l.b16 %v7073
    %v8872 = vunpack.c.h.b16 %v7073
    %v8873 = vunpack.c.l.b16 %v7074
    %v8874 = vunpack.c.h.b16 %v7074
    %v8875 = vunpack.c.l.b16 %v7075
    %v8876 = vunpack.c.h.b16 %v7075
    %v8877 = vunpack.c.l.b16 %v7076
    %v8878 = vunpack.c.h.b16 %v7076
    %v8879 = vunpack.c.l.b16 %v7077
    %v8880 = vunpack.c.h.b16 %v7077
    %v8881 = vunpack.c.l.b16 %v7078
    %v8882 = vunpack.c.h.b16 %v7078
    %v8883 = vunpack.c.l.b16 %v7079
    %v8884 = vunpack.c.h.b16 %v7079
    %v8885 = vunpack.c.l.b16 %v7080
    %v8886 = vunpack.c.h.b16 %v7080
    %v8887 = vunpack.c.l.b16 %v7081
    %v8888 = vunpack.c.h.b16 %v7081
    %v8889 = vunpack.c.l.b16 %v7082
    %v8890 = vunpack.c.h.b16 %v7082
    %v8891 = vunpack.c.l.b16 %v7083
    %v8892 = vunpack.c.h.b16 %v7083
    %v8893 = vunpack.c.l.b16 %v7084
    %v8894 = vunpack.c.h.b16 %v7084
    %v8895 = vunpack.c.l.b16 %v7085
    %v8896 = vunpack.c.h.b16 %v7085
    %v8897 = vunpack.c.l.b16 %v7086
    %v8898 = vunpack.c.h.b16 %v7086
    %v8899 = vunpack.c.l.b16 %v7087
    %v8900 = vunpack.c.h.b16 %v7087
    %v8901 = vunpack.c.l.b16 %v7088
    %v8902 = vunpack.c.h.b16 %v7088
    %v8903 = vunpack.c.l.b16 %v7089
    %v8904 = vunpack.c.h.b16 %v7089
    %v8905 = vunpack.c.l.b16 %v7090
    %v8906 = vunpack.c.h.b16 %v7090
    %v8907 = vunpack.c.l.b16 %v7091
    %v8908 = vunpack.c.h.b16 %v7091
    %v8909 = vunpack.c.l.b16 %v7092
    %v8910 = vunpack.c.h.b16 %v7092
    %v8911 = vunpack.c.l.b16 %v7093
    %v8912 = vunpack.c.h.b16 %v7093
    %v8913 = vunpack.c.l.b16 %v7094
    %v8914 = vunpack.c.h.b16 %v7094
    %v8915 = vunpack.c.l.b16 %v7095
    %v8916 = vunpack.c.h.b16 %v7095
    %v8917 = vunpack.c.l.b16 %v7096
    %v8918 = vunpack.c.h.b16 %v7096
    %v8919 = vunpack.c.l.b16 %v7097
    %v8920 = vunpack.c.h.b16 %v7097
    %v8921 = vunpack.c.l.b16 %v7098
    %v8922 = vunpack.c.h.b16 %v7098
    %v8923 = vunpack.c.l.b16 %v7099
    %v8924 = vunpack.c.h.b16 %v7099
    %v8925 = vunpack.c.l.b16 %v7100
    %v8926 = vunpack.c.h.b16 %v7100
    %v8927 = vunpack.c.l.b16 %v7101
    %v8928 = vunpack.c.h.b16 %v7101
    %v8929 = vunpack.c.l.b16 %v7102
    %v8930 = vunpack.c.h.b16 %v7102
    %v8931 = vunpack.c.l.b16 %v7103
    %v8932 = vunpack.c.h.b16 %v7103
    %v8933 = vunpack.c.l.b16 %v7104
    %v8934 = vunpack.c.h.b16 %v7104
    %v8935 = vunpack.c.l.b16 %v7105
    %v8936 = vunpack.c.h.b16 %v7105
    %v8937 = vunpack.c.l.b16 %v7106
    %v8938 = vunpack.c.h.b16 %v7106
    %v8939 = vunpack.c.l.b16 %v7107
    %v8940 = vunpack.c.h.b16 %v7107
    %v8941 = vunpack.c.l.b16 %v7108
    %v8942 = vunpack.c.h.b16 %v7108
    %v8943 = vunpack.c.l.b16 %v7109
    %v8944 = vunpack.c.h.b16 %v7109
    %v8945 = vunpack.c.l.b16 %v7110
    %v8946 = vunpack.c.h.b16 %v7110
    %v8947 = vunpack.c.l.b16 %v7111
    %v8948 = vunpack.c.h.b16 %v7111
    %v8949 = vunpack.c.l.b16 %v7112
    %v8950 = vunpack.c.h.b16 %v7112
    %v8951 = vunpack.c.l.b16 %v7113
    %v8952 = vunpack.c.h.b16 %v7113
    %v8953 = vunpack.c.l.b16 %v7114
    %v8954 = vunpack.c.h.b16 %v7114
    %v8955 = vunpack.c.l.b16 %v7115
    %v8956 = vunpack.c.h.b16 %v7115
    %v8957 = vunpack.c.l.b16 %v7116
    %v8958 = vunpack.c.h.b16 %v7116
    %v8959 = vunpack.c.l.b16 %v7117
    %v8960 = vunpack.c.h.b16 %v7117
    %v8961 = vunpack.c.l.b16 %v7118
    %v8962 = vunpack.c.h.b16 %v7118
    %v8963 = vunpack.c.l.b16 %v7119
    %v8964 = vunpack.c.h.b16 %v7119
    %v8965 = vunpack.c.l.b16 %v7120
    %v8966 = vunpack.c.h.b16 %v7120
    %v8967 = vunpack.c.l.b16 %v7121
    %v8968 = vunpack.c.h.b16 %v7121
    %v8969 = vunpack.c.l.b16 %v7122
    %v8970 = vunpack.c.h.b16 %v7122
    %v8971 = vunpack.c.l.b16 %v7123
    %v8972 = vunpack.c.h.b16 %v7123
    %v8973 = vunpack.c.l.b16 %v7124
    %v8974 = vunpack.c.h.b16 %v7124
    %v8975 = vunpack.c.l.b16 %v7125
    %v8976 = vunpack.c.h.b16 %v7125
    %v8977 = vunpack.c.l.b16 %v7126
    %v8978 = vunpack.c.h.b16 %v7126
    %v8979 = vunpack.c.l.b16 %v7127
    %v8980 = vunpack.c.h.b16 %v7127
    %v8981 = vunpack.c.l.b16 %v7128
    %v8982 = vunpack.c.h.b16 %v7128
    %v8983 = vunpack.c.l.b16 %v7129
    %v8984 = vunpack.c.h.b16 %v7129
    %v8985 = vunpack.c.l.b16 %v7130
    %v8986 = vunpack.c.h.b16 %v7130
    %v8987 = vunpack.c.l.b16 %v7131
    %v8988 = vunpack.c.h.b16 %v7131
    %v8989 = vunpack.c.l.b16 %v7132
    %v8990 = vunpack.c.h.b16 %v7132
    %v8991 = vunpack.c.l.b16 %v7133
    %v8992 = vunpack.c.h.b16 %v7133
    %v8993 = vunpack.c.l.b16 %v7134
    %v8994 = vunpack.c.h.b16 %v7134
    %v8995 = vunpack.c.l.b16 %v7135
    %v8996 = vunpack.c.h.b16 %v7135
    %v8997 = vunpack.c.l.b16 %v7136
    %v8998 = vunpack.c.h.b16 %v7136
    %v8999 = vunpack.c.l.b16 %v7137
    %v9000 = vunpack.c.h.b16 %v7137
    %v9001 = vunpack.c.l.b16 %v7138
    %v9002 = vunpack.c.h.b16 %v7138
    %v9003 = vunpack.c.l.b16 %v7139
    %v9004 = vunpack.c.h.b16 %v7139
    %v9005 = vunpack.c.l.b16 %v7140
    %v9006 = vunpack.c.h.b16 %v7140
    %v9007 = vunpack.c.l.b16 %v7141
    %v9008 = vunpack.c.h.b16 %v7141
    %v9009 = vunpack.c.l.b16 %v7142
    %v9010 = vunpack.c.h.b16 %v7142
    %v9011 = vunpack.c.l.b16 %v7143
    %v9012 = vunpack.c.h.b16 %v7143
    %v9013 = vunpack.c.l.b16 %v7144
    %v9014 = vunpack.c.h.b16 %v7144
    %v9015 = vunpack.c.l.b16 %v7145
    %v9016 = vunpack.c.h.b16 %v7145
    %v9017 = vunpack.c.l.b16 %v7146
    %v9018 = vunpack.c.h.b16 %v7146
    %v9019 = vunpack.c.l.b16 %v7147
    %v9020 = vunpack.c.h.b16 %v7147
    %v9021 = vunpack.c.l.b16 %v7148
    %v9022 = vunpack.c.h.b16 %v7148
    %v9023 = vunpack.c.l.b16 %v7149
    %v9024 = vunpack.c.h.b16 %v7149
    %v9025 = vunpack.c.l.b16 %v7150
    %v9026 = vunpack.c.h.b16 %v7150
    %v9027 = vunpack.c.l.b16 %v7151
    %v9028 = vunpack.c.h.b16 %v7151
    %v9029 = vunpack.c.l.b16 %v7152
    %v9030 = vunpack.c.h.b16 %v7152
    %v9031 = vunpack.c.l.b16 %v7153
    %v9032 = vunpack.c.h.b16 %v7153
    %v9033 = vunpack.c.l.b16 %v7154
    %v9034 = vunpack.c.h.b16 %v7154
    %v9035 = vunpack.c.l.b16 %v7155
    %v9036 = vunpack.c.h.b16 %v7155
    %v9037 = vunpack.c.l.b16 %v7156
    %v9038 = vunpack.c.h.b16 %v7156
    %v9039 = vunpack.c.l.b16 %v7157
    %v9040 = vunpack.c.h.b16 %v7157
    %v9041 = vunpack.c.l.b16 %v7158
    %v9042 = vunpack.c.h.b16 %v7158
    %v9043 = vunpack.c.l.b16 %v7159
    %v9044 = vunpack.c.h.b16 %v7159
    %v9045 = vunpack.c.l.b16 %v7160
    %v9046 = vunpack.c.h.b16 %v7160
    %v9047 = vunpack.c.l.b16 %v7161
    %v9048 = vunpack.c.h.b16 %v7161
    %v9049 = vunpack.c.l.b16 %v7162
    %v9050 = vunpack.c.h.b16 %v7162
    %v9051 = vunpack.c.l.b16 %v7163
    %v9052 = vunpack.c.h.b16 %v7163
    %v9053 = vunpack.c.l.b16 %v7164
    %v9054 = vunpack.c.h.b16 %v7164
    %v9055 = vunpack.c.l.b16 %v7165
    %v9056 = vunpack.c.h.b16 %v7165
    %v9057 = vunpack.c.l.b16 %v7166
    %v9058 = vunpack.c.h.b16 %v7166
    %v9059 = vunpack.c.l.b16 %v7167
    %v9060 = vunpack.c.h.b16 %v7167
    %v9061 = vunpack.c.l.b16 %v7168
    %v9062 = vunpack.c.h.b16 %v7168
    %v9063 = vunpack.c.l.b16 %v7169
    %v9064 = vunpack.c.h.b16 %v7169
    %v9065 = vunpack.c.l.b16 %v7170
    %v9066 = vunpack.c.h.b16 %v7170
    %v9067 = vunpack.c.l.b16 %v7171
    %v9068 = vunpack.c.h.b16 %v7171
    %v9069 = vunpack.c.l.b16 %v7172
    %v9070 = vunpack.c.h.b16 %v7172
    %v9071 = vunpack.c.l.b16 %v7173
    %v9072 = vunpack.c.h.b16 %v7173
    %v9073 = vunpack.c.l.b16 %v7174
    %v9074 = vunpack.c.h.b16 %v7174
    %v9075 = vunpack.c.l.b16 %v7175
    %v9076 = vunpack.c.h.b16 %v7175
    %v9077 = vunpack.c.l.b16 %v7176
    %v9078 = vunpack.c.h.b16 %v7176
    %v9079 = vunpack.c.l.b16 %v7177
    %v9080 = vunpack.c.h.b16 %v7177
    %v9081 = vunpack.c.l.b16 %v7178
    %v9082 = vunpack.c.h.b16 %v7178
    %v9083 = vunpack.c.l.b16 %v7179
    %v9084 = vunpack.c.h.b16 %v7179
    %v9085 = vunpack.c.l.b16 %v7180
    %v9086 = vunpack.c.h.b16 %v7180
    %v9087 = vunpack.c.l.b16 %v7181
    %v9088 = vunpack.c.h.b16 %v7181
    %v9089 = vunpack.c.l.b16 %v7182
    %v9090 = vunpack.c.h.b16 %v7182
    %v9091 = vunpack.c.l.b16 %v7183
    %v9092 = vunpack.c.h.b16 %v7183
    %v9093 = vunpack.c.l.b16 %v7184
    %v9094 = vunpack.c.h.b16 %v7184
    %v9095 = vunpack.c.l.b16 %v7185
    %v9096 = vunpack.c.h.b16 %v7185
    %v9097 = vunpack.c.l.b16 %v7186
    %v9098 = vunpack.c.h.b16 %v7186
    %v9099 = vunpack.c.l.b16 %v7187
    %v9100 = vunpack.c.h.b16 %v7187
    %v9101 = vunpack.c.l.b16 %v7188
    %v9102 = vunpack.c.h.b16 %v7188
    %v9103 = vunpack.c.l.b16 %v7189
    %v9104 = vunpack.c.h.b16 %v7189
    %v9105 = vunpack.c.l.b16 %v7190
    %v9106 = vunpack.c.h.b16 %v7190
    %v9107 = vunpack.c.l.b16 %v7191
    %v9108 = vunpack.c.h.b16 %v7191
    %v9109 = vunpack.c.l.b16 %v7192
    %v9110 = vunpack.c.h.b16 %v7192
    %v9111 = vunpack.c.l.b16 %v7193
    %v9112 = vunpack.c.h.b16 %v7193
    %v9113 = vunpack.c.l.b16 %v7194
    %v9114 = vunpack.c.h.b16 %v7194
    %v9115 = vunpack.c.l.b16 %v7195
    %v9116 = vunpack.c.h.b16 %v7195
    %v9117 = vunpack.c.l.b16 %v7196
    %v9118 = vunpack.c.h.b16 %v7196
    %v9119 = vunpack.c.l.b16 %v7197
    %v9120 = vunpack.c.h.b16 %v7197
    %v9121 = vunpack.c.l.b16 %v7198
    %v9122 = vunpack.c.h.b16 %v7198
    %v9123 = vunpack.c.l.b16 %v7199
    %v9124 = vunpack.c.h.b16 %v7199
    %v9125 = vunpack.c.l.b16 %v7200
    %v9126 = vunpack.c.h.b16 %v7200
    %v9127 = vunpack.c.l.b16 %v7201
    %v9128 = vunpack.c.h.b16 %v7201
    %v9129 = vunpack.c.l.b16 %v7202
    %v9130 = vunpack.c.h.b16 %v7202
    %v9131 = vunpack.c.l.b16 %v7203
    %v9132 = vunpack.c.h.b16 %v7203
    %v9133 = vunpack.c.l.b16 %v7204
    %v9134 = vunpack.c.h.b16 %v7204
    %v9135 = vunpack.c.l.b16 %v7205
    %v9136 = vunpack.c.h.b16 %v7205
    %v9137 = vunpack.c.l.b16 %v7206
    %v9138 = vunpack.c.h.b16 %v7206
    %v9139 = vunpack.c.l.b16 %v7207
    %v9140 = vunpack.c.h.b16 %v7207
    %v9141 = vunpack.c.l.b16 %v7208
    %v9142 = vunpack.c.h.b16 %v7208
    %v9143 = vunpack.c.l.b16 %v7209
    %v9144 = vunpack.c.h.b16 %v7209
    %v9145 = vunpack.c.l.b16 %v7210
    %v9146 = vunpack.c.h.b16 %v7210
    %v9147 = vunpack.c.l.b16 %v7211
    %v9148 = vunpack.c.h.b16 %v7211
    %v9149 = vunpack.c.l.b16 %v7212
    %v9150 = vunpack.c.h.b16 %v7212
    %v9151 = vunpack.c.l.b16 %v7213
    %v9152 = vunpack.c.h.b16 %v7213
    %v9153 = vunpack.c.l.b16 %v7214
    %v9154 = vunpack.c.h.b16 %v7214
    %v9155 = vunpack.c.l.b16 %v7215
    %v9156 = vunpack.c.h.b16 %v7215
    %v9157 = vunpack.c.l.b16 %v7216
    %v9158 = vunpack.c.h.b16 %v7216
    %v9159 = vunpack.c.l.b16 %v7217
    %v9160 = vunpack.c.h.b16 %v7217
    %v9161 = vunpack.c.l.b16 %v7218
    %v9162 = vunpack.c.h.b16 %v7218
    %v9163 = vunpack.c.l.b16 %v7219
    %v9164 = vunpack.c.h.b16 %v7219
    %v9165 = vunpack.c.l.b16 %v7220
    %v9166 = vunpack.c.h.b16 %v7220
    %v9167 = vunpack.c.l.b16 %v7221
    %v9168 = vunpack.c.h.b16 %v7221
    %v9169 = vunpack.c.l.b16 %v7222
    %v9170 = vunpack.c.h.b16 %v7222
    %v9171 = vunpack.c.l.b16 %v7223
    %v9172 = vunpack.c.h.b16 %v7223
    %v9173 = vunpack.c.l.b16 %v7224
    %v9174 = vunpack.c.h.b16 %v7224
    %v9175 = vunpack.c.l.b16 %v7225
    %v9176 = vunpack.c.h.b16 %v7225
    %v9177 = vunpack.c.l.b16 %v7226
    %v9178 = vunpack.c.h.b16 %v7226
    %v9179 = vunpack.c.l.b16 %v7227
    %v9180 = vunpack.c.h.b16 %v7227
    %v9181 = vunpack.c.l.b16 %v7228
    %v9182 = vunpack.c.h.b16 %v7228
    %v9183 = vunpack.c.l.b16 %v7229
    %v9184 = vunpack.c.h.b16 %v7229
    %v9185 = vunpack.c.l.b16 %v7230
    %v9186 = vunpack.c.h.b16 %v7230
    %v9187 = vunpack.c.l.b16 %v7231
    %v9188 = vunpack.c.h.b16 %v7231
    %v9189 = vunpack.c.l.b16 %v7232
    %v9190 = vunpack.c.h.b16 %v7232
    %v9191 = vunpack.c.l.b16 %v7233
    %v9192 = vunpack.c.h.b16 %v7233
    %v9193 = vunpack.c.l.b16 %v7234
    %v9194 = vunpack.c.h.b16 %v7234
    %v9195 = vunpack.c.l.b16 %v7235
    %v9196 = vunpack.c.h.b16 %v7235
    %v9197 = vunpack.c.l.b16 %v7236
    %v9198 = vunpack.c.h.b16 %v7236
    %v9199 = vunpack.c.l.b16 %v7237
    %v9200 = vunpack.c.h.b16 %v7237
    %v9201 = vunpack.c.l.b16 %v7238
    %v9202 = vunpack.c.h.b16 %v7238
    %v9203 = vunpack.c.l.b16 %v7239
    %v9204 = vunpack.c.h.b16 %v7239
    %v9205 = vunpack.c.l.b16 %v7240
    %v9206 = vunpack.c.h.b16 %v7240
    %v9207 = vunpack.c.l.b16 %v7241
    %v9208 = vunpack.c.h.b16 %v7241
    %v9209 = vunpack.c.l.b16 %v7242
    %v9210 = vunpack.c.h.b16 %v7242
    %v9211 = vunpack.c.l.b16 %v7243
    %v9212 = vunpack.c.h.b16 %v7243
    %v9213 = vunpack.c.l.b16 %v7244
    %v9214 = vunpack.c.h.b16 %v7244
    %v9215 = vunpack.c.l.b16 %v7245
    %v9216 = vunpack.c.h.b16 %v7245
    %v9217 = vunpack.c.l.b16 %v7246
    %v9218 = vunpack.c.h.b16 %v7246
    %v9219 = vunpack.c.l.b16 %v7247
    %v9220 = vunpack.c.h.b16 %v7247
    %v9221 = vunpack.c.l.b16 %v7248
    %v9222 = vunpack.c.h.b16 %v7248
    %v9223 = vunpack.c.l.b16 %v7249
    %v9224 = vunpack.c.h.b16 %v7249
    %v9225 = vunpack.c.l.b16 %v7250
    %v9226 = vunpack.c.h.b16 %v7250
    %v9227 = vunpack.c.l.b16 %v7251
    %v9228 = vunpack.c.h.b16 %v7251
    %v9229 = vunpack.c.l.b16 %v7252
    %v9230 = vunpack.c.h.b16 %v7252
    %v9231 = vunpack.c.l.b16 %v7253
    %v9232 = vunpack.c.h.b16 %v7253
    %v9233 = vunpack.c.l.b16 %v7254
    %v9234 = vunpack.c.h.b16 %v7254
    %v9235 = vunpack.c.l.b16 %v7255
    %v9236 = vunpack.c.h.b16 %v7255
    %v9237 = vunpack.c.l.b16 %v7256
    %v9238 = vunpack.c.h.b16 %v7256
    %v9239 = vunpack.c.l.b16 %v7257
    %v9240 = vunpack.c.h.b16 %v7257
    %v9241 = vunpack.c.l.b16 %v7258
    %v9242 = vunpack.c.h.b16 %v7258
    %v9243 = vunpack.c.l.b16 %v7259
    %v9244 = vunpack.c.h.b16 %v7259
    %v9245 = vunpack.c.l.b16 %v7260
    %v9246 = vunpack.c.h.b16 %v7260
    %v9247 = vunpack.c.l.b16 %v7261
    %v9248 = vunpack.c.h.b16 %v7261
    %v9249 = vunpack.c.l.b16 %v7262
    %v9250 = vunpack.c.h.b16 %v7262
    %v9251 = vunpack.c.l.b16 %v7263
    %v9252 = vunpack.c.h.b16 %v7263
    %v9253 = vunpack.c.l.b16 %v7264
    %v9254 = vunpack.c.h.b16 %v7264
    %v9255 = vunpack.c.l.b16 %v7265
    %v9256 = vunpack.c.h.b16 %v7265
    %v9257 = vunpack.c.l.b16 %v7266
    %v9258 = vunpack.c.h.b16 %v7266
    %v9259 = vunpack.c.l.b16 %v7267
    %v9260 = vunpack.c.h.b16 %v7267
    %v9261 = vunpack.c.l.b16 %v7268
    %v9262 = vunpack.c.h.b16 %v7268
    %v9263 = vunpack.c.l.b16 %v7269
    %v9264 = vunpack.c.h.b16 %v7269
    %v9265 = vunpack.c.l.b16 %v7270
    %v9266 = vunpack.c.h.b16 %v7270
    %v9267 = vunpack.c.l.b16 %v7271
    %v9268 = vunpack.c.h.b16 %v7271
    %v9269 = vunpack.c.l.b16 %v7272
    %v9270 = vunpack.c.h.b16 %v7272
    %v9271 = vunpack.c.l.b16 %v7273
    %v9272 = vunpack.c.h.b16 %v7273
    %v9273 = vunpack.c.l.b16 %v7274
    %v9274 = vunpack.c.h.b16 %v7274
    %v9275 = vunpack.c.l.b16 %v7275
    %v9276 = vunpack.c.h.b16 %v7275
    %v9277 = vunpack.c.l.b16 %v7276
    %v9278 = vunpack.c.h.b16 %v7276
    %v9279 = vunpack.c.l.b16 %v7277
    %v9280 = vunpack.c.h.b16 %v7277
    %v9281 = vunpack.c.l.b16 %v7278
    %v9282 = vunpack.c.h.b16 %v7278
    %v9283 = vunpack.c.l.b16 %v7279
    %v9284 = vunpack.c.h.b16 %v7279
    %v9285 = vunpack.c.l.b16 %v7280
    %v9286 = vunpack.c.h.b16 %v7280
    %v9287 = vunpack.c.l.b16 %v7281
    %v9288 = vunpack.c.h.b16 %v7281
    %v9289 = vunpack.c.l.b16 %v7282
    %v9290 = vunpack.c.h.b16 %v7282
    %v9291 = vunpack.c.l.b16 %v7283
    %v9292 = vunpack.c.h.b16 %v7283
    %v9293 = vunpack.c.l.b16 %v7284
    %v9294 = vunpack.c.h.b16 %v7284
    %v9295 = vunpack.c.l.b16 %v7285
    %v9296 = vunpack.c.h.b16 %v7285
    %v9297 = vunpack.c.l.b16 %v7286
    %v9298 = vunpack.c.h.b16 %v7286
    %v9299 = vunpack.c.l.b16 %v7287
    %v9300 = vunpack.c.h.b16 %v7287
    %v9301 = vunpack.c.l.b16 %v7288
    %v9302 = vunpack.c.h.b16 %v7288
    %v9303 = vunpack.c.l.b16 %v7289
    %v9304 = vunpack.c.h.b16 %v7289
    %v9305 = vunpack.c.l.b16 %v7290
    %v9306 = vunpack.c.h.b16 %v7290
    %v9307 = vunpack.c.l.b16 %v7291
    %v9308 = vunpack.c.h.b16 %v7291
    %v9309 = vunpack.c.l.b16 %v7292
    %v9310 = vunpack.c.h.b16 %v7292
    %v9311 = vunpack.c.l.b16 %v7293
    %v9312 = vunpack.c.h.b16 %v7293
    %v9313 = vunpack.c.l.b16 %v7294
    %v9314 = vunpack.c.h.b16 %v7294
    %v9315 = vunpack.c.l.b16 %v7295
    %v9316 = vunpack.c.h.b16 %v7295
    %v9317 = vunpack.c.l.b16 %v7296
    %v9318 = vunpack.c.h.b16 %v7296
    %v9319 = vunpack.c.l.b16 %v7297
    %v9320 = vunpack.c.h.b16 %v7297
    %v9321 = vunpack.c.l.b16 %v7298
    %v9322 = vunpack.c.h.b16 %v7298
    %v9323 = vunpack.c.l.b16 %v7299
    %v9324 = vunpack.c.h.b16 %v7299
    %v9325 = vunpack.c.l.b16 %v7300
    %v9326 = vunpack.c.h.b16 %v7300
    %v9327 = vunpack.c.l.b16 %v7301
    %v9328 = vunpack.c.h.b16 %v7301
    %v9329 = vunpack.c.l.b16 %v7302
    %v9330 = vunpack.c.h.b16 %v7302
    %v9331 = vunpack.c.l.b16 %v7303
    %v9332 = vunpack.c.h.b16 %v7303
    %v9333 = vunpack.c.l.b16 %v7304
    %v9334 = vunpack.c.h.b16 %v7304
    %v9335 = vunpack.c.l.b16 %v7305
    %v9336 = vunpack.c.h.b16 %v7305
    %v9337 = vunpack.c.l.b16 %v7306
    %v9338 = vunpack.c.h.b16 %v7306
    %v9339 = vunpack.c.l.b16 %v7307
    %v9340 = vunpack.c.h.b16 %v7307
    %v9341 = vunpack.c.l.b16 %v7308
    %v9342 = vunpack.c.h.b16 %v7308
    %v9343 = vunpack.c.l.b16 %v7309
    %v9344 = vunpack.c.h.b16 %v7309
    %v9345 = vunpack.c.l.b16 %v7310
    %v9346 = vunpack.c.h.b16 %v7310
    %v9347 = vunpack.c.l.b16 %v7311
    %v9348 = vunpack.c.h.b16 %v7311
    %v9349 = vunpack.c.l.b16 %v7312
    %v9350 = vunpack.c.h.b16 %v7312
    %v9351 = vunpack.c.l.b16 %v7313
    %v9352 = vunpack.c.h.b16 %v7313
    %v9353 = vunpack.c.l.b16 %v7314
    %v9354 = vunpack.c.h.b16 %v7314
    %v9355 = vunpack.c.l.b16 %v7315
    %v9356 = vunpack.c.h.b16 %v7315
    %v9357 = vunpack.c.l.b16 %v7316
    %v9358 = vunpack.c.h.b16 %v7316
    %v9359 = vunpack.c.l.b16 %v7317
    %v9360 = vunpack.c.h.b16 %v7317
    %v9361 = vunpack.c.l.b16 %v7318
    %v9362 = vunpack.c.h.b16 %v7318
    %v9363 = vunpack.c.l.b16 %v7319
    %v9364 = vunpack.c.h.b16 %v7319
    %v9365 = vunpack.c.l.b16 %v7320
    %v9366 = vunpack.c.h.b16 %v7320
    %v9367 = vunpack.c.l.b16 %v7321
    %v9368 = vunpack.c.h.b16 %v7321
    %v9369 = vunpack.c.l.b16 %v7322
    %v9370 = vunpack.c.h.b16 %v7322
    %v9371 = vunpack.c.l.b16 %v7323
    %v9372 = vunpack.c.h.b16 %v7323
    %v9373 = vunpack.c.l.b16 %v7324
    %v9374 = vunpack.c.h.b16 %v7324
    %v9375 = vunpack.c.l.b16 %v7325
    %v9376 = vunpack.c.h.b16 %v7325
    %v9377 = vunpack.c.l.b16 %v7326
    %v9378 = vunpack.c.h.b16 %v7326
    %v9379 = vunpack.c.l.b16 %v7327
    %v9380 = vunpack.c.h.b16 %v7327
    %v9381 = vunpack.c.l.b16 %v7328
    %v9382 = vunpack.c.h.b16 %v7328
    %v9383 = vunpack.c.l.b16 %v7329
    %v9384 = vunpack.c.h.b16 %v7329
    %v9385 = vunpack.c.l.b16 %v7330
    %v9386 = vunpack.c.h.b16 %v7330
    %v9387 = vunpack.c.l.b16 %v7331
    %v9388 = vunpack.c.h.b16 %v7331
    %v9389 = vunpack.c.l.b16 %v7332
    %v9390 = vunpack.c.h.b16 %v7332
    %v9391 = vunpack.c.l.b16 %v7333
    %v9392 = vunpack.c.h.b16 %v7333
    %v9393 = vunpack.c.l.b16 %v7334
    %v9394 = vunpack.c.h.b16 %v7334
    %v9395 = vunpack.c.l.b16 %v7335
    %v9396 = vunpack.c.h.b16 %v7335
    %v9397 = vunpack.c.l.b16 %v7336
    %v9398 = vunpack.c.h.b16 %v7336
    %v9399 = vunpack.c.l.b16 %v7337
    %v9400 = vunpack.c.h.b16 %v7337
    %v9401 = vunpack.c.l.b16 %v7338
    %v9402 = vunpack.c.h.b16 %v7338
    %v9403 = vunpack.c.l.b16 %v7339
    %v9404 = vunpack.c.h.b16 %v7339
    %v9405 = vunpack.c.l.b16 %v7340
    %v9406 = vunpack.c.h.b16 %v7340
    %v9407 = vunpack.c.l.b16 %v7341
    %v9408 = vunpack.c.h.b16 %v7341
    %v9409 = vunpack.c.l.b16 %v7342
    %v9410 = vunpack.c.h.b16 %v7342
    %v9411 = vunpack.c.l.b16 %v7343
    %v9412 = vunpack.c.h.b16 %v7343
    %v9413 = vunpack.c.l.b16 %v7344
    %v9414 = vunpack.c.h.b16 %v7344
    %v9415 = vunpack.c.l.b16 %v7345
    %v9416 = vunpack.c.h.b16 %v7345
    %v9417 = vunpack.c.l.b16 %v7346
    %v9418 = vunpack.c.h.b16 %v7346
    %v9419 = vunpack.c.l.b16 %v7347
    %v9420 = vunpack.c.h.b16 %v7347
    %v9421 = vunpack.c.l.b16 %v7348
    %v9422 = vunpack.c.h.b16 %v7348
    %v9423 = vunpack.c.l.b16 %v7349
    %v9424 = vunpack.c.h.b16 %v7349
    %v9425 = vunpack.c.l.b16 %v7350
    %v9426 = vunpack.c.h.b16 %v7350
    %v9427 = vunpack.c.l.b16 %v7351
    %v9428 = vunpack.c.h.b16 %v7351
    %v9429 = vunpack.c.l.b16 %v7352
    %v9430 = vunpack.c.h.b16 %v7352
    %v9431 = vunpack.c.l.b16 %v7353
    %v9432 = vunpack.c.h.b16 %v7353
    %v9433 = vunpack.c.l.b16 %v7354
    %v9434 = vunpack.c.h.b16 %v7354
    %v9435 = vunpack.c.l.b16 %v7355
    %v9436 = vunpack.c.h.b16 %v7355
    %v9437 = vunpack.c.l.b16 %v7356
    %v9438 = vunpack.c.h.b16 %v7356
    %v9439 = vunpack.c.l.b16 %v7357
    %v9440 = vunpack.c.h.b16 %v7357
    %v9441 = vunpack.c.l.b16 %v7358
    %v9442 = vunpack.c.h.b16 %v7358
    %v9443 = vunpack.c.l.b16 %v7359
    %v9444 = vunpack.c.h.b16 %v7359
    %v9445 = vunpack.c.l.b16 %v7360
    %v9446 = vunpack.c.h.b16 %v7360
    %v9447 = vunpack.c.l.b16 %v7361
    %v9448 = vunpack.c.h.b16 %v7361
    %v9449 = vunpack.c.l.b16 %v7362
    %v9450 = vunpack.c.h.b16 %v7362
    %v9451 = vunpack.c.l.b16 %v7363
    %v9452 = vunpack.c.h.b16 %v7363
    %v9453 = vunpack.c.l.b16 %v7364
    %v9454 = vunpack.c.h.b16 %v7364
    %v9455 = vunpack.c.l.b16 %v7365
    %v9456 = vunpack.c.h.b16 %v7365
    %v9457 = vunpack.c.l.b16 %v7366
    %v9458 = vunpack.c.h.b16 %v7366
    %v9459 = vunpack.c.l.b16 %v7367
    %v9460 = vunpack.c.h.b16 %v7367
    %v9461 = vunpack.c.l.b16 %v7368
    %v9462 = vunpack.c.h.b16 %v7368
    %v9463 = vunpack.c.l.b16 %v7369
    %v9464 = vunpack.c.h.b16 %v7369
    %v9465 = vunpack.c.l.b16 %v7370
    %v9466 = vunpack.c.h.b16 %v7370
    %v9467 = vunpack.c.l.b16 %v7371
    %v9468 = vunpack.c.h.b16 %v7371
    %v9469 = vunpack.c.l.b16 %v7372
    %v9470 = vunpack.c.h.b16 %v7372
    %v9471 = vunpack.c.l.b16 %v7373
    %v9472 = vunpack.c.h.b16 %v7373
    %v9473 = vunpack.c.l.b16 %v7374
    %v9474 = vunpack.c.h.b16 %v7374
    %v9475 = vunpack.c.l.b16 %v7375
    %v9476 = vunpack.c.h.b16 %v7375
    %v9477 = vunpack.c.l.b16 %v7376
    %v9478 = vunpack.c.h.b16 %v7376
    %v9479 = vunpack.c.l.b16 %v7377
    %v9480 = vunpack.c.h.b16 %v7377
    %v9481 = vunpack.c.l.b16 %v7378
    %v9482 = vunpack.c.h.b16 %v7378
    %v9483 = vunpack.c.l.b16 %v7379
    %v9484 = vunpack.c.h.b16 %v7379
    %v9485 = vunpack.c.l.b16 %v7380
    %v9486 = vunpack.c.h.b16 %v7380
    %v9487 = vunpack.c.l.b16 %v7381
    %v9488 = vunpack.c.h.b16 %v7381
    %v9489 = vunpack.c.l.b16 %v7382
    %v9490 = vunpack.c.h.b16 %v7382
    %v9491 = vunpack.c.l.b16 %v7383
    %v9492 = vunpack.c.h.b16 %v7383
    %v9493 = vunpack.c.l.b16 %v7384
    %v9494 = vunpack.c.h.b16 %v7384
    %v9495 = vunpack.c.l.b16 %v7385
    %v9496 = vunpack.c.h.b16 %v7385
    %v9497 = vunpack.c.l.b16 %v7386
    %v9498 = vunpack.c.h.b16 %v7386
    %v9499 = vunpack.c.l.b16 %v7387
    %v9500 = vunpack.c.h.b16 %v7387
    %v9501 = vunpack.c.l.b16 %v7388
    %v9502 = vunpack.c.h.b16 %v7388
    %v9503 = vunpack.c.l.b16 %v7389
    %v9504 = vunpack.c.h.b16 %v7389
    %v9505 = vunpack.c.l.b16 %v7390
    %v9506 = vunpack.c.h.b16 %v7390
    %v9507 = vunpack.c.l.b16 %v7391
    %v9508 = vunpack.c.h.b16 %v7391
    %v9509 = vunpack.c.l.b16 %v7392
    %v9510 = vunpack.c.h.b16 %v7392
    %v9511 = vunpack.c.l.b16 %v7393
    %v9512 = vunpack.c.h.b16 %v7393
    %v9513 = vunpack.c.l.b16 %v7394
    %v9514 = vunpack.c.h.b16 %v7394
    %v9515 = vunpack.c.l.b16 %v7395
    %v9516 = vunpack.c.h.b16 %v7395
    %v9517 = vunpack.c.l.b16 %v7396
    %v9518 = vunpack.c.h.b16 %v7396
    %v9519 = vunpack.c.l.b16 %v7397
    %v9520 = vunpack.c.h.b16 %v7397
    %v9521 = vunpack.c.l.b16 %v7398
    %v9522 = vunpack.c.h.b16 %v7398
    %v9523 = vunpack.c.l.b16 %v7399
    %v9524 = vunpack.c.h.b16 %v7399
    %v9525 = vunpack.c.l.b16 %v7400
    %v9526 = vunpack.c.h.b16 %v7400
    %v9527 = vunpack.c.l.b16 %v7401
    %v9528 = vunpack.c.h.b16 %v7401
    %v9529 = vunpack.c.l.b16 %v7402
    %v9530 = vunpack.c.h.b16 %v7402
    %v9531 = vunpack.c.l.b16 %v7403
    %v9532 = vunpack.c.h.b16 %v7403
    %v9533 = vunpack.c.l.b16 %v7404
    %v9534 = vunpack.c.h.b16 %v7404
    %v9535 = vunpack.c.l.b16 %v7405
    %v9536 = vunpack.c.h.b16 %v7405
    %v9537 = vunpack.c.l.b16 %v7406
    %v9538 = vunpack.c.h.b16 %v7406
    %v9539 = vunpack.c.l.b16 %v7407
    %v9540 = vunpack.c.h.b16 %v7407
    %v9541 = vunpack.c.l.b16 %v7408
    %v9542 = vunpack.c.h.b16 %v7408
    %v9543 = vunpack.c.l.b16 %v7409
    %v9544 = vunpack.c.h.b16 %v7409
    %v9545 = vunpack.c.l.b16 %v7410
    %v9546 = vunpack.c.h.b16 %v7410
    %v9547 = vunpack.c.l.b16 %v7411
    %v9548 = vunpack.c.h.b16 %v7411
    %v9549 = vunpack.c.l.b16 %v7412
    %v9550 = vunpack.c.h.b16 %v7412
    %v9551 = vunpack.c.l.b16 %v7413
    %v9552 = vunpack.c.h.b16 %v7413
    %v9553 = vunpack.c.l.b16 %v7414
    %v9554 = vunpack.c.h.b16 %v7414
    %v9555 = vunpack.c.l.b16 %v7415
    %v9556 = vunpack.c.h.b16 %v7415
    %v9557 = vunpack.c.l.b16 %v7416
    %v9558 = vunpack.c.h.b16 %v7416
    %v9559 = vunpack.c.l.b16 %v7417
    %v9560 = vunpack.c.h.b16 %v7417
    %v9561 = vunpack.c.l.b16 %v7418
    %v9562 = vunpack.c.h.b16 %v7418
    %v9563 = vunpack.c.l.b16 %v7419
    %v9564 = vunpack.c.h.b16 %v7419
    %v9565 = vunpack.c.l.b16 %v7420
    %v9566 = vunpack.c.h.b16 %v7420
    %v9567 = vunpack.c.l.b16 %v7421
    %v9568 = vunpack.c.h.b16 %v7421
    %v9569 = vunpack.c.l.b16 %v7422
    %v9570 = vunpack.c.h.b16 %v7422
    %v9571 = vunpack.c.l.b16 %v7423
    %v9572 = vunpack.c.h.b16 %v7423
    %v9573 = vunpack.c.l.b16 %v7424
    %v9574 = vunpack.c.h.b16 %v7424
    %v9575 = vunpack.c.l.b16 %v7425
    %v9576 = vunpack.c.h.b16 %v7425
    %v9577 = vunpack.c.l.b16 %v7426
    %v9578 = vunpack.c.h.b16 %v7426
    %v9579 = vunpack.c.l.b16 %v7427
    %v9580 = vunpack.c.h.b16 %v7427
    %v9581 = vunpack.c.l.b16 %v7428
    %v9582 = vunpack.c.h.b16 %v7428
    %v9583 = vunpack.c.l.b16 %v7429
    %v9584 = vunpack.c.h.b16 %v7429
    %v9585 = vunpack.c.l.b16 %v7430
    %v9586 = vunpack.c.h.b16 %v7430
    %v9587 = vunpack.c.l.b16 %v7431
    %v9588 = vunpack.c.h.b16 %v7431
    %v9589 = vunpack.c.l.b16 %v7432
    %v9590 = vunpack.c.h.b16 %v7432
    %v9591 = vunpack.c.l.b16 %v7433
    %v9592 = vunpack.c.h.b16 %v7433
    %v9593 = vunpack.c.l.b16 %v7434
    %v9594 = vunpack.c.h.b16 %v7434
    %v9595 = vunpack.c.l.b16 %v7435
    %v9596 = vunpack.c.h.b16 %v7435
    %v9597 = vunpack.c.l.b16 %v7436
    %v9598 = vunpack.c.h.b16 %v7436
    %v9599 = vunpack.c.l.b16 %v7437
    %v9600 = vunpack.c.h.b16 %v7437
    %v9601 = vunpack.c.l.b16 %v7438
    %v9602 = vunpack.c.h.b16 %v7438
    %v9603 = vunpack.c.l.b16 %v7439
    %v9604 = vunpack.c.h.b16 %v7439
    %v9605 = vunpack.c.l.b16 %v7440
    %v9606 = vunpack.c.h.b16 %v7440
    %v9607 = vunpack.c.l.b16 %v7441
    %v9608 = vunpack.c.h.b16 %v7441
    %v9609 = vunpack.c.l.b16 %v7442
    %v9610 = vunpack.c.h.b16 %v7442
    %v9611 = vunpack.c.l.b16 %v7443
    %v9612 = vunpack.c.h.b16 %v7443
    %v9613 = vunpack.c.l.b16 %v7444
    %v9614 = vunpack.c.h.b16 %v7444
    %v9615 = vunpack.c.l.b16 %v7445
    %v9616 = vunpack.c.h.b16 %v7445
    %v9617 = vunpack.c.l.b16 %v7446
    %v9618 = vunpack.c.h.b16 %v7446
    %v9619 = vunpack.c.l.b16 %v7447
    %v9620 = vunpack.c.h.b16 %v7447
    %v9621 = vunpack.c.l.b16 %v7448
    %v9622 = vunpack.c.h.b16 %v7448
    %v9623 = vunpack.c.l.b16 %v7449
    %v9624 = vunpack.c.h.b16 %v7449
    %v9625 = vunpack.c.l.b16 %v7450
    %v9626 = vunpack.c.h.b16 %v7450
    %v9627 = vunpack.c.l.b16 %v7451
    %v9628 = vunpack.c.h.b16 %v7451
    %v9629 = vunpack.c.l.b16 %v7452
    %v9630 = vunpack.c.h.b16 %v7452
    %v9631 = vunpack.c.l.b16 %v7453
    %v9632 = vunpack.c.h.b16 %v7453
    %v9633 = vunpack.c.l.b16 %v7454
    %v9634 = vunpack.c.h.b16 %v7454
    %v9635 = vunpack.c.l.b16 %v7455
    %v9636 = vunpack.c.h.b16 %v7455
    %v9637 = vunpack.c.l.b16 %v7456
    %v9638 = vunpack.c.h.b16 %v7456
    %v9639 = vunpack.c.l.b16 %v7457
    %v9640 = vunpack.c.h.b16 %v7457
    %v9641 = vunpack.c.l.b16 %v7458
    %v9642 = vunpack.c.h.b16 %v7458
    %v9643 = vunpack.c.l.b16 %v7459
    %v9644 = vunpack.c.h.b16 %v7459
    %v9645 = vunpack.c.l.b16 %v7460
    %v9646 = vunpack.c.h.b16 %v7460
    %v9647 = vunpack.c.l.b16 %v7461
    %v9648 = vunpack.c.h.b16 %v7461
    %v9649 = vunpack.c.l.b16 %v7462
    %v9650 = vunpack.c.h.b16 %v7462
    %v9651 = vunpack.c.l.b16 %v7463
    %v9652 = vunpack.c.h.b16 %v7463
    %v9653 = vunpack.c.l.b16 %v7464
    %v9654 = vunpack.c.h.b16 %v7464
    %v9655 = vunpack.c.l.b16 %v7465
    %v9656 = vunpack.c.h.b16 %v7465
    %v9657 = vunpack.c.l.b16 %v7466
    %v9658 = vunpack.c.h.b16 %v7466
    %v9659 = vunpack.c.l.b16 %v7467
    %v9660 = vunpack.c.h.b16 %v7467
    %v9661 = vunpack.c.l.b16 %v7468
    %v9662 = vunpack.c.h.b16 %v7468
    %v9663 = vunpack.c.l.b16 %v7469
    %v9664 = vunpack.c.h.b16 %v7469
    %v9665 = vunpack.c.l.b16 %v7470
    %v9666 = vunpack.c.h.b16 %v7470
    %v9667 = vunpack.c.l.b16 %v7471
    %v9668 = vunpack.c.h.b16 %v7471
    %v9669 = vunpack.c.l.b16 %v7472
    %v9670 = vunpack.c.h.b16 %v7472
    %v9671 = vunpack.c.l.b16 %v7473
    %v9672 = vunpack.c.h.b16 %v7473
    %v9673 = vunpack.c.l.b16 %v7474
    %v9674 = vunpack.c.h.b16 %v7474
    %v9675 = vunpack.c.l.b16 %v7475
    %v9676 = vunpack.c.h.b16 %v7475
    %v9677 = vunpack.c.l.b16 %v7476
    %v9678 = vunpack.c.h.b16 %v7476
    %v9679 = vunpack.c.l.b16 %v7477
    %v9680 = vunpack.c.h.b16 %v7477
    %v9681 = vunpack.c.l.b16 %v7478
    %v9682 = vunpack.c.h.b16 %v7478
    %v9683 = vunpack.c.l.b16 %v7479
    %v9684 = vunpack.c.h.b16 %v7479
    %v9685 = vunpack.c.l.b16 %v7480
    %v9686 = vunpack.c.h.b16 %v7480
    %v9687 = vunpack.c.l.b16 %v7481
    %v9688 = vunpack.c.h.b16 %v7481
    %v9689 = vunpack.c.l.b16 %v7482
    %v9690 = vunpack.c.h.b16 %v7482
    %v9691 = vunpack.c.l.b16 %v7483
    %v9692 = vunpack.c.h.b16 %v7483
    %v9693 = vunpack.c.l.b16 %v7484
    %v9694 = vunpack.c.h.b16 %v7484
    %v9695 = vunpack.c.l.b16 %v7485
    %v9696 = vunpack.c.h.b16 %v7485
    %v9697 = vunpack.c.l.b16 %v7486
    %v9698 = vunpack.c.h.b16 %v7486
    %v9699 = vunpack.c.l.b16 %v7487
    %v9700 = vunpack.c.h.b16 %v7487
    %v9701 = vunpack.c.l.b16 %v7488
    %v9702 = vunpack.c.h.b16 %v7488
    %v9703 = vunpack.c.l.b16 %v7489
    %v9704 = vunpack.c.h.b16 %v7489
    %v9705 = vunpack.c.l.b16 %v7490
    %v9706 = vunpack.c.h.b16 %v7490
    %v9707 = vunpack.c.l.b16 %v7491
    %v9708 = vunpack.c.h.b16 %v7491
    %v9709 = vunpack.c.l.b16 %v7492
    %v9710 = vunpack.c.h.b16 %v7492
    %v9711 = vunpack.c.l.b16 %v7493
    %v9712 = vunpack.c.h.b16 %v7493
    %v9713 = vunpack.c.l.b16 %v7494
    %v9714 = vunpack.c.h.b16 %v7494
    %v9715 = vunpack.c.l.b16 %v7495
    %v9716 = vunpack.c.h.b16 %v7495
    %v9717 = vunpack.c.l.b16 %v7496
    %v9718 = vunpack.c.h.b16 %v7496
    %v9719 = vunpack.c.l.b16 %v7497
    %v9720 = vunpack.c.h.b16 %v7497
    %v9721 = vunpack.c.l.b16 %v7498
    %v9722 = vunpack.c.h.b16 %v7498
    %v9723 = vunpack.c.l.b16 %v7499
    %v9724 = vunpack.c.h.b16 %v7499
    %v9725 = vunpack.c.l.b16 %v7500
    %v9726 = vunpack.c.h.b16 %v7500
    %v9727 = vunpack.c.l.b16 %v7501
    %v9728 = vunpack.c.h.b16 %v7501
    %v9729 = vunpack.c.l.b16 %v7502
    %v9730 = vunpack.c.h.b16 %v7502
    %v9731 = vunpack.c.l.b16 %v7503
    %v9732 = vunpack.c.h.b16 %v7503
    %v9733 = vunpack.c.l.b16 %v7504
    %v9734 = vunpack.c.h.b16 %v7504
    %v9735 = vunpack.c.l.b16 %v7505
    %v9736 = vunpack.c.h.b16 %v7505
    %v9737 = vunpack.c.l.b16 %v7506
    %v9738 = vunpack.c.h.b16 %v7506
    %v9739 = vunpack.c.l.b16 %v7507
    %v9740 = vunpack.c.h.b16 %v7507
    %v9741 = vunpack.c.l.b16 %v7508
    %v9742 = vunpack.c.h.b16 %v7508
    %v9743 = vunpack.c.l.b16 %v7509
    %v9744 = vunpack.c.h.b16 %v7509
    %v9745 = vunpack.c.l.b16 %v7510
    %v9746 = vunpack.c.h.b16 %v7510
    %v9747 = vunpack.c.l.b16 %v7511
    %v9748 = vunpack.c.h.b16 %v7511
    %v9749 = vunpack.c.l.b16 %v7512
    %v9750 = vunpack.c.h.b16 %v7512
    %v9751 = vunpack.c.l.b16 %v7513
    %v9752 = vunpack.c.h.b16 %v7513
    %v9753 = vunpack.c.l.b16 %v7514
    %v9754 = vunpack.c.h.b16 %v7514
    %v9755 = vunpack.c.l.b16 %v7515
    %v9756 = vunpack.c.h.b16 %v7515
    %v9757 = vunpack.c.l.b16 %v7516
    %v9758 = vunpack.c.h.b16 %v7516
    %v9759 = vunpack.c.l.b16 %v7517
    %v9760 = vunpack.c.h.b16 %v7517
    %v9761 = vunpack.c.l.b16 %v7518
    %v9762 = vunpack.c.h.b16 %v7518
    %v9763 = vunpack.c.l.b16 %v7519
    %v9764 = vunpack.c.h.b16 %v7519
    %v9765 = vunpack.c.l.b16 %v7520
    %v9766 = vunpack.c.h.b16 %v7520
    %v9767 = vunpack.c.l.b16 %v7521
    %v9768 = vunpack.c.h.b16 %v7521
    %v9769 = vunpack.c.l.b16 %v7522
    %v9770 = vunpack.c.h.b16 %v7522
    %v9771 = vunpack.c.l.b16 %v7523
    %v9772 = vunpack.c.h.b16 %v7523
    %v9773 = vunpack.c.l.b16 %v7524
    %v9774 = vunpack.c.h.b16 %v7524
    %v9775 = vunpack.c.l.b16 %v7525
    %v9776 = vunpack.c.h.b16 %v7525
    %v9777 = vunpack.c.l.b16 %v7526
    %v9778 = vunpack.c.h.b16 %v7526
    %v9779 = vunpack.c.l.b16 %v7527
    %v9780 = vunpack.c.h.b16 %v7527
    %v9781 = vunpack.c.l.b16 %v7528
    %v9782 = vunpack.c.h.b16 %v7528
    %v9783 = vunpack.c.l.b16 %v7529
    %v9784 = vunpack.c.h.b16 %v7529
    %v9785 = vunpack.c.l.b16 %v7530
    %v9786 = vunpack.c.h.b16 %v7530
    %v9787 = vunpack.c.l.b16 %v7531
    %v9788 = vunpack.c.h.b16 %v7531
    %v9789 = vunpack.c.l.b16 %v7532
    %v9790 = vunpack.c.h.b16 %v7532
    %v9791 = vunpack.c.l.b16 %v7533
    %v9792 = vunpack.c.h.b16 %v7533
    %v9793 = vunpack.c.l.b16 %v7534
    %v9794 = vunpack.c.h.b16 %v7534
    %v9795 = vunpack.c.l.b16 %v7535
    %v9796 = vunpack.c.h.b16 %v7535
    %v9797 = vunpack.c.l.b16 %v7536
    %v9798 = vunpack.c.h.b16 %v7536
    %v9799 = vunpack.c.l.b16 %v7537
    %v9800 = vunpack.c.h.b16 %v7537
    %v9801 = vunpack.c.l.b16 %v7538
    %v9802 = vunpack.c.h.b16 %v7538
    %v9803 = vunpack.c.l.b16 %v7539
    %v9804 = vunpack.c.h.b16 %v7539
    %v9805 = vunpack.c.l.b16 %v7540
    %v9806 = vunpack.c.h.b16 %v7540
    %v9807 = vunpack.c.l.b16 %v7541
    %v9808 = vunpack.c.h.b16 %v7541
    %v9809 = vunpack.c.l.b16 %v7542
    %v9810 = vunpack.c.h.b16 %v7542
    %v9811 = vunpack.c.l.b16 %v7543
    %v9812 = vunpack.c.h.b16 %v7543
    %v9813 = vunpack.c.l.b16 %v7544
    %v9814 = vunpack.c.h.b16 %v7544
    %v9815 = vunpack.c.l.b16 %v7545
    %v9816 = vunpack.c.h.b16 %v7545
    %v9817 = vunpack.c.l.b16 %v7546
    %v9818 = vunpack.c.h.b16 %v7546
    %v9819 = vunpack.c.l.b16 %v7547
    %v9820 = vunpack.c.h.b16 %v7547
    %v9821 = vunpack.c.l.b16 %v7548
    %v9822 = vunpack.c.h.b16 %v7548
    %v9823 = vunpack.c.l.b16 %v7549
    %v9824 = vunpack.c.h.b16 %v7549
    %v9825 = vunpack.c.l.b16 %v7550
    %v9826 = vunpack.c.h.b16 %v7550
    %v9827 = vunpack.c.l.b16 %v7551
    %v9828 = vunpack.c.h.b16 %v7551
    %v9829 = vunpack.c.l.b16 %v7552
    %v9830 = vunpack.c.h.b16 %v7552
    %v9831 = vunpack.c.l.b16 %v7553
    %v9832 = vunpack.c.h.b16 %v7553
    %v9833 = vunpack.c.l.b16 %v7554
    %v9834 = vunpack.c.h.b16 %v7554
    %v9835 = vunpack.c.l.b16 %v7555
    %v9836 = vunpack.c.h.b16 %v7555
    %v9837 = vunpack.c.l.b16 %v7556
    %v9838 = vunpack.c.h.b16 %v7556
    %v9839 = vunpack.c.l.b16 %v7557
    %v9840 = vunpack.c.h.b16 %v7557
    %v9841 = vunpack.c.l.b16 %v7558
    %v9842 = vunpack.c.h.b16 %v7558
    %v9843 = vunpack.c.l.b16 %v7559
    %v9844 = vunpack.c.h.b16 %v7559
    %v9845 = vunpack.c.l.b16 %v7560
    %v9846 = vunpack.c.h.b16 %v7560
    %v9847 = vunpack.c.l.b16 %v7561
    %v9848 = vunpack.c.h.b16 %v7561
    %v9849 = vunpack.c.l.b16 %v7562
    %v9850 = vunpack.c.h.b16 %v7562
    %v9851 = vunpack.c.l.b16 %v7563
    %v9852 = vunpack.c.h.b16 %v7563
    %v9853 = vunpack.c.l.b16 %v7564
    %v9854 = vunpack.c.h.b16 %v7564
    %v9855 = vunpack.c.l.b16 %v7565
    %v9856 = vunpack.c.h.b16 %v7565
    %v9857 = vunpack.c.l.b16 %v7566
    %v9858 = vunpack.c.h.b16 %v7566
    %v9859 = vunpack.c.l.b16 %v7567
    %v9860 = vunpack.c.h.b16 %v7567
    %v9861 = vunpack.c.l.b16 %v7568
    %v9862 = vunpack.c.h.b16 %v7568
    %v9863 = vunpack.c.l.b16 %v7569
    %v9864 = vunpack.c.h.b16 %v7569
    %v9865 = vunpack.c.l.b16 %v7570
    %v9866 = vunpack.c.h.b16 %v7570
    %v9867 = vunpack.c.l.b16 %v7571
    %v9868 = vunpack.c.h.b16 %v7571
    %v9869 = vunpack.c.l.b16 %v7572
    %v9870 = vunpack.c.h.b16 %v7572
    %v9871 = vunpack.c.l.b16 %v7573
    %v9872 = vunpack.c.h.b16 %v7573
    %v9873 = vunpack.c.l.b16 %v7574
    %v9874 = vunpack.c.h.b16 %v7574
    %v9875 = vunpack.c.l.b16 %v7575
    %v9876 = vunpack.c.h.b16 %v7575
    %v9877 = vunpack.c.l.b16 %v7576
    %v9878 = vunpack.c.h.b16 %v7576
    %v9879 = vunpack.c.l.b16 %v7577
    %v9880 = vunpack.c.h.b16 %v7577
    %v9881 = vunpack.c.l.b16 %v7578
    %v9882 = vunpack.c.h.b16 %v7578
    %v9883 = vunpack.c.l.b16 %v7579
    %v9884 = vunpack.c.h.b16 %v7579
    %v9885 = vunpack.c.l.b16 %v7580
    %v9886 = vunpack.c.h.b16 %v7580
    %v9887 = vunpack.c.l.b16 %v7581
    %v9888 = vunpack.c.h.b16 %v7581
    %v9889 = vunpack.c.l.b16 %v7582
    %v9890 = vunpack.c.h.b16 %v7582
    %v9891 = vunpack.c.l.b16 %v7583
    %v9892 = vunpack.c.h.b16 %v7583
    %v9893 = vunpack.c.l.b16 %v7584
    %v9894 = vunpack.c.h.b16 %v7584
    %v9895 = vunpack.c.l.b16 %v7585
    %v9896 = vunpack.c.h.b16 %v7585
    %v9897 = vunpack.c.l.b16 %v7586
    %v9898 = vunpack.c.h.b16 %v7586
    %v9899 = vunpack.c.l.b16 %v7587
    %v9900 = vunpack.c.h.b16 %v7587
    %v9901 = vunpack.c.l.b16 %v7588
    %v9902 = vunpack.c.h.b16 %v7588
    %v9903 = vunpack.c.l.b16 %v7589
    %v9904 = vunpack.c.h.b16 %v7589
    %v9905 = vunpack.c.l.b16 %v7590
    %v9906 = vunpack.c.h.b16 %v7590
    %v9907 = vunpack.c.l.b16 %v7591
    %v9908 = vunpack.c.h.b16 %v7591
    %v9909 = vunpack.c.l.b16 %v7592
    %v9910 = vunpack.c.h.b16 %v7592
    %v9911 = vunpack.c.l.b16 %v7593
    %v9912 = vunpack.c.h.b16 %v7593
    %v9913 = vunpack.c.l.b16 %v7594
    %v9914 = vunpack.c.h.b16 %v7594
    %v9915 = vunpack.c.l.b16 %v7595
    %v9916 = vunpack.c.h.b16 %v7595
    %v9917 = vunpack.c.l.b16 %v7596
    %v9918 = vunpack.c.h.b16 %v7596
    %v9919 = vunpack.c.l.b16 %v7597
    %v9920 = vunpack.c.h.b16 %v7597
    %v9921 = vunpack.c.l.b16 %v7598
    %v9922 = vunpack.c.h.b16 %v7598
    %v9923 = vunpack.c.l.b16 %v7599
    %v9924 = vunpack.c.h.b16 %v7599
    %v9925 = vunpack.c.l.b16 %v7600
    %v9926 = vunpack.c.h.b16 %v7600
    %v9927 = vunpack.c.l.b16 %v7601
    %v9928 = vunpack.c.h.b16 %v7601
    %v9929 = vunpack.c.l.b16 %v7602
    %v9930 = vunpack.c.h.b16 %v7602
    %v9931 = vunpack.c.l.b16 %v7603
    %v9932 = vunpack.c.h.b16 %v7603
    %v9933 = vunpack.c.l.b16 %v7604
    %v9934 = vunpack.c.h.b16 %v7604
    %v9935 = vunpack.c.l.b16 %v7605
    %v9936 = vunpack.c.h.b16 %v7605
    %v9937 = vunpack.c.l.b16 %v7606
    %v9938 = vunpack.c.h.b16 %v7606
    %v9939 = vunpack.c.l.b16 %v7607
    %v9940 = vunpack.c.h.b16 %v7607
    %v9941 = vunpack.c.l.b16 %v7608
    %v9942 = vunpack.c.h.b16 %v7608
    %v9943 = vunpack.c.l.b16 %v7609
    %v9944 = vunpack.c.h.b16 %v7609
    %v9945 = vunpack.c.l.b16 %v7610
    %v9946 = vunpack.c.h.b16 %v7610
    %v9947 = vunpack.c.l.b16 %v7611
    %v9948 = vunpack.c.h.b16 %v7611
    %v9949 = vunpack.c.l.b16 %v7612
    %v9950 = vunpack.c.h.b16 %v7612
    %v9951 = vunpack.c.l.b16 %v7613
    %v9952 = vunpack.c.h.b16 %v7613
    %v9953 = vunpack.c.l.b16 %v7614
    %v9954 = vunpack.c.h.b16 %v7614
    %v9955 = vunpack.c.l.b16 %v7615
    %v9956 = vunpack.c.h.b16 %v7615
    %v9957 = vunpack.c.l.b16 %v7616
    %v9958 = vunpack.c.h.b16 %v7616
    %v9959 = vunpack.c.l.b16 %v7617
    %v9960 = vunpack.c.h.b16 %v7617
    %v9961 = vunpack.c.l.b16 %v7618
    %v9962 = vunpack.c.h.b16 %v7618
    %v9963 = vunpack.c.l.b16 %v7619
    %v9964 = vunpack.c.h.b16 %v7619
    %v9965 = vunpack.c.l.b16 %v7620
    %v9966 = vunpack.c.h.b16 %v7620
    %v9967 = vunpack.c.l.b16 %v7621
    %v9968 = vunpack.c.h.b16 %v7621
    %v9969 = vunpack.c.l.b16 %v7622
    %v9970 = vunpack.c.h.b16 %v7622
    %v9971 = vunpack.c.l.b16 %v7623
    %v9972 = vunpack.c.h.b16 %v7623
    %v9973 = vunpack.c.l.b16 %v7624
    %v9974 = vunpack.c.h.b16 %v7624
    %v9975 = vunpack.c.l.b16 %v7625
    %v9976 = vunpack.c.h.b16 %v7625
    %v9977 = vunpack.c.l.b16 %v7626
    %v9978 = vunpack.c.h.b16 %v7626
    %v9979 = vunpack.c.l.b16 %v7627
    %v9980 = vunpack.c.h.b16 %v7627
    %v9981 = vunpack.c.l.b16 %v7628
    %v9982 = vunpack.c.h.b16 %v7628
    %v9983 = vunpack.c.l.b16 %v7629
    %v9984 = vunpack.c.h.b16 %v7629
    %v9985 = vunpack.c.l.b16 %v7630
    %v9986 = vunpack.c.h.b16 %v7630
    %v9987 = vunpack.c.l.b16 %v7631
    %v9988 = vunpack.c.h.b16 %v7631
    %v9989 = vunpack.c.l.b16 %v7632
    %v9990 = vunpack.c.h.b16 %v7632
    %v9991 = vunpack.c.l.b16 %v7633
    %v9992 = vunpack.c.h.b16 %v7633
    %v9993 = vunpack.c.l.b16 %v7634
    %v9994 = vunpack.c.h.b16 %v7634
    %v9995 = vunpack.c.l.b16 %v7635
    %v9996 = vunpack.c.h.b16 %v7635
    %v9997 = vunpack.c.l.b16 %v7636
    %v9998 = vunpack.c.h.b16 %v7636
    %v9999 = vunpack.c.l.b16 %v7637
    %v10000 = vunpack.c.h.b16 %v7637
    %v10001 = vunpack.c.l.b16 %v7638
    %v10002 = vunpack.c.h.b16 %v7638
    %v10003 = vunpack.c.l.b16 %v7639
    %v10004 = vunpack.c.h.b16 %v7639
    %v10005 = vunpack.c.l.b16 %v7640
    %v10006 = vunpack.c.h.b16 %v7640
    %v10007 = vunpack.c.l.b16 %v7641
    %v10008 = vunpack.c.h.b16 %v7641
    %v10009 = vunpack.c.l.b16 %v7642
    %v10010 = vunpack.c.h.b16 %v7642
    %v10011 = vunpack.c.l.b16 %v7643
    %v10012 = vunpack.c.h.b16 %v7643
    %v10013 = vunpack.c.l.b16 %v7644
    %v10014 = vunpack.c.h.b16 %v7644
    %v10015 = vunpack.c.l.b16 %v7645
    %v10016 = vunpack.c.h.b16 %v7645
    %v10017 = vunpack.c.l.b16 %v7646
    %v10018 = vunpack.c.h.b16 %v7646
    %v10019 = vunpack.c.l.b16 %v7647
    %v10020 = vunpack.c.h.b16 %v7647
    %v10021 = vunpack.c.l.b16 %v7648
    %v10022 = vunpack.c.h.b16 %v7648
    %v10023 = vunpack.c.l.b16 %v7649
    %v10024 = vunpack.c.h.b16 %v7649
    %v10025 = vunpack.c.l.b16 %v7650
    %v10026 = vunpack.c.h.b16 %v7650
    %v10027 = vunpack.c.l.b16 %v7651
    %v10028 = vunpack.c.h.b16 %v7651
    %v10029 = vunpack.c.l.b16 %v7652
    %v10030 = vunpack.c.h.b16 %v7652
    %v10031 = vunpack.c.l.b16 %v7653
    %v10032 = vunpack.c.h.b16 %v7653
    %v10033 = vunpack.c.l.b16 %v7654
    %v10034 = vunpack.c.h.b16 %v7654
    %v10035 = vunpack.c.l.b16 %v7655
    %v10036 = vunpack.c.h.b16 %v7655
    %v10037 = vunpack.c.l.b16 %v7656
    %v10038 = vunpack.c.h.b16 %v7656
    %v10039 = vunpack.c.l.b16 %v7657
    %v10040 = vunpack.c.h.b16 %v7657
    %v10041 = vunpack.c.l.b16 %v7658
    %v10042 = vunpack.c.h.b16 %v7658
    %v10043 = vunpack.c.l.b16 %v7659
    %v10044 = vunpack.c.h.b16 %v7659
    %v10045 = vunpack.c.l.b16 %v7660
    %v10046 = vunpack.c.h.b16 %v7660
    %v10047 = vunpack.c.l.b16 %v7661
    %v10048 = vunpack.c.h.b16 %v7661
    %v10049 = vunpack.c.l.b16 %v7662
    %v10050 = vunpack.c.h.b16 %v7662
    %v10051 = vunpack.c.l.b16 %v7663
    %v10052 = vunpack.c.h.b16 %v7663
    %v10053 = vunpack.c.l.b16 %v7664
    %v10054 = vunpack.c.h.b16 %v7664
    %v10055 = vunpack.c.l.b16 %v7665
    %v10056 = vunpack.c.h.b16 %v7665
    %v10057 = vunpack.c.l.b16 %v7666
    %v10058 = vunpack.c.h.b16 %v7666
    %v10059 = vunpack.c.l.b16 %v7667
    %v10060 = vunpack.c.h.b16 %v7667
    %v10061 = vunpack.c.l.b16 %v7668
    %v10062 = vunpack.c.h.b16 %v7668
    %v10063 = vunpack.c.l.b16 %v7669
    %v10064 = vunpack.c.h.b16 %v7669
    %v10065 = vunpack.c.l.b16 %v7670
    %v10066 = vunpack.c.h.b16 %v7670
    %v10067 = vunpack.c.l.b16 %v7671
    %v10068 = vunpack.c.h.b16 %v7671
    %v10069 = vunpack.c.l.b16 %v7672
    %v10070 = vunpack.c.h.b16 %v7672
    %v10071 = vunpack.c.l.b16 %v7673
    %v10072 = vunpack.c.h.b16 %v7673
    %v10073 = vunpack.c.l.b16 %v7674
    %v10074 = vunpack.c.h.b16 %v7674
    %v10075 = vunpack.c.l.b16 %v7675
    %v10076 = vunpack.c.h.b16 %v7675
    %v10077 = vunpack.c.l.b16 %v7676
    %v10078 = vunpack.c.h.b16 %v7676
    %v10079 = vunpack.c.l.b16 %v7677
    %v10080 = vunpack.c.h.b16 %v7677
    %v10081 = vunpack.c.l.b16 %v7678
    %v10082 = vunpack.c.h.b16 %v7678
    %v10083 = vunpack.c.l.b16 %v7679
    %v10084 = vunpack.c.h.b16 %v7679
    %v10085 = vunpack.c.l.b16 %v7680
    %v10086 = vunpack.c.h.b16 %v7680
    %v10087 = vunpack.c.l.b16 %v7681
    %v10088 = vunpack.c.h.b16 %v7681
    %v10089 = vunpack.c.l.b16 %v7682
    %v10090 = vunpack.c.h.b16 %v7682
    %v10091 = vunpack.c.l.b16 %v7683
    %v10092 = vunpack.c.h.b16 %v7683
    %v10093 = vunpack.c.l.b16 %v7684
    %v10094 = vunpack.c.h.b16 %v7684
    %v10095 = vunpack.c.l.b16 %v7685
    %v10096 = vunpack.c.h.b16 %v7685
    %v10097 = vunpack.c.l.b16 %v7686
    %v10098 = vunpack.c.h.b16 %v7686
    %v10099 = vunpack.c.l.b16 %v7687
    %v10100 = vunpack.c.h.b16 %v7687
    %v10101 = vunpack.c.l.b16 %v7688
    %v10102 = vunpack.c.h.b16 %v7688
    %v10103 = vunpack.c.l.b16 %v7689
    %v10104 = vunpack.c.h.b16 %v7689
    %v10105 = vunpack.c.l.b16 %v7690
    %v10106 = vunpack.c.h.b16 %v7690
    %v10107 = vunpack.c.l.b16 %v7691
    %v10108 = vunpack.c.h.b16 %v7691
    %v10109 = vunpack.c.l.b16 %v7692
    %v10110 = vunpack.c.h.b16 %v7692
    %v10111 = vunpack.c.l.b16 %v7693
    %v10112 = vunpack.c.h.b16 %v7693
    %v10113 = vunpack.c.l.b16 %v7694
    %v10114 = vunpack.c.h.b16 %v7694
    %v10115 = vunpack.c.l.b16 %v7695
    %v10116 = vunpack.c.h.b16 %v7695
    %v10117 = vunpack.c.l.b16 %v7696
    %v10118 = vunpack.c.h.b16 %v7696
    %v10119 = vunpack.c.l.b16 %v7697
    %v10120 = vunpack.c.h.b16 %v7697
    %v10121 = vunpack.c.l.b16 %v7698
    %v10122 = vunpack.c.h.b16 %v7698
    %v10123 = vunpack.c.l.b16 %v7699
    %v10124 = vunpack.c.h.b16 %v7699
    %v10125 = vunpack.c.l.b16 %v7700
    %v10126 = vunpack.c.h.b16 %v7700
    %v10127 = vunpack.c.l.b16 %v7701
    %v10128 = vunpack.c.h.b16 %v7701
    %v10129 = vunpack.c.l.b16 %v7702
    %v10130 = vunpack.c.h.b16 %v7702
    %v10131 = vunpack.c.l.b16 %v7703
    %v10132 = vunpack.c.h.b16 %v7703
    %v10133 = vunpack.c.l.b16 %v7704
    %v10134 = vunpack.c.h.b16 %v7704
    %v10135 = vunpack.c.l.b16 %v7705
    %v10136 = vunpack.c.h.b16 %v7705
    %v10137 = vunpack.c.l.b16 %v7706
    %v10138 = vunpack.c.h.b16 %v7706
    %v10139 = vunpack.c.l.b16 %v7707
    %v10140 = vunpack.c.h.b16 %v7707
    %v10141 = vunpack.c.l.b16 %v7708
    %v10142 = vunpack.c.h.b16 %v7708
    %v10143 = vunpack.c.l.b16 %v7709
    %v10144 = vunpack.c.h.b16 %v7709
    %v10145 = vunpack.c.l.b16 %v7710
    %v10146 = vunpack.c.h.b16 %v7710
    %v10147 = vunpack.c.l.b16 %v7711
    %v10148 = vunpack.c.h.b16 %v7711
    %v10149 = vunpack.c.l.b16 %v7712
    %v10150 = vunpack.c.h.b16 %v7712
    %v10151 = vunpack.c.l.b16 %v7713
    %v10152 = vunpack.c.h.b16 %v7713
    %v10153 = vunpack.c.l.b16 %v7714
    %v10154 = vunpack.c.h.b16 %v7714
    %v10155 = vunpack.c.l.b16 %v7715
    %v10156 = vunpack.c.h.b16 %v7715
    %v10157 = vunpack.c.l.b16 %v7716
    %v10158 = vunpack.c.h.b16 %v7716
    %v10159 = vunpack.c.l.b16 %v7717
    %v10160 = vunpack.c.h.b16 %v7717
    %v10161 = vunpack.c.l.b16 %v7718
    %v10162 = vunpack.c.h.b16 %v7718
    %v10163 = vunpack.c.l.b16 %v7719
    %v10164 = vunpack.c.h.b16 %v7719
    %v10165 = vunpack.c.l.b16 %v7720
    %v10166 = vunpack.c.h.b16 %v7720
    %v10167 = vunpack.c.l.b16 %v7721
    %v10168 = vunpack.c.h.b16 %v7721
    %v10169 = vunpack.c.l.b16 %v7722
    %v10170 = vunpack.c.h.b16 %v7722
    %v10171 = vunpack.c.l.b16 %v7723
    %v10172 = vunpack.c.h.b16 %v7723
    %v10173 = vunpack.c.l.b16 %v7724
    %v10174 = vunpack.c.h.b16 %v7724
    %v10175 = vunpack.c.l.b16 %v7725
    %v10176 = vunpack.c.h.b16 %v7725
    %v10177 = vunpack.c.l.b16 %v7726
    %v10178 = vunpack.c.h.b16 %v7726
    %v10179 = vunpack.c.l.b16 %v7727
    %v10180 = vunpack.c.h.b16 %v7727
    %v10181 = vunpack.c.l.b16 %v7728
    %v10182 = vunpack.c.h.b16 %v7728
    %v10183 = vunpack.c.l.b16 %v7729
    %v10184 = vunpack.c.h.b16 %v7729
    %v10185 = vunpack.c.l.b16 %v7730
    %v10186 = vunpack.c.h.b16 %v7730
    %v10187 = vunpack.c.l.b16 %v7731
    %v10188 = vunpack.c.h.b16 %v7731
    %v10189 = vunpack.c.l.b16 %v7732
    %v10190 = vunpack.c.h.b16 %v7732
    %v10191 = vunpack.c.l.b16 %v7733
    %v10192 = vunpack.c.h.b16 %v7733
    %v10193 = vunpack.c.l.b16 %v7734
    %v10194 = vunpack.c.h.b16 %v7734
    %v10195 = vunpack.c.l.b16 %v7735
    %v10196 = vunpack.c.h.b16 %v7735
    %v10197 = vunpack.c.l.b16 %v7736
    %v10198 = vunpack.c.h.b16 %v7736
    %v10199 = vunpack.c.l.b16 %v7737
    %v10200 = vunpack.c.h.b16 %v7737
    %v10201 = vunpack.c.l.b16 %v7738
    %v10202 = vunpack.c.h.b16 %v7738
    %v10203 = vunpack.c.l.b16 %v7739
    %v10204 = vunpack.c.h.b16 %v7739
    %v10205 = vunpack.c.l.b16 %v7740
    %v10206 = vunpack.c.h.b16 %v7740
    %v10207 = vunpack.c.l.b16 %v7741
    %v10208 = vunpack.c.h.b16 %v7741
    %v10209 = vunpack.c.l.b16 %v7742
    %v10210 = vunpack.c.h.b16 %v7742
    %v10211 = vunpack.c.l.b16 %v7743
    %v10212 = vunpack.c.h.b16 %v7743
    %v10213 = vunpack.c.l.b16 %v7744
    %v10214 = vunpack.c.h.b16 %v7744
    %v10215 = vunpack.c.l.b16 %v7745
    %v10216 = vunpack.c.h.b16 %v7745
    %v10217 = vunpack.c.l.b16 %v7746
    %v10218 = vunpack.c.h.b16 %v7746
    %v10219 = vunpack.c.l.b16 %v7747
    %v10220 = vunpack.c.h.b16 %v7747
    %v10221 = vunpack.c.l.b16 %v7748
    %v10222 = vunpack.c.h.b16 %v7748
    %v10223 = vunpack.c.l.b16 %v7749
    %v10224 = vunpack.c.h.b16 %v7749
    %v10225 = vunpack.c.l.b16 %v7750
    %v10226 = vunpack.c.h.b16 %v7750
    %v10227 = vunpack.c.l.b16 %v7751
    %v10228 = vunpack.c.h.b16 %v7751
    %v10229 = vunpack.c.l.b16 %v7752
    %v10230 = vunpack.c.h.b16 %v7752
    %v10231 = vunpack.c.l.b16 %v7753
    %v10232 = vunpack.c.h.b16 %v7753
    %v10233 = vunpack.c.l.b16 %v7754
    %v10234 = vunpack.c.h.b16 %v7754
    %v10235 = vunpack.c.l.b16 %v7755
    %v10236 = vunpack.c.h.b16 %v7755
    %v10237 = vunpack.c.l.b16 %v7756
    %v10238 = vunpack.c.h.b16 %v7756
    %v10239 = vunpack.c.l.b16 %v7757
    %v10240 = vunpack.c.h.b16 %v7757
    %v10241 = vunpack.c.l.b16 %v7758
    %v10242 = vunpack.c.h.b16 %v7758
    %v10243 = vunpack.c.l.b16 %v7759
    %v10244 = vunpack.c.h.b16 %v7759
    %v10245 = vunpack.c.l.b16 %v7760
    %v10246 = vunpack.c.h.b16 %v7760
    %v10247 = vunpack.c.l.b16 %v7761
    %v10248 = vunpack.c.h.b16 %v7761
    %v10249 = vunpack.c.l.b16 %v7762
    %v10250 = vunpack.c.h.b16 %v7762
    %v10251 = vunpack.c.l.b16 %v7763
    %v10252 = vunpack.c.h.b16 %v7763
    %v10253 = vunpack.c.l.b16 %v7764
    %v10254 = vunpack.c.h.b16 %v7764
    %v10255 = vunpack.c.l.b16 %v7765
    %v10256 = vunpack.c.h.b16 %v7765
    %v10257 = vunpack.c.l.b16 %v7766
    %v10258 = vunpack.c.h.b16 %v7766
    %v10259 = vunpack.c.l.b16 %v7767
    %v10260 = vunpack.c.h.b16 %v7767
    %v10261 = vunpack.c.l.b16 %v7768
    %v10262 = vunpack.c.h.b16 %v7768
    %v10263 = vunpack.c.l.b16 %v7769
    %v10264 = vunpack.c.h.b16 %v7769
    %v10265 = vunpack.c.l.b16 %v7770
    %v10266 = vunpack.c.h.b16 %v7770
    %v10267 = vunpack.c.l.b16 %v7771
    %v10268 = vunpack.c.h.b16 %v7771
    %v10269 = vunpack.c.l.b16 %v7772
    %v10270 = vunpack.c.h.b16 %v7772
    %v10271 = vunpack.c.l.b16 %v7773
    %v10272 = vunpack.c.h.b16 %v7773
    %v10273 = vunpack.c.l.b16 %v7774
    %v10274 = vunpack.c.h.b16 %v7774
    %v10275 = vunpack.c.l.b16 %v7775
    %v10276 = vunpack.c.h.b16 %v7775
    %v10277 = vunpack.c.l.b16 %v7776
    %v10278 = vunpack.c.h.b16 %v7776
    %v10279 = vunpack.c.l.b16 %v7777
    %v10280 = vunpack.c.h.b16 %v7777
    %v10281 = vunpack.c.l.b16 %v7778
    %v10282 = vunpack.c.h.b16 %v7778
    %v10283 = vunpack.c.l.b16 %v7779
    %v10284 = vunpack.c.h.b16 %v7779
    %v10285 = vunpack.c.l.b16 %v7780
    %v10286 = vunpack.c.h.b16 %v7780
    %v10287 = vunpack.c.l.b16 %v7781
    %v10288 = vunpack.c.h.b16 %v7781
    %v10289 = vunpack.c.l.b16 %v7782
    %v10290 = vunpack.c.h.b16 %v7782
    %v10291 = vunpack.c.l.b16 %v7783
    %v10292 = vunpack.c.h.b16 %v7783
    %v10293 = vunpack.c.l.b16 %v7784
    %v10294 = vunpack.c.h.b16 %v7784
    %v10295 = vunpack.c.l.b16 %v7785
    %v10296 = vunpack.c.h.b16 %v7785
    %v10297 = vunpack.c.l.b16 %v7786
    %v10298 = vunpack.c.h.b16 %v7786
    %v10299 = vunpack.c.l.b16 %v7787
    %v10300 = vunpack.c.h.b16 %v7787
    %v10301 = vunpack.c.l.b16 %v7788
    %v10302 = vunpack.c.h.b16 %v7788
    %v10303 = vunpack.c.l.b16 %v7789
    %v10304 = vunpack.c.h.b16 %v7789
    %v10305 = vunpack.c.l.b16 %v7790
    %v10306 = vunpack.c.h.b16 %v7790
    %v10307 = vunpack.c.l.b16 %v7791
    %v10308 = vunpack.c.h.b16 %v7791
    %v10309 = vunpack.c.l.b16 %v7792
    %v10310 = vunpack.c.h.b16 %v7792
    %v10311 = vunpack.c.l.b16 %v7793
    %v10312 = vunpack.c.h.b16 %v7793
    %v10313 = vunpack.c.l.b16 %v7794
    %v10314 = vunpack.c.h.b16 %v7794
    %v10315 = vunpack.c.l.b16 %v7795
    %v10316 = vunpack.c.h.b16 %v7795
    %v10317 = vunpack.c.l.b16 %v7796
    %v10318 = vunpack.c.h.b16 %v7796
    %v10319 = vunpack.c.l.b16 %v7797
    %v10320 = vunpack.c.h.b16 %v7797
    %v10321 = vunpack.c.l.b16 %v7798
    %v10322 = vunpack.c.h.b16 %v7798
    %v10323 = vunpack.c.l.b16 %v7799
    %v10324 = vunpack.c.h.b16 %v7799
    %v10325 = vunpack.c.l.b16 %v7800
    %v10326 = vunpack.c.h.b16 %v7800
    %v10327 = vunpack.c.l.b16 %v7801
    %v10328 = vunpack.c.h.b16 %v7801
    %v10329 = vunpack.c.l.b16 %v7802
    %v10330 = vunpack.c.h.b16 %v7802
    %v10331 = vunpack.c.l.b16 %v7803
    %v10332 = vunpack.c.h.b16 %v7803
    %v10333 = vunpack.c.l.b16 %v7804
    %v10334 = vunpack.c.h.b16 %v7804
    %v10335 = vunpack.c.l.b16 %v7805
    %v10336 = vunpack.c.h.b16 %v7805
    %v10337 = vunpack.c.l.b16 %v7806
    %v10338 = vunpack.c.h.b16 %v7806
    %v10339 = vunpack.c.l.b16 %v7807
    %v10340 = vunpack.c.h.b16 %v7807
    %v10341 = vunpack.c.l.b16 %v7808
    %v10342 = vunpack.c.h.b16 %v7808
    %v10343 = vunpack.c.l.b16 %v7809
    %v10344 = vunpack.c.h.b16 %v7809
    %v10345 = vunpack.c.l.b16 %v7810
    %v10346 = vunpack.c.h.b16 %v7810
    %v10347 = vunpack.c.l.b16 %v7811
    %v10348 = vunpack.c.h.b16 %v7811
    %v10349 = vunpack.c.l.b16 %v7812
    %v10350 = vunpack.c.h.b16 %v7812
    %v10351 = vunpack.c.l.b16 %v7813
    %v10352 = vunpack.c.h.b16 %v7813
    %v10353 = vunpack.c.l.b16 %v7814
    %v10354 = vunpack.c.h.b16 %v7814
    %v10355 = vunpack.c.l.b16 %v7815
    %v10356 = vunpack.c.h.b16 %v7815
    %v10357 = vunpack.c.l.b16 %v7816
    %v10358 = vunpack.c.h.b16 %v7816
    %v10359 = vunpack.c.l.b16 %v7817
    %v10360 = vunpack.c.h.b16 %v7817
    %v10361 = vunpack.c.l.b16 %v7818
    %v10362 = vunpack.c.h.b16 %v7818
    %v10363 = vunpack.c.l.b16 %v7819
    %v10364 = vunpack.c.h.b16 %v7819
    %v10365 = vunpack.c.l.b16 %v7820
    %v10366 = vunpack.c.h.b16 %v7820
    %v10367 = vunpack.c.l.b16 %v7821
    %v10368 = vunpack.c.h.b16 %v7821
    %v10369 = vunpack.c.l.b16 %v7822
    %v10370 = vunpack.c.h.b16 %v7822
    %v10371 = vunpack.c.l.b16 %v7823
    %v10372 = vunpack.c.h.b16 %v7823
    %v10373 = vunpack.c.l.b16 %v7824
    %v10374 = vunpack.c.h.b16 %v7824
    %v10375 = vunpack.c.l.b16 %v7825
    %v10376 = vunpack.c.h.b16 %v7825
    %v10377 = vunpack.c.l.b16 %v7826
    %v10378 = vunpack.c.h.b16 %v7826
    %v10379 = vunpack.c.l.b16 %v7827
    %v10380 = vunpack.c.h.b16 %v7827
    %v10381 = vunpack.c.l.b16 %v7828
    %v10382 = vunpack.c.h.b16 %v7828
    %v10383 = vunpack.c.l.b16 %v7829
    %v10384 = vunpack.c.h.b16 %v7829
    %v10385 = vunpack.c.l.b16 %v7830
    %v10386 = vunpack.c.h.b16 %v7830
    %v10387 = vunpack.c.l.b16 %v7831
    %v10388 = vunpack.c.h.b16 %v7831
    %v10389 = vunpack.c.l.b16 %v7832
    %v10390 = vunpack.c.h.b16 %v7832
    %v10391 = vunpack.c.l.b16 %v7833
    %v10392 = vunpack.c.h.b16 %v7833
    %v10393 = vunpack.c.l.b16 %v7834
    %v10394 = vunpack.c.h.b16 %v7834
    %v10395 = vunpack.c.l.b16 %v7835
    %v10396 = vunpack.c.h.b16 %v7835
    %v10397 = vunpack.c.l.b16 %v7836
    %v10398 = vunpack.c.h.b16 %v7836
    %v10399 = vunpack.c.l.b16 %v7837
    %v10400 = vunpack.c.h.b16 %v7837
    %v10401 = vunpack.c.l.b16 %v7838
    %v10402 = vunpack.c.h.b16 %v7838
    %v10403 = vunpack.c.l.b16 %v7839
    %v10404 = vunpack.c.h.b16 %v7839
    %v10405 = vunpack.c.l.b16 %v7840
    %v10406 = vunpack.c.h.b16 %v7840
    %v10407 = vunpack.c.l.b16 %v7841
    %v10408 = vunpack.c.h.b16 %v7841
    %v10409 = vunpack.c.l.b16 %v7842
    %v10410 = vunpack.c.h.b16 %v7842
    %v10411 = vunpack.c.l.b16 %v7843
    %v10412 = vunpack.c.h.b16 %v7843
    %v10413 = vunpack.c.l.b16 %v7844
    %v10414 = vunpack.c.h.b16 %v7844
    %v10415 = vunpack.c.l.b16 %v7845
    %v10416 = vunpack.c.h.b16 %v7845
    %v10417 = vunpack.c.l.b16 %v7846
    %v10418 = vunpack.c.h.b16 %v7846
    %v10419 = vunpack.c.l.b16 %v7847
    %v10420 = vunpack.c.h.b16 %v7847
    %v10421 = vunpack.c.l.b16 %v7848
    %v10422 = vunpack.c.h.b16 %v7848
    %v10423 = vunpack.c.l.b16 %v7849
    %v10424 = vunpack.c.h.b16 %v7849
    %v10425 = vunpack.c.l.b16 %v7850
    %v10426 = vunpack.c.h.b16 %v7850
    %v10427 = vunpack.c.l.b16 %v7851
    %v10428 = vunpack.c.h.b16 %v7851
    %v10429 = vunpack.c.l.b16 %v7852
    %v10430 = vunpack.c.h.b16 %v7852
    %v10431 = vunpack.c.l.b16 %v7853
    %v10432 = vunpack.c.h.b16 %v7853
    %v10433 = vunpack.c.l.b16 %v7854
    %v10434 = vunpack.c.h.b16 %v7854
    %v10435 = vunpack.c.l.b16 %v7855
    %v10436 = vunpack.c.h.b16 %v7855
    %v10437 = vunpack.c.l.b16 %v7856
    %v10438 = vunpack.c.h.b16 %v7856
    %v10439 = vunpack.c.l.b16 %v7857
    %v10440 = vunpack.c.h.b16 %v7857
    %v10441 = vunpack.c.l.b16 %v7858
    %v10442 = vunpack.c.h.b16 %v7858
    %v10443 = vunpack.c.l.b16 %v7859
    %v10444 = vunpack.c.h.b16 %v7859
    %v10445 = vunpack.c.l.b16 %v7860
    %v10446 = vunpack.c.h.b16 %v7860
    %v10447 = vunpack.c.l.b16 %v7861
    %v10448 = vunpack.c.h.b16 %v7861
    %v10449 = vunpack.c.l.b16 %v7862
    %v10450 = vunpack.c.h.b16 %v7862
    %v10451 = vunpack.c.l.b16 %v7863
    %v10452 = vunpack.c.h.b16 %v7863
    %v10453 = vunpack.c.l.b16 %v7864
    %v10454 = vunpack.c.h.b16 %v7864
    %v10455 = vunpack.c.l.b16 %v7865
    %v10456 = vunpack.c.h.b16 %v7865
    %v10457 = vunpack.c.l.b16 %v7866
    %v10458 = vunpack.c.h.b16 %v7866
    %v10459 = vunpack.c.l.b16 %v7867
    %v10460 = vunpack.c.h.b16 %v7867
    %v10461 = vunpack.c.l.b16 %v7868
    %v10462 = vunpack.c.h.b16 %v7868
    %v10463 = vunpack.c.l.b16 %v7869
    %v10464 = vunpack.c.h.b16 %v7869
    %v10465 = vunpack.c.l.b16 %v7870
    %v10466 = vunpack.c.h.b16 %v7870
    %v10467 = vunpack.c.l.b16 %v7871
    %v10468 = vunpack.c.h.b16 %v7871
    %v10469 = vunpack.c.l.b16 %v7872
    %v10470 = vunpack.c.h.b16 %v7872
    %v10471 = vunpack.c.l.b16 %v7873
    %v10472 = vunpack.c.h.b16 %v7873
    %v10473 = vunpack.c.l.b16 %v7874
    %v10474 = vunpack.c.h.b16 %v7874
    %v10475 = vunpack.c.l.b16 %v7875
    %v10476 = vunpack.c.h.b16 %v7875
    %v10477 = vunpack.c.l.b16 %v7876
    %v10478 = vunpack.c.h.b16 %v7876
    %v10479 = vunpack.c.l.b16 %v7877
    %v10480 = vunpack.c.h.b16 %v7877
    %v10481 = vunpack.c.l.b16 %v7878
    %v10482 = vunpack.c.h.b16 %v7878
    %v10483 = vunpack.c.l.b16 %v7879
    %v10484 = vunpack.c.h.b16 %v7879
    %v10485 = vunpack.c.l.b16 %v7880
    %v10486 = vunpack.c.h.b16 %v7880
    %v10487 = vunpack.c.l.b16 %v7881
    %v10488 = vunpack.c.h.b16 %v7881
    %v10489 = vunpack.c.l.b16 %v7882
    %v10490 = vunpack.c.h.b16 %v7882
    %v10491 = vunpack.c.l.b16 %v7883
    %v10492 = vunpack.c.h.b16 %v7883
    %v10493 = vunpack.c.l.b16 %v7884
    %v10494 = vunpack.c.h.b16 %v7884
    %v10495 = vunpack.c.l.b16 %v7885
    %v10496 = vunpack.c.h.b16 %v7885
    %v10497 = vunpack.c.l.b16 %v7886
    %v10498 = vunpack.c.h.b16 %v7886
    %v10499 = vunpack.c.l.b16 %v7887
    %v10500 = vunpack.c.h.b16 %v7887
    %v10501 = vunpack.c.l.b16 %v7888
    %v10502 = vunpack.c.h.b16 %v7888
    %v10503 = vunpack.c.l.b16 %v7889
    %v10504 = vunpack.c.h.b16 %v7889
    %v10505 = vunpack.c.l.b16 %v7890
    %v10506 = vunpack.c.h.b16 %v7890
    %v10507 = vunpack.c.l.b16 %v7891
    %v10508 = vunpack.c.h.b16 %v7891
    %v10509 = vunpack.c.l.b16 %v7892
    %v10510 = vunpack.c.h.b16 %v7892
    %v10511 = vunpack.c.l.b16 %v7893
    %v10512 = vunpack.c.h.b16 %v7893
    %v10513 = vunpack.c.l.b16 %v7894
    %v10514 = vunpack.c.h.b16 %v7894
    %v10515 = vunpack.c.l.b16 %v7895
    %v10516 = vunpack.c.h.b16 %v7895
    %v10517 = vunpack.c.l.b16 %v7896
    %v10518 = vunpack.c.h.b16 %v7896
    %v10519 = vunpack.c.l.b16 %v7897
    %v10520 = vunpack.c.h.b16 %v7897
    %v10521 = vunpack.c.l.b16 %v7898
    %v10522 = vunpack.c.h.b16 %v7898
    %v10523 = vpack.c.b16 %v8801, %v8795
    %v10524 = vpack.c.b16 %v8802, %v8796
    %v10525 = vpack.c.b16 %v8803, %v8797
    %v10526 = vpack.c.b16 %v8804, %v8798
    %v10527 = vpack.c.b16 %v8805, %v8799
    %v10528 = vpack.c.b16 %v8806, %v8800
    %v10529 = vpack.c.b16 %v8813, %v8807
    %v10530 = vpack.c.b16 %v8814, %v8808
    %v10531 = vpack.c.b16 %v8815, %v8809
    %v10532 = vpack.c.b16 %v8816, %v8810
    %v10533 = vpack.c.b16 %v8817, %v8811
    %v10534 = vpack.c.b16 %v8818, %v8812
    %v10535 = vpack.c.b16 %v8825, %v8819
    %v10536 = vpack.c.b16 %v8826, %v8820
    %v10537 = vpack.c.b16 %v8827, %v8821
    %v10538 = vpack.c.b16 %v8828, %v8822
    %v10539 = vpack.c.b16 %v8829, %v8823
    %v10540 = vpack.c.b16 %v8830, %v8824
    %v10541 = vpack.c.b16 %v8837, %v8831
    %v10542 = vpack.c.b16 %v8838, %v8832
    %v10543 = vpack.c.b16 %v8839, %v8833
    %v10544 = vpack.c.b16 %v8840, %v8834
    %v10545 = vpack.c.b16 %v8841, %v8835
    %v10546 = vpack.c.b16 %v8842, %v8836
    %v10547 = vpack.c.b16 %v8849, %v8843
    %v10548 = vpack.c.b16 %v8850, %v8844
    %v10549 = vpack.c.b16 %v8851, %v8845
    %v10550 = vpack.c.b16 %v8852, %v8846
    %v10551 = vpack.c.b16 %v8853, %v8847
    %v10552 = vpack.c.b16 %v8854, %v8848
    %v10553 = vpack.c.b16 %v8861, %v8855
    %v10554 = vpack.c.b16 %v8862, %v8856
    %v10555 = vpack.c.b16 %v8863, %v8857
    %v10556 = vpack.c.b16 %v8864, %v8858
    %v10557 = vpack.c.b16 %v8865, %v8859
    %v10558 = vpack.c.b16 %v8866, %v8860
    %v10559 = vpack.c.b16 %v8873, %v8867
    %v10560 = vpack.c.b16 %v8874, %v8868
    %v10561 = vpack.c.b16 %v8875, %v8869
    %v10562 = vpack.c.b16 %v8876, %v8870
    %v10563 = vpack.c.b16 %v8877, %v8871
    %v10564 = vpack.c.b16 %v8878, %v8872
    %v10565 = vpack.c.b16 %v8885, %v8879
    %v10566 = vpack.c.b16 %v8886, %v8880
    %v10567 = vpack.c.b16 %v8887, %v8881
    %v10568 = vpack.c.b16 %v8888, %v8882
    %v10569 = vpack.c.b16 %v8889, %v8883
    %v10570 = vpack.c.b16 %v8890, %v8884
    %v10571 = vpack.c.b16 %v8897, %v8891
    %v10572 = vpack.c.b16 %v8898, %v8892
    %v10573 = vpack.c.b16 %v8899, %v8893
    %v10574 = vpack.c.b16 %v8900, %v8894
    %v10575 = vpack.c.b16 %v8901, %v8895
    %v10576 = vpack.c.b16 %v8902, %v8896
    %v10577 = vpack.c.b16 %v8909, %v8903
    %v10578 = vpack.c.b16 %v8910, %v8904
    %v10579 = vpack.c.b16 %v8911, %v8905
    %v10580 = vpack.c.b16 %v8912, %v8906
    %v10581 = vpack.c.b16 %v8913, %v8907
    %v10582 = vpack.c.b16 %v8914, %v8908
    %v10583 = vpack.c.b16 %v8921, %v8915
    %v10584 = vpack.c.b16 %v8922, %v8916
    %v10585 = vpack.c.b16 %v8923, %v8917
    %v10586 = vpack.c.b16 %v8924, %v8918
    %v10587 = vpack.c.b16 %v8925, %v8919
    %v10588 = vpack.c.b16 %v8926, %v8920
    %v10589 = vpack.c.b16 %v8933, %v8927
    %v10590 = vpack.c.b16 %v8934, %v8928
    %v10591 = vpack.c.b16 %v8935, %v8929
    %v10592 = vpack.c.b16 %v8936, %v8930
    %v10593 = vpack.c.b16 %v8937, %v8931
    %v10594 = vpack.c.b16 %v8938, %v8932
    %v10595 = vpack.c.b16 %v8945, %v8939
    %v10596 = vpack.c.b16 %v8946, %v8940
    %v10597 = vpack.c.b16 %v8947, %v8941
    %v10598 = vpack.c.b16 %v8948, %v8942
    %v10599 = vpack.c.b16 %v8949, %v8943
    %v10600 = vpack.c.b16 %v8950, %v8944
    %v10601 = vpack.c.b16 %v8957, %v8951
    %v10602 = vpack.c.b16 %v8958, %v8952
    %v10603 = vpack.c.b16 %v8959, %v8953
    %v10604 = vpack.c.b16 %v8960, %v8954
    %v10605 = vpack.c.b16 %v8961, %v8955
    %v10606 = vpack.c.b16 %v8962, %v8956
    %v10607 = vpack.c.b16 %v8969, %v8963
    %v10608 = vpack.c.b16 %v8970, %v8964
    %v10609 = vpack.c.b16 %v8971, %v8965
    %v10610 = vpack.c.b16 %v8972, %v8966
    %v10611 = vpack.c.b16 %v8973, %v8967
    %v10612 = vpack.c.b16 %v8974, %v8968
    %v10613 = vpack.c.b16 %v8981, %v8975
    %v10614 = vpack.c.b16 %v8982, %v8976
    %v10615 = vpack.c.b16 %v8983, %v8977
    %v10616 = vpack.c.b16 %v8984, %v8978
    %v10617 = vpack.c.b16 %v8985, %v8979
    %v10618 = vpack.c.b16 %v8986, %v8980
    %v10619 = vpack.c.b16 %v8993, %v8987
    %v10620 = vpack.c.b16 %v8994, %v8988
    %v10621 = vpack.c.b16 %v8995, %v8989
    %v10622 = vpack.c.b16 %v8996, %v8990
    %v10623 = vpack.c.b16 %v8997, %v8991
    %v10624 = vpack.c.b16 %v8998, %v8992
    %v10625 = vpack.c.b16 %v9005, %v8999
    %v10626 = vpack.c.b16 %v9006, %v9000
    %v10627 = vpack.c.b16 %v9007, %v9001
    %v10628 = vpack.c.b16 %v9008, %v9002
    %v10629 = vpack.c.b16 %v9009, %v9003
    %v10630 = vpack.c.b16 %v9010, %v9004
    %v10631 = vpack.c.b16 %v9017, %v9011
    %v10632 = vpack.c.b16 %v9018, %v9012
    %v10633 = vpack.c.b16 %v9019, %v9013
    %v10634 = vpack.c.b16 %v9020, %v9014
    %v10635 = vpack.c.b16 %v9021, %v9015
    %v10636 = vpack.c.b16 %v9022, %v9016
    %v10637 = vpack.c.b16 %v9029, %v9023
    %v10638 = vpack.c.b16 %v9030, %v9024
    %v10639 = vpack.c.b16 %v9031, %v9025
    %v10640 = vpack.c.b16 %v9032, %v9026
    %v10641 = vpack.c.b16 %v9033, %v9027
    %v10642 = vpack.c.b16 %v9034, %v9028
    %v10643 = vpack.c.b16 %v9041, %v9035
    %v10644 = vpack.c.b16 %v9042, %v9036
    %v10645 = vpack.c.b16 %v9043, %v9037
    %v10646 = vpack.c.b16 %v9044, %v9038
    %v10647 = vpack.c.b16 %v9045, %v9039
    %v10648 = vpack.c.b16 %v9046, %v9040
    %v10649 = vpack.c.b16 %v9053, %v9047
    %v10650 = vpack.c.b16 %v9054, %v9048
    %v10651 = vpack.c.b16 %v9055, %v9049
    %v10652 = vpack.c.b16 %v9056, %v9050
    %v10653 = vpack.c.b16 %v9057, %v9051
    %v10654 = vpack.c.b16 %v9058, %v9052
    %v10655 = vpack.c.b16 %v9065, %v9059
    %v10656 = vpack.c.b16 %v9066, %v9060
    %v10657 = vpack.c.b16 %v9067, %v9061
    %v10658 = vpack.c.b16 %v9068, %v9062
    %v10659 = vpack.c.b16 %v9069, %v9063
    %v10660 = vpack.c.b16 %v9070, %v9064
    %v10661 = vpack.c.b16 %v9077, %v9071
    %v10662 = vpack.c.b16 %v9078, %v9072
    %v10663 = vpack.c.b16 %v9079, %v9073
    %v10664 = vpack.c.b16 %v9080, %v9074
    %v10665 = vpack.c.b16 %v9081, %v9075
    %v10666 = vpack.c.b16 %v9082, %v9076
    %v10667 = vpack.c.b16 %v9089, %v9083
    %v10668 = vpack.c.b16 %v9090, %v9084
    %v10669 = vpack.c.b16 %v9091, %v9085
    %v10670 = vpack.c.b16 %v9092, %v9086
    %v10671 = vpack.c.b16 %v9093, %v9087
    %v10672 = vpack.c.b16 %v9094, %v9088
    %v10673 = vpack.c.b16 %v9101, %v9095
    %v10674 = vpack.c.b16 %v9102, %v9096
    %v10675 = vpack.c.b16 %v9103, %v9097
    %v10676 = vpack.c.b16 %v9104, %v9098
    %v10677 = vpack.c.b16 %v9105, %v9099
    %v10678 = vpack.c.b16 %v9106, %v9100
    %v10679 = vpack.c.b16 %v9113, %v9107
    %v10680 = vpack.c.b16 %v9114, %v9108
    %v10681 = vpack.c.b16 %v9115, %v9109
    %v10682 = vpack.c.b16 %v9116, %v9110
    %v10683 = vpack.c.b16 %v9117, %v9111
    %v10684 = vpack.c.b16 %v9118, %v9112
    %v10685 = vpack.c.b16 %v9125, %v9119
    %v10686 = vpack.c.b16 %v9126, %v9120
    %v10687 = vpack.c.b16 %v9127, %v9121
    %v10688 = vpack.c.b16 %v9128, %v9122
    %v10689 = vpack.c.b16 %v9129, %v9123
    %v10690 = vpack.c.b16 %v9130, %v9124
    %v10691 = vpack.c.b16 %v9137, %v9131
    %v10692 = vpack.c.b16 %v9138, %v9132
    %v10693 = vpack.c.b16 %v9139, %v9133
    %v10694 = vpack.c.b16 %v9140, %v9134
    %v10695 = vpack.c.b16 %v9141, %v9135
    %v10696 = vpack.c.b16 %v9142, %v9136
    %v10697 = vpack.c.b16 %v9149, %v9143
    %v10698 = vpack.c.b16 %v9150, %v9144
    %v10699 = vpack.c.b16 %v9151, %v9145
    %v10700 = vpack.c.b16 %v9152, %v9146
    %v10701 = vpack.c.b16 %v9153, %v9147
    %v10702 = vpack.c.b16 %v9154, %v9148
    %v10703 = vpack.c.b16 %v9161, %v9155
    %v10704 = vpack.c.b16 %v9162, %v9156
    %v10705 = vpack.c.b16 %v9163, %v9157
    %v10706 = vpack.c.b16 %v9164, %v9158
    %v10707 = vpack.c.b16 %v9165, %v9159
    %v10708 = vpack.c.b16 %v9166, %v9160
    %v10709 = vpack.c.b16 %v9173, %v9167
    %v10710 = vpack.c.b16 %v9174, %v9168
    %v10711 = vpack.c.b16 %v9175, %v9169
    %v10712 = vpack.c.b16 %v9176, %v9170
    %v10713 = vpack.c.b16 %v9177, %v9171
    %v10714 = vpack.c.b16 %v9178, %v9172
    %v10715 = vpack.c.b16 %v9185, %v9179
    %v10716 = vpack.c.b16 %v9186, %v9180
    %v10717 = vpack.c.b16 %v9187, %v9181
    %v10718 = vpack.c.b16 %v9188, %v9182
    %v10719 = vpack.c.b16 %v9189, %v9183
    %v10720 = vpack.c.b16 %v9190, %v9184
    %v10721 = vpack.c.b16 %v9197, %v9191
    %v10722 = vpack.c.b16 %v9198, %v9192
    %v10723 = vpack.c.b16 %v9199, %v9193
    %v10724 = vpack.c.b16 %v9200, %v9194
    %v10725 = vpack.c.b16 %v9201, %v9195
    %v10726 = vpack.c.b16 %v9202, %v9196
    %v10727 = vpack.c.b16 %v9209, %v9203
    %v10728 = vpack.c.b16 %v9210, %v9204
    %v10729 = vpack.c.b16 %v9211, %v9205
    %v10730 = vpack.c.b16 %v9212, %v9206
    %v10731 = vpack.c.b16 %v9213, %v9207
    %v10732 = vpack.c.b16 %v9214, %v9208
    %v10733 = vpack.c.b16 %v9221, %v9215
    %v10734 = vpack.c.b16 %v9222, %v9216
    %v10735 = vpack.c.b16 %v9223, %v9217
    %v10736 = vpack.c.b16 %v9224, %v9218
    %v10737 = vpack.c.b16 %v9225, %v9219
    %v10738 = vpack.c.b16 %v9226, %v9220
    %v10739 = vpack.c.b16 %v9233, %v9227
    %v10740 = vpack.c.b16 %v9234, %v9228
    %v10741 = vpack.c.b16 %v9235, %v9229
    %v10742 = vpack.c.b16 %v9236, %v9230
    %v10743 = vpack.c.b16 %v9237, %v9231
    %v10744 = vpack.c.b16 %v9238, %v9232
    %v10745 = vpack.c.b16 %v9245, %v9239
    %v10746 = vpack.c.b16 %v9246, %v9240
    %v10747 = vpack.c.b16 %v9247, %v9241
    %v10748 = vpack.c.b16 %v9248, %v9242
    %v10749 = vpack.c.b16 %v9249, %v9243
    %v10750 = vpack.c.b16 %v9250, %v9244
    %v10751 = vpack.c.b16 %v9257, %v9251
    %v10752 = vpack.c.b16 %v9258, %v9252
    %v10753 = vpack.c.b16 %v9259, %v9253
    %v10754 = vpack.c.b16 %v9260, %v9254
    %v10755 = vpack.c.b16 %v9261, %v9255
    %v10756 = vpack.c.b16 %v9262, %v9256
    %v10757 = vpack.c.b16 %v9269, %v9263
    %v10758 = vpack.c.b16 %v9270, %v9264
    %v10759 = vpack.c.b16 %v9271, %v9265
    %v10760 = vpack.c.b16 %v9272, %v9266
    %v10761 = vpack.c.b16 %v9273, %v9267
    %v10762 = vpack.c.b16 %v9274, %v9268
    %v10763 = vpack.c.b16 %v9281, %v9275
    %v10764 = vpack.c.b16 %v9282, %v9276
    %v10765 = vpack.c.b16 %v9283, %v9277
    %v10766 = vpack.c.b16 %v9284, %v9278
    %v10767 = vpack.c.b16 %v9285, %v9279
    %v10768 = vpack.c.b16 %v9286, %v9280
    %v10769 = vpack.c.b16 %v9293, %v9287
    %v10770 = vpack.c.b16 %v9294, %v9288
    %v10771 = vpack.c.b16 %v9295, %v9289
    %v10772 = vpack.c.b16 %v9296, %v9290
    %v10773 = vpack.c.b16 %v9297, %v9291
    %v10774 = vpack.c.b16 %v9298, %v9292
    %v10775 = vpack.c.b16 %v9305, %v9299
    %v10776 = vpack.c.b16 %v9306, %v9300
    %v10777 = vpack.c.b16 %v9307, %v9301
    %v10778 = vpack.c.b16 %v9308, %v9302
    %v10779 = vpack.c.b16 %v9309, %v9303
    %v10780 = vpack.c.b16 %v9310, %v9304
    %v10781 = vpack.c.b16 %v9317, %v9311
    %v10782 = vpack.c.b16 %v9318, %v9312
    %v10783 = vpack.c.b16 %v9319, %v9313
    %v10784 = vpack.c.b16 %v9320, %v9314
    %v10785 = vpack.c.b16 %v9321, %v9315
    %v10786 = vpack.c.b16 %v9322, %v9316
    %v10787 = vpack.c.b16 %v9329, %v9323
    %v10788 = vpack.c.b16 %v9330, %v9324
    %v10789 = vpack.c.b16 %v9331, %v9325
    %v10790 = vpack.c.b16 %v9332, %v9326
    %v10791 = vpack.c.b16 %v9333, %v9327
    %v10792 = vpack.c.b16 %v9334, %v9328
    %v10793 = vpack.c.b16 %v9341, %v9335
    %v10794 = vpack.c.b16 %v9342, %v9336
    %v10795 = vpack.c.b16 %v9343, %v9337
    %v10796 = vpack.c.b16 %v9344, %v9338
    %v10797 = vpack.c.b16 %v9345, %v9339
    %v10798 = vpack.c.b16 %v9346, %v9340
    %v10799 = vpack.c.b16 %v9353, %v9347
    %v10800 = vpack.c.b16 %v9354, %v9348
    %v10801 = vpack.c.b16 %v9355, %v9349
    %v10802 = vpack.c.b16 %v9356, %v9350
    %v10803 = vpack.c.b16 %v9357, %v9351
    %v10804 = vpack.c.b16 %v9358, %v9352
    %v10805 = vpack.c.b16 %v9365, %v9359
    %v10806 = vpack.c.b16 %v9366, %v9360
    %v10807 = vpack.c.b16 %v9367, %v9361
    %v10808 = vpack.c.b16 %v9368, %v9362
    %v10809 = vpack.c.b16 %v9369, %v9363
    %v10810 = vpack.c.b16 %v9370, %v9364
    %v10811 = vpack.c.b16 %v9377, %v9371
    %v10812 = vpack.c.b16 %v9378, %v9372
    %v10813 = vpack.c.b16 %v9379, %v9373
    %v10814 = vpack.c.b16 %v9380, %v9374
    %v10815 = vpack.c.b16 %v9381, %v9375
    %v10816 = vpack.c.b16 %v9382, %v9376
    %v10817 = vpack.c.b16 %v9389, %v9383
    %v10818 = vpack.c.b16 %v9390, %v9384
    %v10819 = vpack.c.b16 %v9391, %v9385
    %v10820 = vpack.c.b16 %v9392, %v9386
    %v10821 = vpack.c.b16 %v9393, %v9387
    %v10822 = vpack.c.b16 %v9394, %v9388
    %v10823 = vpack.c.b16 %v9401, %v9395
    %v10824 = vpack.c.b16 %v9402, %v9396
    %v10825 = vpack.c.b16 %v9403, %v9397
    %v10826 = vpack.c.b16 %v9404, %v9398
    %v10827 = vpack.c.b16 %v9405, %v9399
    %v10828 = vpack.c.b16 %v9406, %v9400
    %v10829 = vpack.c.b16 %v9413, %v9407
    %v10830 = vpack.c.b16 %v9414, %v9408
    %v10831 = vpack.c.b16 %v9415, %v9409
    %v10832 = vpack.c.b16 %v9416, %v9410
    %v10833 = vpack.c.b16 %v9417, %v9411
    %v10834 = vpack.c.b16 %v9418, %v9412
    %v10835 = vpack.c.b16 %v9425, %v9419
    %v10836 = vpack.c.b16 %v9426, %v9420
    %v10837 = vpack.c.b16 %v9427, %v9421
    %v10838 = vpack.c.b16 %v9428, %v9422
    %v10839 = vpack.c.b16 %v9429, %v9423
    %v10840 = vpack.c.b16 %v9430, %v9424
    %v10841 = vpack.c.b16 %v9437, %v9431
    %v10842 = vpack.c.b16 %v9438, %v9432
    %v10843 = vpack.c.b16 %v9439, %v9433
    %v10844 = vpack.c.b16 %v9440, %v9434
    %v10845 = vpack.c.b16 %v9441, %v9435
    %v10846 = vpack.c.b16 %v9442, %v9436
    %v10847 = vpack.c.b16 %v9449, %v9443
    %v10848 = vpack.c.b16 %v9450, %v9444
    %v10849 = vpack.c.b16 %v9451, %v9445
    %v10850 = vpack.c.b16 %v9452, %v9446
    %v10851 = vpack.c.b16 %v9453, %v9447
    %v10852 = vpack.c.b16 %v9454, %v9448
    %v10853 = vpack.c.b16 %v9461, %v9455
    %v10854 = vpack.c.b16 %v9462, %v9456
    %v10855 = vpack.c.b16 %v9463, %v9457
    %v10856 = vpack.c.b16 %v9464, %v9458
    %v10857 = vpack.c.b16 %v9465, %v9459
    %v10858 = vpack.c.b16 %v9466, %v9460
    %v10859 = vpack.c.b16 %v9473, %v9467
    %v10860 = vpack.c.b16 %v9474, %v9468
    %v10861 = vpack.c.b16 %v9475, %v9469
    %v10862 = vpack.c.b16 %v9476, %v9470
    %v10863 = vpack.c.b16 %v9477, %v9471
    %v10864 = vpack.c.b16 %v9478, %v9472
    %v10865 = vpack.c.b16 %v9485, %v9479
    %v10866 = vpack.c.b16 %v9486, %v9480
    %v10867 = vpack.c.b16 %v9487, %v9481
    %v10868 = vpack.c.b16 %v9488, %v9482
    %v10869 = vpack.c.b16 %v9489, %v9483
    %v10870 = vpack.c.b16 %v9490, %v9484
    %v10871 = vpack.c.b16 %v9497, %v9491
    %v10872 = vpack.c.b16 %v9498, %v9492
    %v10873 = vpack.c.b16 %v9499, %v9493
    %v10874 = vpack.c.b16 %v9500, %v9494
    %v10875 = vpack.c.b16 %v9501, %v9495
    %v10876 = vpack.c.b16 %v9502, %v9496
    %v10877 = vpack.c.b16 %v9509, %v9503
    %v10878 = vpack.c.b16 %v9510, %v9504
    %v10879 = vpack.c.b16 %v9511, %v9505
    %v10880 = vpack.c.b16 %v9512, %v9506
    %v10881 = vpack.c.b16 %v9513, %v9507
    %v10882 = vpack.c.b16 %v9514, %v9508
    %v10883 = vpack.c.b16 %v9521, %v9515
    %v10884 = vpack.c.b16 %v9522, %v9516
    %v10885 = vpack.c.b16 %v9523, %v9517
    %v10886 = vpack.c.b16 %v9524, %v9518
    %v10887 = vpack.c.b16 %v9525, %v9519
    %v10888 = vpack.c.b16 %v9526, %v9520
    %v10889 = vpack.c.b16 %v9533, %v9527
    %v10890 = vpack.c.b16 %v9534, %v9528
    %v10891 = vpack.c.b16 %v9535, %v9529
    %v10892 = vpack.c.b16 %v9536, %v9530
    %v10893 = vpack.c.b16 %v9537, %v9531
    %v10894 = vpack.c.b16 %v9538, %v9532
    %v10895 = vpack.c.b16 %v9545, %v9539
    %v10896 = vpack.c.b16 %v9546, %v9540
    %v10897 = vpack.c.b16 %v9547, %v9541
    %v10898 = vpack.c.b16 %v9548, %v9542
    %v10899 = vpack.c.b16 %v9549, %v9543
    %v10900 = vpack.c.b16 %v9550, %v9544
    %v10901 = vpack.c.b16 %v9557, %v9551
    %v10902 = vpack.c.b16 %v9558, %v9552
    %v10903 = vpack.c.b16 %v9559, %v9553
    %v10904 = vpack.c.b16 %v9560, %v9554
    %v10905 = vpack.c.b16 %v9561, %v9555
    %v10906 = vpack.c.b16 %v9562, %v9556
    %v10907 = vpack.c.b16 %v9569, %v9563
    %v10908 = vpack.c.b16 %v9570, %v9564
    %v10909 = vpack.c.b16 %v9571, %v9565
    %v10910 = vpack.c.b16 %v9572, %v9566
    %v10911 = vpack.c.b16 %v9573, %v9567
    %v10912 = vpack.c.b16 %v9574, %v9568
    %v10913 = vpack.c.b16 %v9581, %v9575
    %v10914 = vpack.c.b16 %v9582, %v9576
    %v10915 = vpack.c.b16 %v9583, %v9577
    %v10916 = vpack.c.b16 %v9584, %v9578
    %v10917 = vpack.c.b16 %v9585, %v9579
    %v10918 = vpack.c.b16 %v9586, %v9580
    %v10919 = vpack.c.b16 %v9593, %v9587
    %v10920 = vpack.c.b16 %v9594, %v9588
    %v10921 = vpack.c.b16 %v9595, %v9589
    %v10922 = vpack.c.b16 %v9596, %v9590
    %v10923 = vpack.c.b16 %v9597, %v9591
    %v10924 = vpack.c.b16 %v9598, %v9592
    %v10925 = vpack.c.b16 %v9605, %v9599
    %v10926 = vpack.c.b16 %v9606, %v9600
    %v10927 = vpack.c.b16 %v9607, %v9601
    %v10928 = vpack.c.b16 %v9608, %v9602
    %v10929 = vpack.c.b16 %v9609, %v9603
    %v10930 = vpack.c.b16 %v9610, %v9604
    %v10931 = vpack.c.b16 %v9617, %v9611
    %v10932 = vpack.c.b16 %v9618, %v9612
    %v10933 = vpack.c.b16 %v9619, %v9613
    %v10934 = vpack.c.b16 %v9620, %v9614
    %v10935 = vpack.c.b16 %v9621, %v9615
    %v10936 = vpack.c.b16 %v9622, %v9616
    %v10937 = vpack.c.b16 %v9629, %v9623
    %v10938 = vpack.c.b16 %v9630, %v9624
    %v10939 = vpack.c.b16 %v9631, %v9625
    %v10940 = vpack.c.b16 %v9632, %v9626
    %v10941 = vpack.c.b16 %v9633, %v9627
    %v10942 = vpack.c.b16 %v9634, %v9628
    %v10943 = vpack.c.b16 %v9641, %v9635
    %v10944 = vpack.c.b16 %v9642, %v9636
    %v10945 = vpack.c.b16 %v9643, %v9637
    %v10946 = vpack.c.b16 %v9644, %v9638
    %v10947 = vpack.c.b16 %v9645, %v9639
    %v10948 = vpack.c.b16 %v9646, %v9640
    %v10949 = vpack.c.b16 %v9653, %v9647
    %v10950 = vpack.c.b16 %v9654, %v9648
    %v10951 = vpack.c.b16 %v9655, %v9649
    %v10952 = vpack.c.b16 %v9656, %v9650
    %v10953 = vpack.c.b16 %v9657, %v9651
    %v10954 = vpack.c.b16 %v9658, %v9652
    %v10955 = vpack.c.b16 %v9665, %v9659
    %v10956 = vpack.c.b16 %v9666, %v9660
    %v10957 = vpack.c.b16 %v9667, %v9661
    %v10958 = vpack.c.b16 %v9668, %v9662
    %v10959 = vpack.c.b16 %v9669, %v9663
    %v10960 = vpack.c.b16 %v9670, %v9664
    %v10961 = vpack.c.b16 %v9677, %v9671
    %v10962 = vpack.c.b16 %v9678, %v9672
    %v10963 = vpack.c.b16 %v9679, %v9673
    %v10964 = vpack.c.b16 %v9680, %v9674
    %v10965 = vpack.c.b16 %v9681, %v9675
    %v10966 = vpack.c.b16 %v9682, %v9676
    %v10967 = vpack.c.b16 %v9689, %v9683
    %v10968 = vpack.c.b16 %v9690, %v9684
    %v10969 = vpack.c.b16 %v9691, %v9685
    %v10970 = vpack.c.b16 %v9692, %v9686
    %v10971 = vpack.c.b16 %v9693, %v9687
    %v10972 = vpack.c.b16 %v9694, %v9688
    %v10973 = vpack.c.b16 %v9701, %v9695
    %v10974 = vpack.c.b16 %v9702, %v9696
    %v10975 = vpack.c.b16 %v9703, %v9697
    %v10976 = vpack.c.b16 %v9704, %v9698
    %v10977 = vpack.c.b16 %v9705, %v9699
    %v10978 = vpack.c.b16 %v9706, %v9700
    %v10979 = vpack.c.b16 %v9713, %v9707
    %v10980 = vpack.c.b16 %v9714, %v9708
    %v10981 = vpack.c.b16 %v9715, %v9709
    %v10982 = vpack.c.b16 %v9716, %v9710
    %v10983 = vpack.c.b16 %v9717, %v9711
    %v10984 = vpack.c.b16 %v9718, %v9712
    %v10985 = vpack.c.b16 %v9725, %v9719
    %v10986 = vpack.c.b16 %v9726, %v9720
    %v10987 = vpack.c.b16 %v9727, %v9721
    %v10988 = vpack.c.b16 %v9728, %v9722
    %v10989 = vpack.c.b16 %v9729, %v9723
    %v10990 = vpack.c.b16 %v9730, %v9724
    %v10991 = vpack.c.b16 %v9737, %v9731
    %v10992 = vpack.c.b16 %v9738, %v9732
    %v10993 = vpack.c.b16 %v9739, %v9733
    %v10994 = vpack.c.b16 %v9740, %v9734
    %v10995 = vpack.c.b16 %v9741, %v9735
    %v10996 = vpack.c.b16 %v9742, %v9736
    %v10997 = vpack.c.b16 %v9749, %v9743
    %v10998 = vpack.c.b16 %v9750, %v9744
    %v10999 = vpack.c.b16 %v9751, %v9745
    %v11000 = vpack.c.b16 %v9752, %v9746
    %v11001 = vpack.c.b16 %v9753, %v9747
    %v11002 = vpack.c.b16 %v9754, %v9748
    %v11003 = vpack.c.b16 %v9761, %v9755
    %v11004 = vpack.c.b16 %v9762, %v9756
    %v11005 = vpack.c.b16 %v9763, %v9757
    %v11006 = vpack.c.b16 %v9764, %v9758
    %v11007 = vpack.c.b16 %v9765, %v9759
    %v11008 = vpack.c.b16 %v9766, %v9760
    %v11009 = vpack.c.b16 %v9773, %v9767
    %v11010 = vpack.c.b16 %v9774, %v9768
    %v11011 = vpack.c.b16 %v9775, %v9769
    %v11012 = vpack.c.b16 %v9776, %v9770
    %v11013 = vpack.c.b16 %v9777, %v9771
    %v11014 = vpack.c.b16 %v9778, %v9772
    %v11015 = vpack.c.b16 %v9785, %v9779
    %v11016 = vpack.c.b16 %v9786, %v9780
    %v11017 = vpack.c.b16 %v9787, %v9781
    %v11018 = vpack.c.b16 %v9788, %v9782
    %v11019 = vpack.c.b16 %v9789, %v9783
    %v11020 = vpack.c.b16 %v9790, %v9784
    %v11021 = vpack.c.b16 %v9797, %v9791
    %v11022 = vpack.c.b16 %v9798, %v9792
    %v11023 = vpack.c.b16 %v9799, %v9793
    %v11024 = vpack.c.b16 %v9800, %v9794
    %v11025 = vpack.c.b16 %v9801, %v9795
    %v11026 = vpack.c.b16 %v9802, %v9796
    %v11027 = vpack.c.b16 %v9809, %v9803
    %v11028 = vpack.c.b16 %v9810, %v9804
    %v11029 = vpack.c.b16 %v9811, %v9805
    %v11030 = vpack.c.b16 %v9812, %v9806
    %v11031 = vpack.c.b16 %v9813, %v9807
    %v11032 = vpack.c.b16 %v9814, %v9808
    %v11033 = vpack.c.b16 %v9821, %v9815
    %v11034 = vpack.c.b16 %v9822, %v9816
    %v11035 = vpack.c.b16 %v9823, %v9817
    %v11036 = vpack.c.b16 %v9824, %v9818
    %v11037 = vpack.c.b16 %v9825, %v9819
    %v11038 = vpack.c.b16 %v9826, %v9820
    %v11039 = vpack.c.b16 %v9833, %v9827
    %v11040 = vpack.c.b16 %v9834, %v9828
    %v11041 = vpack.c.b16 %v9835, %v9829
    %v11042 = vpack.c.b16 %v9836, %v9830
    %v11043 = vpack.c.b16 %v9837, %v9831
    %v11044 = vpack.c.b16 %v9838, %v9832
    %v11045 = vpack.c.b16 %v9845, %v9839
    %v11046 = vpack.c.b16 %v9846, %v9840
    %v11047 = vpack.c.b16 %v9847, %v9841
    %v11048 = vpack.c.b16 %v9848, %v9842
    %v11049 = vpack.c.b16 %v9849, %v9843
    %v11050 = vpack.c.b16 %v9850, %v9844
    %v11051 = vpack.c.b16 %v9857, %v9851
    %v11052 = vpack.c.b16 %v9858, %v9852
    %v11053 = vpack.c.b16 %v9859, %v9853
    %v11054 = vpack.c.b16 %v9860, %v9854
    %v11055 = vpack.c.b16 %v9861, %v9855
    %v11056 = vpack.c.b16 %v9862, %v9856
    %v11057 = vpack.c.b16 %v9869, %v9863
    %v11058 = vpack.c.b16 %v9870, %v9864
    %v11059 = vpack.c.b16 %v9871, %v9865
    %v11060 = vpack.c.b16 %v9872, %v9866
    %v11061 = vpack.c.b16 %v9873, %v9867
    %v11062 = vpack.c.b16 %v9874, %v9868
    %v11063 = vpack.c.b16 %v9881, %v9875
    %v11064 = vpack.c.b16 %v9882, %v9876
    %v11065 = vpack.c.b16 %v9883, %v9877
    %v11066 = vpack.c.b16 %v9884, %v9878
    %v11067 = vpack.c.b16 %v9885, %v9879
    %v11068 = vpack.c.b16 %v9886, %v9880
    %v11069 = vpack.c.b16 %v9893, %v9887
    %v11070 = vpack.c.b16 %v9894, %v9888
    %v11071 = vpack.c.b16 %v9895, %v9889
    %v11072 = vpack.c.b16 %v9896, %v9890
    %v11073 = vpack.c.b16 %v9897, %v9891
    %v11074 = vpack.c.b16 %v9898, %v9892
    %v11075 = vpack.c.b16 %v9905, %v9899
    %v11076 = vpack.c.b16 %v9906, %v9900
    %v11077 = vpack.c.b16 %v9907, %v9901
    %v11078 = vpack.c.b16 %v9908, %v9902
    %v11079 = vpack.c.b16 %v9909, %v9903
    %v11080 = vpack.c.b16 %v9910, %v9904
    %v11081 = vpack.c.b16 %v9917, %v9911
    %v11082 = vpack.c.b16 %v9918, %v9912
    %v11083 = vpack.c.b16 %v9919, %v9913
    %v11084 = vpack.c.b16 %v9920, %v9914
    %v11085 = vpack.c.b16 %v9921, %v9915
    %v11086 = vpack.c.b16 %v9922, %v9916
    %v11087 = vpack.c.b16 %v9929, %v9923
    %v11088 = vpack.c.b16 %v9930, %v9924
    %v11089 = vpack.c.b16 %v9931, %v9925
    %v11090 = vpack.c.b16 %v9932, %v9926
    %v11091 = vpack.c.b16 %v9933, %v9927
    %v11092 = vpack.c.b16 %v9934, %v9928
    %v11093 = vpack.c.b16 %v9941, %v9935
    %v11094 = vpack.c.b16 %v9942, %v9936
    %v11095 = vpack.c.b16 %v9943, %v9937
    %v11096 = vpack.c.b16 %v9944, %v9938
    %v11097 = vpack.c.b16 %v9945, %v9939
    %v11098 = vpack.c.b16 %v9946, %v9940
    %v11099 = vpack.c.b16 %v9953, %v9947
    %v11100 = vpack.c.b16 %v9954, %v9948
    %v11101 = vpack.c.b16 %v9955, %v9949
    %v11102 = vpack.c.b16 %v9956, %v9950
    %v11103 = vpack.c.b16 %v9957, %v9951
    %v11104 = vpack.c.b16 %v9958, %v9952
    %v11105 = vpack.c.b16 %v9965, %v9959
    %v11106 = vpack.c.b16 %v9966, %v9960
    %v11107 = vpack.c.b16 %v9967, %v9961
    %v11108 = vpack.c.b16 %v9968, %v9962
    %v11109 = vpack.c.b16 %v9969, %v9963
    %v11110 = vpack.c.b16 %v9970, %v9964
    %v11111 = vpack.c.b16 %v9977, %v9971
    %v11112 = vpack.c.b16 %v9978, %v9972
    %v11113 = vpack.c.b16 %v9979, %v9973
    %v11114 = vpack.c.b16 %v9980, %v9974
    %v11115 = vpack.c.b16 %v9981, %v9975
    %v11116 = vpack.c.b16 %v9982, %v9976
    %v11117 = vpack.c.b16 %v9989, %v9983
    %v11118 = vpack.c.b16 %v9990, %v9984
    %v11119 = vpack.c.b16 %v9991, %v9985
    %v11120 = vpack.c.b16 %v9992, %v9986
    %v11121 = vpack.c.b16 %v9993, %v9987
    %v11122 = vpack.c.b16 %v9994, %v9988
    %v11123 = vpack.c.b16 %v10001, %v9995
    %v11124 = vpack.c.b16 %v10002, %v9996
    %v11125 = vpack.c.b16 %v10003, %v9997
    %v11126 = vpack.c.b16 %v10004, %v9998
    %v11127 = vpack.c.b16 %v10005, %v9999
    %v11128 = vpack.c.b16 %v10006, %v10000
    %v11129 = vpack.c.b16 %v10013, %v10007
    %v11130 = vpack.c.b16 %v10014, %v10008
    %v11131 = vpack.c.b16 %v10015, %v10009
    %v11132 = vpack.c.b16 %v10016, %v10010
    %v11133 = vpack.c.b16 %v10017, %v10011
    %v11134 = vpack.c.b16 %v10018, %v10012
    %v11135 = vpack.c.b16 %v10025, %v10019
    %v11136 = vpack.c.b16 %v10026, %v10020
    %v11137 = vpack.c.b16 %v10027, %v10021
    %v11138 = vpack.c.b16 %v10028, %v10022
    %v11139 = vpack.c.b16 %v10029, %v10023
    %v11140 = vpack.c.b16 %v10030, %v10024
    %v11141 = vpack.c.b16 %v10037, %v10031
    %v11142 = vpack.c.b16 %v10038, %v10032
    %v11143 = vpack.c.b16 %v10039, %v10033
    %v11144 = vpack.c.b16 %v10040, %v10034
    %v11145 = vpack.c.b16 %v10041, %v10035
    %v11146 = vpack.c.b16 %v10042, %v10036
    %v11147 = vpack.c.b16 %v10049, %v10043
    %v11148 = vpack.c.b16 %v10050, %v10044
    %v11149 = vpack.c.b16 %v10051, %v10045
    %v11150 = vpack.c.b16 %v10052, %v10046
    %v11151 = vpack.c.b16 %v10053, %v10047
    %v11152 = vpack.c.b16 %v10054, %v10048
    %v11153 = vpack.c.b16 %v10061, %v10055
    %v11154 = vpack.c.b16 %v10062, %v10056
    %v11155 = vpack.c.b16 %v10063, %v10057
    %v11156 = vpack.c.b16 %v10064, %v10058
    %v11157 = vpack.c.b16 %v10065, %v10059
    %v11158 = vpack.c.b16 %v10066, %v10060
    %v11159 = vpack.c.b16 %v10073, %v10067
    %v11160 = vpack.c.b16 %v10074, %v10068
    %v11161 = vpack.c.b16 %v10075, %v10069
    %v11162 = vpack.c.b16 %v10076, %v10070
    %v11163 = vpack.c.b16 %v10077, %v10071
    %v11164 = vpack.c.b16 %v10078, %v10072
    %v11165 = vpack.c.b16 %v10085, %v10079
    %v11166 = vpack.c.b16 %v10086, %v10080
    %v11167 = vpack.c.b16 %v10087, %v10081
    %v11168 = vpack.c.b16 %v10088, %v10082
    %v11169 = vpack.c.b16 %v10089, %v10083
    %v11170 = vpack.c.b16 %v10090, %v10084
    %v11171 = vpack.c.b16 %v10097, %v10091
    %v11172 = vpack.c.b16 %v10098, %v10092
    %v11173 = vpack.c.b16 %v10099, %v10093
    %v11174 = vpack.c.b16 %v10100, %v10094
    %v11175 = vpack.c.b16 %v10101, %v10095
    %v11176 = vpack.c.b16 %v10102, %v10096
    %v11177 = vpack.c.b16 %v10109, %v10103
    %v11178 = vpack.c.b16 %v10110, %v10104
    %v11179 = vpack.c.b16 %v10111, %v10105
    %v11180 = vpack.c.b16 %v10112, %v10106
    %v11181 = vpack.c.b16 %v10113, %v10107
    %v11182 = vpack.c.b16 %v10114, %v10108
    %v11183 = vpack.c.b16 %v10121, %v10115
    %v11184 = vpack.c.b16 %v10122, %v10116
    %v11185 = vpack.c.b16 %v10123, %v10117
    %v11186 = vpack.c.b16 %v10124, %v10118
    %v11187 = vpack.c.b16 %v10125, %v10119
    %v11188 = vpack.c.b16 %v10126, %v10120
    %v11189 = vpack.c.b16 %v10133, %v10127
    %v11190 = vpack.c.b16 %v10134, %v10128
    %v11191 = vpack.c.b16 %v10135, %v10129
    %v11192 = vpack.c.b16 %v10136, %v10130
    %v11193 = vpack.c.b16 %v10137, %v10131
    %v11194 = vpack.c.b16 %v10138, %v10132
    %v11195 = vpack.c.b16 %v10145, %v10139
    %v11196 = vpack.c.b16 %v10146, %v10140
    %v11197 = vpack.c.b16 %v10147, %v10141
    %v11198 = vpack.c.b16 %v10148, %v10142
    %v11199 = vpack.c.b16 %v10149, %v10143
    %v11200 = vpack.c.b16 %v10150, %v10144
    %v11201 = vpack.c.b16 %v10157, %v10151
    %v11202 = vpack.c.b16 %v10158, %v10152
    %v11203 = vpack.c.b16 %v10159, %v10153
    %v11204 = vpack.c.b16 %v10160, %v10154
    %v11205 = vpack.c.b16 %v10161, %v10155
    %v11206 = vpack.c.b16 %v10162, %v10156
    %v11207 = vpack.c.b16 %v10169, %v10163
    %v11208 = vpack.c.b16 %v10170, %v10164
    %v11209 = vpack.c.b16 %v10171, %v10165
    %v11210 = vpack.c.b16 %v10172, %v10166
    %v11211 = vpack.c.b16 %v10173, %v10167
    %v11212 = vpack.c.b16 %v10174, %v10168
    %v11213 = vpack.c.b16 %v10181, %v10175
    %v11214 = vpack.c.b16 %v10182, %v10176
    %v11215 = vpack.c.b16 %v10183, %v10177
    %v11216 = vpack.c.b16 %v10184, %v10178
    %v11217 = vpack.c.b16 %v10185, %v10179
    %v11218 = vpack.c.b16 %v10186, %v10180
    %v11219 = vpack.c.b16 %v10193, %v10187
    %v11220 = vpack.c.b16 %v10194, %v10188
    %v11221 = vpack.c.b16 %v10195, %v10189
    %v11222 = vpack.c.b16 %v10196, %v10190
    %v11223 = vpack.c.b16 %v10197, %v10191
    %v11224 = vpack.c.b16 %v10198, %v10192
    %v11225 = vpack.c.b16 %v10205, %v10199
    %v11226 = vpack.c.b16 %v10206, %v10200
    %v11227 = vpack.c.b16 %v10207, %v10201
    %v11228 = vpack.c.b16 %v10208, %v10202
    %v11229 = vpack.c.b16 %v10209, %v10203
    %v11230 = vpack.c.b16 %v10210, %v10204
    %v11231 = vpack.c.b16 %v10217, %v10211
    %v11232 = vpack.c.b16 %v10218, %v10212
    %v11233 = vpack.c.b16 %v10219, %v10213
    %v11234 = vpack.c.b16 %v10220, %v10214
    %v11235 = vpack.c.b16 %v10221, %v10215
    %v11236 = vpack.c.b16 %v10222, %v10216
    %v11237 = vpack.c.b16 %v10229, %v10223
    %v11238 = vpack.c.b16 %v10230, %v10224
    %v11239 = vpack.c.b16 %v10231, %v10225
    %v11240 = vpack.c.b16 %v10232, %v10226
    %v11241 = vpack.c.b16 %v10233, %v10227
    %v11242 = vpack.c.b16 %v10234, %v10228
    %v11243 = vpack.c.b16 %v10241, %v10235
    %v11244 = vpack.c.b16 %v10242, %v10236
    %v11245 = vpack.c.b16 %v10243, %v10237
    %v11246 = vpack.c.b16 %v10244, %v10238
    %v11247 = vpack.c.b16 %v10245, %v10239
    %v11248 = vpack.c.b16 %v10246, %v10240
    %v11249 = vpack.c.b16 %v10253, %v10247
    %v11250 = vpack.c.b16 %v10254, %v10248
    %v11251 = vpack.c.b16 %v10255, %v10249
    %v11252 = vpack.c.b16 %v10256, %v10250
    %v11253 = vpack.c.b16 %v10257, %v10251
    %v11254 = vpack.c.b16 %v10258, %v10252
    %v11255 = vpack.c.b16 %v10265, %v10259
    %v11256 = vpack.c.b16 %v10266, %v10260
    %v11257 = vpack.c.b16 %v10267, %v10261
    %v11258 = vpack.c.b16 %v10268, %v10262
    %v11259 = vpack.c.b16 %v10269, %v10263
    %v11260 = vpack.c.b16 %v10270, %v10264
    %v11261 = vpack.c.b16 %v10277, %v10271
    %v11262 = vpack.c.b16 %v10278, %v10272
    %v11263 = vpack.c.b16 %v10279, %v10273
    %v11264 = vpack.c.b16 %v10280, %v10274
    %v11265 = vpack.c.b16 %v10281, %v10275
    %v11266 = vpack.c.b16 %v10282, %v10276
    %v11267 = vpack.c.b16 %v10289, %v10283
    %v11268 = vpack.c.b16 %v10290, %v10284
    %v11269 = vpack.c.b16 %v10291, %v10285
    %v11270 = vpack.c.b16 %v10292, %v10286
    %v11271 = vpack.c.b16 %v10293, %v10287
    %v11272 = vpack.c.b16 %v10294, %v10288
    %v11273 = vpack.c.b16 %v10301, %v10295
    %v11274 = vpack.c.b16 %v10302, %v10296
    %v11275 = vpack.c.b16 %v10303, %v10297
    %v11276 = vpack.c.b16 %v10304, %v10298
    %v11277 = vpack.c.b16 %v10305, %v10299
    %v11278 = vpack.c.b16 %v10306, %v10300
    %v11279 = vpack.c.b16 %v10313, %v10307
    %v11280 = vpack.c.b16 %v10314, %v10308
    %v11281 = vpack.c.b16 %v10315, %v10309
    %v11282 = vpack.c.b16 %v10316, %v10310
    %v11283 = vpack.c.b16 %v10317, %v10311
    %v11284 = vpack.c.b16 %v10318, %v10312
    %v11285 = vpack.c.b16 %v10325, %v10319
    %v11286 = vpack.c.b16 %v10326, %v10320
    %v11287 = vpack.c.b16 %v10327, %v10321
    %v11288 = vpack.c.b16 %v10328, %v10322
    %v11289 = vpack.c.b16 %v10329, %v10323
    %v11290 = vpack.c.b16 %v10330, %v10324
    %v11291 = vpack.c.b16 %v10337, %v10331
    %v11292 = vpack.c.b16 %v10338, %v10332
    %v11293 = vpack.c.b16 %v10339, %v10333
    %v11294 = vpack.c.b16 %v10340, %v10334
    %v11295 = vpack.c.b16 %v10341, %v10335
    %v11296 = vpack.c.b16 %v10342, %v10336
    %v11297 = vpack.c.b16 %v10349, %v10343
    %v11298 = vpack.c.b16 %v10350, %v10344
    %v11299 = vpack.c.b16 %v10351, %v10345
    %v11300 = vpack.c.b16 %v10352, %v10346
    %v11301 = vpack.c.b16 %v10353, %v10347
    %v11302 = vpack.c.b16 %v10354, %v10348
    %v11303 = vpack.c.b16 %v10361, %v10355
    %v11304 = vpack.c.b16 %v10362, %v10356
    %v11305 = vpack.c.b16 %v10363, %v10357
    %v11306 = vpack.c.b16 %v10364, %v10358
    %v11307 = vpack.c.b16 %v10365, %v10359
    %v11308 = vpack.c.b16 %v10366, %v10360
    %v11309 = vpack.c.b16 %v10373, %v10367
    %v11310 = vpack.c.b16 %v10374, %v10368
    %v11311 = vpack.c.b16 %v10375, %v10369
    %v11312 = vpack.c.b16 %v10376, %v10370
    %v11313 = vpack.c.b16 %v10377, %v10371
    %v11314 = vpack.c.b16 %v10378, %v10372
    %v11315 = vpack.c.b16 %v10385, %v10379
    %v11316 = vpack.c.b16 %v10386, %v10380
    %v11317 = vpack.c.b16 %v10387, %v10381
    %v11318 = vpack.c.b16 %v10388, %v10382
    %v11319 = vpack.c.b16 %v10389, %v10383
    %v11320 = vpack.c.b16 %v10390, %v10384
    %v11321 = vpack.c.b16 %v10397, %v10391
    %v11322 = vpack.c.b16 %v10398, %v10392
    %v11323 = vpack.c.b16 %v10399, %v10393
    %v11324 = vpack.c.b16 %v10400, %v10394
    %v11325 = vpack.c.b16 %v10401, %v10395
    %v11326 = vpack.c.b16 %v10402, %v10396
    %v11327 = vpack.c.b16 %v10409, %v10403
    %v11328 = vpack.c.b16 %v10410, %v10404
    %v11329 = vpack.c.b16 %v10411, %v10405
    %v11330 = vpack.c.b16 %v10412, %v10406
    %v11331 = vpack.c.b16 %v10413, %v10407
    %v11332 = vpack.c.b16 %v10414, %v10408
    %v11333 = vpack.c.b16 %v10421, %v10415
    %v11334 = vpack.c.b16 %v10422, %v10416
    %v11335 = vpack.c.b16 %v10423, %v10417
    %v11336 = vpack.c.b16 %v10424, %v10418
    %v11337 = vpack.c.b16 %v10425, %v10419
    %v11338 = vpack.c.b16 %v10426, %v10420
    %v11339 = vpack.c.b16 %v10433, %v10427
    %v11340 = vpack.c.b16 %v10434, %v10428
    %v11341 = vpack.c.b16 %v10435, %v10429
    %v11342 = vpack.c.b16 %v10436, %v10430
    %v11343 = vpack.c.b16 %v10437, %v10431
    %v11344 = vpack.c.b16 %v10438, %v10432
    %v11345 = vpack.c.b16 %v10445, %v10439
    %v11346 = vpack.c.b16 %v10446, %v10440
    %v11347 = vpack.c.b16 %v10447, %v10441
    %v11348 = vpack.c.b16 %v10448, %v10442
    %v11349 = vpack.c.b16 %v10449, %v10443
    %v11350 = vpack.c.b16 %v10450, %v10444
    %v11351 = vpack.c.b16 %v10457, %v10451
    %v11352 = vpack.c.b16 %v10458, %v10452
    %v11353 = vpack.c.b16 %v10459, %v10453
    %v11354 = vpack.c.b16 %v10460, %v10454
    %v11355 = vpack.c.b16 %v10461, %v10455
    %v11356 = vpack.c.b16 %v10462, %v10456
    %v11357 = vpack.c.b16 %v10469, %v10463
    %v11358 = vpack.c.b16 %v10470, %v10464
    %v11359 = vpack.c.b16 %v10471, %v10465
    %v11360 = vpack.c.b16 %v10472, %v10466
    %v11361 = vpack.c.b16 %v10473, %v10467
    %v11362 = vpack.c.b16 %v10474, %v10468
    %v11363 = vpack.c.b16 %v10481, %v10475
    %v11364 = vpack.c.b16 %v10482, %v10476
    %v11365 = vpack.c.b16 %v10483, %v10477
    %v11366 = vpack.c.b16 %v10484, %v10478
    %v11367 = vpack.c.b16 %v10485, %v10479
    %v11368 = vpack.c.b16 %v10486, %v10480
    %v11369 = vpack.c.b16 %v10493, %v10487
    %v11370 = vpack.c.b16 %v10494, %v10488
    %v11371 = vpack.c.b16 %v10495, %v10489
    %v11372 = vpack.c.b16 %v10496, %v10490
    %v11373 = vpack.c.b16 %v10497, %v10491
    %v11374 = vpack.c.b16 %v10498, %v10492
    %v11375 = vpack.c.b16 %v10505, %v10499
    %v11376 = vpack.c.b16 %v10506, %v10500
    %v11377 = vpack.c.b16 %v10507, %v10501
    %v11378 = vpack.c.b16 %v10508, %v10502
    %v11379 = vpack.c.b16 %v10509, %v10503
    %v11380 = vpack.c.b16 %v10510, %v10504
    %v11381 = vpack.c.b16 %v10517, %v10511
    %v11382 = vpack.c.b16 %v10518, %v10512
    %v11383 = vpack.c.b16 %v10519, %v10513
    %v11384 = vpack.c.b16 %v10520, %v10514
    %v11385 = vpack.c.b16 %v10521, %v10515
    %v11386 = vpack.c.b16 %v10522, %v10516
    %12251 = vmatprep.subr.bf16.mxu0 %v10524
    %12252 = vmatpush1.bf16.msra.mxu0 %v10523
    %12253 = vmatprep.subr.bf16.mxu0 %v10530
    %12254 = vmatpush1.bf16.msra.mxu0 %v10529
    %12255 = vmatprep.subr.bf16.mxu0 %v10536
    %12256 = vmatpush1.bf16.msra.mxu0 %v10535
    %12257 = vmatprep.subr.bf16.mxu0 %v10542
    %12258 = vmatpush1.bf16.msra.mxu0 %v10541
    %12259 = vmatprep.subr.bf16.mxu0 %v10548
    %12260 = vmatpush1.bf16.msra.mxu0 %v10547
    %12261 = vmatprep.subr.bf16.mxu0 %v10554
    %12262 = vmatpush1.bf16.msra.mxu0 %v10553
    %12263 = vmatprep.subr.bf16.mxu0 %v10560
    %12264 = vmatpush1.bf16.msra.mxu0 %v10559
    %12265 = vmatprep.subr.bf16.mxu0 %v10566
    %12266 = vmatpush1.bf16.msra.mxu0 %v10565
    %12267 = vmatprep.subr.bf16.mxu0 %v10572
    %12268 = vmatpush1.bf16.msra.mxu0 %v10571
    %12269 = vmatprep.subr.bf16.mxu0 %v10578
    %12270 = vmatpush1.bf16.msra.mxu0 %v10577
    %12271 = vmatprep.subr.bf16.mxu0 %v10584
    %12272 = vmatpush1.bf16.msra.mxu0 %v10583
    %12273 = vmatprep.subr.bf16.mxu0 %v10590
    %12274 = vmatpush1.bf16.msra.mxu0 %v10589
    %12275 = vmatprep.subr.bf16.mxu0 %v10596
    %12276 = vmatpush1.bf16.msra.mxu0 %v10595
    %12277 = vmatprep.subr.bf16.mxu0 %v10602
    %12278 = vmatpush1.bf16.msra.mxu0 %v10601
    %12279 = vmatprep.subr.bf16.mxu0 %v10608
    %12280 = vmatpush1.bf16.msra.mxu0 %v10607
    %12281 = vmatprep.subr.bf16.mxu0 %v10614
    %12282 = vmatpush1.bf16.msra.mxu0 %v10613
    %12283 = vmatprep.mubr.bf16.mxu0 %v7018
    %12284 = vmatmul.mubr.bf16.gmra.mrb[0].mxu0 %v7017
    %v12285 = vpop.f32.mrb[0].mxu0
    %v12286 = vadd.f32 %v7904, %v12285
    %v12287 = vpop.f32.mrb[0].mxu0
    %v12288 = vadd.f32 %v7908, %v12287
    %v12289 = vpop.f32.mrb[0].mxu0
    %v12290 = vpop.f32.mrb[0].mxu0
    %12291 = vdwg.mxu0
    %12292 = vmatprep.subr.bf16.mxu0 %v10620
    %12293 = vmatpush1.bf16.msra.mxu0 %v10619
    %12294 = vmatprep.subr.bf16.mxu0 %v10626
    %12295 = vmatpush1.bf16.msra.mxu0 %v10625
    %12296 = vmatprep.subr.bf16.mxu0 %v10632
    %12297 = vmatpush1.bf16.msra.mxu0 %v10631
    %12298 = vmatprep.subr.bf16.mxu0 %v10638
    %12299 = vmatpush1.bf16.msra.mxu0 %v10637
    %12300 = vmatprep.subr.bf16.mxu0 %v10644
    %12301 = vmatpush1.bf16.msra.mxu0 %v10643
    %12302 = vmatprep.subr.bf16.mxu0 %v10650
    %12303 = vmatpush1.bf16.msra.mxu0 %v10649
    %12304 = vmatprep.subr.bf16.mxu0 %v10656
    %12305 = vmatpush1.bf16.msra.mxu0 %v10655
    %12306 = vmatprep.subr.bf16.mxu0 %v10662
    %12307 = vmatpush1.bf16.msra.mxu0 %v10661
    %12308 = vmatprep.subr.bf16.mxu0 %v10668
    %12309 = vmatpush1.bf16.msra.mxu0 %v10667
    %12310 = vmatprep.subr.bf16.mxu0 %v10674
    %12311 = vmatpush1.bf16.msra.mxu0 %v10673
    %12312 = vmatprep.subr.bf16.mxu0 %v10680
    %12313 = vmatpush1.bf16.msra.mxu0 %v10679
    %12314 = vmatprep.subr.bf16.mxu0 %v10686
    %12315 = vmatpush1.bf16.msra.mxu0 %v10685
    %12316 = vmatprep.subr.bf16.mxu0 %v10692
    %12317 = vmatpush1.bf16.msra.mxu0 %v10691
    %12318 = vmatprep.subr.bf16.mxu0 %v10698
    %12319 = vmatpush1.bf16.msra.mxu0 %v10697
    %12320 = vmatprep.subr.bf16.mxu0 %v10704
    %12321 = vmatpush1.bf16.msra.mxu0 %v10703
    %12322 = vmatprep.subr.bf16.mxu0 %v10710
    %12323 = vmatpush1.bf16.msra.mxu0 %v10709
    %12324 = vmatprep.mubr.bf16.mxu0 %v7020
    %12325 = vmatmul.mubr.bf16.gmra.mrb[0].mxu0 %v7019
    %v12326 = vpop.f32.mrb[0].mxu0
    %v12327 = vadd.f32 %v12286, %v12326
    %v12328 = vpop.f32.mrb[0].mxu0
    %v12329 = vadd.f32 %v12288, %v12328
    %v12330 = vpop.f32.mrb[0].mxu0
    %v12331 = vpop.f32.mrb[0].mxu0
    %12332 = vdwg.mxu0
    %12333 = vmatprep.subr.bf16.mxu0 %v10716
    %12334 = vmatpush1.bf16.msra.mxu0 %v10715
    %12335 = vmatprep.subr.bf16.mxu0 %v10722
    %12336 = vmatpush1.bf16.msra.mxu0 %v10721
    %12337 = vmatprep.subr.bf16.mxu0 %v10728
    %12338 = vmatpush1.bf16.msra.mxu0 %v10727
    %12339 = vmatprep.subr.bf16.mxu0 %v10734
    %12340 = vmatpush1.bf16.msra.mxu0 %v10733
    %12341 = vmatprep.subr.bf16.mxu0 %v10740
    %12342 = vmatpush1.bf16.msra.mxu0 %v10739
    %12343 = vmatprep.subr.bf16.mxu0 %v10746
    %12344 = vmatpush1.bf16.msra.mxu0 %v10745
    %12345 = vmatprep.subr.bf16.mxu0 %v10752
    %12346 = vmatpush1.bf16.msra.mxu0 %v10751
    %12347 = vmatprep.subr.bf16.mxu0 %v10758
    %12348 = vmatpush1.bf16.msra.mxu0 %v10757
    %12349 = vmatprep.subr.bf16.mxu0 %v10764
    %12350 = vmatpush1.bf16.msra.mxu0 %v10763
    %12351 = vmatprep.subr.bf16.mxu0 %v10770
    %12352 = vmatpush1.bf16.msra.mxu0 %v10769
    %12353 = vmatprep.subr.bf16.mxu0 %v10776
    %12354 = vmatpush1.bf16.msra.mxu0 %v10775
    %12355 = vmatprep.subr.bf16.mxu0 %v10782
    %12356 = vmatpush1.bf16.msra.mxu0 %v10781
    %12357 = vmatprep.subr.bf16.mxu0 %v10788
    %12358 = vmatpush1.bf16.msra.mxu0 %v10787
    %12359 = vmatprep.subr.bf16.mxu0 %v10794
    %12360 = vmatpush1.bf16.msra.mxu0 %v10793
    %12361 = vmatprep.subr.bf16.mxu0 %v10800
    %12362 = vmatpush1.bf16.msra.mxu0 %v10799
    %12363 = vmatprep.subr.bf16.mxu0 %v10806
    %12364 = vmatpush1.bf16.msra.mxu0 %v10805
    %12365 = vmatprep.mubr.bf16.mxu0 %v7022
    %12366 = vmatmul.mubr.bf16.gmra.mrb[0].mxu0 %v7021
    %v12367 = vpop.f32.mrb[0].mxu0
    %v12368 = vadd.f32 %v12327, %v12367
    %v12369 = vpop.f32.mrb[0].mxu0
    %v12370 = vadd.f32 %v12329, %v12369
    %v12371 = vpop.f32.mrb[0].mxu0
    %v12372 = vpop.f32.mrb[0].mxu0
    %12373 = vdwg.mxu0
    %12374 = vmatprep.subr.bf16.mxu0 %v10812
    %12375 = vmatpush1.bf16.msra.mxu0 %v10811
    %12376 = vmatprep.subr.bf16.mxu0 %v10818
    %12377 = vmatpush1.bf16.msra.mxu0 %v10817
    %12378 = vmatprep.subr.bf16.mxu0 %v10824
    %12379 = vmatpush1.bf16.msra.mxu0 %v10823
    %12380 = vmatprep.subr.bf16.mxu0 %v10830
    %12381 = vmatpush1.bf16.msra.mxu0 %v10829
    %12382 = vmatprep.subr.bf16.mxu0 %v10836
    %12383 = vmatpush1.bf16.msra.mxu0 %v10835
    %12384 = vmatprep.subr.bf16.mxu0 %v10842
    %12385 = vmatpush1.bf16.msra.mxu0 %v10841
    %12386 = vmatprep.subr.bf16.mxu0 %v10848
    %12387 = vmatpush1.bf16.msra.mxu0 %v10847
    %12388 = vmatprep.subr.bf16.mxu0 %v10854
    %12389 = vmatpush1.bf16.msra.mxu0 %v10853
    %12390 = vmatprep.subr.bf16.mxu0 %v10860
    %12391 = vmatpush1.bf16.msra.mxu0 %v10859
    %12392 = vmatprep.subr.bf16.mxu0 %v10866
    %12393 = vmatpush1.bf16.msra.mxu0 %v10865
    %12394 = vmatprep.subr.bf16.mxu0 %v10872
    %12395 = vmatpush1.bf16.msra.mxu0 %v10871
    %12396 = vmatprep.subr.bf16.mxu0 %v10878
    %12397 = vmatpush1.bf16.msra.mxu0 %v10877
    %12398 = vmatprep.subr.bf16.mxu0 %v10884
    %12399 = vmatpush1.bf16.msra.mxu0 %v10883
    %12400 = vmatprep.subr.bf16.mxu0 %v10890
    %12401 = vmatpush1.bf16.msra.mxu0 %v10889
    %12402 = vmatprep.subr.bf16.mxu0 %v10896
    %12403 = vmatpush1.bf16.msra.mxu0 %v10895
    %12404 = vmatprep.subr.bf16.mxu0 %v10902
    %12405 = vmatpush1.bf16.msra.mxu0 %v10901
    %12406 = vmatprep.mubr.bf16.mxu0 %v7024
    %12407 = vmatmul.mubr.bf16.gmra.mrb[0].mxu0 %v7023
    %v12408 = vpop.f32.mrb[0].mxu0
    %v12409 = vadd.f32 %v12368, %v12408
    %v12410 = vpop.f32.mrb[0].mxu0
    %v12411 = vadd.f32 %v12370, %v12410
    %v12412 = vpop.f32.mrb[0].mxu0
    %v12413 = vpop.f32.mrb[0].mxu0
    %12414 = vdwg.mxu0
    %12415 = vmatprep.subr.bf16.mxu0 %v10908
    %12416 = vmatpush1.bf16.msra.mxu0 %v10907
    %12417 = vmatprep.subr.bf16.mxu0 %v10914
    %12418 = vmatpush1.bf16.msra.mxu0 %v10913
    %12419 = vmatprep.subr.bf16.mxu0 %v10920
    %12420 = vmatpush1.bf16.msra.mxu0 %v10919
    %12421 = vmatprep.subr.bf16.mxu0 %v10926
    %12422 = vmatpush1.bf16.msra.mxu0 %v10925
    %12423 = vmatprep.subr.bf16.mxu0 %v10932
    %12424 = vmatpush1.bf16.msra.mxu0 %v10931
    %12425 = vmatprep.subr.bf16.mxu0 %v10938
    %12426 = vmatpush1.bf16.msra.mxu0 %v10937
    %12427 = vmatprep.subr.bf16.mxu0 %v10944
    %12428 = vmatpush1.bf16.msra.mxu0 %v10943
    %12429 = vmatprep.subr.bf16.mxu0 %v10950
    %12430 = vmatpush1.bf16.msra.mxu0 %v10949
    %12431 = vmatprep.subr.bf16.mxu0 %v10956
    %12432 = vmatpush1.bf16.msra.mxu0 %v10955
    %12433 = vmatprep.subr.bf16.mxu0 %v10962
    %12434 = vmatpush1.bf16.msra.mxu0 %v10961
    %12435 = vmatprep.subr.bf16.mxu0 %v10968
    %12436 = vmatpush1.bf16.msra.mxu0 %v10967
    %12437 = vmatprep.subr.bf16.mxu0 %v10974
    %12438 = vmatpush1.bf16.msra.mxu0 %v10973
    %12439 = vmatprep.subr.bf16.mxu0 %v10980
    %12440 = vmatpush1.bf16.msra.mxu0 %v10979
    %12441 = vmatprep.subr.bf16.mxu0 %v10986
    %12442 = vmatpush1.bf16.msra.mxu0 %v10985
    %12443 = vmatprep.subr.bf16.mxu0 %v10992
    %12444 = vmatpush1.bf16.msra.mxu0 %v10991
    %12445 = vmatprep.subr.bf16.mxu0 %v10998
    %12446 = vmatpush1.bf16.msra.mxu0 %v10997
    %12447 = vmatprep.mubr.bf16.mxu0 %v7026
    %12448 = vmatmul.mubr.bf16.gmra.mrb[0].mxu0 %v7025
    %v12449 = vpop.f32.mrb[0].mxu0
    %v12450 = vadd.f32 %v12409, %v12449
    %v12451 = vpop.f32.mrb[0].mxu0
    %v12452 = vadd.f32 %v12411, %v12451
    %v12453 = vpop.f32.mrb[0].mxu0
    %v12454 = vpop.f32.mrb[0].mxu0
    %12455 = vdwg.mxu0
    %12456 = vmatprep.subr.bf16.mxu0 %v11004
    %12457 = vmatpush1.bf16.msra.mxu0 %v11003
    %12458 = vmatprep.subr.bf16.mxu0 %v11010
    %12459 = vmatpush1.bf16.msra.mxu0 %v11009
    %12460 = vmatprep.subr.bf16.mxu0 %v11016
    %12461 = vmatpush1.bf16.msra.mxu0 %v11015
    %12462 = vmatprep.subr.bf16.mxu0 %v11022
    %12463 = vmatpush1.bf16.msra.mxu0 %v11021
    %12464 = vmatprep.subr.bf16.mxu0 %v11028
    %12465 = vmatpush1.bf16.msra.mxu0 %v11027
    %12466 = vmatprep.subr.bf16.mxu0 %v11034
    %12467 = vmatpush1.bf16.msra.mxu0 %v11033
    %12468 = vmatprep.subr.bf16.mxu0 %v11040
    %12469 = vmatpush1.bf16.msra.mxu0 %v11039
    %12470 = vmatprep.subr.bf16.mxu0 %v11046
    %12471 = vmatpush1.bf16.msra.mxu0 %v11045
    %12472 = vmatprep.subr.bf16.mxu0 %v11052
    %12473 = vmatpush1.bf16.msra.mxu0 %v11051
    %12474 = vmatprep.subr.bf16.mxu0 %v11058
    %12475 = vmatpush1.bf16.msra.mxu0 %v11057
    %12476 = vmatprep.subr.bf16.mxu0 %v11064
    %12477 = vmatpush1.bf16.msra.mxu0 %v11063
    %12478 = vmatprep.subr.bf16.mxu0 %v11070
    %12479 = vmatpush1.bf16.msra.mxu0 %v11069
    %12480 = vmatprep.subr.bf16.mxu0 %v11076
    %12481 = vmatpush1.bf16.msra.mxu0 %v11075
    %12482 = vmatprep.subr.bf16.mxu0 %v11082
    %12483 = vmatpush1.bf16.msra.mxu0 %v11081
    %12484 = vmatprep.subr.bf16.mxu0 %v11088
    %12485 = vmatpush1.bf16.msra.mxu0 %v11087
    %12486 = vmatprep.subr.bf16.mxu0 %v11094
    %12487 = vmatpush1.bf16.msra.mxu0 %v11093
    %12488 = vmatprep.mubr.bf16.mxu0 %v7028
    %12489 = vmatmul.mubr.bf16.gmra.mrb[0].mxu0 %v7027
    %v12490 = vpop.f32.mrb[0].mxu0
    %v12491 = vadd.f32 %v12450, %v12490
    %v12492 = vpop.f32.mrb[0].mxu0
    %v12493 = vadd.f32 %v12452, %v12492
    %v12494 = vpop.f32.mrb[0].mxu0
    %v12495 = vpop.f32.mrb[0].mxu0
    %12496 = vdwg.mxu0
    %12497 = vmatprep.subr.bf16.mxu0 %v11100
    %12498 = vmatpush1.bf16.msra.mxu0 %v11099
    %12499 = vmatprep.subr.bf16.mxu0 %v11106
    %12500 = vmatpush1.bf16.msra.mxu0 %v11105
    %12501 = vmatprep.subr.bf16.mxu0 %v11112
    %12502 = vmatpush1.bf16.msra.mxu0 %v11111
    %12503 = vmatprep.subr.bf16.mxu0 %v11118
    %12504 = vmatpush1.bf16.msra.mxu0 %v11117
    %12505 = vmatprep.subr.bf16.mxu0 %v11124
    %12506 = vmatpush1.bf16.msra.mxu0 %v11123
    %12507 = vmatprep.subr.bf16.mxu0 %v11130
    %12508 = vmatpush1.bf16.msra.mxu0 %v11129
    %12509 = vmatprep.subr.bf16.mxu0 %v11136
    %12510 = vmatpush1.bf16.msra.mxu0 %v11135
    %12511 = vmatprep.subr.bf16.mxu0 %v11142
    %12512 = vmatpush1.bf16.msra.mxu0 %v11141
    %12513 = vmatprep.subr.bf16.mxu0 %v11148
    %12514 = vmatpush1.bf16.msra.mxu0 %v11147
    %12515 = vmatprep.subr.bf16.mxu0 %v11154
    %12516 = vmatpush1.bf16.msra.mxu0 %v11153
    %12517 = vmatprep.subr.bf16.mxu0 %v11160
    %12518 = vmatpush1.bf16.msra.mxu0 %v11159
    %12519 = vmatprep.subr.bf16.mxu0 %v11166
    %12520 = vmatpush1.bf16.msra.mxu0 %v11165
    %12521 = vmatprep.subr.bf16.mxu0 %v11172
    %12522 = vmatpush1.bf16.msra.mxu0 %v11171
    %12523 = vmatprep.subr.bf16.mxu0 %v11178
    %12524 = vmatpush1.bf16.msra.mxu0 %v11177
    %12525 = vmatprep.subr.bf16.mxu0 %v11184
    %12526 = vmatpush1.bf16.msra.mxu0 %v11183
    %12527 = vmatprep.subr.bf16.mxu0 %v11190
    %12528 = vmatpush1.bf16.msra.mxu0 %v11189
    %12529 = vmatprep.mubr.bf16.mxu0 %v7030
    %12530 = vmatmul.mubr.bf16.gmra.mrb[0].mxu0 %v7029
    %v12531 = vpop.f32.mrb[0].mxu0
    %v12532 = vadd.f32 %v12491, %v12531
    %v12533 = vpop.f32.mrb[0].mxu0
    %v12534 = vadd.f32 %v12493, %v12533
    %v12535 = vpop.f32.mrb[0].mxu0
    %v12536 = vpop.f32.mrb[0].mxu0
    %12537 = vdwg.mxu0
    %12538 = vmatprep.subr.bf16.mxu0 %v11196
    %12539 = vmatpush1.bf16.msra.mxu0 %v11195
    %12540 = vmatprep.subr.bf16.mxu0 %v11202
    %12541 = vmatpush1.bf16.msra.mxu0 %v11201
    %12542 = vmatprep.subr.bf16.mxu0 %v11208
    %12543 = vmatpush1.bf16.msra.mxu0 %v11207
    %12544 = vmatprep.subr.bf16.mxu0 %v11214
    %12545 = vmatpush1.bf16.msra.mxu0 %v11213
    %12546 = vmatprep.subr.bf16.mxu0 %v11220
    %12547 = vmatpush1.bf16.msra.mxu0 %v11219
    %12548 = vmatprep.subr.bf16.mxu0 %v11226
    %12549 = vmatpush1.bf16.msra.mxu0 %v11225
    %12550 = vmatprep.subr.bf16.mxu0 %v11232
    %12551 = vmatpush1.bf16.msra.mxu0 %v11231
    %12552 = vmatprep.subr.bf16.mxu0 %v11238
    %12553 = vmatpush1.bf16.msra.mxu0 %v11237
    %12554 = vmatprep.subr.bf16.mxu0 %v11244
    %12555 = vmatpush1.bf16.msra.mxu0 %v11243
    %12556 = vmatprep.subr.bf16.mxu0 %v11250
    %12557 = vmatpush1.bf16.msra.mxu0 %v11249
    %12558 = vmatprep.subr.bf16.mxu0 %v11256
    %12559 = vmatpush1.bf16.msra.mxu0 %v11255
    %12560 = vmatprep.subr.bf16.mxu0 %v11262
    %12561 = vmatpush1.bf16.msra.mxu0 %v11261
    %12562 = vmatprep.subr.bf16.mxu0 %v11268
    %12563 = vmatpush1.bf16.msra.mxu0 %v11267
    %12564 = vmatprep.subr.bf16.mxu0 %v11274
    %12565 = vmatpush1.bf16.msra.mxu0 %v11273
    %12566 = vmatprep.subr.bf16.mxu0 %v11280
    %12567 = vmatpush1.bf16.msra.mxu0 %v11279
    %12568 = vmatprep.subr.bf16.mxu0 %v11286
    %12569 = vmatpush1.bf16.msra.mxu0 %v11285
    %12570 = vmatprep.mubr.bf16.mxu0 %v7032
    %12571 = vmatmul.mubr.bf16.gmra.mrb[0].mxu0 %v7031
    %v12572 = vpop.f32.mrb[0].mxu0
    %v12573 = vadd.f32 %v12532, %v12572
    %v12574 = vpop.f32.mrb[0].mxu0
    %v12575 = vadd.f32 %v12534, %v12574
    %v12576 = vpop.f32.mrb[0].mxu0
    %v12577 = vpop.f32.mrb[0].mxu0
    %12578 = vdwg.mxu0
    %12579 = vmatprep.subr.bf16.mxu0 %v11292
    %12580 = vmatpush1.bf16.msra.mxu0 %v11291
    %12581 = vmatprep.subr.bf16.mxu0 %v11298
    %12582 = vmatpush1.bf16.msra.mxu0 %v11297
    %12583 = vmatprep.subr.bf16.mxu0 %v11304
    %12584 = vmatpush1.bf16.msra.mxu0 %v11303
    %12585 = vmatprep.subr.bf16.mxu0 %v11310
    %12586 = vmatpush1.bf16.msra.mxu0 %v11309
    %12587 = vmatprep.subr.bf16.mxu0 %v11316
    %12588 = vmatpush1.bf16.msra.mxu0 %v11315
    %12589 = vmatprep.subr.bf16.mxu0 %v11322
    %12590 = vmatpush1.bf16.msra.mxu0 %v11321
    %12591 = vmatprep.subr.bf16.mxu0 %v11328
    %12592 = vmatpush1.bf16.msra.mxu0 %v11327
    %12593 = vmatprep.subr.bf16.mxu0 %v11334
    %12594 = vmatpush1.bf16.msra.mxu0 %v11333
    %12595 = vmatprep.subr.bf16.mxu0 %v11340
    %12596 = vmatpush1.bf16.msra.mxu0 %v11339
    %12597 = vmatprep.subr.bf16.mxu0 %v11346
    %12598 = vmatpush1.bf16.msra.mxu0 %v11345
    %12599 = vmatprep.subr.bf16.mxu0 %v11352
    %12600 = vmatpush1.bf16.msra.mxu0 %v11351
    %12601 = vmatprep.subr.bf16.mxu0 %v11358
    %12602 = vmatpush1.bf16.msra.mxu0 %v11357
    %12603 = vmatprep.subr.bf16.mxu0 %v11364
    %12604 = vmatpush1.bf16.msra.mxu0 %v11363
    %12605 = vmatprep.subr.bf16.mxu0 %v11370
    %12606 = vmatpush1.bf16.msra.mxu0 %v11369
    %12607 = vmatprep.subr.bf16.mxu0 %v11376
    %12608 = vmatpush1.bf16.msra.mxu0 %v11375
    %12609 = vmatprep.subr.bf16.mxu0 %v11382
    %12610 = vmatpush1.bf16.msra.mxu0 %v11381
    %12611 = vmatprep.mubr.bf16.mxu0 %v7034
    %12612 = vmatmul.mubr.bf16.gmra.mrb[0].mxu0 %v7033
    %v12613 = vpop.f32.mrb[0].mxu0
    %v12614 = vadd.f32 %v12573, %v12613
    %v12615 = vpop.f32.mrb[0].mxu0
    %v12616 = vadd.f32 %v12575, %v12615
    %v12617 = vpop.f32.mrb[0].mxu0
    %v12618 = vpop.f32.mrb[0].mxu0
    %12619 = vdwg.mxu0
    %12620 = vmatprep.subr.bf16.mxu0 %v10526
    %12621 = vmatpush1.bf16.msra.mxu0 %v10525
    %12622 = vmatprep.subr.bf16.mxu0 %v10532
    %12623 = vmatpush1.bf16.msra.mxu0 %v10531
    %12624 = vmatprep.subr.bf16.mxu0 %v10538
    %12625 = vmatpush1.bf16.msra.mxu0 %v10537
    %12626 = vmatprep.subr.bf16.mxu0 %v10544
    %12627 = vmatpush1.bf16.msra.mxu0 %v10543
    %12628 = vmatprep.subr.bf16.mxu0 %v10550
    %12629 = vmatpush1.bf16.msra.mxu0 %v10549
    %12630 = vmatprep.subr.bf16.mxu0 %v10556
    %12631 = vmatpush1.bf16.msra.mxu0 %v10555
    %12632 = vmatprep.subr.bf16.mxu0 %v10562
    %12633 = vmatpush1.bf16.msra.mxu0 %v10561
    %12634 = vmatprep.subr.bf16.mxu0 %v10568
    %12635 = vmatpush1.bf16.msra.mxu0 %v10567
    %12636 = vmatprep.subr.bf16.mxu0 %v10574
    %12637 = vmatpush1.bf16.msra.mxu0 %v10573
    %12638 = vmatprep.subr.bf16.mxu0 %v10580
    %12639 = vmatpush1.bf16.msra.mxu0 %v10579
    %12640 = vmatprep.subr.bf16.mxu0 %v10586
    %12641 = vmatpush1.bf16.msra.mxu0 %v10585
    %12642 = vmatprep.subr.bf16.mxu0 %v10592
    %12643 = vmatpush1.bf16.msra.mxu0 %v10591
    %12644 = vmatprep.subr.bf16.mxu0 %v10598
    %12645 = vmatpush1.bf16.msra.mxu0 %v10597
    %12646 = vmatprep.subr.bf16.mxu0 %v10604
    %12647 = vmatpush1.bf16.msra.mxu0 %v10603
    %12648 = vmatprep.subr.bf16.mxu0 %v10610
    %12649 = vmatpush1.bf16.msra.mxu0 %v10609
    %12650 = vmatprep.subr.bf16.mxu0 %v10616
    %12651 = vmatpush1.bf16.msra.mxu0 %v10615
    %12652 = vmatprep.mubr.bf16.mxu0 %v7018
    %12653 = vmatmul.mubr.bf16.gmra.mrb[0].mxu0 %v7017
    %v12654 = vpop.f32.mrb[0].mxu0
    %v12655 = vadd.f32 %v7912, %v12654
    %v12656 = vpop.f32.mrb[0].mxu0
    %v12657 = vadd.f32 %v7916, %v12656
    %v12658 = vpop.f32.mrb[0].mxu0
    %v12659 = vpop.f32.mrb[0].mxu0
    %12660 = vdwg.mxu0
    %12661 = vmatprep.subr.bf16.mxu0 %v10622
    %12662 = vmatpush1.bf16.msra.mxu0 %v10621
    %12663 = vmatprep.subr.bf16.mxu0 %v10628
    %12664 = vmatpush1.bf16.msra.mxu0 %v10627
    %12665 = vmatprep.subr.bf16.mxu0 %v10634
    %12666 = vmatpush1.bf16.msra.mxu0 %v10633
    %12667 = vmatprep.subr.bf16.mxu0 %v10640
    %12668 = vmatpush1.bf16.msra.mxu0 %v10639
    %12669 = vmatprep.subr.bf16.mxu0 %v10646
    %12670 = vmatpush1.bf16.msra.mxu0 %v10645
    %12671 = vmatprep.subr.bf16.mxu0 %v10652
    %12672 = vmatpush1.bf16.msra.mxu0 %v10651
    %12673 = vmatprep.subr.bf16.mxu0 %v10658
    %12674 = vmatpush1.bf16.msra.mxu0 %v10657
    %12675 = vmatprep.subr.bf16.mxu0 %v10664
    %12676 = vmatpush1.bf16.msra.mxu0 %v10663
    %12677 = vmatprep.subr.bf16.mxu0 %v10670
    %12678 = vmatpush1.bf16.msra.mxu0 %v10669
    %12679 = vmatprep.subr.bf16.mxu0 %v10676
    %12680 = vmatpush1.bf16.msra.mxu0 %v10675
    %12681 = vmatprep.subr.bf16.mxu0 %v10682
    %12682 = vmatpush1.bf16.msra.mxu0 %v10681
    %12683 = vmatprep.subr.bf16.mxu0 %v10688
    %12684 = vmatpush1.bf16.msra.mxu0 %v10687
    %12685 = vmatprep.subr.bf16.mxu0 %v10694
    %12686 = vmatpush1.bf16.msra.mxu0 %v10693
    %12687 = vmatprep.subr.bf16.mxu0 %v10700
    %12688 = vmatpush1.bf16.msra.mxu0 %v10699
    %12689 = vmatprep.subr.bf16.mxu0 %v10706
    %12690 = vmatpush1.bf16.msra.mxu0 %v10705
    %12691 = vmatprep.subr.bf16.mxu0 %v10712
    %12692 = vmatpush1.bf16.msra.mxu0 %v10711
    %12693 = vmatprep.mubr.bf16.mxu0 %v7020
    %12694 = vmatmul.mubr.bf16.gmra.mrb[0].mxu0 %v7019
    %v12695 = vpop.f32.mrb[0].mxu0
    %v12696 = vadd.f32 %v12655, %v12695
    %v12697 = vpop.f32.mrb[0].mxu0
    %v12698 = vadd.f32 %v12657, %v12697
    %v12699 = vpop.f32.mrb[0].mxu0
    %v12700 = vpop.f32.mrb[0].mxu0
    %12701 = vdwg.mxu0
    %12702 = vmatprep.subr.bf16.mxu0 %v10718
    %12703 = vmatpush1.bf16.msra.mxu0 %v10717
    %12704 = vmatprep.subr.bf16.mxu0 %v10724
    %12705 = vmatpush1.bf16.msra.mxu0 %v10723
    %12706 = vmatprep.subr.bf16.mxu0 %v10730
    %12707 = vmatpush1.bf16.msra.mxu0 %v10729
    %12708 = vmatprep.subr.bf16.mxu0 %v10736
    %12709 = vmatpush1.bf16.msra.mxu0 %v10735
    %12710 = vmatprep.subr.bf16.mxu0 %v10742
    %12711 = vmatpush1.bf16.msra.mxu0 %v10741
    %12712 = vmatprep.subr.bf16.mxu0 %v10748
    %12713 = vmatpush1.bf16.msra.mxu0 %v10747
    %12714 = vmatprep.subr.bf16.mxu0 %v10754
    %12715 = vmatpush1.bf16.msra.mxu0 %v10753
    %12716 = vmatprep.subr.bf16.mxu0 %v10760
    %12717 = vmatpush1.bf16.msra.mxu0 %v10759
    %12718 = vmatprep.subr.bf16.mxu0 %v10766
    %12719 = vmatpush1.bf16.msra.mxu0 %v10765
    %12720 = vmatprep.subr.bf16.mxu0 %v10772
    %12721 = vmatpush1.bf16.msra.mxu0 %v10771
    %12722 = vmatprep.subr.bf16.mxu0 %v10778
    %12723 = vmatpush1.bf16.msra.mxu0 %v10777
    %12724 = vmatprep.subr.bf16.mxu0 %v10784
    %12725 = vmatpush1.bf16.msra.mxu0 %v10783
    %12726 = vmatprep.subr.bf16.mxu0 %v10790
    %12727 = vmatpush1.bf16.msra.mxu0 %v10789
    %12728 = vmatprep.subr.bf16.mxu0 %v10796
    %12729 = vmatpush1.bf16.msra.mxu0 %v10795
    %12730 = vmatprep.subr.bf16.mxu0 %v10802
    %12731 = vmatpush1.bf16.msra.mxu0 %v10801
    %12732 = vmatprep.subr.bf16.mxu0 %v10808
    %12733 = vmatpush1.bf16.msra.mxu0 %v10807
    %12734 = vmatprep.mubr.bf16.mxu0 %v7022
    %12735 = vmatmul.mubr.bf16.gmra.mrb[0].mxu0 %v7021
    %v12736 = vpop.f32.mrb[0].mxu0
    %v12737 = vadd.f32 %v12696, %v12736
    %v12738 = vpop.f32.mrb[0].mxu0
    %v12739 = vadd.f32 %v12698, %v12738
    %v12740 = vpop.f32.mrb[0].mxu0
    %v12741 = vpop.f32.mrb[0].mxu0
    %12742 = vdwg.mxu0
    %12743 = vmatprep.subr.bf16.mxu0 %v10814
    %12744 = vmatpush1.bf16.msra.mxu0 %v10813
    %12745 = vmatprep.subr.bf16.mxu0 %v10820
    %12746 = vmatpush1.bf16.msra.mxu0 %v10819
    %12747 = vmatprep.subr.bf16.mxu0 %v10826
    %12748 = vmatpush1.bf16.msra.mxu0 %v10825
    %12749 = vmatprep.subr.bf16.mxu0 %v10832
    %12750 = vmatpush1.bf16.msra.mxu0 %v10831
    %12751 = vmatprep.subr.bf16.mxu0 %v10838
    %12752 = vmatpush1.bf16.msra.mxu0 %v10837
    %12753 = vmatprep.subr.bf16.mxu0 %v10844
    %12754 = vmatpush1.bf16.msra.mxu0 %v10843
    %12755 = vmatprep.subr.bf16.mxu0 %v10850
    %12756 = vmatpush1.bf16.msra.mxu0 %v10849
    %12757 = vmatprep.subr.bf16.mxu0 %v10856
    %12758 = vmatpush1.bf16.msra.mxu0 %v10855
    %12759 = vmatprep.subr.bf16.mxu0 %v10862
    %12760 = vmatpush1.bf16.msra.mxu0 %v10861
    %12761 = vmatprep.subr.bf16.mxu0 %v10868
    %12762 = vmatpush1.bf16.msra.mxu0 %v10867
    %12763 = vmatprep.subr.bf16.mxu0 %v10874
    %12764 = vmatpush1.bf16.msra.mxu0 %v10873
    %12765 = vmatprep.subr.bf16.mxu0 %v10880
    %12766 = vmatpush1.bf16.msra.mxu0 %v10879
    %12767 = vmatprep.subr.bf16.mxu0 %v10886
    %12768 = vmatpush1.bf16.msra.mxu0 %v10885
    %12769 = vmatprep.subr.bf16.mxu0 %v10892
    %12770 = vmatpush1.bf16.msra.mxu0 %v10891
    %12771 = vmatprep.subr.bf16.mxu0 %v10898
    %12772 = vmatpush1.bf16.msra.mxu0 %v10897
    %12773 = vmatprep.subr.bf16.mxu0 %v10904
    %12774 = vmatpush1.bf16.msra.mxu0 %v10903
    %12775 = vmatprep.mubr.bf16.mxu0 %v7024
    %12776 = vmatmul.mubr.bf16.gmra.mrb[0].mxu0 %v7023
    %v12777 = vpop.f32.mrb[0].mxu0
    %v12778 = vadd.f32 %v12737, %v12777
    %v12779 = vpop.f32.mrb[0].mxu0
    %v12780 = vadd.f32 %v12739, %v12779
    %v12781 = vpop.f32.mrb[0].mxu0
    %v12782 = vpop.f32.mrb[0].mxu0
    %12783 = vdwg.mxu0
    %12784 = vmatprep.subr.bf16.mxu0 %v10910
    %12785 = vmatpush1.bf16.msra.mxu0 %v10909
    %12786 = vmatprep.subr.bf16.mxu0 %v10916
    %12787 = vmatpush1.bf16.msra.mxu0 %v10915
    %12788 = vmatprep.subr.bf16.mxu0 %v10922
    %12789 = vmatpush1.bf16.msra.mxu0 %v10921
    %12790 = vmatprep.subr.bf16.mxu0 %v10928
    %12791 = vmatpush1.bf16.msra.mxu0 %v10927
    %12792 = vmatprep.subr.bf16.mxu0 %v10934
    %12793 = vmatpush1.bf16.msra.mxu0 %v10933
    %12794 = vmatprep.subr.bf16.mxu0 %v10940
    %12795 = vmatpush1.bf16.msra.mxu0 %v10939
    %12796 = vmatprep.subr.bf16.mxu0 %v10946
    %12797 = vmatpush1.bf16.msra.mxu0 %v10945
    %12798 = vmatprep.subr.bf16.mxu0 %v10952
    %12799 = vmatpush1.bf16.msra.mxu0 %v10951
    %12800 = vmatprep.subr.bf16.mxu0 %v10958
    %12801 = vmatpush1.bf16.msra.mxu0 %v10957
    %12802 = vmatprep.subr.bf16.mxu0 %v10964
    %12803 = vmatpush1.bf16.msra.mxu0 %v10963
    %12804 = vmatprep.subr.bf16.mxu0 %v10970
    %12805 = vmatpush1.bf16.msra.mxu0 %v10969
    %12806 = vmatprep.subr.bf16.mxu0 %v10976
    %12807 = vmatpush1.bf16.msra.mxu0 %v10975
    %12808 = vmatprep.subr.bf16.mxu0 %v10982
    %12809 = vmatpush1.bf16.msra.mxu0 %v10981
    %12810 = vmatprep.subr.bf16.mxu0 %v10988
    %12811 = vmatpush1.bf16.msra.mxu0 %v10987
    %12812 = vmatprep.subr.bf16.mxu0 %v10994
    %12813 = vmatpush1.bf16.msra.mxu0 %v10993
    %12814 = vmatprep.subr.bf16.mxu0 %v11000
    %12815 = vmatpush1.bf16.msra.mxu0 %v10999
    %12816 = vmatprep.mubr.bf16.mxu0 %v7026
    %12817 = vmatmul.mubr.bf16.gmra.mrb[0].mxu0 %v7025
    %v12818 = vpop.f32.mrb[0].mxu0
    %v12819 = vadd.f32 %v12778, %v12818
    %v12820 = vpop.f32.mrb[0].mxu0
    %v12821 = vadd.f32 %v12780, %v12820
    %v12822 = vpop.f32.mrb[0].mxu0
    %v12823 = vpop.f32.mrb[0].mxu0
    %12824 = vdwg.mxu0
    %12825 = vmatprep.subr.bf16.mxu0 %v11006
    %12826 = vmatpush1.bf16.msra.mxu0 %v11005
    %12827 = vmatprep.subr.bf16.mxu0 %v11012
    %12828 = vmatpush1.bf16.msra.mxu0 %v11011
    %12829 = vmatprep.subr.bf16.mxu0 %v11018
    %12830 = vmatpush1.bf16.msra.mxu0 %v11017
    %12831 = vmatprep.subr.bf16.mxu0 %v11024
    %12832 = vmatpush1.bf16.msra.mxu0 %v11023
    %12833 = vmatprep.subr.bf16.mxu0 %v11030
    %12834 = vmatpush1.bf16.msra.mxu0 %v11029
    %12835 = vmatprep.subr.bf16.mxu0 %v11036
    %12836 = vmatpush1.bf16.msra.mxu0 %v11035
    %12837 = vmatprep.subr.bf16.mxu0 %v11042
    %12838 = vmatpush1.bf16.msra.mxu0 %v11041
    %12839 = vmatprep.subr.bf16.mxu0 %v11048
    %12840 = vmatpush1.bf16.msra.mxu0 %v11047
    %12841 = vmatprep.subr.bf16.mxu0 %v11054
    %12842 = vmatpush1.bf16.msra.mxu0 %v11053
    %12843 = vmatprep.subr.bf16.mxu0 %v11060
    %12844 = vmatpush1.bf16.msra.mxu0 %v11059
    %12845 = vmatprep.subr.bf16.mxu0 %v11066
    %12846 = vmatpush1.bf16.msra.mxu0 %v11065
    %12847 = vmatprep.subr.bf16.mxu0 %v11072
    %12848 = vmatpush1.bf16.msra.mxu0 %v11071
    %12849 = vmatprep.subr.bf16.mxu0 %v11078
    %12850 = vmatpush1.bf16.msra.mxu0 %v11077
    %12851 = vmatprep.subr.bf16.mxu0 %v11084
    %12852 = vmatpush1.bf16.msra.mxu0 %v11083
    %12853 = vmatprep.subr.bf16.mxu0 %v11090
    %12854 = vmatpush1.bf16.msra.mxu0 %v11089
    %12855 = vmatprep.subr.bf16.mxu0 %v11096
    %12856 = vmatpush1.bf16.msra.mxu0 %v11095
    %12857 = vmatprep.mubr.bf16.mxu0 %v7028
    %12858 = vmatmul.mubr.bf16.gmra.mrb[0].mxu0 %v7027
    %v12859 = vpop.f32.mrb[0].mxu0
    %v12860 = vadd.f32 %v12819, %v12859
    %v12861 = vpop.f32.mrb[0].mxu0
    %v12862 = vadd.f32 %v12821, %v12861
    %v12863 = vpop.f32.mrb[0].mxu0
    %v12864 = vpop.f32.mrb[0].mxu0
    %12865 = vdwg.mxu0
    %12866 = vmatprep.subr.bf16.mxu0 %v11102
    %12867 = vmatpush1.bf16.msra.mxu0 %v11101
    %12868 = vmatprep.subr.bf16.mxu0 %v11108
    %12869 = vmatpush1.bf16.msra.mxu0 %v11107
    %12870 = vmatprep.subr.bf16.mxu0 %v11114
    %12871 = vmatpush1.bf16.msra.mxu0 %v11113
    %12872 = vmatprep.subr.bf16.mxu0 %v11120
    %12873 = vmatpush1.bf16.msra.mxu0 %v11119
    %12874 = vmatprep.subr.bf16.mxu0 %v11126
    %12875 = vmatpush1.bf16.msra.mxu0 %v11125
    %12876 = vmatprep.subr.bf16.mxu0 %v11132
    %12877 = vmatpush1.bf16.msra.mxu0 %v11131
    %12878 = vmatprep.subr.bf16.mxu0 %v11138
    %12879 = vmatpush1.bf16.msra.mxu0 %v11137
    %12880 = vmatprep.subr.bf16.mxu0 %v11144
    %12881 = vmatpush1.bf16.msra.mxu0 %v11143
    %12882 = vmatprep.subr.bf16.mxu0 %v11150
    %12883 = vmatpush1.bf16.msra.mxu0 %v11149
    %12884 = vmatprep.subr.bf16.mxu0 %v11156
    %12885 = vmatpush1.bf16.msra.mxu0 %v11155
    %12886 = vmatprep.subr.bf16.mxu0 %v11162
    %12887 = vmatpush1.bf16.msra.mxu0 %v11161
    %12888 = vmatprep.subr.bf16.mxu0 %v11168
    %12889 = vmatpush1.bf16.msra.mxu0 %v11167
    %12890 = vmatprep.subr.bf16.mxu0 %v11174
    %12891 = vmatpush1.bf16.msra.mxu0 %v11173
    %12892 = vmatprep.subr.bf16.mxu0 %v11180
    %12893 = vmatpush1.bf16.msra.mxu0 %v11179
    %12894 = vmatprep.subr.bf16.mxu0 %v11186
    %12895 = vmatpush1.bf16.msra.mxu0 %v11185
    %12896 = vmatprep.subr.bf16.mxu0 %v11192
    %12897 = vmatpush1.bf16.msra.mxu0 %v11191
    %12898 = vmatprep.mubr.bf16.mxu0 %v7030
    %12899 = vmatmul.mubr.bf16.gmra.mrb[0].mxu0 %v7029
    %v12900 = vpop.f32.mrb[0].mxu0
    %v12901 = vadd.f32 %v12860, %v12900
    %v12902 = vpop.f32.mrb[0].mxu0
    %v12903 = vadd.f32 %v12862, %v12902
    %v12904 = vpop.f32.mrb[0].mxu0
    %v12905 = vpop.f32.mrb[0].mxu0
    %12906 = vdwg.mxu0
    %12907 = vmatprep.subr.bf16.mxu0 %v11198
    %12908 = vmatpush1.bf16.msra.mxu0 %v11197
    %12909 = vmatprep.subr.bf16.mxu0 %v11204
    %12910 = vmatpush1.bf16.msra.mxu0 %v11203
    %12911 = vmatprep.subr.bf16.mxu0 %v11210
    %12912 = vmatpush1.bf16.msra.mxu0 %v11209
    %12913 = vmatprep.subr.bf16.mxu0 %v11216
    %12914 = vmatpush1.bf16.msra.mxu0 %v11215
    %12915 = vmatprep.subr.bf16.mxu0 %v11222
    %12916 = vmatpush1.bf16.msra.mxu0 %v11221
    %12917 = vmatprep.subr.bf16.mxu0 %v11228
    %12918 = vmatpush1.bf16.msra.mxu0 %v11227
    %12919 = vmatprep.subr.bf16.mxu0 %v11234
    %12920 = vmatpush1.bf16.msra.mxu0 %v11233
    %12921 = vmatprep.subr.bf16.mxu0 %v11240
    %12922 = vmatpush1.bf16.msra.mxu0 %v11239
    %12923 = vmatprep.subr.bf16.mxu0 %v11246
    %12924 = vmatpush1.bf16.msra.mxu0 %v11245
    %12925 = vmatprep.subr.bf16.mxu0 %v11252
    %12926 = vmatpush1.bf16.msra.mxu0 %v11251
    %12927 = vmatprep.subr.bf16.mxu0 %v11258
    %12928 = vmatpush1.bf16.msra.mxu0 %v11257
    %12929 = vmatprep.subr.bf16.mxu0 %v11264
    %12930 = vmatpush1.bf16.msra.mxu0 %v11263
    %12931 = vmatprep.subr.bf16.mxu0 %v11270
    %12932 = vmatpush1.bf16.msra.mxu0 %v11269
    %12933 = vmatprep.subr.bf16.mxu0 %v11276
    %12934 = vmatpush1.bf16.msra.mxu0 %v11275
    %12935 = vmatprep.subr.bf16.mxu0 %v11282
    %12936 = vmatpush1.bf16.msra.mxu0 %v11281
    %12937 = vmatprep.subr.bf16.mxu0 %v11288
    %12938 = vmatpush1.bf16.msra.mxu0 %v11287
    %12939 = vmatprep.mubr.bf16.mxu0 %v7032
    %12940 = vmatmul.mubr.bf16.gmra.mrb[0].mxu0 %v7031
    %v12941 = vpop.f32.mrb[0].mxu0
    %v12942 = vadd.f32 %v12901, %v12941
    %v12943 = vpop.f32.mrb[0].mxu0
    %v12944 = vadd.f32 %v12903, %v12943
    %v12945 = vpop.f32.mrb[0].mxu0
    %v12946 = vpop.f32.mrb[0].mxu0
    %12947 = vdwg.mxu0
    %12948 = vmatprep.subr.bf16.mxu0 %v11294
    %12949 = vmatpush1.bf16.msra.mxu0 %v11293
    %12950 = vmatprep.subr.bf16.mxu0 %v11300
    %12951 = vmatpush1.bf16.msra.mxu0 %v11299
    %12952 = vmatprep.subr.bf16.mxu0 %v11306
    %12953 = vmatpush1.bf16.msra.mxu0 %v11305
    %12954 = vmatprep.subr.bf16.mxu0 %v11312
    %12955 = vmatpush1.bf16.msra.mxu0 %v11311
    %12956 = vmatprep.subr.bf16.mxu0 %v11318
    %12957 = vmatpush1.bf16.msra.mxu0 %v11317
    %12958 = vmatprep.subr.bf16.mxu0 %v11324
    %12959 = vmatpush1.bf16.msra.mxu0 %v11323
    %12960 = vmatprep.subr.bf16.mxu0 %v11330
    %12961 = vmatpush1.bf16.msra.mxu0 %v11329
    %12962 = vmatprep.subr.bf16.mxu0 %v11336
    %12963 = vmatpush1.bf16.msra.mxu0 %v11335
    %12964 = vmatprep.subr.bf16.mxu0 %v11342
    %12965 = vmatpush1.bf16.msra.mxu0 %v11341
    %12966 = vmatprep.subr.bf16.mxu0 %v11348
    %12967 = vmatpush1.bf16.msra.mxu0 %v11347
    %12968 = vmatprep.subr.bf16.mxu0 %v11354
    %12969 = vmatpush1.bf16.msra.mxu0 %v11353
    %12970 = vmatprep.subr.bf16.mxu0 %v11360
    %12971 = vmatpush1.bf16.msra.mxu0 %v11359
    %12972 = vmatprep.subr.bf16.mxu0 %v11366
    %12973 = vmatpush1.bf16.msra.mxu0 %v11365
    %12974 = vmatprep.subr.bf16.mxu0 %v11372
    %12975 = vmatpush1.bf16.msra.mxu0 %v11371
    %12976 = vmatprep.subr.bf16.mxu0 %v11378
    %12977 = vmatpush1.bf16.msra.mxu0 %v11377
    %12978 = vmatprep.subr.bf16.mxu0 %v11384
    %12979 = vmatpush1.bf16.msra.mxu0 %v11383
    %12980 = vmatprep.mubr.bf16.mxu0 %v7034
    %12981 = vmatmul.mubr.bf16.gmra.mrb[0].mxu0 %v7033
    %v12982 = vpop.f32.mrb[0].mxu0
    %v12983 = vadd.f32 %v12942, %v12982
    %v12984 = vpop.f32.mrb[0].mxu0
    %v12985 = vadd.f32 %v12944, %v12984
    %v12986 = vpop.f32.mrb[0].mxu0
    %v12987 = vpop.f32.mrb[0].mxu0
    %12988 = vdwg.mxu0
    %12989 = vmatprep.subr.bf16.mxu0 %v10528
    %12990 = vmatpush1.bf16.msra.mxu0 %v10527
    %12991 = vmatprep.subr.bf16.mxu0 %v10534
    %12992 = vmatpush1.bf16.msra.mxu0 %v10533
    %12993 = vmatprep.subr.bf16.mxu0 %v10540
    %12994 = vmatpush1.bf16.msra.mxu0 %v10539
    %12995 = vmatprep.subr.bf16.mxu0 %v10546
    %12996 = vmatpush1.bf16.msra.mxu0 %v10545
    %12997 = vmatprep.subr.bf16.mxu0 %v10552
    %12998 = vmatpush1.bf16.msra.mxu0 %v10551
    %12999 = vmatprep.subr.bf16.mxu0 %v10558
    %13000 = vmatpush1.bf16.msra.mxu0 %v10557
    %13001 = vmatprep.subr.bf16.mxu0 %v10564
    %13002 = vmatpush1.bf16.msra.mxu0 %v10563
    %13003 = vmatprep.subr.bf16.mxu0 %v10570
    %13004 = vmatpush1.bf16.msra.mxu0 %v10569
    %13005 = vmatprep.subr.bf16.mxu0 %v10576
    %13006 = vmatpush1.bf16.msra.mxu0 %v10575
    %13007 = vmatprep.subr.bf16.mxu0 %v10582
    %13008 = vmatpush1.bf16.msra.mxu0 %v10581
    %13009 = vmatprep.subr.bf16.mxu0 %v10588
    %13010 = vmatpush1.bf16.msra.mxu0 %v10587
    %13011 = vmatprep.subr.bf16.mxu0 %v10594
    %13012 = vmatpush1.bf16.msra.mxu0 %v10593
    %13013 = vmatprep.subr.bf16.mxu0 %v10600
    %13014 = vmatpush1.bf16.msra.mxu0 %v10599
    %13015 = vmatprep.subr.bf16.mxu0 %v10606
    %13016 = vmatpush1.bf16.msra.mxu0 %v10605
    %13017 = vmatprep.subr.bf16.mxu0 %v10612
    %13018 = vmatpush1.bf16.msra.mxu0 %v10611
    %13019 = vmatprep.subr.bf16.mxu0 %v10618
    %13020 = vmatpush1.bf16.msra.mxu0 %v10617
    %13021 = vmatprep.mubr.bf16.mxu0 %v7018
    %13022 = vmatmul.mubr.bf16.gmra.mrb[0].mxu0 %v7017
    %v13023 = vpop.f32.mrb[0].mxu0
    %v13024 = vadd.f32 %v7920, %v13023
    %v13025 = vpop.f32.mrb[0].mxu0
    %v13026 = vadd.f32 %v7924, %v13025
    %v13027 = vpop.f32.mrb[0].mxu0
    %v13028 = vpop.f32.mrb[0].mxu0
    %13029 = vdwg.mxu0
    %13030 = vmatprep.subr.bf16.mxu0 %v10624
    %13031 = vmatpush1.bf16.msra.mxu0 %v10623
    %13032 = vmatprep.subr.bf16.mxu0 %v10630
    %13033 = vmatpush1.bf16.msra.mxu0 %v10629
    %13034 = vmatprep.subr.bf16.mxu0 %v10636
    %13035 = vmatpush1.bf16.msra.mxu0 %v10635
    %13036 = vmatprep.subr.bf16.mxu0 %v10642
    %13037 = vmatpush1.bf16.msra.mxu0 %v10641
    %13038 = vmatprep.subr.bf16.mxu0 %v10648
    %13039 = vmatpush1.bf16.msra.mxu0 %v10647
    %13040 = vmatprep.subr.bf16.mxu0 %v10654
    %13041 = vmatpush1.bf16.msra.mxu0 %v10653
    %13042 = vmatprep.subr.bf16.mxu0 %v10660
    %13043 = vmatpush1.bf16.msra.mxu0 %v10659
    %13044 = vmatprep.subr.bf16.mxu0 %v10666
    %13045 = vmatpush1.bf16.msra.mxu0 %v10665
    %13046 = vmatprep.subr.bf16.mxu0 %v10672
    %13047 = vmatpush1.bf16.msra.mxu0 %v10671
    %13048 = vmatprep.subr.bf16.mxu0 %v10678
    %13049 = vmatpush1.bf16.msra.mxu0 %v10677
    %13050 = vmatprep.subr.bf16.mxu0 %v10684
    %13051 = vmatpush1.bf16.msra.mxu0 %v10683
    %13052 = vmatprep.subr.bf16.mxu0 %v10690
    %13053 = vmatpush1.bf16.msra.mxu0 %v10689
    %13054 = vmatprep.subr.bf16.mxu0 %v10696
    %13055 = vmatpush1.bf16.msra.mxu0 %v10695
    %13056 = vmatprep.subr.bf16.mxu0 %v10702
    %13057 = vmatpush1.bf16.msra.mxu0 %v10701
    %13058 = vmatprep.subr.bf16.mxu0 %v10708
    %13059 = vmatpush1.bf16.msra.mxu0 %v10707
    %13060 = vmatprep.subr.bf16.mxu0 %v10714
    %13061 = vmatpush1.bf16.msra.mxu0 %v10713
    %13062 = vmatprep.mubr.bf16.mxu0 %v7020
    %13063 = vmatmul.mubr.bf16.gmra.mrb[0].mxu0 %v7019
    %v13064 = vpop.f32.mrb[0].mxu0
    %v13065 = vadd.f32 %v13024, %v13064
    %v13066 = vpop.f32.mrb[0].mxu0
    %v13067 = vadd.f32 %v13026, %v13066
    %v13068 = vpop.f32.mrb[0].mxu0
    %v13069 = vpop.f32.mrb[0].mxu0
    %13070 = vdwg.mxu0
    %13071 = vmatprep.subr.bf16.mxu0 %v10720
    %13072 = vmatpush1.bf16.msra.mxu0 %v10719
    %13073 = vmatprep.subr.bf16.mxu0 %v10726
    %13074 = vmatpush1.bf16.msra.mxu0 %v10725
    %13075 = vmatprep.subr.bf16.mxu0 %v10732
    %13076 = vmatpush1.bf16.msra.mxu0 %v10731
    %13077 = vmatprep.subr.bf16.mxu0 %v10738
    %13078 = vmatpush1.bf16.msra.mxu0 %v10737
    %13079 = vmatprep.subr.bf16.mxu0 %v10744
    %13080 = vmatpush1.bf16.msra.mxu0 %v10743
    %13081 = vmatprep.subr.bf16.mxu0 %v10750
    %13082 = vmatpush1.bf16.msra.mxu0 %v10749
    %13083 = vmatprep.subr.bf16.mxu0 %v10756
    %13084 = vmatpush1.bf16.msra.mxu0 %v10755
    %13085 = vmatprep.subr.bf16.mxu0 %v10762
    %13086 = vmatpush1.bf16.msra.mxu0 %v10761
    %13087 = vmatprep.subr.bf16.mxu0 %v10768
    %13088 = vmatpush1.bf16.msra.mxu0 %v10767
    %13089 = vmatprep.subr.bf16.mxu0 %v10774
    %13090 = vmatpush1.bf16.msra.mxu0 %v10773
    %13091 = vmatprep.subr.bf16.mxu0 %v10780
    %13092 = vmatpush1.bf16.msra.mxu0 %v10779
    %13093 = vmatprep.subr.bf16.mxu0 %v10786
    %13094 = vmatpush1.bf16.msra.mxu0 %v10785
    %13095 = vmatprep.subr.bf16.mxu0 %v10792
    %13096 = vmatpush1.bf16.msra.mxu0 %v10791
    %13097 = vmatprep.subr.bf16.mxu0 %v10798
    %13098 = vmatpush1.bf16.msra.mxu0 %v10797
    %13099 = vmatprep.subr.bf16.mxu0 %v10804
    %13100 = vmatpush1.bf16.msra.mxu0 %v10803
    %13101 = vmatprep.subr.bf16.mxu0 %v10810
    %13102 = vmatpush1.bf16.msra.mxu0 %v10809
    %13103 = vmatprep.mubr.bf16.mxu0 %v7022
    %13104 = vmatmul.mubr.bf16.gmra.mrb[0].mxu0 %v7021
    %v13105 = vpop.f32.mrb[0].mxu0
    %v13106 = vadd.f32 %v13065, %v13105
    %v13107 = vpop.f32.mrb[0].mxu0
    %v13108 = vadd.f32 %v13067, %v13107
    %v13109 = vpop.f32.mrb[0].mxu0
    %v13110 = vpop.f32.mrb[0].mxu0
    %13111 = vdwg.mxu0
    %13112 = vmatprep.subr.bf16.mxu0 %v10816
    %13113 = vmatpush1.bf16.msra.mxu0 %v10815
    %13114 = vmatprep.subr.bf16.mxu0 %v10822
    %13115 = vmatpush1.bf16.msra.mxu0 %v10821
    %13116 = vmatprep.subr.bf16.mxu0 %v10828
    %13117 = vmatpush1.bf16.msra.mxu0 %v10827
    %13118 = vmatprep.subr.bf16.mxu0 %v10834
    %13119 = vmatpush1.bf16.msra.mxu0 %v10833
    %13120 = vmatprep.subr.bf16.mxu0 %v10840
    %13121 = vmatpush1.bf16.msra.mxu0 %v10839
    %13122 = vmatprep.subr.bf16.mxu0 %v10846
    %13123 = vmatpush1.bf16.msra.mxu0 %v10845
    %13124 = vmatprep.subr.bf16.mxu0 %v10852
    %13125 = vmatpush1.bf16.msra.mxu0 %v10851
    %13126 = vmatprep.subr.bf16.mxu0 %v10858
    %13127 = vmatpush1.bf16.msra.mxu0 %v10857
    %13128 = vmatprep.subr.bf16.mxu0 %v10864
    %13129 = vmatpush1.bf16.msra.mxu0 %v10863
    %13130 = vmatprep.subr.bf16.mxu0 %v10870
    %13131 = vmatpush1.bf16.msra.mxu0 %v10869
    %13132 = vmatprep.subr.bf16.mxu0 %v10876
    %13133 = vmatpush1.bf16.msra.mxu0 %v10875
    %13134 = vmatprep.subr.bf16.mxu0 %v10882
    %13135 = vmatpush1.bf16.msra.mxu0 %v10881
    %13136 = vmatprep.subr.bf16.mxu0 %v10888
    %13137 = vmatpush1.bf16.msra.mxu0 %v10887
    %13138 = vmatprep.subr.bf16.mxu0 %v10894
    %13139 = vmatpush1.bf16.msra.mxu0 %v10893
    %13140 = vmatprep.subr.bf16.mxu0 %v10900
    %13141 = vmatpush1.bf16.msra.mxu0 %v10899
    %13142 = vmatprep.subr.bf16.mxu0 %v10906
    %13143 = vmatpush1.bf16.msra.mxu0 %v10905
    %13144 = vmatprep.mubr.bf16.mxu0 %v7024
    %13145 = vmatmul.mubr.bf16.gmra.mrb[0].mxu0 %v7023
    %v13146 = vpop.f32.mrb[0].mxu0
    %v13147 = vadd.f32 %v13106, %v13146
    %v13148 = vpop.f32.mrb[0].mxu0
    %v13149 = vadd.f32 %v13108, %v13148
    %v13150 = vpop.f32.mrb[0].mxu0
    %v13151 = vpop.f32.mrb[0].mxu0
    %13152 = vdwg.mxu0
    %13153 = vmatprep.subr.bf16.mxu0 %v10912
    %13154 = vmatpush1.bf16.msra.mxu0 %v10911
    %13155 = vmatprep.subr.bf16.mxu0 %v10918
    %13156 = vmatpush1.bf16.msra.mxu0 %v10917
    %13157 = vmatprep.subr.bf16.mxu0 %v10924
    %13158 = vmatpush1.bf16.msra.mxu0 %v10923
    %13159 = vmatprep.subr.bf16.mxu0 %v10930
    %13160 = vmatpush1.bf16.msra.mxu0 %v10929
    %13161 = vmatprep.subr.bf16.mxu0 %v10936
    %13162 = vmatpush1.bf16.msra.mxu0 %v10935
    %13163 = vmatprep.subr.bf16.mxu0 %v10942
    %13164 = vmatpush1.bf16.msra.mxu0 %v10941
    %13165 = vmatprep.subr.bf16.mxu0 %v10948
    %13166 = vmatpush1.bf16.msra.mxu0 %v10947
    %13167 = vmatprep.subr.bf16.mxu0 %v10954
    %13168 = vmatpush1.bf16.msra.mxu0 %v10953
    %13169 = vmatprep.subr.bf16.mxu0 %v10960
    %13170 = vmatpush1.bf16.msra.mxu0 %v10959
    %13171 = vmatprep.subr.bf16.mxu0 %v10966
    %13172 = vmatpush1.bf16.msra.mxu0 %v10965
    %13173 = vmatprep.subr.bf16.mxu0 %v10972
    %13174 = vmatpush1.bf16.msra.mxu0 %v10971
    %13175 = vmatprep.subr.bf16.mxu0 %v10978
    %13176 = vmatpush1.bf16.msra.mxu0 %v10977
    %13177 = vmatprep.subr.bf16.mxu0 %v10984
    %13178 = vmatpush1.bf16.msra.mxu0 %v10983
    %13179 = vmatprep.subr.bf16.mxu0 %v10990
    %13180 = vmatpush1.bf16.msra.mxu0 %v10989
    %13181 = vmatprep.subr.bf16.mxu0 %v10996
    %13182 = vmatpush1.bf16.msra.mxu0 %v10995
    %13183 = vmatprep.subr.bf16.mxu0 %v11002
    %13184 = vmatpush1.bf16.msra.mxu0 %v11001
    %13185 = vmatprep.mubr.bf16.mxu0 %v7026
    %13186 = vmatmul.mubr.bf16.gmra.mrb[0].mxu0 %v7025
    %v13187 = vpop.f32.mrb[0].mxu0
    %v13188 = vadd.f32 %v13147, %v13187
    %v13189 = vpop.f32.mrb[0].mxu0
    %v13190 = vadd.f32 %v13149, %v13189
    %v13191 = vpop.f32.mrb[0].mxu0
    %v13192 = vpop.f32.mrb[0].mxu0
    %13193 = vdwg.mxu0
    %13194 = vmatprep.subr.bf16.mxu0 %v11008
    %13195 = vmatpush1.bf16.msra.mxu0 %v11007
    %13196 = vmatprep.subr.bf16.mxu0 %v11014
    %13197 = vmatpush1.bf16.msra.mxu0 %v11013
    %13198 = vmatprep.subr.bf16.mxu0 %v11020
    %13199 = vmatpush1.bf16.msra.mxu0 %v11019
    %13200 = vmatprep.subr.bf16.mxu0 %v11026
    %13201 = vmatpush1.bf16.msra.mxu0 %v11025
    %13202 = vmatprep.subr.bf16.mxu0 %v11032
    %13203 = vmatpush1.bf16.msra.mxu0 %v11031
    %13204 = vmatprep.subr.bf16.mxu0 %v11038
    %13205 = vmatpush1.bf16.msra.mxu0 %v11037
    %13206 = vmatprep.subr.bf16.mxu0 %v11044
    %13207 = vmatpush1.bf16.msra.mxu0 %v11043
    %13208 = vmatprep.subr.bf16.mxu0 %v11050
    %13209 = vmatpush1.bf16.msra.mxu0 %v11049
    %13210 = vmatprep.subr.bf16.mxu0 %v11056
    %13211 = vmatpush1.bf16.msra.mxu0 %v11055
    %13212 = vmatprep.subr.bf16.mxu0 %v11062
    %13213 = vmatpush1.bf16.msra.mxu0 %v11061
    %13214 = vmatprep.subr.bf16.mxu0 %v11068
    %13215 = vmatpush1.bf16.msra.mxu0 %v11067
    %13216 = vmatprep.subr.bf16.mxu0 %v11074
    %13217 = vmatpush1.bf16.msra.mxu0 %v11073
    %13218 = vmatprep.subr.bf16.mxu0 %v11080
    %13219 = vmatpush1.bf16.msra.mxu0 %v11079
    %13220 = vmatprep.subr.bf16.mxu0 %v11086
    %13221 = vmatpush1.bf16.msra.mxu0 %v11085
    %13222 = vmatprep.subr.bf16.mxu0 %v11092
    %13223 = vmatpush1.bf16.msra.mxu0 %v11091
    %13224 = vmatprep.subr.bf16.mxu0 %v11098
    %13225 = vmatpush1.bf16.msra.mxu0 %v11097
    %13226 = vmatprep.mubr.bf16.mxu0 %v7028
    %13227 = vmatmul.mubr.bf16.gmra.mrb[0].mxu0 %v7027
    %v13228 = vpop.f32.mrb[0].mxu0
    %v13229 = vadd.f32 %v13188, %v13228
    %v13230 = vpop.f32.mrb[0].mxu0
    %v13231 = vadd.f32 %v13190, %v13230
    %v13232 = vpop.f32.mrb[0].mxu0
    %v13233 = vpop.f32.mrb[0].mxu0
    %13234 = vdwg.mxu0
    %13235 = vmatprep.subr.bf16.mxu0 %v11104
    %13236 = vmatpush1.bf16.msra.mxu0 %v11103
    %13237 = vmatprep.subr.bf16.mxu0 %v11110
    %13238 = vmatpush1.bf16.msra.mxu0 %v11109
    %13239 = vmatprep.subr.bf16.mxu0 %v11116
    %13240 = vmatpush1.bf16.msra.mxu0 %v11115
    %13241 = vmatprep.subr.bf16.mxu0 %v11122
    %13242 = vmatpush1.bf16.msra.mxu0 %v11121
    %13243 = vmatprep.subr.bf16.mxu0 %v11128
    %13244 = vmatpush1.bf16.msra.mxu0 %v11127
    %13245 = vmatprep.subr.bf16.mxu0 %v11134
    %13246 = vmatpush1.bf16.msra.mxu0 %v11133
    %13247 = vmatprep.subr.bf16.mxu0 %v11140
    %13248 = vmatpush1.bf16.msra.mxu0 %v11139
    %13249 = vmatprep.subr.bf16.mxu0 %v11146
    %13250 = vmatpush1.bf16.msra.mxu0 %v11145
    %13251 = vmatprep.subr.bf16.mxu0 %v11152
    %13252 = vmatpush1.bf16.msra.mxu0 %v11151
    %13253 = vmatprep.subr.bf16.mxu0 %v11158
    %13254 = vmatpush1.bf16.msra.mxu0 %v11157
    %13255 = vmatprep.subr.bf16.mxu0 %v11164
    %13256 = vmatpush1.bf16.msra.mxu0 %v11163
    %13257 = vmatprep.subr.bf16.mxu0 %v11170
    %13258 = vmatpush1.bf16.msra.mxu0 %v11169
    %13259 = vmatprep.subr.bf16.mxu0 %v11176
    %13260 = vmatpush1.bf16.msra.mxu0 %v11175
    %13261 = vmatprep.subr.bf16.mxu0 %v11182
    %13262 = vmatpush1.bf16.msra.mxu0 %v11181
    %13263 = vmatprep.subr.bf16.mxu0 %v11188
    %13264 = vmatpush1.bf16.msra.mxu0 %v11187
    %13265 = vmatprep.subr.bf16.mxu0 %v11194
    %13266 = vmatpush1.bf16.msra.mxu0 %v11193
    %13267 = vmatprep.mubr.bf16.mxu0 %v7030
    %13268 = vmatmul.mubr.bf16.gmra.mrb[0].mxu0 %v7029
    %v13269 = vpop.f32.mrb[0].mxu0
    %v13270 = vadd.f32 %v13229, %v13269
    %v13271 = vpop.f32.mrb[0].mxu0
    %v13272 = vadd.f32 %v13231, %v13271
    %v13273 = vpop.f32.mrb[0].mxu0
    %v13274 = vpop.f32.mrb[0].mxu0
    %13275 = vdwg.mxu0
    %13276 = vmatprep.subr.bf16.mxu0 %v11200
    %13277 = vmatpush1.bf16.msra.mxu0 %v11199
    %13278 = vmatprep.subr.bf16.mxu0 %v11206
    %13279 = vmatpush1.bf16.msra.mxu0 %v11205
    %13280 = vmatprep.subr.bf16.mxu0 %v11212
    %13281 = vmatpush1.bf16.msra.mxu0 %v11211
    %13282 = vmatprep.subr.bf16.mxu0 %v11218
    %13283 = vmatpush1.bf16.msra.mxu0 %v11217
    %13284 = vmatprep.subr.bf16.mxu0 %v11224
    %13285 = vmatpush1.bf16.msra.mxu0 %v11223
    %13286 = vmatprep.subr.bf16.mxu0 %v11230
    %13287 = vmatpush1.bf16.msra.mxu0 %v11229
    %13288 = vmatprep.subr.bf16.mxu0 %v11236
    %13289 = vmatpush1.bf16.msra.mxu0 %v11235
    %13290 = vmatprep.subr.bf16.mxu0 %v11242
    %13291 = vmatpush1.bf16.msra.mxu0 %v11241
    %13292 = vmatprep.subr.bf16.mxu0 %v11248
    %13293 = vmatpush1.bf16.msra.mxu0 %v11247
    %13294 = vmatprep.subr.bf16.mxu0 %v11254
    %13295 = vmatpush1.bf16.msra.mxu0 %v11253
    %13296 = vmatprep.subr.bf16.mxu0 %v11260
    %13297 = vmatpush1.bf16.msra.mxu0 %v11259
    %13298 = vmatprep.subr.bf16.mxu0 %v11266
    %13299 = vmatpush1.bf16.msra.mxu0 %v11265
    %13300 = vmatprep.subr.bf16.mxu0 %v11272
    %13301 = vmatpush1.bf16.msra.mxu0 %v11271
    %13302 = vmatprep.subr.bf16.mxu0 %v11278
    %13303 = vmatpush1.bf16.msra.mxu0 %v11277
    %13304 = vmatprep.subr.bf16.mxu0 %v11284
    %13305 = vmatpush1.bf16.msra.mxu0 %v11283
    %13306 = vmatprep.subr.bf16.mxu0 %v11290
    %13307 = vmatpush1.bf16.msra.mxu0 %v11289
    %13308 = vmatprep.mubr.bf16.mxu0 %v7032
    %13309 = vmatmul.mubr.bf16.gmra.mrb[0].mxu0 %v7031
    %v13310 = vpop.f32.mrb[0].mxu0
    %v13311 = vadd.f32 %v13270, %v13310
    %v13312 = vpop.f32.mrb[0].mxu0
    %v13313 = vadd.f32 %v13272, %v13312
    %v13314 = vpop.f32.mrb[0].mxu0
    %v13315 = vpop.f32.mrb[0].mxu0
    %13316 = vdwg.mxu0
    %13317 = vmatprep.subr.bf16.mxu0 %v11296
    %13318 = vmatpush1.bf16.msra.mxu0 %v11295
    %13319 = vmatprep.subr.bf16.mxu0 %v11302
    %13320 = vmatpush1.bf16.msra.mxu0 %v11301
    %13321 = vmatprep.subr.bf16.mxu0 %v11308
    %13322 = vmatpush1.bf16.msra.mxu0 %v11307
    %13323 = vmatprep.subr.bf16.mxu0 %v11314
    %13324 = vmatpush1.bf16.msra.mxu0 %v11313
    %13325 = vmatprep.subr.bf16.mxu0 %v11320
    %13326 = vmatpush1.bf16.msra.mxu0 %v11319
    %13327 = vmatprep.subr.bf16.mxu0 %v11326
    %13328 = vmatpush1.bf16.msra.mxu0 %v11325
    %13329 = vmatprep.subr.bf16.mxu0 %v11332
    %13330 = vmatpush1.bf16.msra.mxu0 %v11331
    %13331 = vmatprep.subr.bf16.mxu0 %v11338
    %13332 = vmatpush1.bf16.msra.mxu0 %v11337
    %13333 = vmatprep.subr.bf16.mxu0 %v11344
    %13334 = vmatpush1.bf16.msra.mxu0 %v11343
    %13335 = vmatprep.subr.bf16.mxu0 %v11350
    %13336 = vmatpush1.bf16.msra.mxu0 %v11349
    %13337 = vmatprep.subr.bf16.mxu0 %v11356
    %13338 = vmatpush1.bf16.msra.mxu0 %v11355
    %13339 = vmatprep.subr.bf16.mxu0 %v11362
    %13340 = vmatpush1.bf16.msra.mxu0 %v11361
    %13341 = vmatprep.subr.bf16.mxu0 %v11368
    %13342 = vmatpush1.bf16.msra.mxu0 %v11367
    %13343 = vmatprep.subr.bf16.mxu0 %v11374
    %13344 = vmatpush1.bf16.msra.mxu0 %v11373
    %13345 = vmatprep.subr.bf16.mxu0 %v11380
    %13346 = vmatpush1.bf16.msra.mxu0 %v11379
    %13347 = vmatprep.subr.bf16.mxu0 %v11386
    %13348 = vmatpush1.bf16.msra.mxu0 %v11385
    %13349 = vmatprep.mubr.bf16.mxu0 %v7034
    %13350 = vmatmul.mubr.bf16.gmra.mrb[0].mxu0 %v7033
    %v13351 = vpop.f32.mrb[0].mxu0
    %v13352 = vadd.f32 %v13311, %v13351
    %v13353 = vpop.f32.mrb[0].mxu0
    %v13354 = vadd.f32 %v13313, %v13353
    %v13355 = vpop.f32.mrb[0].mxu0
    %v13356 = vpop.f32.mrb[0].mxu0
    %13357 = vdwg.mxu0
    %v13358 = vmul.f32 %v12614, %v12614
    %v13359 = vmul.f32 %v12616, %v12616
    %v13360 = vmul.f32 %v12983, %v12983
    %v13361 = vmul.f32 %v12985, %v12985
    %v13362 = vmul.f32 %v13352, %v13352
    %v13363 = vmul.f32 %v13354, %v13354
    %v13364 = vpack.c.bf16 %v13358, %v13358
    %v13365 = vpack.c.bf16 %v13359, %v13359
    %v13366 = vpack.c.bf16 %v13360, %v13360
    %v13367 = vpack.c.bf16 %v13361, %v13361
    %v13368 = vpack.c.bf16 %v13362, %v13362
    %v13369 = vpack.c.bf16 %v13363, %v13363
    %v13370 = vld [vmem:[#allocation9] sm:$0xf]
    %v13371 = vld [vmem:[#allocation9 + $0x4] sm:$0xf]
    %v13372 = vld [vmem:[#allocation9 + $0x8] sm:$0xf]
    %v13373 = vld [vmem:[#allocation9 + $0xc] sm:$0xf]
    %v13374 = vld [vmem:[#allocation9 + $0x10] sm:$0xf]
    %v13375 = vld [vmem:[#allocation9 + $0x14] sm:$0xf]
    %v13376 = vld [vmem:[#allocation9 + $0x18] sm:$0xf]
    %v13377 = vld [vmem:[#allocation9 + $0x1c] sm:$0xf]
    %v13378 = vld [vmem:[#allocation9 + $0x20] sm:$0xf]
    %v13379 = vld [vmem:[#allocation9 + $0x24] sm:$0xf]
    %v13380 = vld [vmem:[#allocation9 + $0x28] sm:$0xf]
    %v13381 = vld [vmem:[#allocation9 + $0x2c] sm:$0xf]
    %v13382 = vld [vmem:[#allocation9 + $0x30] sm:$0xf]
    %v13383 = vld [vmem:[#allocation9 + $0x34] sm:$0xf]
    %v13384 = vld [vmem:[#allocation9 + $0x38] sm:$0xf]
    %v13385 = vld [vmem:[#allocation9 + $0x3c] sm:$0xf]
    %v13386 = vld [vmem:[#allocation9 + $0x40] sm:$0xf]
    %v13387 = vld [vmem:[#allocation9 + $0x44] sm:$0xf]
    %v13388 = vld [vmem:[#allocation9 + $0x48] sm:$0xf]
    %v13389 = vld [vmem:[#allocation9 + $0x4c] sm:$0xf]
    %v13390 = vld [vmem:[#allocation9 + $0x50] sm:$0xf]
    %v13391 = vld [vmem:[#allocation9 + $0x54] sm:$0xf]
    %v13392 = vld [vmem:[#allocation9 + $0x58] sm:$0xf]
    %v13393 = vld [vmem:[#allocation9 + $0x5c] sm:$0xf]
    %v13394 = vld [vmem:[#allocation9 + $0x60] sm:$0xf]
    %v13395 = vld [vmem:[#allocation9 + $0x64] sm:$0xf]
    %v13396 = vld [vmem:[#allocation9 + $0x68] sm:$0xf]
    %v13397 = vld [vmem:[#allocation9 + $0x6c] sm:$0xf]
    %v13398 = vld [vmem:[#allocation9 + $0x70] sm:$0xf]
    %v13399 = vld [vmem:[#allocation9 + $0x74] sm:$0xf]
    %v13400 = vld [vmem:[#allocation9 + $0x78] sm:$0xf]
    %v13401 = vld [vmem:[#allocation9 + $0x7c] sm:$0xf]
    %v13402 = vld [vmem:[#allocation9 + $0x80] sm:$0xf]
    %v13403 = vld [vmem:[#allocation9 + $0x84] sm:$0xf]
    %v13404 = vld [vmem:[#allocation9 + $0x88] sm:$0xf]
    %v13405 = vld [vmem:[#allocation9 + $0x8c] sm:$0xf]
    %v13406 = vld [vmem:[#allocation9 + $0x90] sm:$0xf]
    %v13407 = vld [vmem:[#allocation9 + $0x94] sm:$0xf]
    %v13408 = vld [vmem:[#allocation9 + $0x98] sm:$0xf]
    %v13409 = vld [vmem:[#allocation9 + $0x9c] sm:$0xf]
    %v13410 = vld [vmem:[#allocation9 + $0xa0] sm:$0xf]
    %v13411 = vld [vmem:[#allocation9 + $0xa4] sm:$0xf]
    %v13412 = vld [vmem:[#allocation9 + $0xa8] sm:$0xf]
    %v13413 = vld [vmem:[#allocation9 + $0xac] sm:$0xf]
    %v13414 = vld [vmem:[#allocation9 + $0xb0] sm:$0xf]
    %v13415 = vld [vmem:[#allocation9 + $0xb4] sm:$0xf]
    %v13416 = vld [vmem:[#allocation9 + $0xb8] sm:$0xf]
    %v13417 = vld [vmem:[#allocation9 + $0xbc] sm:$0xf]
    %v13418 = vld [vmem:[#allocation9 + $0xc0] sm:$0xf]
    %v13419 = vld [vmem:[#allocation9 + $0xc4] sm:$0xf]
    %v13420 = vld [vmem:[#allocation9 + $0xc8] sm:$0xf]
    %v13421 = vld [vmem:[#allocation9 + $0xcc] sm:$0xf]
    %v13422 = vld [vmem:[#allocation9 + $0xd0] sm:$0xf]
    %v13423 = vld [vmem:[#allocation9 + $0xd4] sm:$0xf]
    %v13424 = vld [vmem:[#allocation9 + $0xd8] sm:$0xf]
    %v13425 = vld [vmem:[#allocation9 + $0xdc] sm:$0xf]
    %v13426 = vld [vmem:[#allocation9 + $0xe0] sm:$0xf]
    %v13427 = vld [vmem:[#allocation9 + $0xe4] sm:$0xf]
    %v13428 = vld [vmem:[#allocation9 + $0xe8] sm:$0xf]
    %v13429 = vld [vmem:[#allocation9 + $0xec] sm:$0xf]
    %v13430 = vld [vmem:[#allocation9 + $0xf0] sm:$0xf]
    %v13431 = vld [vmem:[#allocation9 + $0xf4] sm:$0xf]
    %v13432 = vld [vmem:[#allocation9 + $0xf8] sm:$0xf]
    %v13433 = vld [vmem:[#allocation9 + $0xfc] sm:$0xf]
    %v13434 = vld [vmem:[#allocation9 + $0x100] sm:$0xf]
    %v13435 = vld [vmem:[#allocation9 + $0x104] sm:$0xf]
    %v13436 = vld [vmem:[#allocation9 + $0x108] sm:$0xf]
    %v13437 = vld [vmem:[#allocation9 + $0x10c] sm:$0xf]
    %v13438 = vld [vmem:[#allocation9 + $0x110] sm:$0xf]
    %v13439 = vld [vmem:[#allocation9 + $0x114] sm:$0xf]
    %v13440 = vld [vmem:[#allocation9 + $0x118] sm:$0xf]
    %v13441 = vld [vmem:[#allocation9 + $0x11c] sm:$0xf]
    %v13442 = vld [vmem:[#allocation9 + $0x120] sm:$0xf]
    %v13443 = vld [vmem:[#allocation9 + $0x124] sm:$0xf]
    %v13444 = vld [vmem:[#allocation9 + $0x128] sm:$0xf]
    %v13445 = vld [vmem:[#allocation9 + $0x12c] sm:$0xf]
    %v13446 = vld [vmem:[#allocation9 + $0x130] sm:$0xf]
    %v13447 = vld [vmem:[#allocation9 + $0x134] sm:$0xf]
    %v13448 = vld [vmem:[#allocation9 + $0x138] sm:$0xf]
    %v13449 = vld [vmem:[#allocation9 + $0x13c] sm:$0xf]
    %v13450 = vld [vmem:[#allocation9 + $0x140] sm:$0xf]
    %v13451 = vld [vmem:[#allocation9 + $0x144] sm:$0xf]
    %v13452 = vld [vmem:[#allocation9 + $0x148] sm:$0xf]
    %v13453 = vld [vmem:[#allocation9 + $0x14c] sm:$0xf]
    %v13454 = vld [vmem:[#allocation9 + $0x150] sm:$0xf]
    %v13455 = vld [vmem:[#allocation9 + $0x154] sm:$0xf]
    %v13456 = vld [vmem:[#allocation9 + $0x158] sm:$0xf]
    %v13457 = vld [vmem:[#allocation9 + $0x15c] sm:$0xf]
    %v13458 = vld [vmem:[#allocation9 + $0x160] sm:$0xf]
    %v13459 = vld [vmem:[#allocation9 + $0x164] sm:$0xf]
    %v13460 = vld [vmem:[#allocation9 + $0x168] sm:$0xf]
    %v13461 = vld [vmem:[#allocation9 + $0x16c] sm:$0xf]
    %v13462 = vld [vmem:[#allocation9 + $0x170] sm:$0xf]
    %v13463 = vld [vmem:[#allocation9 + $0x174] sm:$0xf]
    %v13464 = vld [vmem:[#allocation9 + $0x178] sm:$0xf]
    %v13465 = vld [vmem:[#allocation9 + $0x17c] sm:$0xf]
    %v13466 = vld [vmem:[#allocation10] sm:$0x1]
    %v13468 = vlaneseq
    %v13469 = vshrl.u32 %v13468, 7
    %v13470 = vsub.s32 0, %v13469
    %v13471 = vrot.slane %v13466, %v13470
    %v13569 = vunpack.c.l.b16 %v13370
    %v13570 = vunpack.c.l.b16 %v13371
    %v13571 = vunpack.c.l.b16 %v13372
    %v13572 = vunpack.c.l.b16 %v13373
    %v13573 = vunpack.c.l.b16 %v13374
    %v13574 = vunpack.c.l.b16 %v13375
    %v13575 = vunpack.c.l.b16 %v13376
    %v13576 = vunpack.c.l.b16 %v13377
    %v13577 = vunpack.c.l.b16 %v13378
    %v13578 = vunpack.c.l.b16 %v13379
    %v13579 = vunpack.c.l.b16 %v13380
    %v13580 = vunpack.c.l.b16 %v13381
    %v13581 = vunpack.c.l.b16 %v13382
    %v13582 = vunpack.c.l.b16 %v13383
    %v13583 = vunpack.c.l.b16 %v13384
    %v13584 = vunpack.c.l.b16 %v13385
    %v13585 = vunpack.c.l.b16 %v13386
    %v13586 = vunpack.c.l.b16 %v13387
    %v13587 = vunpack.c.l.b16 %v13388
    %v13588 = vunpack.c.l.b16 %v13389
    %v13589 = vunpack.c.l.b16 %v13390
    %v13590 = vunpack.c.l.b16 %v13391
    %v13591 = vunpack.c.l.b16 %v13392
    %v13592 = vunpack.c.l.b16 %v13393
    %v13593 = vunpack.c.l.b16 %v13394
    %v13594 = vunpack.c.l.b16 %v13395
    %v13595 = vunpack.c.l.b16 %v13396
    %v13596 = vunpack.c.l.b16 %v13397
    %v13597 = vunpack.c.l.b16 %v13398
    %v13598 = vunpack.c.l.b16 %v13399
    %v13599 = vunpack.c.l.b16 %v13400
    %v13600 = vunpack.c.l.b16 %v13401
    %v13601 = vunpack.c.l.b16 %v13402
    %v13602 = vunpack.c.l.b16 %v13403
    %v13603 = vunpack.c.l.b16 %v13404
    %v13604 = vunpack.c.l.b16 %v13405
    %v13605 = vunpack.c.l.b16 %v13406
    %v13606 = vunpack.c.l.b16 %v13407
    %v13607 = vunpack.c.l.b16 %v13408
    %v13608 = vunpack.c.l.b16 %v13409
    %v13609 = vunpack.c.l.b16 %v13410
    %v13610 = vunpack.c.l.b16 %v13411
    %v13611 = vunpack.c.l.b16 %v13412
    %v13612 = vunpack.c.l.b16 %v13413
    %v13613 = vunpack.c.l.b16 %v13414
    %v13614 = vunpack.c.l.b16 %v13415
    %v13615 = vunpack.c.l.b16 %v13416
    %v13616 = vunpack.c.l.b16 %v13417
    %v13617 = vunpack.c.l.b16 %v13418
    %v13618 = vunpack.c.l.b16 %v13419
    %v13619 = vunpack.c.l.b16 %v13420
    %v13620 = vunpack.c.l.b16 %v13421
    %v13621 = vunpack.c.l.b16 %v13422
    %v13622 = vunpack.c.l.b16 %v13423
    %v13623 = vunpack.c.l.b16 %v13424
    %v13624 = vunpack.c.l.b16 %v13425
    %v13625 = vunpack.c.l.b16 %v13426
    %v13626 = vunpack.c.l.b16 %v13427
    %v13627 = vunpack.c.l.b16 %v13428
    %v13628 = vunpack.c.l.b16 %v13429
    %v13629 = vunpack.c.l.b16 %v13430
    %v13630 = vunpack.c.l.b16 %v13431
    %v13631 = vunpack.c.l.b16 %v13432
    %v13632 = vunpack.c.l.b16 %v13433
    %v13633 = vunpack.c.l.b16 %v13434
    %v13634 = vunpack.c.l.b16 %v13435
    %v13635 = vunpack.c.l.b16 %v13436
    %v13636 = vunpack.c.l.b16 %v13437
    %v13637 = vunpack.c.l.b16 %v13438
    %v13638 = vunpack.c.l.b16 %v13439
    %v13639 = vunpack.c.l.b16 %v13440
    %v13640 = vunpack.c.l.b16 %v13441
    %v13641 = vunpack.c.l.b16 %v13442
    %v13642 = vunpack.c.l.b16 %v13443
    %v13643 = vunpack.c.l.b16 %v13444
    %v13644 = vunpack.c.l.b16 %v13445
    %v13645 = vunpack.c.l.b16 %v13446
    %v13646 = vunpack.c.l.b16 %v13447
    %v13647 = vunpack.c.l.b16 %v13448
    %v13648 = vunpack.c.l.b16 %v13449
    %v13649 = vunpack.c.l.b16 %v13450
    %v13650 = vunpack.c.l.b16 %v13451
    %v13651 = vunpack.c.l.b16 %v13452
    %v13652 = vunpack.c.l.b16 %v13453
    %v13653 = vunpack.c.l.b16 %v13454
    %v13654 = vunpack.c.l.b16 %v13455
    %v13655 = vunpack.c.l.b16 %v13456
    %v13656 = vunpack.c.l.b16 %v13457
    %v13657 = vunpack.c.l.b16 %v13458
    %v13658 = vunpack.c.l.b16 %v13459
    %v13659 = vunpack.c.l.b16 %v13460
    %v13660 = vunpack.c.l.b16 %v13461
    %v13661 = vunpack.c.l.b16 %v13462
    %v13662 = vunpack.c.l.b16 %v13463
    %v13663 = vunpack.c.l.b16 %v13464
    %v13664 = vunpack.c.l.b16 %v13465
    %v13665 = vpack.c.b16 %v13570, %v13569
    %v13666 = vpack.c.b16 %v13572, %v13571
    %v13667 = vpack.c.b16 %v13574, %v13573
    %v13668 = vpack.c.b16 %v13576, %v13575
    %v13669 = vpack.c.b16 %v13578, %v13577
    %v13670 = vpack.c.b16 %v13580, %v13579
    %v13671 = vpack.c.b16 %v13582, %v13581
    %v13672 = vpack.c.b16 %v13584, %v13583
    %v13673 = vpack.c.b16 %v13586, %v13585
    %v13674 = vpack.c.b16 %v13588, %v13587
    %v13675 = vpack.c.b16 %v13590, %v13589
    %v13676 = vpack.c.b16 %v13592, %v13591
    %v13677 = vpack.c.b16 %v13594, %v13593
    %v13678 = vpack.c.b16 %v13596, %v13595
    %v13679 = vpack.c.b16 %v13598, %v13597
    %v13680 = vpack.c.b16 %v13600, %v13599
    %v13681 = vpack.c.b16 %v13602, %v13601
    %v13682 = vpack.c.b16 %v13604, %v13603
    %v13683 = vpack.c.b16 %v13606, %v13605
    %v13684 = vpack.c.b16 %v13608, %v13607
    %v13685 = vpack.c.b16 %v13610, %v13609
    %v13686 = vpack.c.b16 %v13612, %v13611
    %v13687 = vpack.c.b16 %v13614, %v13613
    %v13688 = vpack.c.b16 %v13616, %v13615
    %v13689 = vpack.c.b16 %v13618, %v13617
    %v13690 = vpack.c.b16 %v13620, %v13619
    %v13691 = vpack.c.b16 %v13622, %v13621
    %v13692 = vpack.c.b16 %v13624, %v13623
    %v13693 = vpack.c.b16 %v13626, %v13625
    %v13694 = vpack.c.b16 %v13628, %v13627
    %v13695 = vpack.c.b16 %v13630, %v13629
    %v13696 = vpack.c.b16 %v13632, %v13631
    %v13697 = vpack.c.b16 %v13634, %v13633
    %v13698 = vpack.c.b16 %v13636, %v13635
    %v13699 = vpack.c.b16 %v13638, %v13637
    %v13700 = vpack.c.b16 %v13640, %v13639
    %v13701 = vpack.c.b16 %v13642, %v13641
    %v13702 = vpack.c.b16 %v13644, %v13643
    %v13703 = vpack.c.b16 %v13646, %v13645
    %v13704 = vpack.c.b16 %v13648, %v13647
    %v13705 = vpack.c.b16 %v13650, %v13649
    %v13706 = vpack.c.b16 %v13652, %v13651
    %v13707 = vpack.c.b16 %v13654, %v13653
    %v13708 = vpack.c.b16 %v13656, %v13655
    %v13709 = vpack.c.b16 %v13658, %v13657
    %v13710 = vpack.c.b16 %v13660, %v13659
    %v13711 = vpack.c.b16 %v13662, %v13661
    %v13712 = vpack.c.b16 %v13664, %v13663
    %13761 = vmatprep.subr.bf16.mxu0 0
    %13762 = vmatpush1.bf16.msra.mxu0 %v13665
    %13763 = vmatprep.subr.bf16.mxu0 0
    %13764 = vmatpush1.bf16.msra.mxu0 %v13666
    %13765 = vmatprep.subr.bf16.mxu0 0
    %13766 = vmatpush1.bf16.msra.mxu0 %v13667
    %13767 = vmatprep.subr.bf16.mxu0 0
    %13768 = vmatpush1.bf16.msra.mxu0 %v13668
    %13769 = vmatprep.subr.bf16.mxu0 0
    %13770 = vmatpush1.bf16.msra.mxu0 %v13669
    %13771 = vmatprep.subr.bf16.mxu0 0
    %13772 = vmatpush1.bf16.msra.mxu0 %v13670
    %13773 = vmatprep.subr.bf16.mxu0 0
    %13774 = vmatpush1.bf16.msra.mxu0 %v13671
    %13775 = vmatprep.subr.bf16.mxu0 0
    %13776 = vmatpush1.bf16.msra.mxu0 %v13672
    %13777 = vmatprep.subr.bf16.mxu0 0
    %13778 = vmatpush1.bf16.msra.mxu0 %v13673
    %13779 = vmatprep.subr.bf16.mxu0 0
    %13780 = vmatpush1.bf16.msra.mxu0 %v13674
    %13781 = vmatprep.subr.bf16.mxu0 0
    %13782 = vmatpush1.bf16.msra.mxu0 %v13675
    %13783 = vmatprep.subr.bf16.mxu0 0
    %13784 = vmatpush1.bf16.msra.mxu0 %v13676
    %13785 = vmatprep.subr.bf16.mxu0 0
    %13786 = vmatpush1.bf16.msra.mxu0 %v13677
    %13787 = vmatprep.subr.bf16.mxu0 0
    %13788 = vmatpush1.bf16.msra.mxu0 %v13678
    %13789 = vmatprep.subr.bf16.mxu0 0
    %13790 = vmatpush1.bf16.msra.mxu0 %v13679
    %13791 = vmatprep.subr.bf16.mxu0 0
    %13792 = vmatpush1.bf16.msra.mxu0 %v13680
    %13793 = vmatprep.mubr.bf16.mxu0 %v13365
    %13794 = vmatmul.mubr.bf16.gmra.mrb[0].mxu0 %v13364
    %v13795 = vpop.f32.mrb[0].mxu0
    %v13796 = vadd.f32 %v13471, %v13795
    %v13797 = vpop.f32.mrb[0].mxu0
    %v13798 = vpop.f32.mrb[0].mxu0
    %v13799 = vpop.f32.mrb[0].mxu0
    %13800 = vdwg.mxu0
    %13801 = vmatprep.subr.bf16.mxu0 0
    %13802 = vmatpush1.bf16.msra.mxu0 %v13681
    %13803 = vmatprep.subr.bf16.mxu0 0
    %13804 = vmatpush1.bf16.msra.mxu0 %v13682
    %13805 = vmatprep.subr.bf16.mxu0 0
    %13806 = vmatpush1.bf16.msra.mxu0 %v13683
    %13807 = vmatprep.subr.bf16.mxu0 0
    %13808 = vmatpush1.bf16.msra.mxu0 %v13684
    %13809 = vmatprep.subr.bf16.mxu0 0
    %13810 = vmatpush1.bf16.msra.mxu0 %v13685
    %13811 = vmatprep.subr.bf16.mxu0 0
    %13812 = vmatpush1.bf16.msra.mxu0 %v13686
    %13813 = vmatprep.subr.bf16.mxu0 0
    %13814 = vmatpush1.bf16.msra.mxu0 %v13687
    %13815 = vmatprep.subr.bf16.mxu0 0
    %13816 = vmatpush1.bf16.msra.mxu0 %v13688
    %13817 = vmatprep.subr.bf16.mxu0 0
    %13818 = vmatpush1.bf16.msra.mxu0 %v13689
    %13819 = vmatprep.subr.bf16.mxu0 0
    %13820 = vmatpush1.bf16.msra.mxu0 %v13690
    %13821 = vmatprep.subr.bf16.mxu0 0
    %13822 = vmatpush1.bf16.msra.mxu0 %v13691
    %13823 = vmatprep.subr.bf16.mxu0 0
    %13824 = vmatpush1.bf16.msra.mxu0 %v13692
    %13825 = vmatprep.subr.bf16.mxu0 0
    %13826 = vmatpush1.bf16.msra.mxu0 %v13693
    %13827 = vmatprep.subr.bf16.mxu0 0
    %13828 = vmatpush1.bf16.msra.mxu0 %v13694
    %13829 = vmatprep.subr.bf16.mxu0 0
    %13830 = vmatpush1.bf16.msra.mxu0 %v13695
    %13831 = vmatprep.subr.bf16.mxu0 0
    %13832 = vmatpush1.bf16.msra.mxu0 %v13696
    %13833 = vmatprep.mubr.bf16.mxu0 %v13367
    %13834 = vmatmul.mubr.bf16.gmra.mrb[0].mxu0 %v13366
    %v13835 = vpop.f32.mrb[0].mxu0
    %v13836 = vadd.f32 %v13796, %v13835
    %v13837 = vpop.f32.mrb[0].mxu0
    %v13838 = vpop.f32.mrb[0].mxu0
    %v13839 = vpop.f32.mrb[0].mxu0
    %13840 = vdwg.mxu0
    %13841 = vmatprep.subr.bf16.mxu0 0
    %13842 = vmatpush1.bf16.msra.mxu0 %v13697
    %13843 = vmatprep.subr.bf16.mxu0 0
    %13844 = vmatpush1.bf16.msra.mxu0 %v13698
    %13845 = vmatprep.subr.bf16.mxu0 0
    %13846 = vmatpush1.bf16.msra.mxu0 %v13699
    %13847 = vmatprep.subr.bf16.mxu0 0
    %13848 = vmatpush1.bf16.msra.mxu0 %v13700
    %13849 = vmatprep.subr.bf16.mxu0 0
    %13850 = vmatpush1.bf16.msra.mxu0 %v13701
    %13851 = vmatprep.subr.bf16.mxu0 0
    %13852 = vmatpush1.bf16.msra.mxu0 %v13702
    %13853 = vmatprep.subr.bf16.mxu0 0
    %13854 = vmatpush1.bf16.msra.mxu0 %v13703
    %13855 = vmatprep.subr.bf16.mxu0 0
    %13856 = vmatpush1.bf16.msra.mxu0 %v13704
    %13857 = vmatprep.subr.bf16.mxu0 0
    %13858 = vmatpush1.bf16.msra.mxu0 %v13705
    %13859 = vmatprep.subr.bf16.mxu0 0
    %13860 = vmatpush1.bf16.msra.mxu0 %v13706
    %13861 = vmatprep.subr.bf16.mxu0 0
    %13862 = vmatpush1.bf16.msra.mxu0 %v13707
    %13863 = vmatprep.subr.bf16.mxu0 0
    %13864 = vmatpush1.bf16.msra.mxu0 %v13708
    %13865 = vmatprep.subr.bf16.mxu0 0
    %13866 = vmatpush1.bf16.msra.mxu0 %v13709
    %13867 = vmatprep.subr.bf16.mxu0 0
    %13868 = vmatpush1.bf16.msra.mxu0 %v13710
    %13869 = vmatprep.subr.bf16.mxu0 0
    %13870 = vmatpush1.bf16.msra.mxu0 %v13711
    %13871 = vmatprep.subr.bf16.mxu0 0
    %13872 = vmatpush1.bf16.msra.mxu0 %v13712
    %13873 = vmatprep.mubr.bf16.mxu0 %v13369
    %13874 = vmatmul.mubr.bf16.gmra.mrb[0].mxu0 %v13368
    %v13875 = vpop.f32.mrb[0].mxu0
    %v13876 = vadd.f32 %v13836, %v13875
    %v13877 = vpop.f32.mrb[0].mxu0
    %v13878 = vpop.f32.mrb[0].mxu0
    %v13879 = vpop.f32.mrb[0].mxu0
    %13880 = vdwg.mxu0
    %13881 = vst [vmem:[%s7] sm:$0xff] %v13876
    // Predicated region
    $region54: #{m2_forward.1} parent=1 // pred_check
      _
    $region55: #{m2_forward.1} parent=1 // pred_check_branch
      %13883 = sbr.rel (0) target = $region57
    $region56: #{m2_forward.1} parent=1 // pred_region
      _
    $region57: #{m2_forward.1} parent=1 // pred_fallthru
      _
    // Predicated region
    $region58: #{m2_forward.1} parent=1 // pred_check
      _
    $region59: #{m2_forward.1} parent=1 // pred_check_branch
      %13885 = sbr.rel (0) target = $region61
    $region60: #{m2_forward.1} parent=1 // pred_region
      _
    $region61: #{m2_forward.1} parent=1 // pred_fallthru
      _
    %13886 = vsyncpa [#allocation3], 1
    %13887 = vsyncpa [#allocation5], 1
    %13888 = vsyncpa [#allocation8], 1
    %13889 = vsyncpa [#allocation11], 1

</llo_original>
